<compile_context>
chip_gen: v7x
topology: tpu7x:2x2x1
jax: 0.10.0
libtpu: 0.0.40
codegen_flags: <defaults>
</compile_context>

<pallas_src>
import functools

import jax
import jax.numpy as jnp
from jax.experimental import pallas as pl
from jax.experimental.pallas import tpu as pltpu

EPS = 1e-5
SLOPE = 0.2                      # LeakyReLU negative_slope
_VMEM_LIMIT = 32 * 1024 * 1024   # safe on v5e/v6e/v7x (raise to ~48 MiB on v7x only)


# ------------------------------ helpers -------------------------------------
def _lrelu(h):
    return jnp.where(h >= 0, h, SLOPE * h)


def _pick_tile(total, target, mult):
    """Largest tile <= target that divides `total` and is a multiple of `mult`
    (falls back to the full extent, which is always a legal block shape)."""
    t = min(target, total)
    t = (t // mult) * mult
    while t >= mult:
        if total % t == 0:
            return t
        t -= mult
    return total


def _bn_affine(gamma, beta, mean, ex2):
    """Training-mode BatchNorm folded into a per-channel scale/shift."""
    var = jnp.maximum(ex2 - mean * mean, 0.0)
    scale = gamma * jax.lax.rsqrt(var + EPS)
    shift = beta - mean * scale
    return scale, shift


def _bn_affine_from_gram(gamma, beta, w, col_sum, gram, rows):
    """Batch stats of h = X @ w without materializing h:
       mean(h) = mean(X) @ w ;  E[h^2] = diag(w^T (X^T X / R) w)."""
    mean = (col_sum / rows) @ w
    ex2 = jnp.sum(w * ((gram / rows) @ w), axis=0, keepdims=True)
    return _bn_affine(gamma, beta, mean, ex2)


# ------------------------------ kernels -------------------------------------
def _knn_kernel(xr_ref, xc_ref, idx_ref, bestv_ref, besti_ref, *, k):
    """Fused pairwise distance + streaming top-k.  Column tiles are the inner
    grid-reduction axis; a resident (tr, k) best-value/index accumulator lives
    in VMEM scratch.  All compare values are f32 (review correctness note)."""
    j = pl.program_id(2)
    nj = pl.num_programs(2)
    tc = xc_ref.shape[-1]

    xr = xr_ref[0]                                    # (tr, 3)  f32
    xc = xc_ref[0]                                    # (3, tc)  f32
    a0, a1, a2 = xr[:, 0:1], xr[:, 1:2], xr[:, 2:3]   # (tr, 1)
    b0, b1, b2 = xc[0:1, :], xc[1:2, :], xc[2:3, :]   # (1, tc)
    d = (2.0 * (a0 * b0 + a1 * b1 + a2 * b2)
         - (a0 * a0 + a1 * a1 + a2 * a2)
         - (b0 * b0 + b1 * b1 + b2 * b2))             # (tr, tc) = -||xi-xj||^2
    cid = (j * tc + jax.lax.broadcasted_iota(jnp.int32, d.shape, 1)
           ).astype(jnp.float32)                      # global column index (f32, exact)

    @pl.when(j == 0)
    def _():
        bestv_ref[...] = jnp.full(bestv_ref.shape, -jnp.inf, bestv_ref.dtype)
        besti_ref[...] = jnp.zeros(besti_ref.shape, besti_ref.dtype)

    cand_v = jnp.concatenate([bestv_ref[...], d], axis=-1)     # (tr, k+tc)
    cand_i = jnp.concatenate([besti_ref[...], cid], axis=-1)
    m_cols = cand_v.shape[-1]
    pos = jax.lax.broadcasted_iota(jnp.int32, cand_v.shape, 1).astype(jnp.float32)
    slot = jax.lax.broadcasted_iota(jnp.int32, bestv_ref.shape, 1)

    new_v = jnp.zeros(bestv_ref.shape, bestv_ref.dtype)
    new_i = jnp.zeros(besti_ref.shape, besti_ref.dtype)
    for s in range(k):                                # unrolled running top-k merge
        m = jnp.max(cand_v, axis=-1, keepdims=True)              # (tr, 1)
        first = jnp.min(jnp.where(cand_v == m, pos, float(m_cols)),
                        axis=-1, keepdims=True)
        chosen = pos == first                                    # exactly one per row
        sel = jnp.max(jnp.where(chosen, cand_i, -1.0), axis=-1, keepdims=True)
        new_v = jnp.where(slot == s, m, new_v)
        new_i = jnp.where(slot == s, sel, new_i)
        cand_v = jnp.where(chosen, -jnp.inf, cand_v)
    bestv_ref[...] = new_v
    besti_ref[...] = new_i

    @pl.when(j == nj - 1)
    def _():
        idx_ref[0] = besti_ref[...].astype(jnp.int32)


def _a1_stats_kernel(x_ref, w1_ref, sc1_ref, sh1_ref, s_ref, g_ref):
    """Per-tile colsum(a1) and a1^T a1 (64x64) — conv2 BN stats are derived
    from these via linearity (no conv2 matmul recompute, no w2 DMA)."""
    h1 = jnp.dot(x_ref[...], w1_ref[...], preferred_element_type=jnp.float32)
    a1 = _lrelu(h1 * sc1_ref[...] + sh1_ref[...]).astype(jnp.bfloat16)
    s_ref[0] = jnp.sum(a1.astype(jnp.float32), axis=0, keepdims=True)
    g_ref[0] = jax.lax.dot_general(a1, a1, (((0,), (0,)), ((), ())),
                                   preferred_element_type=jnp.float32)


def _edge_main_kernel(x_ref, w1_ref, sc1_ref, sh1_ref, w2_ref, sc2_ref, sh2_ref,
                      t_ref, tsum_ref, tgram_ref, *, k):
    """conv1(6->64)+BN+LReLU, conv2(64->128)+BN+LReLU and max over k, with the
    k axis folded into the block (in-kernel fori_loop running max).  Emits the
    bf16 max feature plus per-tile colsum / 128x128 Gram partials (conv3 BN
    stats), so the single grid axis can be 'parallel'."""
    def edge_step(kk):
        h1 = jnp.dot(x_ref[kk], w1_ref[...], preferred_element_type=jnp.float32)
        a1 = _lrelu(h1 * sc1_ref[...] + sh1_ref[...]).astype(jnp.bfloat16)
        h2 = jnp.dot(a1, w2_ref[...], preferred_element_type=jnp.float32)
        return _lrelu(h2 * sc2_ref[...] + sh2_ref[...])

    m = jax.lax.fori_loop(1, k, lambda kk, acc: jnp.maximum(acc, edge_step(kk)),
                          edge_step(0))
    tb = m.astype(t_ref.dtype)                        # bf16, matches conv3 consumer
    t_ref[...] = tb
    tsum_ref[0] = jnp.sum(tb.astype(jnp.float32), axis=0, keepdims=True)
    tgram_ref[0] = jax.lax.dot_general(                # bf16 operands, f32 accumulate
        tb, tb, (((0,), (0,)), ((), ())), preferred_element_type=jnp.float32)


def _conv3_kernel(t_ref, w3_ref, sc3_ref, sh3_ref, o_ref):
    # conv3 (128->1024) + BN1d + LReLU for one row tile; max over the point axis
    # is a per-batch running max kept in the resident output block.
    i = pl.program_id(1)
    h = jnp.dot(t_ref[0], w3_ref[...], preferred_element_type=jnp.float32)
    a = _lrelu(h * sc3_ref[...] + sh3_ref[...])
    m = jnp.max(a, axis=0, keepdims=True)             # (1, 1024)

    @pl.when(i == 0)
    def _():
        o_ref[0] = m

    @pl.when(i > 0)
    def _():
        o_ref[0] = jnp.maximum(o_ref[0], m)


def _head_kernel(f_ref, w4_ref, g4_ref, b4_ref, w5_ref, g5_ref, b5_ref,
                 wt_ref, bt_ref, o_ref):
    # linear(1024->512)+BN+LReLU, linear(512->256)+BN+LReLU, transform(256->9).
    # Only B rows -> single small block; BN batch stats are over the B rows.
    def bn(h, gamma, beta):
        mean = jnp.mean(h, axis=0, keepdims=True)
        var = jnp.maximum(jnp.mean(h * h, axis=0, keepdims=True) - mean * mean, 0.0)
        return (h - mean) * jax.lax.rsqrt(var + EPS) * gamma + beta

    h = jnp.dot(f_ref[...].astype(jnp.bfloat16), w4_ref[...],
                preferred_element_type=jnp.float32)
    h = _lrelu(bn(h, g4_ref[...], b4_ref[...]))
    h = jnp.dot(h.astype(jnp.bfloat16), w5_ref[...],
                preferred_element_type=jnp.float32)
    h = _lrelu(bn(h, g5_ref[...], b5_ref[...]))
    o_ref[...] = jnp.dot(h, wt_ref[...],
                         preferred_element_type=jnp.float32) + bt_ref[...]


def _bmm_kernel(x_ref, t_ref, o_ref):
    # y[b, c, n] = sum_d t[b, d, c] * x[b, d, n]  ==  (x^T @ t)^T, written
    # directly in the lane-dense (B, 3, N) output layout (N on lanes).
    x3 = x_ref[...]                                   # (1, 3, N)
    t3 = t_ref[...]                                   # (1, 3, 3)
    o_ref[...] = (t3[:, 0, :, None] * x3[:, 0, None, :]
                  + t3[:, 1, :, None] * x3[:, 1, None, :]
                  + t3[:, 2, :, None] * x3[:, 2, None, :])


# ------------------------------ forward -------------------------------------
def init_params(key):
    ks = jax.random.split(key, 5)

    def w(k_, shape):
        return 0.1 * jax.random.normal(k_, shape, jnp.float32)

    return {
        "w1": w(ks[0], (6, 64)),
        "g1": jnp.ones((1, 64), jnp.float32), "b1": jnp.zeros((1, 64), jnp.float32),
        "w2": w(ks[1], (64, 128)),
        "g2": jnp.ones((1, 128), jnp.float32), "b2": jnp.zeros((1, 128), jnp.float32),
        "w3": w(ks[2], (128, 1024)),
        "g3": jnp.ones((1, 1024), jnp.float32), "b3": jnp.zeros((1, 1024), jnp.float32),
        "w4": w(ks[3], (1024, 512)),
        "g4": jnp.ones((1, 512), jnp.float32), "b4": jnp.zeros((1, 512), jnp.float32),
        "w5": w(ks[4], (512, 256)),
        "g5": jnp.ones((1, 256), jnp.float32), "b5": jnp.zeros((1, 256), jnp.float32),
        # transform layer: init.constant_(weight, 0), bias = flattened identity
        "wt": jnp.zeros((256, 9), jnp.float32),
        "bt": jnp.eye(3, dtype=jnp.float32).reshape(1, 9),
    }


def position_embedding_forward(x, params, *, k,
                               knn_row_tile=256, knn_col_tile=256,
                               stats_tile=2048, row_tile=2048, n_tile=1024):
    """x: (B, 3, N) float32 (PyTorch NCW layout). Returns (B, 3, N) float32."""
    B, C, N = x.shape
    assert C == 3 and N >= k
    bf16 = jnp.bfloat16
    xt = jnp.transpose(x, (0, 2, 1))                  # (B, N, 3)

    # ---- fused pairwise-distance + streaming top-k (no (B,N,N) HBM matrix) --
    tr = _pick_tile(N, knn_row_tile, 8)
    tc = _pick_tile(N, knn_col_tile, 128)             # 128-mult or full extent
    # guard the in-kernel (tr, tc) f32 working set (v7x only has 64 MiB VMEM)
    assert tr * tc * 4 <= 8 * (1 << 20), (
        "kNN tile working set too large; pick smaller knn_row_tile/knn_col_tile "
        "or an N with friendlier factors")
    idx = pl.pallas_call(
        functools.partial(_knn_kernel, k=k),
        out_shape=jax.ShapeDtypeStruct((B, N, k), jnp.int32),
        grid=(B, N // tr, N // tc),
        in_specs=[pl.BlockSpec((1, tr, 3), lambda b, i, j: (b, i, 0)),
                  pl.BlockSpec((1, 3, tc), lambda b, i, j: (b, 0, j))],
        out_specs=pl.BlockSpec((1, tr, k), lambda b, i, j: (b, i, 0)),
        scratch_shapes=[pltpu.VMEM((tr, k), jnp.float32),   # best values (f32)
                        pltpu.VMEM((tr, k), jnp.float32)],  # best indices (f32, exact)
        compiler_params=pltpu.CompilerParams(
            dimension_semantics=("parallel", "parallel", "arbitrary"),
            vmem_limit_bytes=_VMEM_LIMIT),
    )(xt, x)                                          # (B, N, k) int32

    # ---- edge features assembled directly in neighbour-major (k, B*N, 8) ----
    # TODO(synk): the neighbour row-gather stays in XLA; a manual in-kernel DMA
    # gather would remove this remaining HBM pass.
    idx_k = jnp.transpose(idx, (2, 0, 1))             # (k, B, N), tiny int32
    nbrs = jax.vmap(lambda pts, ind: pts[ind],
                    in_axes=(0, 1), out_axes=1)(xt, idx_k)        # (k, B, N, 3)
    center = jnp.broadcast_to(xt[None], (k, B, N, 3))
    x0k = jnp.concatenate([nbrs - center, center,
                           jnp.zeros((k, B, N, 2), x.dtype)], axis=-1)
    x0k = x0k.reshape(k, B * N, 8).astype(bf16)       # channel-padded 6 -> 8
    x0f = x0k.reshape(k * B * N, 8)
    r1 = k * B * N
    pn = B * N

    w1 = jnp.concatenate([params["w1"],
                          jnp.zeros((2, 64), jnp.float32)], axis=0).astype(bf16)
    w2 = params["w2"].astype(bf16)
    w3 = params["w3"].astype(bf16)

    # ---- conv1 BN stats via linearity on the tiny 8x8 input Gram ------------
    col_sum = jnp.sum(x0f.astype(jnp.float32), axis=0, keepdims=True)
    gram_x = jax.lax.dot_general(x0f, x0f, (((0,), (0,)), ((), ())),
                                 preferred_element_type=jnp.float32)
    sc1, sh1 = _bn_affine_from_gram(params["g1"], params["b1"],
                                    w1.astype(jnp.float32), col_sum, gram_x, r1)

    # ---- conv2 BN stats from colsum(a1) + a1^T a1 (no h2 recompute) ----------
    t_r = _pick_tile(r1, stats_tile, 16)
    n_s = r1 // t_r
    s_parts, g_parts = pl.pallas_call(
        _a1_stats_kernel,
        out_shape=(jax.ShapeDtypeStruct((n_s, 1, 64), jnp.float32),
                   jax.ShapeDtypeStruct((n_s, 64, 64), jnp.float32)),
        grid=(n_s,),
        in_specs=[pl.BlockSpec((t_r, 8), lambda i: (i, 0)),
                  pl.BlockSpec((8, 64), lambda i: (0, 0)),
                  pl.BlockSpec((1, 64), lambda i: (0, 0)),
                  pl.BlockSpec((1, 64), lambda i: (0, 0))],
        out_specs=(pl.BlockSpec((1, 1, 64), lambda i: (i, 0, 0)),
                   pl.BlockSpec((1, 64, 64), lambda i: (i, 0, 0))),
        compiler_params=pltpu.CompilerParams(
            dimension_semantics=("parallel",),        # per-tile partials -> parallel
            vmem_limit_bytes=_VMEM_LIMIT),
    )(x0f, w1, sc1, sh1)
    sc2, sh2 = _bn_affine_from_gram(params["g2"], params["b2"], params["w2"],
                                    jnp.sum(s_parts, axis=0),
                                    jnp.sum(g_parts, axis=0), r1)

    # ---- conv1 + conv2 + max over k (k folded into the block) ----------------
    t_pn = _pick_tile(pn, row_tile, 16)
    n_t = pn // t_pn
    t_feat, tsum_p, tgram_p = pl.pallas_call(
        functools.partial(_edge_main_kernel, k=k),
        out_shape=(jax.ShapeDtypeStruct((pn, 128), bf16),
                   jax.ShapeDtypeStruct((n_t, 1, 128), jnp.float32),
                   jax.ShapeDtypeStruct((n_t, 128, 128), jnp.float32)),
        grid=(n_t,),
        in_specs=[pl.BlockSpec((k, t_pn, 8), lambda i: (0, i, 0)),
                  pl.BlockSpec((8, 64), lambda i: (0, 0)),
                  pl.BlockSpec((1, 64), lambda i: (0, 0)),
                  pl.BlockSpec((1, 64), lambda i: (0, 0)),
                  pl.BlockSpec((64, 128), lambda i: (0, 0)),
                  pl.BlockSpec((1, 128), lambda i: (0, 0)),
                  pl.BlockSpec((1, 128), lambda i: (0, 0))],
        out_specs=(pl.BlockSpec((t_pn, 128), lambda i: (i, 0)),
                   pl.BlockSpec((1, 1, 128), lambda i: (i, 0, 0)),
                   pl.BlockSpec((1, 128, 128), lambda i: (i, 0, 0))),
        compiler_params=pltpu.CompilerParams(
            dimension_semantics=("parallel",),        # partial stats -> parallel (v7x)
            vmem_limit_bytes=_VMEM_LIMIT),
    )(x0k, w1, sc1, sh1, w2, sc2, sh2)

    # ---- conv3 BN stats via linearity on the (reduced) 128x128 Gram ----------
    sc3, sh3 = _bn_affine_from_gram(params["g3"], params["b3"],
                                    w3.astype(jnp.float32),
                                    jnp.sum(tsum_p, axis=0),
                                    jnp.sum(tgram_p, axis=0), pn)

    # ---- conv3 + max over the N points (per-batch running max) --------------
    t_b = t_feat.reshape(B, N, 128)
    t_n = _pick_tile(N, n_tile, 16)
    feat = pl.pallas_call(
        _conv3_kernel,
        out_shape=jax.ShapeDtypeStruct((B, 1, 1024), jnp.float32),
        grid=(B, N // t_n),
        in_specs=[pl.BlockSpec((1, t_n, 128), lambda b, i: (b, i, 0)),
                  pl.BlockSpec((128, 1024), lambda b, i: (0, 0)),
                  pl.BlockSpec((1, 1024), lambda b, i: (0, 0)),
                  pl.BlockSpec((1, 1024), lambda b, i: (0, 0))],
        out_specs=pl.BlockSpec((1, 1, 1024), lambda b, i: (b, 0, 0)),
        compiler_params=pltpu.CompilerParams(
            dimension_semantics=("parallel", "arbitrary"),
            vmem_limit_bytes=_VMEM_LIMIT),
    )(t_b, w3, sc3, sh3).reshape(B, 1024)

    # ---- linear head + transform (B rows only: single small block) ----------
    t9 = pl.pallas_call(
        _head_kernel,
        out_shape=jax.ShapeDtypeStruct((B, 9), jnp.float32),
        in_specs=[pl.BlockSpec(memory_space=pltpu.MemorySpace.VMEM)] * 9,
        out_specs=pl.BlockSpec(memory_space=pltpu.MemorySpace.VMEM),
    )(feat, params["w4"].astype(bf16), params["g4"], params["b4"],
      params["w5"].astype(bf16), params["g5"], params["b5"],
      params["wt"], params["bt"])
    tmat = t9.reshape(B, 3, 3)

    # ---- x^T @ t, emitted directly in the lane-dense (B, 3, N) layout -------
    y = pl.pallas_call(
        _bmm_kernel,
        out_shape=jax.ShapeDtypeStruct((B, 3, N), jnp.float32),
        grid=(B,),
        in_specs=[pl.BlockSpec((1, 3, N), lambda b: (b, 0, 0)),
                  pl.BlockSpec((1, 3, 3), lambda b: (b, 0, 0))],
        out_specs=pl.BlockSpec((1, 3, N), lambda b: (b, 0, 0)),
        compiler_params=pltpu.CompilerParams(
            dimension_semantics=("parallel",),
            vmem_limit_bytes=_VMEM_LIMIT),
    )(x, tmat)
    return y


if __name__ == "__main__":
    key = jax.random.PRNGKey(0)
    kx, kp = jax.random.split(key)
    B, N, K = 2, 32, 8
    x = jax.random.normal(kx, (B, 3, N), jnp.float32)
    params = init_params(kp)

    # Small tiles so the toy shapes still exercise multi-tile grids, the fused
    # streaming top-k, the in-kernel k loop, and cross-tile (global) BN stats.
    fwd = jax.jit(functools.partial(position_embedding_forward, k=K,
                                    knn_row_tile=16, knn_col_tile=16,
                                    stats_tile=128, row_tile=16, n_tile=16))
    y = jax.block_until_ready(fwd(x, params))

    assert y.shape == (B, 3, N)
    # Sanity: transform weight is 0 and its bias is the identity, so the
    # predicted 3x3 transform is I and the output must equal the input.
    assert jnp.allclose(y, x, atol=1e-5)
    print("KERNEL_OK")
</pallas_src>

<mosaic_0001>
module attributes {stable_mosaic.version = 11 : i64} {
  func.func @_knn_kernel(%arg0: i32, %arg1: i32, %arg2: i32, %arg3: memref<1x16x3xf32, #tpu.memory_space<vmem>>, %arg4: memref<1x3x32xf32, #tpu.memory_space<vmem>>, %arg5: memref<1x16x8xi32, #tpu.memory_space<vmem>>, %arg6: memref<16x8xf32, #tpu.memory_space<vmem>>, %arg7: memref<16x8xf32, #tpu.memory_space<vmem>>) attributes {dimension_semantics = [#tpu.dimension_semantics<parallel>, #tpu.dimension_semantics<parallel>, #tpu.dimension_semantics<arbitrary>], iteration_bounds = array<i64: 2, 2, 1>, scalar_prefetch = 0 : i64, scratch_operands = 2 : i64, tpu.core_type = #tpu.core_type<tc>, window_params = [{transform_indices = @transform_0, window_bounds = array<i64: 1, 16, 3>}, {transform_indices = @transform_1, window_bounds = array<i64: 1, 3, 32>}, {transform_indices = @transform_2, window_bounds = array<i64: 1, 16, 8>}]} {
    %c0 = arith.constant 0 : index
    %c0_0 = arith.constant 0 : index
    %c0_1 = arith.constant 0 : index
    %0 = vector.load %arg3[%c0, %c0_0, %c0_1] : memref<1x16x3xf32, #tpu.memory_space<vmem>>, vector<1x16x3xf32>
    %1 = vector.shape_cast %0 : vector<1x16x3xf32> to vector<16x3xf32>
    %c0_2 = arith.constant 0 : index
    %c0_3 = arith.constant 0 : index
    %c0_4 = arith.constant 0 : index
    %2 = vector.load %arg4[%c0_2, %c0_3, %c0_4] : memref<1x3x32xf32, #tpu.memory_space<vmem>>, vector<1x3x32xf32>
    %3 = vector.shape_cast %2 : vector<1x3x32xf32> to vector<3x32xf32>
    %4 = vector.extract_strided_slice %1 {offsets = [0, 0], sizes = [16, 1], strides = [1, 1]} : vector<16x3xf32> to vector<16x1xf32>
    %5 = vector.extract_strided_slice %1 {offsets = [0, 1], sizes = [16, 1], strides = [1, 1]} : vector<16x3xf32> to vector<16x1xf32>
    %6 = vector.extract_strided_slice %1 {offsets = [0, 2], sizes = [16, 1], strides = [1, 1]} : vector<16x3xf32> to vector<16x1xf32>
    %7 = vector.extract_strided_slice %3 {offsets = [0, 0], sizes = [1, 32], strides = [1, 1]} : vector<3x32xf32> to vector<1x32xf32>
    %8 = vector.extract_strided_slice %3 {offsets = [1, 0], sizes = [1, 32], strides = [1, 1]} : vector<3x32xf32> to vector<1x32xf32>
    %9 = vector.extract_strided_slice %3 {offsets = [2, 0], sizes = [1, 32], strides = [1, 1]} : vector<3x32xf32> to vector<1x32xf32>
    %10 = vector.broadcast %4 : vector<16x1xf32> to vector<16x32xf32>
    %11 = vector.broadcast %7 : vector<1x32xf32> to vector<16x32xf32>
    %12 = arith.mulf %10, %11 : vector<16x32xf32>
    %13 = vector.broadcast %5 : vector<16x1xf32> to vector<16x32xf32>
    %14 = vector.broadcast %8 : vector<1x32xf32> to vector<16x32xf32>
    %15 = arith.mulf %13, %14 : vector<16x32xf32>
    %16 = arith.addf %12, %15 : vector<16x32xf32>
    %17 = vector.broadcast %6 : vector<16x1xf32> to vector<16x32xf32>
    %18 = vector.broadcast %9 : vector<1x32xf32> to vector<16x32xf32>
    %19 = arith.mulf %17, %18 : vector<16x32xf32>
    %20 = arith.addf %16, %19 : vector<16x32xf32>
    %cst = arith.constant 2.000000e+00 : f32
    %21 = vector.broadcast %cst : f32 to vector<16x32xf32>
    %22 = arith.mulf %21, %20 : vector<16x32xf32>
    %23 = arith.mulf %4, %4 : vector<16x1xf32>
    %24 = arith.mulf %5, %5 : vector<16x1xf32>
    %25 = arith.addf %23, %24 : vector<16x1xf32>
    %26 = arith.mulf %6, %6 : vector<16x1xf32>
    %27 = arith.addf %25, %26 : vector<16x1xf32>
    %28 = vector.broadcast %27 : vector<16x1xf32> to vector<16x32xf32>
    %29 = arith.subf %22, %28 : vector<16x32xf32>
    %30 = arith.mulf %7, %7 : vector<1x32xf32>
    %31 = arith.mulf %8, %8 : vector<1x32xf32>
    %32 = arith.addf %30, %31 : vector<1x32xf32>
    %33 = arith.mulf %9, %9 : vector<1x32xf32>
    %34 = arith.addf %32, %33 : vector<1x32xf32>
    %35 = vector.broadcast %34 : vector<1x32xf32> to vector<16x32xf32>
    %36 = arith.subf %29, %35 : vector<16x32xf32>
    %c32_i32 = arith.constant 32 : i32
    %37 = arith.muli %arg2, %c32_i32 : i32
    %38 = tpu.iota {dimensions = array<i32: 1>} : vector<16x32xi32>
    %39 = vector.broadcast %37 : i32 to vector<16x32xi32>
    %40 = arith.addi %39, %38 : vector<16x32xi32>
    %41 = arith.sitofp %40 : vector<16x32xi32> to vector<16x32xf32>
    %c0_i32 = arith.constant 0 : i32
    %42 = arith.cmpi eq, %arg2, %c0_i32 : i32
    %43 = arith.extui %42 : i1 to i32
    %c0_i32_5 = arith.constant 0 : i32
    %44 = arith.cmpi ne, %43, %c0_i32_5 : i32
    scf.if %44 {
      %cst_74 = arith.constant 0xFF800000 : f32
      %265 = vector.broadcast %cst_74 : f32 to vector<16x8xf32>
      %c0_75 = arith.constant 0 : index
      %c0_76 = arith.constant 0 : index
      %266 = vector.load %arg6[%c0_75, %c0_76] : memref<16x8xf32, #tpu.memory_space<vmem>>, vector<16x8xf32>
      tpu.vector_store %arg6[%c0_75, %c0_76], %265 {strides = array<i32>} : memref<16x8xf32, #tpu.memory_space<vmem>>, vector<16x8xf32>,
      %cst_77 = arith.constant 0.000000e+00 : f32
      %267 = vector.broadcast %cst_77 : f32 to vector<16x8xf32>
      %c0_78 = arith.constant 0 : index
      %c0_79 = arith.constant 0 : index
      %268 = vector.load %arg7[%c0_78, %c0_79] : memref<16x8xf32, #tpu.memory_space<vmem>>, vector<16x8xf32>
      tpu.vector_store %arg7[%c0_78, %c0_79], %267 {strides = array<i32>} : memref<16x8xf32, #tpu.memory_space<vmem>>, vector<16x8xf32>,
    } else {
    }
    %c0_6 = arith.constant 0 : index
    %c0_7 = arith.constant 0 : index
    %45 = vector.load %arg6[%c0_6, %c0_7] : memref<16x8xf32, #tpu.memory_space<vmem>>, vector<16x8xf32>
    %46 = tpu.concatenate %45, %36 in 1 : vector<16x8xf32>, vector<16x32xf32> -> vector<16x40xf32>
    %c0_8 = arith.constant 0 : index
    %c0_9 = arith.constant 0 : index
    %47 = vector.load %arg7[%c0_8, %c0_9] : memref<16x8xf32, #tpu.memory_space<vmem>>, vector<16x8xf32>
    %48 = tpu.concatenate %47, %41 in 1 : vector<16x8xf32>, vector<16x32xf32> -> vector<16x40xf32>
    %49 = tpu.iota {dimensions = array<i32: 1>} : vector<16x40xi32>
    %50 = arith.sitofp %49 : vector<16x40xi32> to vector<16x40xf32>
    %51 = tpu.iota {dimensions = array<i32: 1>} : vector<16x8xi32>
    %cst_10 = arith.constant 0.000000e+00 : f32
    %52 = vector.broadcast %cst_10 : f32 to vector<16x8xf32>
    %cst_11 = arith.constant 0.000000e+00 : f32
    %53 = vector.broadcast %cst_11 : f32 to vector<16x8xf32>
    %cst_12 = arith.constant dense<0xFF800000> : vector<16xf32>
    %54 = vector.multi_reduction <maximumf>, %46, %cst_12 [1] : vector<16x40xf32> to vector<16xf32>
    %55 = vector.shape_cast %54 : vector<16xf32> to vector<16x1xf32>
    %56 = vector.broadcast %55 : vector<16x1xf32> to vector<16x40xf32>
    %57 = arith.cmpf oeq, %46, %56 : vector<16x40xf32>
    %cst_13 = arith.constant 4.000000e+01 : f32
    %58 = vector.broadcast %cst_13 : f32 to vector<16x40xf32>
    %59 = arith.select %57, %50, %58 : vector<16x40xi1>, vector<16x40xf32>
    %cst_14 = arith.constant dense<0x7F800000> : vector<16xf32>
    %60 = vector.multi_reduction <minimumf>, %59, %cst_14 [1] : vector<16x40xf32> to vector<16xf32>
    %61 = vector.shape_cast %60 : vector<16xf32> to vector<16x1xf32>
    %62 = vector.broadcast %61 : vector<16x1xf32> to vector<16x40xf32>
    %63 = arith.cmpf oeq, %50, %62 : vector<16x40xf32>
    %cst_15 = arith.constant -1.000000e+00 : f32
    %64 = vector.broadcast %cst_15 : f32 to vector<16x40xf32>
    %65 = arith.select %63, %48, %64 : vector<16x40xi1>, vector<16x40xf32>
    %cst_16 = arith.constant dense<0xFF800000> : vector<16xf32>
    %66 = vector.multi_reduction <maximumf>, %65, %cst_16 [1] : vector<16x40xf32> to vector<16xf32>
    %67 = vector.shape_cast %66 : vector<16xf32> to vector<16x1xf32>
    %c0_i32_17 = arith.constant 0 : i32
    %68 = vector.broadcast %c0_i32_17 : i32 to vector<16x8xi32>
    %69 = arith.cmpi eq, %51, %68 : vector<16x8xi32>
    %70 = vector.shape_cast %55 : vector<16x1xf32> to vector<16x1xf32>
    %71 = vector.broadcast %70 : vector<16x1xf32> to vector<16x8xf32>
    %72 = arith.select %69, %71, %52 : vector<16x8xi1>, vector<16x8xf32>
    %c0_i32_18 = arith.constant 0 : i32
    %73 = vector.broadcast %c0_i32_18 : i32 to vector<16x8xi32>
    %74 = arith.cmpi eq, %51, %73 : vector<16x8xi32>
    %75 = vector.shape_cast %67 : vector<16x1xf32> to vector<16x1xf32>
    %76 = vector.broadcast %75 : vector<16x1xf32> to vector<16x8xf32>
    %77 = arith.select %74, %76, %53 : vector<16x8xi1>, vector<16x8xf32>
    %cst_19 = arith.constant 0xFF800000 : f32
    %78 = vector.broadcast %cst_19 : f32 to vector<16x40xf32>
    %79 = arith.select %63, %78, %46 : vector<16x40xi1>, vector<16x40xf32>
    %cst_20 = arith.constant dense<0xFF800000> : vector<16xf32>
    %80 = vector.multi_reduction <maximumf>, %79, %cst_20 [1] : vector<16x40xf32> to vector<16xf32>
    %81 = vector.shape_cast %80 : vector<16xf32> to vector<16x1xf32>
    %82 = vector.broadcast %81 : vector<16x1xf32> to vector<16x40xf32>
    %83 = arith.cmpf oeq, %79, %82 : vector<16x40xf32>
    %cst_21 = arith.constant 4.000000e+01 : f32
    %84 = vector.broadcast %cst_21 : f32 to vector<16x40xf32>
    %85 = arith.select %83, %50, %84 : vector<16x40xi1>, vector<16x40xf32>
    %cst_22 = arith.constant dense<0x7F800000> : vector<16xf32>
    %86 = vector.multi_reduction <minimumf>, %85, %cst_22 [1] : vector<16x40xf32> to vector<16xf32>
    %87 = vector.shape_cast %86 : vector<16xf32> to vector<16x1xf32>
    %88 = vector.broadcast %87 : vector<16x1xf32> to vector<16x40xf32>
    %89 = arith.cmpf oeq, %50, %88 : vector<16x40xf32>
    %cst_23 = arith.constant -1.000000e+00 : f32
    %90 = vector.broadcast %cst_23 : f32 to vector<16x40xf32>
    %91 = arith.select %89, %48, %90 : vector<16x40xi1>, vector<16x40xf32>
    %cst_24 = arith.constant dense<0xFF800000> : vector<16xf32>
    %92 = vector.multi_reduction <maximumf>, %91, %cst_24 [1] : vector<16x40xf32> to vector<16xf32>
    %93 = vector.shape_cast %92 : vector<16xf32> to vector<16x1xf32>
    %c1_i32 = arith.constant 1 : i32
    %94 = vector.broadcast %c1_i32 : i32 to vector<16x8xi32>
    %95 = arith.cmpi eq, %51, %94 : vector<16x8xi32>
    %96 = vector.shape_cast %81 : vector<16x1xf32> to vector<16x1xf32>
    %97 = vector.broadcast %96 : vector<16x1xf32> to vector<16x8xf32>
    %98 = arith.select %95, %97, %72 : vector<16x8xi1>, vector<16x8xf32>
    %c1_i32_25 = arith.constant 1 : i32
    %99 = vector.broadcast %c1_i32_25 : i32 to vector<16x8xi32>
    %100 = arith.cmpi eq, %51, %99 : vector<16x8xi32>
    %101 = vector.shape_cast %93 : vector<16x1xf32> to vector<16x1xf32>
    %102 = vector.broadcast %101 : vector<16x1xf32> to vector<16x8xf32>
    %103 = arith.select %100, %102, %77 : vector<16x8xi1>, vector<16x8xf32>
    %cst_26 = arith.constant 0xFF800000 : f32
    %104 = vector.broadcast %cst_26 : f32 to vector<16x40xf32>
    %105 = arith.select %89, %104, %79 : vector<16x40xi1>, vector<16x40xf32>
    %cst_27 = arith.constant dense<0xFF800000> : vector<16xf32>
    %106 = vector.multi_reduction <maximumf>, %105, %cst_27 [1] : vector<16x40xf32> to vector<16xf32>
    %107 = vector.shape_cast %106 : vector<16xf32> to vector<16x1xf32>
    %108 = vector.broadcast %107 : vector<16x1xf32> to vector<16x40xf32>
    %109 = arith.cmpf oeq, %105, %108 : vector<16x40xf32>
    %cst_28 = arith.constant 4.000000e+01 : f32
    %110 = vector.broadcast %cst_28 : f32 to vector<16x40xf32>
    %111 = arith.select %109, %50, %110 : vector<16x40xi1>, vector<16x40xf32>
    %cst_29 = arith.constant dense<0x7F800000> : vector<16xf32>
    %112 = vector.multi_reduction <minimumf>, %111, %cst_29 [1] : vector<16x40xf32> to vector<16xf32>
    %113 = vector.shape_cast %112 : vector<16xf32> to vector<16x1xf32>
    %114 = vector.broadcast %113 : vector<16x1xf32> to vector<16x40xf32>
    %115 = arith.cmpf oeq, %50, %114 : vector<16x40xf32>
    %cst_30 = arith.constant -1.000000e+00 : f32
    %116 = vector.broadcast %cst_30 : f32 to vector<16x40xf32>
    %117 = arith.select %115, %48, %116 : vector<16x40xi1>, vector<16x40xf32>
    %cst_31 = arith.constant dense<0xFF800000> : vector<16xf32>
    %118 = vector.multi_reduction <maximumf>, %117, %cst_31 [1] : vector<16x40xf32> to vector<16xf32>
    %119 = vector.shape_cast %118 : vector<16xf32> to vector<16x1xf32>
    %c2_i32 = arith.constant 2 : i32
    %120 = vector.broadcast %c2_i32 : i32 to vector<16x8xi32>
    %121 = arith.cmpi eq, %51, %120 : vector<16x8xi32>
    %122 = vector.shape_cast %107 : vector<16x1xf32> to vector<16x1xf32>
    %123 = vector.broadcast %122 : vector<16x1xf32> to vector<16x8xf32>
    %124 = arith.select %121, %123, %98 : vector<16x8xi1>, vector<16x8xf32>
    %c2_i32_32 = arith.constant 2 : i32
    %125 = vector.broadcast %c2_i32_32 : i32 to vector<16x8xi32>
    %126 = arith.cmpi eq, %51, %125 : vector<16x8xi32>
    %127 = vector.shape_cast %119 : vector<16x1xf32> to vector<16x1xf32>
    %128 = vector.broadcast %127 : vector<16x1xf32> to vector<16x8xf32>
    %129 = arith.select %126, %128, %103 : vector<16x8xi1>, vector<16x8xf32>
    %cst_33 = arith.constant 0xFF800000 : f32
    %130 = vector.broadcast %cst_33 : f32 to vector<16x40xf32>
    %131 = arith.select %115, %130, %105 : vector<16x40xi1>, vector<16x40xf32>
    %cst_34 = arith.constant dense<0xFF800000> : vector<16xf32>
    %132 = vector.multi_reduction <maximumf>, %131, %cst_34 [1] : vector<16x40xf32> to vector<16xf32>
    %133 = vector.shape_cast %132 : vector<16xf32> to vector<16x1xf32>
    %134 = vector.broadcast %133 : vector<16x1xf32> to vector<16x40xf32>
    %135 = arith.cmpf oeq, %131, %134 : vector<16x40xf32>
    %cst_35 = arith.constant 4.000000e+01 : f32
    %136 = vector.broadcast %cst_35 : f32 to vector<16x40xf32>
    %137 = arith.select %135, %50, %136 : vector<16x40xi1>, vector<16x40xf32>
    %cst_36 = arith.constant dense<0x7F800000> : vector<16xf32>
    %138 = vector.multi_reduction <minimumf>, %137, %cst_36 [1] : vector<16x40xf32> to vector<16xf32>
    %139 = vector.shape_cast %138 : vector<16xf32> to vector<16x1xf32>
    %140 = vector.broadcast %139 : vector<16x1xf32> to vector<16x40xf32>
    %141 = arith.cmpf oeq, %50, %140 : vector<16x40xf32>
    %cst_37 = arith.constant -1.000000e+00 : f32
    %142 = vector.broadcast %cst_37 : f32 to vector<16x40xf32>
    %143 = arith.select %141, %48, %142 : vector<16x40xi1>, vector<16x40xf32>
    %cst_38 = arith.constant dense<0xFF800000> : vector<16xf32>
    %144 = vector.multi_reduction <maximumf>, %143, %cst_38 [1] : vector<16x40xf32> to vector<16xf32>
    %145 = vector.shape_cast %144 : vector<16xf32> to vector<16x1xf32>
    %c3_i32 = arith.constant 3 : i32
    %146 = vector.broadcast %c3_i32 : i32 to vector<16x8xi32>
    %147 = arith.cmpi eq, %51, %146 : vector<16x8xi32>
    %148 = vector.shape_cast %133 : vector<16x1xf32> to vector<16x1xf32>
    %149 = vector.broadcast %148 : vector<16x1xf32> to vector<16x8xf32>
    %150 = arith.select %147, %149, %124 : vector<16x8xi1>, vector<16x8xf32>
    %c3_i32_39 = arith.constant 3 : i32
    %151 = vector.broadcast %c3_i32_39 : i32 to vector<16x8xi32>
    %152 = arith.cmpi eq, %51, %151 : vector<16x8xi32>
    %153 = vector.shape_cast %145 : vector<16x1xf32> to vector<16x1xf32>
    %154 = vector.broadcast %153 : vector<16x1xf32> to vector<16x8xf32>
    %155 = arith.select %152, %154, %129 : vector<16x8xi1>, vector<16x8xf32>
    %cst_40 = arith.constant 0xFF800000 : f32
    %156 = vector.broadcast %cst_40 : f32 to vector<16x40xf32>
    %157 = arith.select %141, %156, %131 : vector<16x40xi1>, vector<16x40xf32>
    %cst_41 = arith.constant dense<0xFF800000> : vector<16xf32>
    %158 = vector.multi_reduction <maximumf>, %157, %cst_41 [1] : vector<16x40xf32> to vector<16xf32>
    %159 = vector.shape_cast %158 : vector<16xf32> to vector<16x1xf32>
    %160 = vector.broadcast %159 : vector<16x1xf32> to vector<16x40xf32>
    %161 = arith.cmpf oeq, %157, %160 : vector<16x40xf32>
    %cst_42 = arith.constant 4.000000e+01 : f32
    %162 = vector.broadcast %cst_42 : f32 to vector<16x40xf32>
    %163 = arith.select %161, %50, %162 : vector<16x40xi1>, vector<16x40xf32>
    %cst_43 = arith.constant dense<0x7F800000> : vector<16xf32>
    %164 = vector.multi_reduction <minimumf>, %163, %cst_43 [1] : vector<16x40xf32> to vector<16xf32>
    %165 = vector.shape_cast %164 : vector<16xf32> to vector<16x1xf32>
    %166 = vector.broadcast %165 : vector<16x1xf32> to vector<16x40xf32>
    %167 = arith.cmpf oeq, %50, %166 : vector<16x40xf32>
    %cst_44 = arith.constant -1.000000e+00 : f32
    %168 = vector.broadcast %cst_44 : f32 to vector<16x40xf32>
    %169 = arith.select %167, %48, %168 : vector<16x40xi1>, vector<16x40xf32>
    %cst_45 = arith.constant dense<0xFF800000> : vector<16xf32>
    %170 = vector.multi_reduction <maximumf>, %169, %cst_45 [1] : vector<16x40xf32> to vector<16xf32>
    %171 = vector.shape_cast %170 : vector<16xf32> to vector<16x1xf32>
    %c4_i32 = arith.constant 4 : i32
    %172 = vector.broadcast %c4_i32 : i32 to vector<16x8xi32>
    %173 = arith.cmpi eq, %51, %172 : vector<16x8xi32>
    %174 = vector.shape_cast %159 : vector<16x1xf32> to vector<16x1xf32>
    %175 = vector.broadcast %174 : vector<16x1xf32> to vector<16x8xf32>
    %176 = arith.select %173, %175, %150 : vector<16x8xi1>, vector<16x8xf32>
    %c4_i32_46 = arith.constant 4 : i32
    %177 = vector.broadcast %c4_i32_46 : i32 to vector<16x8xi32>
    %178 = arith.cmpi eq, %51, %177 : vector<16x8xi32>
    %179 = vector.shape_cast %171 : vector<16x1xf32> to vector<16x1xf32>
    %180 = vector.broadcast %179 : vector<16x1xf32> to vector<16x8xf32>
    %181 = arith.select %178, %180, %155 : vector<16x8xi1>, vector<16x8xf32>
    %cst_47 = arith.constant 0xFF800000 : f32
    %182 = vector.broadcast %cst_47 : f32 to vector<16x40xf32>
    %183 = arith.select %167, %182, %157 : vector<16x40xi1>, vector<16x40xf32>
    %cst_48 = arith.constant dense<0xFF800000> : vector<16xf32>
    %184 = vector.multi_reduction <maximumf>, %183, %cst_48 [1] : vector<16x40xf32> to vector<16xf32>
    %185 = vector.shape_cast %184 : vector<16xf32> to vector<16x1xf32>
    %186 = vector.broadcast %185 : vector<16x1xf32> to vector<16x40xf32>
    %187 = arith.cmpf oeq, %183, %186 : vector<16x40xf32>
    %cst_49 = arith.constant 4.000000e+01 : f32
    %188 = vector.broadcast %cst_49 : f32 to vector<16x40xf32>
    %189 = arith.select %187, %50, %188 : vector<16x40xi1>, vector<16x40xf32>
    %cst_50 = arith.constant dense<0x7F800000> : vector<16xf32>
    %190 = vector.multi_reduction <minimumf>, %189, %cst_50 [1] : vector<16x40xf32> to vector<16xf32>
    %191 = vector.shape_cast %190 : vector<16xf32> to vector<16x1xf32>
    %192 = vector.broadcast %191 : vector<16x1xf32> to vector<16x40xf32>
    %193 = arith.cmpf oeq, %50, %192 : vector<16x40xf32>
    %cst_51 = arith.constant -1.000000e+00 : f32
    %194 = vector.broadcast %cst_51 : f32 to vector<16x40xf32>
    %195 = arith.select %193, %48, %194 : vector<16x40xi1>, vector<16x40xf32>
    %cst_52 = arith.constant dense<0xFF800000> : vector<16xf32>
    %196 = vector.multi_reduction <maximumf>, %195, %cst_52 [1] : vector<16x40xf32> to vector<16xf32>
    %197 = vector.shape_cast %196 : vector<16xf32> to vector<16x1xf32>
    %c5_i32 = arith.constant 5 : i32
    %198 = vector.broadcast %c5_i32 : i32 to vector<16x8xi32>
    %199 = arith.cmpi eq, %51, %198 : vector<16x8xi32>
    %200 = vector.shape_cast %185 : vector<16x1xf32> to vector<16x1xf32>
    %201 = vector.broadcast %200 : vector<16x1xf32> to vector<16x8xf32>
    %202 = arith.select %199, %201, %176 : vector<16x8xi1>, vector<16x8xf32>
    %c5_i32_53 = arith.constant 5 : i32
    %203 = vector.broadcast %c5_i32_53 : i32 to vector<16x8xi32>
    %204 = arith.cmpi eq, %51, %203 : vector<16x8xi32>
    %205 = vector.shape_cast %197 : vector<16x1xf32> to vector<16x1xf32>
    %206 = vector.broadcast %205 : vector<16x1xf32> to vector<16x8xf32>
    %207 = arith.select %204, %206, %181 : vector<16x8xi1>, vector<16x8xf32>
    %cst_54 = arith.constant 0xFF800000 : f32
    %208 = vector.broadcast %cst_54 : f32 to vector<16x40xf32>
    %209 = arith.select %193, %208, %183 : vector<16x40xi1>, vector<16x40xf32>
    %cst_55 = arith.constant dense<0xFF800000> : vector<16xf32>
    %210 = vector.multi_reduction <maximumf>, %209, %cst_55 [1] : vector<16x40xf32> to vector<16xf32>
    %211 = vector.shape_cast %210 : vector<16xf32> to vector<16x1xf32>
    %212 = vector.broadcast %211 : vector<16x1xf32> to vector<16x40xf32>
    %213 = arith.cmpf oeq, %209, %212 : vector<16x40xf32>
    %cst_56 = arith.constant 4.000000e+01 : f32
    %214 = vector.broadcast %cst_56 : f32 to vector<16x40xf32>
    %215 = arith.select %213, %50, %214 : vector<16x40xi1>, vector<16x40xf32>
    %cst_57 = arith.constant dense<0x7F800000> : vector<16xf32>
    %216 = vector.multi_reduction <minimumf>, %215, %cst_57 [1] : vector<16x40xf32> to vector<16xf32>
    %217 = vector.shape_cast %216 : vector<16xf32> to vector<16x1xf32>
    %218 = vector.broadcast %217 : vector<16x1xf32> to vector<16x40xf32>
    %219 = arith.cmpf oeq, %50, %218 : vector<16x40xf32>
    %cst_58 = arith.constant -1.000000e+00 : f32
    %220 = vector.broadcast %cst_58 : f32 to vector<16x40xf32>
    %221 = arith.select %219, %48, %220 : vector<16x40xi1>, vector<16x40xf32>
    %cst_59 = arith.constant dense<0xFF800000> : vector<16xf32>
    %222 = vector.multi_reduction <maximumf>, %221, %cst_59 [1] : vector<16x40xf32> to vector<16xf32>
    %223 = vector.shape_cast %222 : vector<16xf32> to vector<16x1xf32>
    %c6_i32 = arith.constant 6 : i32
    %224 = vector.broadcast %c6_i32 : i32 to vector<16x8xi32>
    %225 = arith.cmpi eq, %51, %224 : vector<16x8xi32>
    %226 = vector.shape_cast %211 : vector<16x1xf32> to vector<16x1xf32>
    %227 = vector.broadcast %226 : vector<16x1xf32> to vector<16x8xf32>
    %228 = arith.select %225, %227, %202 : vector<16x8xi1>, vector<16x8xf32>
    %c6_i32_60 = arith.constant 6 : i32
    %229 = vector.broadcast %c6_i32_60 : i32 to vector<16x8xi32>
    %230 = arith.cmpi eq, %51, %229 : vector<16x8xi32>
    %231 = vector.shape_cast %223 : vector<16x1xf32> to vector<16x1xf32>
    %232 = vector.broadcast %231 : vector<16x1xf32> to vector<16x8xf32>
    %233 = arith.select %230, %232, %207 : vector<16x8xi1>, vector<16x8xf32>
    %cst_61 = arith.constant 0xFF800000 : f32
    %234 = vector.broadcast %cst_61 : f32 to vector<16x40xf32>
    %235 = arith.select %219, %234, %209 : vector<16x40xi1>, vector<16x40xf32>
    %cst_62 = arith.constant dense<0xFF800000> : vector<16xf32>
    %236 = vector.multi_reduction <maximumf>, %235, %cst_62 [1] : vector<16x40xf32> to vector<16xf32>
    %237 = vector.shape_cast %236 : vector<16xf32> to vector<16x1xf32>
    %238 = vector.broadcast %237 : vector<16x1xf32> to vector<16x40xf32>
    %239 = arith.cmpf oeq, %235, %238 : vector<16x40xf32>
    %cst_63 = arith.constant 4.000000e+01 : f32
    %240 = vector.broadcast %cst_63 : f32 to vector<16x40xf32>
    %241 = arith.select %239, %50, %240 : vector<16x40xi1>, vector<16x40xf32>
    %cst_64 = arith.constant dense<0x7F800000> : vector<16xf32>
    %242 = vector.multi_reduction <minimumf>, %241, %cst_64 [1] : vector<16x40xf32> to vector<16xf32>
    %243 = vector.shape_cast %242 : vector<16xf32> to vector<16x1xf32>
    %244 = vector.broadcast %243 : vector<16x1xf32> to vector<16x40xf32>
    %245 = arith.cmpf oeq, %50, %244 : vector<16x40xf32>
    %cst_65 = arith.constant -1.000000e+00 : f32
    %246 = vector.broadcast %cst_65 : f32 to vector<16x40xf32>
    %247 = arith.select %245, %48, %246 : vector<16x40xi1>, vector<16x40xf32>
    %cst_66 = arith.constant dense<0xFF800000> : vector<16xf32>
    %248 = vector.multi_reduction <maximumf>, %247, %cst_66 [1] : vector<16x40xf32> to vector<16xf32>
    %249 = vector.shape_cast %248 : vector<16xf32> to vector<16x1xf32>
    %c7_i32 = arith.constant 7 : i32
    %250 = vector.broadcast %c7_i32 : i32 to vector<16x8xi32>
    %251 = arith.cmpi eq, %51, %250 : vector<16x8xi32>
    %252 = vector.shape_cast %237 : vector<16x1xf32> to vector<16x1xf32>
    %253 = vector.broadcast %252 : vector<16x1xf32> to vector<16x8xf32>
    %254 = arith.select %251, %253, %228 : vector<16x8xi1>, vector<16x8xf32>
    %c7_i32_67 = arith.constant 7 : i32
    %255 = vector.broadcast %c7_i32_67 : i32 to vector<16x8xi32>
    %256 = arith.cmpi eq, %51, %255 : vector<16x8xi32>
    %257 = vector.shape_cast %249 : vector<16x1xf32> to vector<16x1xf32>
    %258 = vector.broadcast %257 : vector<16x1xf32> to vector<16x8xf32>
    %259 = arith.select %256, %258, %233 : vector<16x8xi1>, vector<16x8xf32>
    %c0_68 = arith.constant 0 : index
    %c0_69 = arith.constant 0 : index
    %260 = vector.load %arg6[%c0_68, %c0_69] : memref<16x8xf32, #tpu.memory_space<vmem>>, vector<16x8xf32>
    tpu.vector_store %arg6[%c0_68, %c0_69], %254 {strides = array<i32>} : memref<16x8xf32, #tpu.memory_space<vmem>>, vector<16x8xf32>,
    %c0_70 = arith.constant 0 : index
    %c0_71 = arith.constant 0 : index
    %261 = vector.load %arg7[%c0_70, %c0_71] : memref<16x8xf32, #tpu.memory_space<vmem>>, vector<16x8xf32>
    tpu.vector_store %arg7[%c0_70, %c0_71], %259 {strides = array<i32>} : memref<16x8xf32, #tpu.memory_space<vmem>>, vector<16x8xf32>,
    %c0_i32_72 = arith.constant 0 : i32
    %262 = arith.cmpi eq, %arg2, %c0_i32_72 : i32
    %263 = arith.extui %262 : i1 to i32
    %c0_i32_73 = arith.constant 0 : i32
    %264 = arith.cmpi ne, %263, %c0_i32_73 : i32
    scf.if %264 {
      %c0_74 = arith.constant 0 : index
      %c0_75 = arith.constant 0 : index
      %265 = vector.load %arg7[%c0_74, %c0_75] : memref<16x8xf32, #tpu.memory_space<vmem>>, vector<16x8xf32>
      %266 = arith.fptosi %265 : vector<16x8xf32> to vector<16x8xi32>
      %c0_76 = arith.constant 0 : index
      %c0_77 = arith.constant 0 : index
      %c0_78 = arith.constant 0 : index
      %267 = vector.load %arg5[%c0_76, %c0_77, %c0_78] : memref<1x16x8xi32, #tpu.memory_space<vmem>>, vector<1x16x8xi32>
      %268 = vector.shape_cast %267 : vector<1x16x8xi32> to vector<16x8xi32>
      %269 = vector.shape_cast %266 : vector<16x8xi32> to vector<1x16x8xi32>
      tpu.vector_store %arg5[%c0_76, %c0_77, %c0_78], %269 {strides = array<i32>} : memref<1x16x8xi32, #tpu.memory_space<vmem>>, vector<1x16x8xi32>,
    } else {
    }
    return
  }
  func.func @transform_0(%arg0: i32, %arg1: i32, %arg2: i32) -> (i32, i32, i32) {
    %c0_i32 = arith.constant 0 : i32
    %c0_i32_0 = arith.constant 0 : i32
    return %arg0, %arg1, %c0_i32 : i32, i32, i32
  }
  func.func @transform_1(%arg0: i32, %arg1: i32, %arg2: i32) -> (i32, i32, i32) {
    %c0_i32 = arith.constant 0 : i32
    %c0_i32_0 = arith.constant 0 : i32
    return %arg0, %c0_i32, %arg2 : i32, i32, i32
  }
  func.func @transform_2(%arg0: i32, %arg1: i32, %arg2: i32) -> (i32, i32, i32) {
    %c0_i32 = arith.constant 0 : i32
    %c0_i32_0 = arith.constant 0 : i32
    return %arg0, %arg1, %c0_i32 : i32, i32, i32
  }
}

module attributes {stable_mosaic.version = 11 : i64} {
  func.func @_a1_stats_kernel(%arg0: i32, %arg1: memref<128x8xbf16, #tpu.memory_space<vmem>>, %arg2: memref<8x64xbf16, #tpu.memory_space<vmem>>, %arg3: memref<1x64xf32, #tpu.memory_space<vmem>>, %arg4: memref<1x64xf32, #tpu.memory_space<vmem>>, %arg5: memref<1x1x64xf32, #tpu.memory_space<vmem>>, %arg6: memref<1x64x64xf32, #tpu.memory_space<vmem>>) attributes {dimension_semantics = [#tpu.dimension_semantics<parallel>], iteration_bounds = array<i64: 4>, scalar_prefetch = 0 : i64, scratch_operands = 0 : i64, tpu.core_type = #tpu.core_type<tc>, window_params = [{transform_indices = @transform_0, window_bounds = array<i64: 128, 8>}, {pipeline_mode = #tpu.pipeline_mode<synchronous>, transform_indices = @transform_1, window_bounds = array<i64: 8, 64>}, {pipeline_mode = #tpu.pipeline_mode<synchronous>, transform_indices = @transform_2, window_bounds = array<i64: 1, 64>}, {pipeline_mode = #tpu.pipeline_mode<synchronous>, transform_indices = @transform_3, window_bounds = array<i64: 1, 64>}, {transform_indices = @transform_4, window_bounds = array<i64: 1, 1, 64>}, {transform_indices = @transform_5, window_bounds = array<i64: 1, 64, 64>}]} {
    %c0 = arith.constant 0 : index
    %c0_0 = arith.constant 0 : index
    %0 = vector.load %arg1[%c0, %c0_0] : memref<128x8xbf16, #tpu.memory_space<vmem>>, vector<128x8xbf16>
    %c0_1 = arith.constant 0 : index
    %c0_2 = arith.constant 0 : index
    %1 = vector.load %arg2[%c0_1, %c0_2] : memref<8x64xbf16, #tpu.memory_space<vmem>>, vector<8x64xbf16>
    %cst = arith.constant dense<0.000000e+00> : vector<128x64xf32>
    %2 = tpu.matmul %0, %1, %cst {dimension_numbers = #tpu.dot_dimension_numbers<[1], [0], [0], [1], [0, 0, 1, 1], [], []>} : vector<128x8xbf16>, vector<8x64xbf16>, vector<128x64xf32> -> vector<128x64xf32>
    %c0_3 = arith.constant 0 : index
    %c0_4 = arith.constant 0 : index
    %3 = vector.load %arg3[%c0_3, %c0_4] : memref<1x64xf32, #tpu.memory_space<vmem>>, vector<1x64xf32>
    %4 = vector.broadcast %3 : vector<1x64xf32> to vector<128x64xf32>
    %5 = arith.mulf %2, %4 : vector<128x64xf32>
    %c0_5 = arith.constant 0 : index
    %c0_6 = arith.constant 0 : index
    %6 = vector.load %arg4[%c0_5, %c0_6] : memref<1x64xf32, #tpu.memory_space<vmem>>, vector<1x64xf32>
    %7 = vector.broadcast %6 : vector<1x64xf32> to vector<128x64xf32>
    %8 = arith.addf %5, %7 : vector<128x64xf32>
    %cst_7 = arith.constant 0.000000e+00 : f32
    %9 = vector.broadcast %cst_7 : f32 to vector<128x64xf32>
    %10 = arith.cmpf oge, %8, %9 : vector<128x64xf32>
    %cst_8 = arith.constant 2.000000e-01 : f32
    %11 = vector.broadcast %cst_8 : f32 to vector<128x64xf32>
    %12 = arith.mulf %11, %8 : vector<128x64xf32>
    %13 = arith.select %10, %8, %12 : vector<128x64xi1>, vector<128x64xf32>
    %14 = arith.truncf %13 : vector<128x64xf32> to vector<128x64xbf16>
    %15 = arith.extf %14 : vector<128x64xbf16> to vector<128x64xf32>
    %cst_9 = arith.constant dense<0.000000e+00> : vector<64xf32>
    %16 = vector.multi_reduction <add>, %15, %cst_9 [0] : vector<128x64xf32> to vector<64xf32>
    %17 = vector.shape_cast %16 : vector<64xf32> to vector<1x64xf32>
    %c0_10 = arith.constant 0 : index
    %c0_11 = arith.constant 0 : index
    %c0_12 = arith.constant 0 : index
    %18 = vector.load %arg5[%c0_10, %c0_11, %c0_12] : memref<1x1x64xf32, #tpu.memory_space<vmem>>, vector<1x1x64xf32>
    %19 = vector.shape_cast %18 : vector<1x1x64xf32> to vector<1x64xf32>
    %20 = vector.shape_cast %17 : vector<1x64xf32> to vector<1x1x64xf32>
    tpu.vector_store %arg5[%c0_10, %c0_11, %c0_12], %20 {strides = array<i32>} : memref<1x1x64xf32, #tpu.memory_space<vmem>>, vector<1x1x64xf32>,
    %cst_13 = arith.constant dense<0.000000e+00> : vector<64x64xf32>
    %21 = tpu.matmul %14, %14, %cst_13 {dimension_numbers = #tpu.dot_dimension_numbers<[0], [0], [1], [1], [0, 1, 1, 1], [], []>} : vector<128x64xbf16>, vector<128x64xbf16>, vector<64x64xf32> -> vector<64x64xf32>
    %c0_14 = arith.constant 0 : index
    %c0_15 = arith.constant 0 : index
    %c0_16 = arith.constant 0 : index
    %22 = vector.load %arg6[%c0_14, %c0_15, %c0_16] : memref<1x64x64xf32, #tpu.memory_space<vmem>>, vector<1x64x64xf32>
    %23 = vector.shape_cast %22 : vector<1x64x64xf32> to vector<64x64xf32>
    %24 = vector.shape_cast %21 : vector<64x64xf32> to vector<1x64x64xf32>
    tpu.vector_store %arg6[%c0_14, %c0_15, %c0_16], %24 {strides = array<i32>} : memref<1x64x64xf32, #tpu.memory_space<vmem>>, vector<1x64x64xf32>,
    return
  }
  func.func @transform_0(%arg0: i32) -> (i32, i32) {
    %c0_i32 = arith.constant 0 : i32
    %c0_i32_0 = arith.constant 0 : i32
    return %arg0, %c0_i32 : i32, i32
  }
  func.func @transform_1(%arg0: i32) -> (i32, i32) {
    %c0_i32 = arith.constant 0 : i32
    %c0_i32_0 = arith.constant 0 : i32
    %c0_i32_1 = arith.constant 0 : i32
    return %c0_i32, %c0_i32_0 : i32, i32
  }
  func.func @transform_2(%arg0: i32) -> (i32, i32) {
    %c0_i32 = arith.constant 0 : i32
    %c0_i32_0 = arith.constant 0 : i32
    %c0_i32_1 = arith.constant 0 : i32
    return %c0_i32, %c0_i32_0 : i32, i32
  }
  func.func @transform_3(%arg0: i32) -> (i32, i32) {
    %c0_i32 = arith.constant 0 : i32
    %c0_i32_0 = arith.constant 0 : i32
    %c0_i32_1 = arith.constant 0 : i32
    return %c0_i32, %c0_i32_0 : i32, i32
  }
  func.func @transform_4(%arg0: i32) -> (i32, i32, i32) {
    %c0_i32 = arith.constant 0 : i32
    %c0_i32_0 = arith.constant 0 : i32
    %c0_i32_1 = arith.constant 0 : i32
    return %arg0, %c0_i32, %c0_i32_0 : i32, i32, i32
  }
  func.func @transform_5(%arg0: i32) -> (i32, i32, i32) {
    %c0_i32 = arith.constant 0 : i32
    %c0_i32_0 = arith.constant 0 : i32
    %c0_i32_1 = arith.constant 0 : i32
    return %arg0, %c0_i32, %c0_i32_0 : i32, i32, i32
  }
}

module attributes {stable_mosaic.version = 11 : i64} {
  func.func @_edge_main_kernel(%arg0: i32, %arg1: memref<8x16x8xbf16, #tpu.memory_space<vmem>>, %arg2: memref<8x64xbf16, #tpu.memory_space<vmem>>, %arg3: memref<1x64xf32, #tpu.memory_space<vmem>>, %arg4: memref<1x64xf32, #tpu.memory_space<vmem>>, %arg5: memref<64x128xbf16, #tpu.memory_space<vmem>>, %arg6: memref<1x128xf32, #tpu.memory_space<vmem>>, %arg7: memref<1x128xf32, #tpu.memory_space<vmem>>, %arg8: memref<16x128xbf16, #tpu.memory_space<vmem>>, %arg9: memref<1x1x128xf32, #tpu.memory_space<vmem>>, %arg10: memref<1x128x128xf32, #tpu.memory_space<vmem>>) attributes {dimension_semantics = [#tpu.dimension_semantics<parallel>], iteration_bounds = array<i64: 4>, scalar_prefetch = 0 : i64, scratch_operands = 0 : i64, tpu.core_type = #tpu.core_type<tc>, window_params = [{transform_indices = @transform_0, window_bounds = array<i64: 8, 16, 8>}, {pipeline_mode = #tpu.pipeline_mode<synchronous>, transform_indices = @transform_1, window_bounds = array<i64: 8, 64>}, {pipeline_mode = #tpu.pipeline_mode<synchronous>, transform_indices = @transform_2, window_bounds = array<i64: 1, 64>}, {pipeline_mode = #tpu.pipeline_mode<synchronous>, transform_indices = @transform_3, window_bounds = array<i64: 1, 64>}, {pipeline_mode = #tpu.pipeline_mode<synchronous>, transform_indices = @transform_4, window_bounds = array<i64: 64, 128>}, {pipeline_mode = #tpu.pipeline_mode<synchronous>, transform_indices = @transform_5, window_bounds = array<i64: 1, 128>}, {pipeline_mode = #tpu.pipeline_mode<synchronous>, transform_indices = @transform_6, window_bounds = array<i64: 1, 128>}, {transform_indices = @transform_7, window_bounds = array<i64: 16, 128>}, {transform_indices = @transform_8, window_bounds = array<i64: 1, 1, 128>}, {transform_indices = @transform_9, window_bounds = array<i64: 1, 128, 128>}]} {
    %c0 = arith.constant 0 : index
    %c0_0 = arith.constant 0 : index
    %c0_1 = arith.constant 0 : index
    %0 = vector.load %arg1[%c0, %c0_0, %c0_1] : memref<8x16x8xbf16, #tpu.memory_space<vmem>>, vector<1x16x8xbf16>
    %1 = vector.shape_cast %0 : vector<1x16x8xbf16> to vector<16x8xbf16>
    %c0_2 = arith.constant 0 : index
    %c0_3 = arith.constant 0 : index
    %2 = vector.load %arg2[%c0_2, %c0_3] : memref<8x64xbf16, #tpu.memory_space<vmem>>, vector<8x64xbf16>
    %cst = arith.constant dense<0.000000e+00> : vector<16x64xf32>
    %3 = tpu.matmul %1, %2, %cst {dimension_numbers = #tpu.dot_dimension_numbers<[1], [0], [0], [1], [0, 0, 1, 1], [], []>} : vector<16x8xbf16>, vector<8x64xbf16>, vector<16x64xf32> -> vector<16x64xf32>
    %c0_4 = arith.constant 0 : index
    %c0_5 = arith.constant 0 : index
    %4 = vector.load %arg3[%c0_4, %c0_5] : memref<1x64xf32, #tpu.memory_space<vmem>>, vector<1x64xf32>
    %5 = vector.broadcast %4 : vector<1x64xf32> to vector<16x64xf32>
    %6 = arith.mulf %3, %5 : vector<16x64xf32>
    %c0_6 = arith.constant 0 : index
    %c0_7 = arith.constant 0 : index
    %7 = vector.load %arg4[%c0_6, %c0_7] : memref<1x64xf32, #tpu.memory_space<vmem>>, vector<1x64xf32>
    %8 = vector.broadcast %7 : vector<1x64xf32> to vector<16x64xf32>
    %9 = arith.addf %6, %8 : vector<16x64xf32>
    %cst_8 = arith.constant 0.000000e+00 : f32
    %10 = vector.broadcast %cst_8 : f32 to vector<16x64xf32>
    %11 = arith.cmpf oge, %9, %10 : vector<16x64xf32>
    %cst_9 = arith.constant 2.000000e-01 : f32
    %12 = vector.broadcast %cst_9 : f32 to vector<16x64xf32>
    %13 = arith.mulf %12, %9 : vector<16x64xf32>
    %14 = arith.select %11, %9, %13 : vector<16x64xi1>, vector<16x64xf32>
    %15 = arith.truncf %14 : vector<16x64xf32> to vector<16x64xbf16>
    %c0_10 = arith.constant 0 : index
    %c0_11 = arith.constant 0 : index
    %16 = vector.load %arg5[%c0_10, %c0_11] : memref<64x128xbf16, #tpu.memory_space<vmem>>, vector<64x128xbf16>
    %cst_12 = arith.constant dense<0.000000e+00> : vector<16x128xf32>
    %17 = tpu.matmul %15, %16, %cst_12 {dimension_numbers = #tpu.dot_dimension_numbers<[1], [0], [0], [1], [0, 0, 1, 1], [], []>} : vector<16x64xbf16>, vector<64x128xbf16>, vector<16x128xf32> -> vector<16x128xf32>
    %c0_13 = arith.constant 0 : index
    %c0_14 = arith.constant 0 : index
    %18 = vector.load %arg6[%c0_13, %c0_14] : memref<1x128xf32, #tpu.memory_space<vmem>>, vector<1x128xf32>
    %19 = vector.broadcast %18 : vector<1x128xf32> to vector<16x128xf32>
    %20 = arith.mulf %17, %19 : vector<16x128xf32>
    %c0_15 = arith.constant 0 : index
    %c0_16 = arith.constant 0 : index
    %21 = vector.load %arg7[%c0_15, %c0_16] : memref<1x128xf32, #tpu.memory_space<vmem>>, vector<1x128xf32>
    %22 = vector.broadcast %21 : vector<1x128xf32> to vector<16x128xf32>
    %23 = arith.addf %20, %22 : vector<16x128xf32>
    %cst_17 = arith.constant 0.000000e+00 : f32
    %24 = vector.broadcast %cst_17 : f32 to vector<16x128xf32>
    %25 = arith.cmpf oge, %23, %24 : vector<16x128xf32>
    %cst_18 = arith.constant 2.000000e-01 : f32
    %26 = vector.broadcast %cst_18 : f32 to vector<16x128xf32>
    %27 = arith.mulf %26, %23 : vector<16x128xf32>
    %28 = arith.select %25, %23, %27 : vector<16x128xi1>, vector<16x128xf32>
    %c1_i32 = arith.constant 1 : i32
    %c7_i32 = arith.constant 7 : i32
    %29 = arith.addi %c1_i32, %c7_i32 : i32
    %c1_i32_19 = arith.constant 1 : i32
    %30 = scf.for %arg11 = %c1_i32 to %29 step %c1_i32_19 iter_args(%arg12 = %28) -> (vector<16x128xf32>)  : i32 {
      %43 = arith.index_cast %arg11 : i32 to index
      %c0_31 = arith.constant 0 : index
      %c0_32 = arith.constant 0 : index
      %44 = vector.load %arg1[%43, %c0_31, %c0_32] : memref<8x16x8xbf16, #tpu.memory_space<vmem>>, vector<1x16x8xbf16>
      %45 = vector.shape_cast %44 : vector<1x16x8xbf16> to vector<16x8xbf16>
      %c0_33 = arith.constant 0 : index
      %c0_34 = arith.constant 0 : index
      %46 = vector.load %arg2[%c0_33, %c0_34] : memref<8x64xbf16, #tpu.memory_space<vmem>>, vector<8x64xbf16>
      %cst_35 = arith.constant dense<0.000000e+00> : vector<16x64xf32>
      %47 = tpu.matmul %45, %46, %cst_35 {dimension_numbers = #tpu.dot_dimension_numbers<[1], [0], [0], [1], [0, 0, 1, 1], [], []>} : vector<16x8xbf16>, vector<8x64xbf16>, vector<16x64xf32> -> vector<16x64xf32>
      %c0_36 = arith.constant 0 : index
      %c0_37 = arith.constant 0 : index
      %48 = vector.load %arg3[%c0_36, %c0_37] : memref<1x64xf32, #tpu.memory_space<vmem>>, vector<1x64xf32>
      %49 = vector.broadcast %48 : vector<1x64xf32> to vector<16x64xf32>
      %50 = arith.mulf %47, %49 : vector<16x64xf32>
      %c0_38 = arith.constant 0 : index
      %c0_39 = arith.constant 0 : index
      %51 = vector.load %arg4[%c0_38, %c0_39] : memref<1x64xf32, #tpu.memory_space<vmem>>, vector<1x64xf32>
      %52 = vector.broadcast %51 : vector<1x64xf32> to vector<16x64xf32>
      %53 = arith.addf %50, %52 : vector<16x64xf32>
      %cst_40 = arith.constant 0.000000e+00 : f32
      %54 = vector.broadcast %cst_40 : f32 to vector<16x64xf32>
      %55 = arith.cmpf oge, %53, %54 : vector<16x64xf32>
      %cst_41 = arith.constant 2.000000e-01 : f32
      %56 = vector.broadcast %cst_41 : f32 to vector<16x64xf32>
      %57 = arith.mulf %56, %53 : vector<16x64xf32>
      %58 = arith.select %55, %53, %57 : vector<16x64xi1>, vector<16x64xf32>
      %59 = arith.truncf %58 : vector<16x64xf32> to vector<16x64xbf16>
      %c0_42 = arith.constant 0 : index
      %c0_43 = arith.constant 0 : index
      %60 = vector.load %arg5[%c0_42, %c0_43] : memref<64x128xbf16, #tpu.memory_space<vmem>>, vector<64x128xbf16>
      %cst_44 = arith.constant dense<0.000000e+00> : vector<16x128xf32>
      %61 = tpu.matmul %59, %60, %cst_44 {dimension_numbers = #tpu.dot_dimension_numbers<[1], [0], [0], [1], [0, 0, 1, 1], [], []>} : vector<16x64xbf16>, vector<64x128xbf16>, vector<16x128xf32> -> vector<16x128xf32>
      %c0_45 = arith.constant 0 : index
      %c0_46 = arith.constant 0 : index
      %62 = vector.load %arg6[%c0_45, %c0_46] : memref<1x128xf32, #tpu.memory_space<vmem>>, vector<1x128xf32>
      %63 = vector.broadcast %62 : vector<1x128xf32> to vector<16x128xf32>
      %64 = arith.mulf %61, %63 : vector<16x128xf32>
      %c0_47 = arith.constant 0 : index
      %c0_48 = arith.constant 0 : index
      %65 = vector.load %arg7[%c0_47, %c0_48] : memref<1x128xf32, #tpu.memory_space<vmem>>, vector<1x128xf32>
      %66 = vector.broadcast %65 : vector<1x128xf32> to vector<16x128xf32>
      %67 = arith.addf %64, %66 : vector<16x128xf32>
      %cst_49 = arith.constant 0.000000e+00 : f32
      %68 = vector.broadcast %cst_49 : f32 to vector<16x128xf32>
      %69 = arith.cmpf oge, %67, %68 : vector<16x128xf32>
      %cst_50 = arith.constant 2.000000e-01 : f32
      %70 = vector.broadcast %cst_50 : f32 to vector<16x128xf32>
      %71 = arith.mulf %70, %67 : vector<16x128xf32>
      %72 = arith.select %69, %67, %71 : vector<16x128xi1>, vector<16x128xf32>
      %73 = arith.maximumf %arg12, %72 : vector<16x128xf32>
      scf.yield %73 : vector<16x128xf32>
    }
    %c7_i32_20 = arith.constant 7 : i32
    %31 = arith.truncf %30 : vector<16x128xf32> to vector<16x128xbf16>
    %c0_21 = arith.constant 0 : index
    %c0_22 = arith.constant 0 : index
    %32 = vector.load %arg8[%c0_21, %c0_22] : memref<16x128xbf16, #tpu.memory_space<vmem>>, vector<16x128xbf16>
    tpu.vector_store %arg8[%c0_21, %c0_22], %31 {strides = array<i32>} : memref<16x128xbf16, #tpu.memory_space<vmem>>, vector<16x128xbf16>,
    %33 = arith.extf %31 : vector<16x128xbf16> to vector<16x128xf32>
    %cst_23 = arith.constant dense<0.000000e+00> : vector<128xf32>
    %34 = vector.multi_reduction <add>, %33, %cst_23 [0] : vector<16x128xf32> to vector<128xf32>
    %35 = vector.shape_cast %34 : vector<128xf32> to vector<1x128xf32>
    %c0_24 = arith.constant 0 : index
    %c0_25 = arith.constant 0 : index
    %c0_26 = arith.constant 0 : index
    %36 = vector.load %arg9[%c0_24, %c0_25, %c0_26] : memref<1x1x128xf32, #tpu.memory_space<vmem>>, vector<1x1x128xf32>
    %37 = vector.shape_cast %36 : vector<1x1x128xf32> to vector<1x128xf32>
    %38 = vector.shape_cast %35 : vector<1x128xf32> to vector<1x1x128xf32>
    tpu.vector_store %arg9[%c0_24, %c0_25, %c0_26], %38 {strides = array<i32>} : memref<1x1x128xf32, #tpu.memory_space<vmem>>, vector<1x1x128xf32>,
    %cst_27 = arith.constant dense<0.000000e+00> : vector<128x128xf32>
    %39 = tpu.matmul %31, %31, %cst_27 {dimension_numbers = #tpu.dot_dimension_numbers<[0], [0], [1], [1], [0, 1, 1, 1], [], []>} : vector<16x128xbf16>, vector<16x128xbf16>, vector<128x128xf32> -> vector<128x128xf32>
    %c0_28 = arith.constant 0 : index
    %c0_29 = arith.constant 0 : index
    %c0_30 = arith.constant 0 : index
    %40 = vector.load %arg10[%c0_28, %c0_29, %c0_30] : memref<1x128x128xf32, #tpu.memory_space<vmem>>, vector<1x128x128xf32>
    %41 = vector.shape_cast %40 : vector<1x128x128xf32> to vector<128x128xf32>
    %42 = vector.shape_cast %39 : vector<128x128xf32> to vector<1x128x128xf32>
    tpu.vector_store %arg10[%c0_28, %c0_29, %c0_30], %42 {strides = array<i32>} : memref<1x128x128xf32, #tpu.memory_space<vmem>>, vector<1x128x128xf32>,
    return
  }
  func.func @transform_0(%arg0: i32) -> (i32, i32, i32) {
    %c0_i32 = arith.constant 0 : i32
    %c0_i32_0 = arith.constant 0 : i32
    %c0_i32_1 = arith.constant 0 : i32
    return %c0_i32, %arg0, %c0_i32_0 : i32, i32, i32
  }
  func.func @transform_1(%arg0: i32) -> (i32, i32) {
    %c0_i32 = arith.constant 0 : i32
    %c0_i32_0 = arith.constant 0 : i32
    %c0_i32_1 = arith.constant 0 : i32
    return %c0_i32, %c0_i32_0 : i32, i32
  }
  func.func @transform_2(%arg0: i32) -> (i32, i32) {
    %c0_i32 = arith.constant 0 : i32
    %c0_i32_0 = arith.constant 0 : i32
    %c0_i32_1 = arith.constant 0 : i32
    return %c0_i32, %c0_i32_0 : i32, i32
  }
  func.func @transform_3(%arg0: i32) -> (i32, i32) {
    %c0_i32 = arith.constant 0 : i32
    %c0_i32_0 = arith.constant 0 : i32
    %c0_i32_1 = arith.constant 0 : i32
    return %c0_i32, %c0_i32_0 : i32, i32
  }
  func.func @transform_4(%arg0: i32) -> (i32, i32) {
    %c0_i32 = arith.constant 0 : i32
    %c0_i32_0 = arith.constant 0 : i32
    %c0_i32_1 = arith.constant 0 : i32
    return %c0_i32, %c0_i32_0 : i32, i32
  }
  func.func @transform_5(%arg0: i32) -> (i32, i32) {
    %c0_i32 = arith.constant 0 : i32
    %c0_i32_0 = arith.constant 0 : i32
    %c0_i32_1 = arith.constant 0 : i32
    return %c0_i32, %c0_i32_0 : i32, i32
  }
  func.func @transform_6(%arg0: i32) -> (i32, i32) {
    %c0_i32 = arith.constant 0 : i32
    %c0_i32_0 = arith.constant 0 : i32
    %c0_i32_1 = arith.constant 0 : i32
    return %c0_i32, %c0_i32_0 : i32, i32
  }
  func.func @transform_7(%arg0: i32) -> (i32, i32) {
    %c0_i32 = arith.constant 0 : i32
    %c0_i32_0 = arith.constant 0 : i32
    return %arg0, %c0_i32 : i32, i32
  }
  func.func @transform_8(%arg0: i32) -> (i32, i32, i32) {
    %c0_i32 = arith.constant 0 : i32
    %c0_i32_0 = arith.constant 0 : i32
    %c0_i32_1 = arith.constant 0 : i32
    return %arg0, %c0_i32, %c0_i32_0 : i32, i32, i32
  }
  func.func @transform_9(%arg0: i32) -> (i32, i32, i32) {
    %c0_i32 = arith.constant 0 : i32
    %c0_i32_0 = arith.constant 0 : i32
    %c0_i32_1 = arith.constant 0 : i32
    return %arg0, %c0_i32, %c0_i32_0 : i32, i32, i32
  }
}

module attributes {stable_mosaic.version = 11 : i64} {
  func.func @_conv3_kernel(%arg0: i32, %arg1: i32, %arg2: memref<1x16x128xbf16, #tpu.memory_space<vmem>>, %arg3: memref<128x1024xbf16, #tpu.memory_space<vmem>>, %arg4: memref<1x1024xf32, #tpu.memory_space<vmem>>, %arg5: memref<1x1024xf32, #tpu.memory_space<vmem>>, %arg6: memref<1x1x1024xf32, #tpu.memory_space<vmem>>) attributes {dimension_semantics = [#tpu.dimension_semantics<parallel>, #tpu.dimension_semantics<arbitrary>], iteration_bounds = array<i64: 2, 2>, scalar_prefetch = 0 : i64, scratch_operands = 0 : i64, tpu.core_type = #tpu.core_type<tc>, window_params = [{transform_indices = @transform_0, window_bounds = array<i64: 1, 16, 128>}, {pipeline_mode = #tpu.pipeline_mode<synchronous>, transform_indices = @transform_1, window_bounds = array<i64: 128, 1024>}, {pipeline_mode = #tpu.pipeline_mode<synchronous>, transform_indices = @transform_2, window_bounds = array<i64: 1, 1024>}, {pipeline_mode = #tpu.pipeline_mode<synchronous>, transform_indices = @transform_3, window_bounds = array<i64: 1, 1024>}, {transform_indices = @transform_4, window_bounds = array<i64: 1, 1, 1024>}]} {
    %c0 = arith.constant 0 : index
    %c0_0 = arith.constant 0 : index
    %c0_1 = arith.constant 0 : index
    %0 = vector.load %arg2[%c0, %c0_0, %c0_1] : memref<1x16x128xbf16, #tpu.memory_space<vmem>>, vector<1x16x128xbf16>
    %1 = vector.shape_cast %0 : vector<1x16x128xbf16> to vector<16x128xbf16>
    %c0_2 = arith.constant 0 : index
    %c0_3 = arith.constant 0 : index
    %2 = vector.load %arg3[%c0_2, %c0_3] : memref<128x1024xbf16, #tpu.memory_space<vmem>>, vector<128x1024xbf16>
    %cst = arith.constant dense<0.000000e+00> : vector<16x1024xf32>
    %3 = tpu.matmul %1, %2, %cst {dimension_numbers = #tpu.dot_dimension_numbers<[1], [0], [0], [1], [0, 0, 1, 1], [], []>} : vector<16x128xbf16>, vector<128x1024xbf16>, vector<16x1024xf32> -> vector<16x1024xf32>
    %c0_4 = arith.constant 0 : index
    %c0_5 = arith.constant 0 : index
    %4 = vector.load %arg4[%c0_4, %c0_5] : memref<1x1024xf32, #tpu.memory_space<vmem>>, vector<1x1024xf32>
    %5 = vector.broadcast %4 : vector<1x1024xf32> to vector<16x1024xf32>
    %6 = arith.mulf %3, %5 : vector<16x1024xf32>
    %c0_6 = arith.constant 0 : index
    %c0_7 = arith.constant 0 : index
    %7 = vector.load %arg5[%c0_6, %c0_7] : memref<1x1024xf32, #tpu.memory_space<vmem>>, vector<1x1024xf32>
    %8 = vector.broadcast %7 : vector<1x1024xf32> to vector<16x1024xf32>
    %9 = arith.addf %6, %8 : vector<16x1024xf32>
    %cst_8 = arith.constant 0.000000e+00 : f32
    %10 = vector.broadcast %cst_8 : f32 to vector<16x1024xf32>
    %11 = arith.cmpf oge, %9, %10 : vector<16x1024xf32>
    %cst_9 = arith.constant 2.000000e-01 : f32
    %12 = vector.broadcast %cst_9 : f32 to vector<16x1024xf32>
    %13 = arith.mulf %12, %9 : vector<16x1024xf32>
    %14 = arith.select %11, %9, %13 : vector<16x1024xi1>, vector<16x1024xf32>
    %cst_10 = arith.constant dense<0xFF800000> : vector<1024xf32>
    %15 = vector.multi_reduction <maximumf>, %14, %cst_10 [0] : vector<16x1024xf32> to vector<1024xf32>
    %16 = vector.shape_cast %15 : vector<1024xf32> to vector<1x1024xf32>
    %c0_i32 = arith.constant 0 : i32
    %17 = arith.cmpi eq, %arg1, %c0_i32 : i32
    %18 = arith.extui %17 : i1 to i32
    %c0_i32_11 = arith.constant 0 : i32
    %19 = arith.cmpi ne, %18, %c0_i32_11 : i32
    scf.if %19 {
      %c0_14 = arith.constant 0 : index
      %c0_15 = arith.constant 0 : index
      %c0_16 = arith.constant 0 : index
      %23 = vector.load %arg6[%c0_14, %c0_15, %c0_16] : memref<1x1x1024xf32, #tpu.memory_space<vmem>>, vector<1x1x1024xf32>
      %24 = vector.shape_cast %23 : vector<1x1x1024xf32> to vector<1x1024xf32>
      %25 = vector.shape_cast %16 : vector<1x1024xf32> to vector<1x1x1024xf32>
      tpu.vector_store %arg6[%c0_14, %c0_15, %c0_16], %25 {strides = array<i32>} : memref<1x1x1024xf32, #tpu.memory_space<vmem>>, vector<1x1x1024xf32>,
    } else {
    }
    %c0_i32_12 = arith.constant 0 : i32
    %20 = arith.cmpi sgt, %arg1, %c0_i32_12 : i32
    %21 = arith.extui %20 : i1 to i32
    %c0_i32_13 = arith.constant 0 : i32
    %22 = arith.cmpi ne, %21, %c0_i32_13 : i32
    scf.if %22 {
      %c0_14 = arith.constant 0 : index
      %c0_15 = arith.constant 0 : index
      %c0_16 = arith.constant 0 : index
      %23 = vector.load %arg6[%c0_14, %c0_15, %c0_16] : memref<1x1x1024xf32, #tpu.memory_space<vmem>>, vector<1x1x1024xf32>
      %24 = vector.shape_cast %23 : vector<1x1x1024xf32> to vector<1x1024xf32>
      %25 = arith.maximumf %24, %16 : vector<1x1024xf32>
      %c0_17 = arith.constant 0 : index
      %c0_18 = arith.constant 0 : index
      %c0_19 = arith.constant 0 : index
      %26 = vector.load %arg6[%c0_17, %c0_18, %c0_19] : memref<1x1x1024xf32, #tpu.memory_space<vmem>>, vector<1x1x1024xf32>
      %27 = vector.shape_cast %26 : vector<1x1x1024xf32> to vector<1x1024xf32>
      %28 = vector.shape_cast %25 : vector<1x1024xf32> to vector<1x1x1024xf32>
      tpu.vector_store %arg6[%c0_17, %c0_18, %c0_19], %28 {strides = array<i32>} : memref<1x1x1024xf32, #tpu.memory_space<vmem>>, vector<1x1x1024xf32>,
    } else {
    }
    return
  }
  func.func @transform_0(%arg0: i32, %arg1: i32) -> (i32, i32, i32) {
    %c0_i32 = arith.constant 0 : i32
    %c0_i32_0 = arith.constant 0 : i32
    return %arg0, %arg1, %c0_i32 : i32, i32, i32
  }
  func.func @transform_1(%arg0: i32, %arg1: i32) -> (i32, i32) {
    %c0_i32 = arith.constant 0 : i32
    %c0_i32_0 = arith.constant 0 : i32
    %c0_i32_1 = arith.constant 0 : i32
    return %c0_i32, %c0_i32_0 : i32, i32
  }
  func.func @transform_2(%arg0: i32, %arg1: i32) -> (i32, i32) {
    %c0_i32 = arith.constant 0 : i32
    %c0_i32_0 = arith.constant 0 : i32
    %c0_i32_1 = arith.constant 0 : i32
    return %c0_i32, %c0_i32_0 : i32, i32
  }
  func.func @transform_3(%arg0: i32, %arg1: i32) -> (i32, i32) {
    %c0_i32 = arith.constant 0 : i32
    %c0_i32_0 = arith.constant 0 : i32
    %c0_i32_1 = arith.constant 0 : i32
    return %c0_i32, %c0_i32_0 : i32, i32
  }
  func.func @transform_4(%arg0: i32, %arg1: i32) -> (i32, i32, i32) {
    %c0_i32 = arith.constant 0 : i32
    %c0_i32_0 = arith.constant 0 : i32
    %c0_i32_1 = arith.constant 0 : i32
    return %arg0, %c0_i32, %c0_i32_0 : i32, i32, i32
  }
}

module attributes {stable_mosaic.version = 11 : i64} {
  func.func @_head_kernel(%arg0: memref<2x1024xf32, #tpu.memory_space<vmem>>, %arg1: memref<1024x512xbf16, #tpu.memory_space<vmem>>, %arg2: memref<1x512xf32, #tpu.memory_space<vmem>>, %arg3: memref<1x512xf32, #tpu.memory_space<vmem>>, %arg4: memref<512x256xbf16, #tpu.memory_space<vmem>>, %arg5: memref<1x256xf32, #tpu.memory_space<vmem>>, %arg6: memref<1x256xf32, #tpu.memory_space<vmem>>, %arg7: memref<256x9xf32, #tpu.memory_space<vmem>>, %arg8: memref<1x9xf32, #tpu.memory_space<vmem>>, %arg9: memref<2x9xf32, #tpu.memory_space<vmem>>) attributes {dimension_semantics = [], scalar_prefetch = 0 : i64, scratch_operands = 0 : i64, tpu.core_type = #tpu.core_type<tc>} {
    %c0 = arith.constant 0 : index
    %c0_0 = arith.constant 0 : index
    %0 = vector.load %arg0[%c0, %c0_0] : memref<2x1024xf32, #tpu.memory_space<vmem>>, vector<2x1024xf32>
    %1 = arith.truncf %0 : vector<2x1024xf32> to vector<2x1024xbf16>
    %c0_1 = arith.constant 0 : index
    %c0_2 = arith.constant 0 : index
    %2 = vector.load %arg1[%c0_1, %c0_2] : memref<1024x512xbf16, #tpu.memory_space<vmem>>, vector<1024x512xbf16>
    %cst = arith.constant dense<0.000000e+00> : vector<2x512xf32>
    %3 = tpu.matmul %1, %2, %cst {dimension_numbers = #tpu.dot_dimension_numbers<[1], [0], [0], [1], [0, 0, 1, 1], [], []>} : vector<2x1024xbf16>, vector<1024x512xbf16>, vector<2x512xf32> -> vector<2x512xf32>
    %c0_3 = arith.constant 0 : index
    %c0_4 = arith.constant 0 : index
    %4 = vector.load %arg2[%c0_3, %c0_4] : memref<1x512xf32, #tpu.memory_space<vmem>>, vector<1x512xf32>
    %c0_5 = arith.constant 0 : index
    %c0_6 = arith.constant 0 : index
    %5 = vector.load %arg3[%c0_5, %c0_6] : memref<1x512xf32, #tpu.memory_space<vmem>>, vector<1x512xf32>
    %cst_7 = arith.constant dense<0.000000e+00> : vector<512xf32>
    %6 = vector.multi_reduction <add>, %3, %cst_7 [0] : vector<2x512xf32> to vector<512xf32>
    %7 = vector.shape_cast %6 : vector<512xf32> to vector<1x512xf32>
    %cst_8 = arith.constant 2.000000e+00 : f32
    %8 = vector.broadcast %cst_8 : f32 to vector<1x512xf32>
    %9 = arith.divf %7, %8 : vector<1x512xf32>
    %10 = arith.mulf %3, %3 : vector<2x512xf32>
    %cst_9 = arith.constant dense<0.000000e+00> : vector<512xf32>
    %11 = vector.multi_reduction <add>, %10, %cst_9 [0] : vector<2x512xf32> to vector<512xf32>
    %12 = vector.shape_cast %11 : vector<512xf32> to vector<1x512xf32>
    %cst_10 = arith.constant 2.000000e+00 : f32
    %13 = vector.broadcast %cst_10 : f32 to vector<1x512xf32>
    %14 = arith.divf %12, %13 : vector<1x512xf32>
    %15 = arith.mulf %9, %9 : vector<1x512xf32>
    %16 = arith.subf %14, %15 : vector<1x512xf32>
    %cst_11 = arith.constant 0.000000e+00 : f32
    %17 = vector.broadcast %cst_11 : f32 to vector<1x512xf32>
    %18 = arith.maximumf %16, %17 : vector<1x512xf32>
    %19 = vector.broadcast %9 : vector<1x512xf32> to vector<2x512xf32>
    %20 = arith.subf %3, %19 : vector<2x512xf32>
    %cst_12 = arith.constant 9.99999974E-6 : f32
    %21 = vector.broadcast %cst_12 : f32 to vector<1x512xf32>
    %22 = arith.addf %18, %21 : vector<1x512xf32>
    %23 = math.rsqrt %22 : vector<1x512xf32>
    %24 = vector.broadcast %23 : vector<1x512xf32> to vector<2x512xf32>
    %25 = arith.mulf %20, %24 : vector<2x512xf32>
    %26 = vector.broadcast %4 : vector<1x512xf32> to vector<2x512xf32>
    %27 = arith.mulf %25, %26 : vector<2x512xf32>
    %28 = vector.broadcast %5 : vector<1x512xf32> to vector<2x512xf32>
    %29 = arith.addf %27, %28 : vector<2x512xf32>
    %cst_13 = arith.constant 0.000000e+00 : f32
    %30 = vector.broadcast %cst_13 : f32 to vector<2x512xf32>
    %31 = arith.cmpf oge, %29, %30 : vector<2x512xf32>
    %cst_14 = arith.constant 2.000000e-01 : f32
    %32 = vector.broadcast %cst_14 : f32 to vector<2x512xf32>
    %33 = arith.mulf %32, %29 : vector<2x512xf32>
    %34 = arith.select %31, %29, %33 : vector<2x512xi1>, vector<2x512xf32>
    %35 = arith.truncf %34 : vector<2x512xf32> to vector<2x512xbf16>
    %c0_15 = arith.constant 0 : index
    %c0_16 = arith.constant 0 : index
    %36 = vector.load %arg4[%c0_15, %c0_16] : memref<512x256xbf16, #tpu.memory_space<vmem>>, vector<512x256xbf16>
    %cst_17 = arith.constant dense<0.000000e+00> : vector<2x256xf32>
    %37 = tpu.matmul %35, %36, %cst_17 {dimension_numbers = #tpu.dot_dimension_numbers<[1], [0], [0], [1], [0, 0, 1, 1], [], []>} : vector<2x512xbf16>, vector<512x256xbf16>, vector<2x256xf32> -> vector<2x256xf32>
    %c0_18 = arith.constant 0 : index
    %c0_19 = arith.constant 0 : index
    %38 = vector.load %arg5[%c0_18, %c0_19] : memref<1x256xf32, #tpu.memory_space<vmem>>, vector<1x256xf32>
    %c0_20 = arith.constant 0 : index
    %c0_21 = arith.constant 0 : index
    %39 = vector.load %arg6[%c0_20, %c0_21] : memref<1x256xf32, #tpu.memory_space<vmem>>, vector<1x256xf32>
    %cst_22 = arith.constant dense<0.000000e+00> : vector<256xf32>
    %40 = vector.multi_reduction <add>, %37, %cst_22 [0] : vector<2x256xf32> to vector<256xf32>
    %41 = vector.shape_cast %40 : vector<256xf32> to vector<1x256xf32>
    %cst_23 = arith.constant 2.000000e+00 : f32
    %42 = vector.broadcast %cst_23 : f32 to vector<1x256xf32>
    %43 = arith.divf %41, %42 : vector<1x256xf32>
    %44 = arith.mulf %37, %37 : vector<2x256xf32>
    %cst_24 = arith.constant dense<0.000000e+00> : vector<256xf32>
    %45 = vector.multi_reduction <add>, %44, %cst_24 [0] : vector<2x256xf32> to vector<256xf32>
    %46 = vector.shape_cast %45 : vector<256xf32> to vector<1x256xf32>
    %cst_25 = arith.constant 2.000000e+00 : f32
    %47 = vector.broadcast %cst_25 : f32 to vector<1x256xf32>
    %48 = arith.divf %46, %47 : vector<1x256xf32>
    %49 = arith.mulf %43, %43 : vector<1x256xf32>
    %50 = arith.subf %48, %49 : vector<1x256xf32>
    %cst_26 = arith.constant 0.000000e+00 : f32
    %51 = vector.broadcast %cst_26 : f32 to vector<1x256xf32>
    %52 = arith.maximumf %50, %51 : vector<1x256xf32>
    %53 = vector.broadcast %43 : vector<1x256xf32> to vector<2x256xf32>
    %54 = arith.subf %37, %53 : vector<2x256xf32>
    %cst_27 = arith.constant 9.99999974E-6 : f32
    %55 = vector.broadcast %cst_27 : f32 to vector<1x256xf32>
    %56 = arith.addf %52, %55 : vector<1x256xf32>
    %57 = math.rsqrt %56 : vector<1x256xf32>
    %58 = vector.broadcast %57 : vector<1x256xf32> to vector<2x256xf32>
    %59 = arith.mulf %54, %58 : vector<2x256xf32>
    %60 = vector.broadcast %38 : vector<1x256xf32> to vector<2x256xf32>
    %61 = arith.mulf %59, %60 : vector<2x256xf32>
    %62 = vector.broadcast %39 : vector<1x256xf32> to vector<2x256xf32>
    %63 = arith.addf %61, %62 : vector<2x256xf32>
    %cst_28 = arith.constant 0.000000e+00 : f32
    %64 = vector.broadcast %cst_28 : f32 to vector<2x256xf32>
    %65 = arith.cmpf oge, %63, %64 : vector<2x256xf32>
    %cst_29 = arith.constant 2.000000e-01 : f32
    %66 = vector.broadcast %cst_29 : f32 to vector<2x256xf32>
    %67 = arith.mulf %66, %63 : vector<2x256xf32>
    %68 = arith.select %65, %63, %67 : vector<2x256xi1>, vector<2x256xf32>
    %c0_30 = arith.constant 0 : index
    %c0_31 = arith.constant 0 : index
    %69 = vector.load %arg7[%c0_30, %c0_31] : memref<256x9xf32, #tpu.memory_space<vmem>>, vector<256x9xf32>
    %cst_32 = arith.constant dense<0.000000e+00> : vector<2x9xf32>
    %70 = tpu.matmul %68, %69, %cst_32 {dimension_numbers = #tpu.dot_dimension_numbers<[1], [0], [0], [1], [0, 0, 1, 1], [], []>} : vector<2x256xf32>, vector<256x9xf32>, vector<2x9xf32> -> vector<2x9xf32>
    %c0_33 = arith.constant 0 : index
    %c0_34 = arith.constant 0 : index
    %71 = vector.load %arg8[%c0_33, %c0_34] : memref<1x9xf32, #tpu.memory_space<vmem>>, vector<1x9xf32>
    %72 = vector.broadcast %71 : vector<1x9xf32> to vector<2x9xf32>
    %73 = arith.addf %70, %72 : vector<2x9xf32>
    %c0_35 = arith.constant 0 : index
    %c0_36 = arith.constant 0 : index
    %74 = vector.load %arg9[%c0_35, %c0_36] : memref<2x9xf32, #tpu.memory_space<vmem>>, vector<2x9xf32>
    tpu.vector_store %arg9[%c0_35, %c0_36], %73 {strides = array<i32>} : memref<2x9xf32, #tpu.memory_space<vmem>>, vector<2x9xf32>,
    return
  }
}

module attributes {stable_mosaic.version = 11 : i64} {
  func.func @_bmm_kernel(%arg0: i32, %arg1: memref<1x3x32xf32, #tpu.memory_space<vmem>>, %arg2: memref<1x3x3xf32, #tpu.memory_space<vmem>>, %arg3: memref<1x3x32xf32, #tpu.memory_space<vmem>>) attributes {dimension_semantics = [#tpu.dimension_semantics<parallel>], iteration_bounds = array<i64: 2>, scalar_prefetch = 0 : i64, scratch_operands = 0 : i64, tpu.core_type = #tpu.core_type<tc>, window_params = [{transform_indices = @transform_0, window_bounds = array<i64: 1, 3, 32>}, {transform_indices = @transform_1, window_bounds = array<i64: 1, 3, 3>}, {transform_indices = @transform_2, window_bounds = array<i64: 1, 3, 32>}]} {
    %c0 = arith.constant 0 : index
    %c0_0 = arith.constant 0 : index
    %c0_1 = arith.constant 0 : index
    %0 = vector.load %arg1[%c0, %c0_0, %c0_1] : memref<1x3x32xf32, #tpu.memory_space<vmem>>, vector<1x3x32xf32>
    %c0_2 = arith.constant 0 : index
    %c0_3 = arith.constant 0 : index
    %c0_4 = arith.constant 0 : index
    %1 = vector.load %arg2[%c0_2, %c0_3, %c0_4] : memref<1x3x3xf32, #tpu.memory_space<vmem>>, vector<1x3x3xf32>
    %2 = vector.extract_strided_slice %1 {offsets = [0, 0, 0], sizes = [1, 1, 3], strides = [1, 1, 1]} : vector<1x3x3xf32> to vector<1x1x3xf32>
    %3 = vector.shape_cast %2 : vector<1x1x3xf32> to vector<1x3xf32>
    %4 = vector.shape_cast %3 : vector<1x3xf32> to vector<1x3x1xf32>
    %5 = vector.extract_strided_slice %0 {offsets = [0, 0, 0], sizes = [1, 1, 32], strides = [1, 1, 1]} : vector<1x3x32xf32> to vector<1x1x32xf32>
    %6 = vector.shape_cast %5 : vector<1x1x32xf32> to vector<1x32xf32>
    %7 = vector.shape_cast %6 : vector<1x32xf32> to vector<1x1x32xf32>
    %8 = vector.broadcast %4 : vector<1x3x1xf32> to vector<1x3x32xf32>
    %9 = vector.broadcast %7 : vector<1x1x32xf32> to vector<1x3x32xf32>
    %10 = arith.mulf %8, %9 : vector<1x3x32xf32>
    %11 = vector.extract_strided_slice %1 {offsets = [0, 1, 0], sizes = [1, 1, 3], strides = [1, 1, 1]} : vector<1x3x3xf32> to vector<1x1x3xf32>
    %12 = vector.shape_cast %11 : vector<1x1x3xf32> to vector<1x3xf32>
    %13 = vector.shape_cast %12 : vector<1x3xf32> to vector<1x3x1xf32>
    %14 = vector.extract_strided_slice %0 {offsets = [0, 1, 0], sizes = [1, 1, 32], strides = [1, 1, 1]} : vector<1x3x32xf32> to vector<1x1x32xf32>
    %15 = vector.shape_cast %14 : vector<1x1x32xf32> to vector<1x32xf32>
    %16 = vector.shape_cast %15 : vector<1x32xf32> to vector<1x1x32xf32>
    %17 = vector.broadcast %13 : vector<1x3x1xf32> to vector<1x3x32xf32>
    %18 = vector.broadcast %16 : vector<1x1x32xf32> to vector<1x3x32xf32>
    %19 = arith.mulf %17, %18 : vector<1x3x32xf32>
    %20 = arith.addf %10, %19 : vector<1x3x32xf32>
    %21 = vector.extract_strided_slice %1 {offsets = [0, 2, 0], sizes = [1, 1, 3], strides = [1, 1, 1]} : vector<1x3x3xf32> to vector<1x1x3xf32>
    %22 = vector.shape_cast %21 : vector<1x1x3xf32> to vector<1x3xf32>
    %23 = vector.shape_cast %22 : vector<1x3xf32> to vector<1x3x1xf32>
    %24 = vector.extract_strided_slice %0 {offsets = [0, 2, 0], sizes = [1, 1, 32], strides = [1, 1, 1]} : vector<1x3x32xf32> to vector<1x1x32xf32>
    %25 = vector.shape_cast %24 : vector<1x1x32xf32> to vector<1x32xf32>
    %26 = vector.shape_cast %25 : vector<1x32xf32> to vector<1x1x32xf32>
    %27 = vector.broadcast %23 : vector<1x3x1xf32> to vector<1x3x32xf32>
    %28 = vector.broadcast %26 : vector<1x1x32xf32> to vector<1x3x32xf32>
    %29 = arith.mulf %27, %28 : vector<1x3x32xf32>
    %30 = arith.addf %20, %29 : vector<1x3x32xf32>
    %c0_5 = arith.constant 0 : index
    %c0_6 = arith.constant 0 : index
    %c0_7 = arith.constant 0 : index
    %31 = vector.load %arg3[%c0_5, %c0_6, %c0_7] : memref<1x3x32xf32, #tpu.memory_space<vmem>>, vector<1x3x32xf32>
    tpu.vector_store %arg3[%c0_5, %c0_6, %c0_7], %30 {strides = array<i32>} : memref<1x3x32xf32, #tpu.memory_space<vmem>>, vector<1x3x32xf32>,
    return
  }
  func.func @transform_0(%arg0: i32) -> (i32, i32, i32) {
    %c0_i32 = arith.constant 0 : i32
    %c0_i32_0 = arith.constant 0 : i32
    %c0_i32_1 = arith.constant 0 : i32
    return %arg0, %c0_i32, %c0_i32_0 : i32, i32, i32
  }
  func.func @transform_1(%arg0: i32) -> (i32, i32, i32) {
    %c0_i32 = arith.constant 0 : i32
    %c0_i32_0 = arith.constant 0 : i32
    %c0_i32_1 = arith.constant 0 : i32
    return %arg0, %c0_i32, %c0_i32_0 : i32, i32, i32
  }
  func.func @transform_2(%arg0: i32) -> (i32, i32, i32) {
    %c0_i32 = arith.constant 0 : i32
    %c0_i32_0 = arith.constant 0 : i32
    %c0_i32_1 = arith.constant 0 : i32
    return %arg0, %c0_i32, %c0_i32_0 : i32, i32, i32
  }
}

</mosaic_0001>

<llo_original>
// kernel: position_embedding_forward.6
$region0: #{position_embedding_forward.6}
  #allocation0 [shape = 'u32[]', space=smem, size = 0x4, offset = 0x4, fixed_abs, tag = 'smem constant byte address 0x4 - core index']
  #allocation1 [shape = 'u32[144,128]{1,0:T(1,128)}', space=vmem, size = 0x12000, scoped, tag = 'internal scratch']
  #allocation2 [shape = 'f32[16,8]{1,0:T(8,128)}', space=vmem, size = 0x2000, scoped, tag = 'scratch operand']
  #allocation3 [shape = 'f32[16,8]{1,0:T(8,128)}', space=vmem, size = 0x2000, scoped, tag = 'scratch operand']
  %s0 = inlined_call_operand.vmem [shape: f32[2,32,3], index: 0, kind: input, shape index: {}]
  %s1 = inlined_call_operand.vmem [shape: f32[2,3,32], index: 1, kind: input, shape index: {}]
  %s2 = inlined_call_operand.vmem [shape: s32[2,32,8], index: 2, kind: output, shape index: {}]
  %s3 = sld [smem:[#allocation0]]
  $region49: #{position_embedding_forward.6} parent=0
    _
  %s5 = ssub.s32 1, %s3
  %s6 = scalar_select 0, %s5, %s3
  loop: start=0, step=1, limit=6
  $region2: #{position_embedding_forward.6} parent=0 // loop_pre_header
    _
  $region3: #{position_embedding_forward.6} parent=0 // loop_header
    %s8 = sphi 0, %s12
    %p9 = scmp.ge.s32.totalorder %s8, 6
    %s15 = sphi 0, %s34
    %s16 = sphi 0, %s30
    %s17 = sphi 0, %s26
    %s18 = sphi 0, %s15
    %s19 = sphi 0, %s16
    %s20 = sphi 0, %s17
    %s21 = sphi 0, %s18
    %s22 = sphi 0, %s19
    %s23 = sphi 0, %s20
    %s39 = sphi 0, %s41
    %s42 = sphi 0, %s39
    %s43 = sphi 0, %s42
    %s59 = sphi 0, %s43
    %s67 = sphi 0, %s69
    %s70 = sphi 0, %s67
    %s71 = sphi 0, %s70
    %s87 = sphi 0, %s71
    %s95 = sphi 0, %s97
    %s98 = sphi 0, %s95
    %s99 = sphi 0, %s98
    %s115 = sphi 0, %s99
  $region4: #{position_embedding_forward.6} parent=0 // loop_header_branch
    %11 = sbr.rel (%p9) target = $region8
  $region5: #{position_embedding_forward.6} parent=0 // loop_body
    %s13 = ssub.s32 %s8, 1
    %s14 = ssub.s32 %s8, 2
    %s24 = sadd.s32 1, %s17
    %p25 = scmp.ge.s32.totalorder %s24, 1
    %s26 = scalar_select %p25, 0, %s24
    %s27 = sadd.s32 1, %s16
    %s28 = scalar_select %p25, %s27, %s16
    %p29 = scmp.ge.s32.totalorder %s28, 2
    %s30 = scalar_select %p29, 0, %s28
    %s31 = sadd.s32 1, %s15
    %s32 = scalar_select %p29, %s31, %s15
    %p33 = scmp.ge.s32.totalorder %s32, 2
    %s34 = scalar_select %p33, 0, %s32
    %s35 = ssub.s32 %s15, %s34
    %s36 = ssub.s32 %s16, %s30
    %s37 = sor.u32 %s35, %s36
    %p38 = scmp.eq.s32.totalorder %s37, 0
    %s40 = sadd.s32 %s39, 1
    %s41 = scalar_select %p38, %s39, %s40
    %p44 = pneg %p38
    %p45 = scmp.eq.s32.totalorder %s8, 3
    %p46 = por %p44, %p45
    %p47 = scmp.ne.s32.totalorder %s39, %s42
    %p48 = scmp.eq.s32.totalorder %s8, 0
    %p49 = por %p47, %p48
    %p50 = scmp.ne.s32.totalorder %s39, %s42
    %p51 = scmp.eq.s32.totalorder %s13, 3
    %p52 = por %p50, %p51
    %p53 = scmp.ne.s32.totalorder %s42, %s43
    %p54 = scmp.eq.s32.totalorder %s13, 0
    %p55 = por %p53, %p54
    %p56 = scmp.ne.s32.totalorder %s42, %s43
    %p57 = scmp.eq.s32.totalorder %s14, 3
    %p58 = por %p56, %p57
    %p60 = scmp.ne.s32.totalorder %s43, %s59
    %p61 = scmp.eq.s32.totalorder %s14, 0
    %p62 = por %p60, %p61
    %s63 = ssub.s32 %s15, %s34
    %s64 = ssub.s32 %s17, %s26
    %s65 = sor.u32 %s63, %s64
    %p66 = scmp.eq.s32.totalorder %s65, 0
    %s68 = sadd.s32 %s67, 1
    %s69 = scalar_select %p66, %s67, %s68
    %p72 = pneg %p66
    %p73 = scmp.eq.s32.totalorder %s8, 3
    %p74 = por %p72, %p73
    %p75 = scmp.ne.s32.totalorder %s67, %s70
    %p76 = scmp.eq.s32.totalorder %s8, 0
    %p77 = por %p75, %p76
    %p78 = scmp.ne.s32.totalorder %s67, %s70
    %p79 = scmp.eq.s32.totalorder %s13, 3
    %p80 = por %p78, %p79
    %p81 = scmp.ne.s32.totalorder %s70, %s71
    %p82 = scmp.eq.s32.totalorder %s13, 0
    %p83 = por %p81, %p82
    %p84 = scmp.ne.s32.totalorder %s70, %s71
    %p85 = scmp.eq.s32.totalorder %s14, 3
    %p86 = por %p84, %p85
    %p88 = scmp.ne.s32.totalorder %s71, %s87
    %p89 = scmp.eq.s32.totalorder %s14, 0
    %p90 = por %p88, %p89
    %s91 = ssub.s32 %s15, %s34
    %s92 = ssub.s32 %s16, %s30
    %s93 = sor.u32 %s91, %s92
    %p94 = scmp.eq.s32.totalorder %s93, 0
    %s96 = sadd.s32 %s95, 1
    %s97 = scalar_select %p94, %s95, %s96
    %p100 = pneg %p94
    %p101 = scmp.eq.s32.totalorder %s8, 3
    %p102 = por %p100, %p101
    %p103 = scmp.ne.s32.totalorder %s95, %s98
    %p104 = scmp.eq.s32.totalorder %s8, 0
    %p105 = por %p103, %p104
    %p106 = scmp.ne.s32.totalorder %s95, %s98
    %p107 = scmp.eq.s32.totalorder %s13, 3
    %p108 = por %p106, %p107
    %p109 = scmp.ne.s32.totalorder %s98, %s99
    %p110 = scmp.eq.s32.totalorder %s13, 0
    %p111 = por %p109, %p110
    %p112 = scmp.ne.s32.totalorder %s98, %s99
    %p113 = scmp.eq.s32.totalorder %s14, 3
    %p114 = por %p112, %p113
    %p116 = scmp.ne.s32.totalorder %s99, %s115
    %p117 = scmp.eq.s32.totalorder %s14, 0
    %p118 = por %p116, %p117
    %p119 = scmp.le.s32.totalorder 1, %s8
    %p120 = scmp.lt.s32.totalorder %s8, 5
    %p121 = pnand %p119, %p120
    %p122 = pneg %p121
    // Predicated region
    $region9: #{position_embedding_forward.6} parent=5 // pred_check
      _
    $region10: #{position_embedding_forward.6} parent=5 // pred_check_branch
      %124 = sbr.rel (%p121) target = $region12
    $region11: #{position_embedding_forward.6} parent=5 // pred_region
      %s125 = ssub.s32 %s8, 1
    $region12: #{position_embedding_forward.6} parent=5 // pred_fallthru
      _
    %p126 = scmp.lt.s32.totalorder %s8, 4
    // Predicated region
    $region13: #{position_embedding_forward.6} parent=5 // pred_check
      %p127 = pneg %p126
    $region14: #{position_embedding_forward.6} parent=5 // pred_check_branch
      %129 = sbr.rel (%p127) target = $region16
    $region15: #{position_embedding_forward.6} parent=5 // pred_region
      // Predicated region
      $region17: #{position_embedding_forward.6} parent=15 // pred_check
        %p130 = pneg %p49
      $region18: #{position_embedding_forward.6} parent=15 // pred_check_branch
        %132 = sbr.rel (%p130) target = $region20
      $region19: #{position_embedding_forward.6} parent=15 // pred_region
        %s133 = smul.u32 2, %s16
        %p134 = scmp.lt.s32.totalorder %s15, 1
        %s135 = scalar_select %p134, %s15, 1
        %p136 = scmp.lt.s32.totalorder %s133, 3
        %s137 = scalar_select %p136, %s133, 3
        %s138 = smul.addr %s135, 4
        %s139 = sadd.s32 %s137, %s138
        %s140 = smul.addr %s139, 8
        %s141 = scalar_lea.vmem %s0, %s140
        %s142 = smul.u32 2, %s16
      $region20: #{position_embedding_forward.6} parent=15 // pred_fallthru
        _
      // Predicated region
      $region21: #{position_embedding_forward.6} parent=15 // pred_check
        %p143 = pneg %p77
      $region22: #{position_embedding_forward.6} parent=15 // pred_check_branch
        %145 = sbr.rel (%p143) target = $region24
      $region23: #{position_embedding_forward.6} parent=15 // pred_region
        %p146 = scmp.lt.s32.totalorder %s15, 1
        %s147 = scalar_select %p146, %s15, 1
        %p148 = scmp.lt.s32.totalorder %s17, 0
        %s149 = scalar_select %p148, %s17, 0
        %s150 = sadd.s32 %s149, %s147
        %s151 = smul.addr %s150, 4
        %s152 = scalar_lea.vmem %s1, %s151
      $region24: #{position_embedding_forward.6} parent=15 // pred_fallthru
        _
    $region16: #{position_embedding_forward.6} parent=5 // pred_fallthru
      _
    %p153 = scmp.le.s32.totalorder 1, %s8
    %p154 = scmp.lt.s32.totalorder %s8, 5
    %p155 = pnand %p153, %p154
    %p156 = pneg %p155
    // Predicated region
    $region25: #{position_embedding_forward.6} parent=5 // pred_check
      _
    $region26: #{position_embedding_forward.6} parent=5 // pred_check_branch
      %158 = sbr.rel (%p155) target = $region28
    $region27: #{position_embedding_forward.6} parent=5 // pred_region
      %s159 = ssub.s32 %s8, 1
      %s160 = smul.u32 2, %s19
      %p161 = scmp.lt.s32.totalorder %s18, 1
      %s162 = scalar_select %p161, %s18, 1
      %p163 = scmp.lt.s32.totalorder %s160, 3
      %s164 = scalar_select %p163, %s160, 3
      %s165 = smul.addr %s162, 4
      %s166 = sadd.s32 %s164, %s165
      %s167 = smul.addr %s166, 8
      %s168 = scalar_lea.vmem %s0, %s167
      %p169 = pneg %p55
      %p170 = pneg %p52
      %p171 = scmp.lt.s32.totalorder %s18, 1
      %s172 = scalar_select %p171, %s18, 1
      %p173 = scmp.lt.s32.totalorder %s20, 0
      %s174 = scalar_select %p173, %s20, 0
      %s175 = sadd.s32 %s174, %s172
      %s176 = smul.addr %s175, 4
      %s177 = scalar_lea.vmem %s1, %s176
      %p178 = pneg %p83
      %p179 = pneg %p80
      %p180 = pneg %p111
      %p181 = pneg %p108
      %s182 = smul.u32 2, %s19
      %p183 = scmp.lt.s32.totalorder %s18, 1
      %s184 = scalar_select %p183, %s18, 1
      %p185 = scmp.lt.s32.totalorder %s182, 3
      %s186 = scalar_select %p185, %s182, 3
      %s187 = smul.addr %s184, 4
      %s188 = sadd.s32 %s186, %s187
      %s189 = smul.addr %s188, 8
      %s190 = scalar_lea.vmem %s2, %s189
      %s191 = smul.u32 2, %s19
      %p192 = scmp.lt.s32.totalorder %s18, 1
      %s193 = scalar_select %p192, %s18, 1
      %p194 = scmp.lt.s32.totalorder %s191, 3
      %s195 = scalar_select %p194, %s191, 3
      %s196 = smul.addr %s193, 4
      %s197 = sadd.s32 %s195, %s196
      %s198 = smul.addr %s197, 8
      %s199 = scalar_lea.vmem %s0, %s198
      %s200 = smul.u32 2, %s19
      %p201 = scmp.lt.s32.totalorder %s18, 1
      %s202 = scalar_select %p201, %s18, 1
      %p203 = scmp.lt.s32.totalorder %s20, 0
      %s204 = scalar_select %p203, %s20, 0
      %s205 = sadd.s32 %s204, %s202
      %s206 = smul.addr %s205, 4
      %s207 = scalar_lea.vmem %s1, %s206
      %s208 = smul.u32 2, %s19
      %p209 = scmp.lt.s32.totalorder %s18, 1
      %s210 = scalar_select %p209, %s18, 1
      %p211 = scmp.lt.s32.totalorder %s208, 3
      %s212 = scalar_select %p211, %s208, 3
      %s213 = smul.addr %s210, 4
      %s214 = sadd.s32 %s212, %s213
      %s215 = smul.addr %s214, 8
      %s216 = scalar_lea.vmem %s2, %s215
      %s217 = smul.u32 2, %s19
      %v218 = vld [vmem:[%s199] sm:$0xff]
      %v219 = vld [vmem:[%s199 + $0x8] sm:$0xff]
      %v220 = vld [vmem:[%s207] sm:$0x7]
      %222 = vset.pattern.permute.xlu0 0
      %223 = vperm.xlu0 %222, %v218
      %v224 = vpop.permute.xlu0 %223
      %227 = vset.pattern.permute.xlu0 0
      %228 = vperm.xlu0 %227, %v219
      %v229 = vpop.permute.xlu0 %228
      %v231 = vlaneseq
      %v232 = vshrl.u32 %v231, 7
      %v233 = vsub.s32 0, %v232
      %v234 = vrot.slane %v220, %v233
      %v235 = vmul.f32 %v224, %v234
      %v236 = vmul.f32 %v229, %v234
      %237 = vset.pattern.permute.xlu0 1
      %238 = vperm.xlu0 %237, %v218
      %v239 = vpop.permute.xlu0 %238
      %241 = vset.pattern.permute.xlu0 1
      %242 = vperm.xlu0 %241, %v219
      %v243 = vpop.permute.xlu0 %242
      %v245 = vlaneseq
      %v246 = vshrl.u32 %v245, 7
      %v247 = vsub.s32 1, %v246
      %v248 = vrot.slane %v220, %v247
      %v249 = vmul.f32 %v239, %v248
      %v250 = vmul.f32 %v243, %v248
      %v251 = vadd.f32 %v235, %v249
      %v252 = vadd.f32 %v236, %v250
      %253 = vset.pattern.permute.xlu0 2
      %254 = vperm.xlu0 %253, %v218
      %v255 = vpop.permute.xlu0 %254
      %257 = vset.pattern.permute.xlu0 2
      %258 = vperm.xlu0 %257, %v219
      %v259 = vpop.permute.xlu0 %258
      %v261 = vlaneseq
      %v262 = vshrl.u32 %v261, 7
      %v263 = vsub.s32 2, %v262
      %v264 = vrot.slane %v220, %v263
      %v265 = vmul.f32 %v255, %v264
      %v266 = vmul.f32 %v259, %v264
      %v267 = vadd.f32 %v251, %v265
      %v268 = vadd.f32 %v252, %v266
      %v269 = vmul.f32 %v267, 2.0
      %v270 = vmul.f32 %v268, 2.0
      %v271 = vmul.f32 %v218, %v218
      %v272 = vmul.f32 %v219, %v219
      %275 = vrot.lane.b32.xlu0 %v271, 127
      %v276 = vpop.permute.xlu0 %275
      %277 = vrot.lane.b32.xlu0 %v272, 127
      %v278 = vpop.permute.xlu0 %277
      %v281 = vadd.f32 %v271, %v276
      %v282 = vadd.f32 %v272, %v278
      %283 = vrot.lane.b32.xlu0 %v271, 126
      %v284 = vpop.permute.xlu0 %283
      %285 = vrot.lane.b32.xlu0 %v272, 126
      %v286 = vpop.permute.xlu0 %285
      %v289 = vadd.f32 %v281, %v284
      %v290 = vadd.f32 %v282, %v286
      %292 = vset.pattern.permute.xlu0 0
      %293 = vperm.xlu0 %292, %v289
      %v294 = vpop.permute.xlu0 %293
      %297 = vset.pattern.permute.xlu0 0
      %298 = vperm.xlu0 %297, %v290
      %v299 = vpop.permute.xlu0 %298
      %v301 = vsub.f32 %v269, %v294
      %v302 = vsub.f32 %v270, %v299
      %v303 = vmul.f32 %v220, %v220
      %v305 = vrot.slane %v303, 1
      %v307 = vadd.f32 %v303, %v305
      %v308 = vrot.slane %v303, 2
      %v310 = vadd.f32 %v307, %v308
      %v311 = vlaneseq
      %v312 = vshrl.u32 %v311, 7
      %v313 = vsub.s32 0, %v312
      %v314 = vrot.slane %v310, %v313
      %v315 = vsub.f32 %v301, %v314
      %v316 = vsub.f32 %v302, %v314
      %s317 = smul.u32 %s20, 32
      %v318 = vlaneseq
      %v319 = vand.u32 %v318, 127
      %v320 = vstv %s317
      %v321 = vadd.s32 %v320, %v319
      %v322 = vcvt.s32.f32 %v321
      %p323 = scmp.eq.s32.totalorder %s20, 0
      // Predicated region
      $region29: #{position_embedding_forward.6} parent=27 // pred_check
        %p324 = pneg %p323
      $region30: #{position_embedding_forward.6} parent=27 // pred_check_branch
        %326 = sbr.rel (%p324) target = $region32
      $region31: #{position_embedding_forward.6} parent=27 // pred_region
        %vm327 = vcmask 64512
        %328 = vst.msk [vmem:[#allocation2] sm:$0xff] %vm327, -inf
        %329 = vst.msk [vmem:[#allocation2 + $0x8] sm:$0xff] %vm327, -inf
        %330 = vst.msk [vmem:[#allocation3] sm:$0xff] %vm327, 0.0
        %331 = vst.msk [vmem:[#allocation3 + $0x8] sm:$0xff] %vm327, 0.0
      $region32: #{position_embedding_forward.6} parent=27 // pred_fallthru
        _
      %v332 = vld [vmem:[#allocation2] sm:$0xff]
      %v333 = vld [vmem:[#allocation2 + $0x8] sm:$0xff]
      %336 = vrot.lane.b32.xlu0 %v315, 8
      %v337 = vpop.permute.xlu0 %336
      %338 = vrot.lane.b32.xlu0 %v316, 8
      %v339 = vpop.permute.xlu0 %338
      %vm342 = vcmask 64512
      %v343 = vsel %vm342, %v332, %v337
      %v344 = vsel %vm342, %v333, %v339
      %v345 = vld [vmem:[#allocation3] sm:$0xff]
      %v346 = vld [vmem:[#allocation3 + $0x8] sm:$0xff]
      %348 = vrot.lane.b32.xlu0 %v322, 8
      %v349 = vpop.permute.xlu0 %348
      %v351 = vsel %vm342, %v345, %v349
      %v352 = vsel %vm342, %v346, %v349
      %v353 = vcvt.s32.f32 %v319
      %vm354 = vcmask 326656
      %v355 = vsel %vm354, %v343, -inf
      %356 = vmax.xlane.f32.xlu0 %v355
      %v357 = vpop.xlane.xlu0 %356
      %v358 = vsel %vm354, %v344, -inf
      %359 = vmax.xlane.f32.xlu0 %v358
      %v360 = vpop.xlane.xlu0 %359
      %vm361 = vcmp.eq.f32.partialorder %v343, %v357
      %vm362 = vcmp.eq.f32.partialorder %v344, %v360
      %v363 = vsel %vm361, %v353, 40.0
      %v364 = vsel %vm362, %v353, 40.0
      %v365 = vsel %vm354, %v363, inf
      %366 = vmin.xlane.f32.xlu0 %v365
      %v367 = vpop.xlane.xlu0 %366
      %v368 = vsel %vm354, %v364, inf
      %369 = vmin.xlane.f32.xlu0 %v368
      %v370 = vpop.xlane.xlu0 %369
      %vm371 = vcmp.eq.f32.partialorder %v353, %v367
      %vm372 = vcmp.eq.f32.partialorder %v353, %v370
      %v373 = vsel %vm371, %v351, -1.0
      %v374 = vsel %vm372, %v352, -1.0
      %v375 = vsel %vm354, %v373, -inf
      %376 = vmax.xlane.f32.xlu0 %v375
      %v377 = vpop.xlane.xlu0 %376
      %v378 = vsel %vm354, %v374, -inf
      %379 = vmax.xlane.f32.xlu0 %v378
      %v380 = vpop.xlane.xlu0 %379
      %vm381 = vcmp.eq.s32.totalorder %v319, 0
      %v382 = vsel %vm381, %v357, 0.0
      %v383 = vsel %vm381, %v360, 0.0
      %v384 = vsel %vm381, %v377, 0.0
      %v385 = vsel %vm381, %v380, 0.0
      %v386 = vsel %vm371, -inf, %v343
      %v387 = vsel %vm372, -inf, %v344
      %v388 = vsel %vm354, %v386, -inf
      %389 = vmax.xlane.f32.xlu0 %v388
      %v390 = vpop.xlane.xlu0 %389
      %v391 = vsel %vm354, %v387, -inf
      %392 = vmax.xlane.f32.xlu0 %v391
      %v393 = vpop.xlane.xlu0 %392
      %vm394 = vcmp.eq.f32.partialorder %v386, %v390
      %vm395 = vcmp.eq.f32.partialorder %v387, %v393
      %v396 = vsel %vm394, %v353, 40.0
      %v397 = vsel %vm395, %v353, 40.0
      %v398 = vsel %vm354, %v396, inf
      %399 = vmin.xlane.f32.xlu0 %v398
      %v400 = vpop.xlane.xlu0 %399
      %v401 = vsel %vm354, %v397, inf
      %402 = vmin.xlane.f32.xlu0 %v401
      %v403 = vpop.xlane.xlu0 %402
      %vm404 = vcmp.eq.f32.partialorder %v353, %v400
      %vm405 = vcmp.eq.f32.partialorder %v353, %v403
      %v406 = vsel %vm404, %v351, -1.0
      %v407 = vsel %vm405, %v352, -1.0
      %v408 = vsel %vm354, %v406, -inf
      %409 = vmax.xlane.f32.xlu0 %v408
      %v410 = vpop.xlane.xlu0 %409
      %v411 = vsel %vm354, %v407, -inf
      %412 = vmax.xlane.f32.xlu0 %v411
      %v413 = vpop.xlane.xlu0 %412
      %vm414 = vcmp.eq.s32.totalorder %v319, 1
      %v415 = vsel %vm414, %v390, %v382
      %v416 = vsel %vm414, %v393, %v383
      %v417 = vsel %vm414, %v410, %v384
      %v418 = vsel %vm414, %v413, %v385
      %v419 = vsel %vm404, -inf, %v386
      %v420 = vsel %vm405, -inf, %v387
      %v421 = vsel %vm354, %v419, -inf
      %422 = vmax.xlane.f32.xlu0 %v421
      %v423 = vpop.xlane.xlu0 %422
      %v424 = vsel %vm354, %v420, -inf
      %425 = vmax.xlane.f32.xlu0 %v424
      %v426 = vpop.xlane.xlu0 %425
      %vm427 = vcmp.eq.f32.partialorder %v419, %v423
      %vm428 = vcmp.eq.f32.partialorder %v420, %v426
      %v429 = vsel %vm427, %v353, 40.0
      %v430 = vsel %vm428, %v353, 40.0
      %v431 = vsel %vm354, %v429, inf
      %432 = vmin.xlane.f32.xlu0 %v431
      %v433 = vpop.xlane.xlu0 %432
      %v434 = vsel %vm354, %v430, inf
      %435 = vmin.xlane.f32.xlu0 %v434
      %v436 = vpop.xlane.xlu0 %435
      %vm437 = vcmp.eq.f32.partialorder %v353, %v433
      %vm438 = vcmp.eq.f32.partialorder %v353, %v436
      %v439 = vsel %vm437, %v351, -1.0
      %v440 = vsel %vm438, %v352, -1.0
      %v441 = vsel %vm354, %v439, -inf
      %442 = vmax.xlane.f32.xlu0 %v441
      %v443 = vpop.xlane.xlu0 %442
      %v444 = vsel %vm354, %v440, -inf
      %445 = vmax.xlane.f32.xlu0 %v444
      %v446 = vpop.xlane.xlu0 %445
      %vm447 = vcmp.eq.s32.totalorder %v319, 2
      %v448 = vsel %vm447, %v423, %v415
      %v449 = vsel %vm447, %v426, %v416
      %v450 = vsel %vm447, %v443, %v417
      %v451 = vsel %vm447, %v446, %v418
      %v452 = vsel %vm437, -inf, %v419
      %v453 = vsel %vm438, -inf, %v420
      %v454 = vsel %vm354, %v452, -inf
      %455 = vmax.xlane.f32.xlu0 %v454
      %v456 = vpop.xlane.xlu0 %455
      %v457 = vsel %vm354, %v453, -inf
      %458 = vmax.xlane.f32.xlu0 %v457
      %v459 = vpop.xlane.xlu0 %458
      %vm460 = vcmp.eq.f32.partialorder %v452, %v456
      %vm461 = vcmp.eq.f32.partialorder %v453, %v459
      %v462 = vsel %vm460, %v353, 40.0
      %v463 = vsel %vm461, %v353, 40.0
      %v464 = vsel %vm354, %v462, inf
      %465 = vmin.xlane.f32.xlu0 %v464
      %v466 = vpop.xlane.xlu0 %465
      %v467 = vsel %vm354, %v463, inf
      %468 = vmin.xlane.f32.xlu0 %v467
      %v469 = vpop.xlane.xlu0 %468
      %vm470 = vcmp.eq.f32.partialorder %v353, %v466
      %vm471 = vcmp.eq.f32.partialorder %v353, %v469
      %v472 = vsel %vm470, %v351, -1.0
      %v473 = vsel %vm471, %v352, -1.0
      %v474 = vsel %vm354, %v472, -inf
      %475 = vmax.xlane.f32.xlu0 %v474
      %v476 = vpop.xlane.xlu0 %475
      %v477 = vsel %vm354, %v473, -inf
      %478 = vmax.xlane.f32.xlu0 %v477
      %v479 = vpop.xlane.xlu0 %478
      %vm480 = vcmp.eq.s32.totalorder %v319, 3
      %v481 = vsel %vm480, %v456, %v448
      %v482 = vsel %vm480, %v459, %v449
      %v483 = vsel %vm480, %v476, %v450
      %v484 = vsel %vm480, %v479, %v451
      %v485 = vsel %vm470, -inf, %v452
      %v486 = vsel %vm471, -inf, %v453
      %v487 = vsel %vm354, %v485, -inf
      %488 = vmax.xlane.f32.xlu0 %v487
      %v489 = vpop.xlane.xlu0 %488
      %v490 = vsel %vm354, %v486, -inf
      %491 = vmax.xlane.f32.xlu0 %v490
      %v492 = vpop.xlane.xlu0 %491
      %vm493 = vcmp.eq.f32.partialorder %v485, %v489
      %vm494 = vcmp.eq.f32.partialorder %v486, %v492
      %v495 = vsel %vm493, %v353, 40.0
      %v496 = vsel %vm494, %v353, 40.0
      %v497 = vsel %vm354, %v495, inf
      %498 = vmin.xlane.f32.xlu0 %v497
      %v499 = vpop.xlane.xlu0 %498
      %v500 = vsel %vm354, %v496, inf
      %501 = vmin.xlane.f32.xlu0 %v500
      %v502 = vpop.xlane.xlu0 %501
      %vm503 = vcmp.eq.f32.partialorder %v353, %v499
      %vm504 = vcmp.eq.f32.partialorder %v353, %v502
      %v505 = vsel %vm503, %v351, -1.0
      %v506 = vsel %vm504, %v352, -1.0
      %v507 = vsel %vm354, %v505, -inf
      %508 = vmax.xlane.f32.xlu0 %v507
      %v509 = vpop.xlane.xlu0 %508
      %v510 = vsel %vm354, %v506, -inf
      %511 = vmax.xlane.f32.xlu0 %v510
      %v512 = vpop.xlane.xlu0 %511
      %vm513 = vcmp.eq.s32.totalorder %v319, 4
      %v514 = vsel %vm513, %v489, %v481
      %v515 = vsel %vm513, %v492, %v482
      %v516 = vsel %vm513, %v509, %v483
      %v517 = vsel %vm513, %v512, %v484
      %v518 = vsel %vm503, -inf, %v485
      %v519 = vsel %vm504, -inf, %v486
      %v520 = vsel %vm354, %v518, -inf
      %521 = vmax.xlane.f32.xlu0 %v520
      %v522 = vpop.xlane.xlu0 %521
      %v523 = vsel %vm354, %v519, -inf
      %524 = vmax.xlane.f32.xlu0 %v523
      %v525 = vpop.xlane.xlu0 %524
      %vm526 = vcmp.eq.f32.partialorder %v518, %v522
      %vm527 = vcmp.eq.f32.partialorder %v519, %v525
      %v528 = vsel %vm526, %v353, 40.0
      %v529 = vsel %vm527, %v353, 40.0
      %v530 = vsel %vm354, %v528, inf
      %531 = vmin.xlane.f32.xlu0 %v530
      %v532 = vpop.xlane.xlu0 %531
      %v533 = vsel %vm354, %v529, inf
      %534 = vmin.xlane.f32.xlu0 %v533
      %v535 = vpop.xlane.xlu0 %534
      %vm536 = vcmp.eq.f32.partialorder %v353, %v532
      %vm537 = vcmp.eq.f32.partialorder %v353, %v535
      %v538 = vsel %vm536, %v351, -1.0
      %v539 = vsel %vm537, %v352, -1.0
      %v540 = vsel %vm354, %v538, -inf
      %541 = vmax.xlane.f32.xlu0 %v540
      %v542 = vpop.xlane.xlu0 %541
      %v543 = vsel %vm354, %v539, -inf
      %544 = vmax.xlane.f32.xlu0 %v543
      %v545 = vpop.xlane.xlu0 %544
      %vm546 = vcmp.eq.s32.totalorder %v319, 5
      %v547 = vsel %vm546, %v522, %v514
      %v548 = vsel %vm546, %v525, %v515
      %v549 = vsel %vm546, %v542, %v516
      %v550 = vsel %vm546, %v545, %v517
      %v551 = vsel %vm536, -inf, %v518
      %v552 = vsel %vm537, -inf, %v519
      %v553 = vsel %vm354, %v551, -inf
      %554 = vmax.xlane.f32.xlu0 %v553
      %v555 = vpop.xlane.xlu0 %554
      %v556 = vsel %vm354, %v552, -inf
      %557 = vmax.xlane.f32.xlu0 %v556
      %v558 = vpop.xlane.xlu0 %557
      %vm559 = vcmp.eq.f32.partialorder %v551, %v555
      %vm560 = vcmp.eq.f32.partialorder %v552, %v558
      %v561 = vsel %vm559, %v353, 40.0
      %v562 = vsel %vm560, %v353, 40.0
      %v563 = vsel %vm354, %v561, inf
      %564 = vmin.xlane.f32.xlu0 %v563
      %v565 = vpop.xlane.xlu0 %564
      %v566 = vsel %vm354, %v562, inf
      %567 = vmin.xlane.f32.xlu0 %v566
      %v568 = vpop.xlane.xlu0 %567
      %vm569 = vcmp.eq.f32.partialorder %v353, %v565
      %vm570 = vcmp.eq.f32.partialorder %v353, %v568
      %v571 = vsel %vm569, %v351, -1.0
      %v572 = vsel %vm570, %v352, -1.0
      %v573 = vsel %vm354, %v571, -inf
      %574 = vmax.xlane.f32.xlu0 %v573
      %v575 = vpop.xlane.xlu0 %574
      %v576 = vsel %vm354, %v572, -inf
      %577 = vmax.xlane.f32.xlu0 %v576
      %v578 = vpop.xlane.xlu0 %577
      %vm579 = vcmp.eq.s32.totalorder %v319, 6
      %v580 = vsel %vm579, %v555, %v547
      %v581 = vsel %vm579, %v558, %v548
      %v582 = vsel %vm579, %v575, %v549
      %v583 = vsel %vm579, %v578, %v550
      %v584 = vsel %vm569, -inf, %v551
      %v585 = vsel %vm570, -inf, %v552
      %v586 = vsel %vm354, %v584, -inf
      %587 = vmax.xlane.f32.xlu0 %v586
      %v588 = vpop.xlane.xlu0 %587
      %v589 = vsel %vm354, %v585, -inf
      %590 = vmax.xlane.f32.xlu0 %v589
      %v591 = vpop.xlane.xlu0 %590
      %vm592 = vcmp.eq.f32.partialorder %v584, %v588
      %vm593 = vcmp.eq.f32.partialorder %v585, %v591
      %v594 = vsel %vm592, %v353, 40.0
      %v595 = vsel %vm593, %v353, 40.0
      %v596 = vsel %vm354, %v594, inf
      %597 = vmin.xlane.f32.xlu0 %v596
      %v598 = vpop.xlane.xlu0 %597
      %v599 = vsel %vm354, %v595, inf
      %600 = vmin.xlane.f32.xlu0 %v599
      %v601 = vpop.xlane.xlu0 %600
      %vm602 = vcmp.eq.f32.partialorder %v353, %v598
      %vm603 = vcmp.eq.f32.partialorder %v353, %v601
      %v604 = vsel %vm602, %v351, -1.0
      %v605 = vsel %vm603, %v352, -1.0
      %v606 = vsel %vm354, %v604, -inf
      %607 = vmax.xlane.f32.xlu0 %v606
      %v608 = vpop.xlane.xlu0 %607
      %v609 = vsel %vm354, %v605, -inf
      %610 = vmax.xlane.f32.xlu0 %v609
      %v611 = vpop.xlane.xlu0 %610
      %vm612 = vcmp.eq.s32.totalorder %v319, 7
      %v613 = vsel %vm612, %v588, %v580
      %v614 = vsel %vm612, %v591, %v581
      %v615 = vsel %vm612, %v608, %v582
      %v616 = vsel %vm612, %v611, %v583
      %617 = vst.msk [vmem:[#allocation2] sm:$0xff] %vm342, %v613
      %618 = vst.msk [vmem:[#allocation2 + $0x8] sm:$0xff] %vm342, %v614
      %619 = vst.msk [vmem:[#allocation3] sm:$0xff] %vm342, %v615
      %620 = vst.msk [vmem:[#allocation3 + $0x8] sm:$0xff] %vm342, %v616
      // Predicated region
      $region33: #{position_embedding_forward.6} parent=27 // pred_check
        %p621 = pneg %p323
      $region34: #{position_embedding_forward.6} parent=27 // pred_check_branch
        %623 = sbr.rel (%p621) target = $region36
      $region35: #{position_embedding_forward.6} parent=27 // pred_region
        %v624 = vld [vmem:[#allocation3] sm:$0xff]
        %v625 = vld [vmem:[#allocation3 + $0x8] sm:$0xff]
        %v626 = vcvt.f32.s32.to.zero.pseudo %v624
        %v627 = vcvt.f32.s32.to.zero.pseudo %v625
        %628 = vst.msk [vmem:[%s216] sm:$0xff] %vm342, %v626
        %629 = vst.msk [vmem:[%s216 + $0x8] sm:$0xff] %vm342, %v627
      $region36: #{position_embedding_forward.6} parent=27 // pred_fallthru
        _
      %s630 = smul.u32 2, %s19
      %p631 = scmp.lt.s32.totalorder %s18, 1
      %s632 = scalar_select %p631, %s18, 1
      %p633 = scmp.lt.s32.totalorder %s630, 3
      %s634 = scalar_select %p633, %s630, 3
      %s635 = smul.addr %s632, 4
      %s636 = sadd.s32 %s634, %s635
      %s637 = smul.addr %s636, 8
      %s638 = scalar_lea.vmem %s2, %s637
      // Predicated region
      $region37: #{position_embedding_forward.6} parent=27 // pred_check
        %p639 = pneg %p108
      $region38: #{position_embedding_forward.6} parent=27 // pred_check_branch
        %641 = sbr.rel (%p639) target = $region40
      $region39: #{position_embedding_forward.6} parent=27 // pred_region
        %s642 = smul.u32 2, %s19
      $region40: #{position_embedding_forward.6} parent=27 // pred_fallthru
        _
    $region28: #{position_embedding_forward.6} parent=5 // pred_fallthru
      _
    %p643 = scmp.le.s32.totalorder 2, %s8
    // Predicated region
    $region41: #{position_embedding_forward.6} parent=5 // pred_check
      %p644 = pneg %p643
    $region42: #{position_embedding_forward.6} parent=5 // pred_check_branch
      %646 = sbr.rel (%p644) target = $region44
    $region43: #{position_embedding_forward.6} parent=5 // pred_region
      %s647 = ssub.s32 %s8, 2
      // Predicated region
      $region45: #{position_embedding_forward.6} parent=43 // pred_check
        %p648 = pneg %p114
      $region46: #{position_embedding_forward.6} parent=43 // pred_check_branch
        %650 = sbr.rel (%p648) target = $region48
      $region47: #{position_embedding_forward.6} parent=43 // pred_region
        %s651 = smul.u32 2, %s22
        %p652 = scmp.lt.s32.totalorder %s21, 1
        %s653 = scalar_select %p652, %s21, 1
        %p654 = scmp.lt.s32.totalorder %s651, 3
        %s655 = scalar_select %p654, %s651, 3
        %s656 = smul.addr %s653, 4
        %s657 = sadd.s32 %s655, %s656
        %s658 = smul.addr %s657, 8
        %s659 = scalar_lea.vmem %s2, %s658
      $region48: #{position_embedding_forward.6} parent=43 // pred_fallthru
        _
    $region44: #{position_embedding_forward.6} parent=5 // pred_fallthru
      _
  $region6: #{position_embedding_forward.6} parent=0 // loop_footer
    %s12 = sadd.s32 1, %s8
  $region7: #{position_embedding_forward.6} parent=0 // loop_footer_branch
    %7 = sbr.rel target = $region3
  $region8: #{position_embedding_forward.6} parent=0 // loop_exit
    _

// kernel: position_embedding_forward.7
$region0: #{position_embedding_forward.7}
  #allocation0 [shape = 'u32[]', space=smem, size = 0x4, offset = 0x4, fixed_abs, tag = 'smem constant byte address 0x4 - core index']
  #allocation1 [shape = 'u32[144,128]{1,0:T(1,128)}', space=vmem, size = 0x12000, scoped, tag = 'internal scratch']
  %s0 = inlined_call_operand.vmem [shape: bf16[512,8], index: 0, kind: input, shape index: {}]
  %s1 = inlined_call_operand.vmem [shape: bf16[8,64], index: 1, kind: input, shape index: {}]
  %s2 = inlined_call_operand.vmem [shape: f32[1,64], index: 2, kind: input, shape index: {}]
  %s3 = inlined_call_operand.vmem [shape: f32[1,64], index: 3, kind: input, shape index: {}]
  %s4 = inlined_call_operand.vmem [shape: f32[4,1,64], index: 4, kind: output, shape index: {0}]
  %s5 = inlined_call_operand.vmem [shape: f32[4,64,64], index: 5, kind: output, shape index: {1}]
  %6 = xla_tuple %s4, %s5
  %s7 = sld [smem:[#allocation0]]
  $region57: #{position_embedding_forward.7} parent=0
    _
  %s9 = ssub.s32 1, %s7
  %s10 = scalar_select 0, %s9, %s7
  loop: start=0, step=1, limit=6
  $region2: #{position_embedding_forward.7} parent=0 // loop_pre_header
    _
  $region3: #{position_embedding_forward.7} parent=0 // loop_header
    %s12 = sphi 0, %s16
    %p13 = scmp.ge.s32.totalorder %s12, 6
    %s22 = sphi 0, %s24
    %s25 = sphi 0, %s22
    %s26 = sphi 0, %s25
    %s42 = sphi 0, %s26
    %s46 = sphi 0, %s46
    %s48 = sphi 0, %s46
    %s49 = sphi 0, %s48
    %s63 = sphi 0, %s49
    %s67 = sphi 0, %s67
    %s69 = sphi 0, %s67
    %s70 = sphi 0, %s69
    %s84 = sphi 0, %s70
    %s88 = sphi 0, %s88
    %s90 = sphi 0, %s88
    %s91 = sphi 0, %s90
    %s105 = sphi 0, %s91
    %s111 = sphi 0, %s113
    %s114 = sphi 0, %s111
    %s115 = sphi 0, %s114
    %s131 = sphi 0, %s115
    %s137 = sphi 0, %s139
    %s140 = sphi 0, %s137
    %s141 = sphi 0, %s140
    %s157 = sphi 0, %s141
  $region4: #{position_embedding_forward.7} parent=0 // loop_header_branch
    %15 = sbr.rel (%p13) target = $region8
  $region5: #{position_embedding_forward.7} parent=0 // loop_body
    %s17 = ssub.s32 %s12, 1
    %s18 = ssub.s32 %s12, 2
    %s19 = sadd.s32 %s12, 1
    %s20 = ssub.s32 %s12, %s19
    %p21 = scmp.eq.s32.totalorder %s20, 0
    %s23 = sadd.s32 %s22, 1
    %s24 = scalar_select %p21, %s22, %s23
    %p27 = pneg %p21
    %p28 = scmp.eq.s32.totalorder %s12, 3
    %p29 = por %p27, %p28
    %p30 = scmp.ne.s32.totalorder %s22, %s25
    %p31 = scmp.eq.s32.totalorder %s12, 0
    %p32 = por %p30, %p31
    %p33 = scmp.ne.s32.totalorder %s22, %s25
    %p34 = scmp.eq.s32.totalorder %s17, 3
    %p35 = por %p33, %p34
    %p36 = scmp.ne.s32.totalorder %s25, %s26
    %p37 = scmp.eq.s32.totalorder %s17, 0
    %p38 = por %p36, %p37
    %p39 = scmp.ne.s32.totalorder %s25, %s26
    %p40 = scmp.eq.s32.totalorder %s18, 3
    %p41 = por %p39, %p40
    %p43 = scmp.ne.s32.totalorder %s26, %s42
    %p44 = scmp.eq.s32.totalorder %s18, 0
    %p45 = por %p43, %p44
    %s47 = sadd.s32 %s46, 1
    %p50 = scmp.eq.s32.totalorder %s12, 3
    %p51 = scmp.ne.s32.totalorder %s46, %s48
    %p52 = scmp.eq.s32.totalorder %s12, 0
    %p53 = por %p51, %p52
    %p54 = scmp.ne.s32.totalorder %s46, %s48
    %p55 = scmp.eq.s32.totalorder %s17, 3
    %p56 = por %p54, %p55
    %p57 = scmp.ne.s32.totalorder %s48, %s49
    %p58 = scmp.eq.s32.totalorder %s17, 0
    %p59 = por %p57, %p58
    %p60 = scmp.ne.s32.totalorder %s48, %s49
    %p61 = scmp.eq.s32.totalorder %s18, 3
    %p62 = por %p60, %p61
    %p64 = scmp.ne.s32.totalorder %s49, %s63
    %p65 = scmp.eq.s32.totalorder %s18, 0
    %p66 = por %p64, %p65
    %s68 = sadd.s32 %s67, 1
    %p71 = scmp.eq.s32.totalorder %s12, 3
    %p72 = scmp.ne.s32.totalorder %s67, %s69
    %p73 = scmp.eq.s32.totalorder %s12, 0
    %p74 = por %p72, %p73
    %p75 = scmp.ne.s32.totalorder %s67, %s69
    %p76 = scmp.eq.s32.totalorder %s17, 3
    %p77 = por %p75, %p76
    %p78 = scmp.ne.s32.totalorder %s69, %s70
    %p79 = scmp.eq.s32.totalorder %s17, 0
    %p80 = por %p78, %p79
    %p81 = scmp.ne.s32.totalorder %s69, %s70
    %p82 = scmp.eq.s32.totalorder %s18, 3
    %p83 = por %p81, %p82
    %p85 = scmp.ne.s32.totalorder %s70, %s84
    %p86 = scmp.eq.s32.totalorder %s18, 0
    %p87 = por %p85, %p86
    %s89 = sadd.s32 %s88, 1
    %p92 = scmp.eq.s32.totalorder %s12, 3
    %p93 = scmp.ne.s32.totalorder %s88, %s90
    %p94 = scmp.eq.s32.totalorder %s12, 0
    %p95 = por %p93, %p94
    %p96 = scmp.ne.s32.totalorder %s88, %s90
    %p97 = scmp.eq.s32.totalorder %s17, 3
    %p98 = por %p96, %p97
    %p99 = scmp.ne.s32.totalorder %s90, %s91
    %p100 = scmp.eq.s32.totalorder %s17, 0
    %p101 = por %p99, %p100
    %p102 = scmp.ne.s32.totalorder %s90, %s91
    %p103 = scmp.eq.s32.totalorder %s18, 3
    %p104 = por %p102, %p103
    %p106 = scmp.ne.s32.totalorder %s91, %s105
    %p107 = scmp.eq.s32.totalorder %s18, 0
    %p108 = por %p106, %p107
    %s109 = ssub.s32 %s12, %s19
    %p110 = scmp.eq.s32.totalorder %s109, 0
    %s112 = sadd.s32 %s111, 1
    %s113 = scalar_select %p110, %s111, %s112
    %p116 = pneg %p110
    %p117 = scmp.eq.s32.totalorder %s12, 3
    %p118 = por %p116, %p117
    %p119 = scmp.ne.s32.totalorder %s111, %s114
    %p120 = scmp.eq.s32.totalorder %s12, 0
    %p121 = por %p119, %p120
    %p122 = scmp.ne.s32.totalorder %s111, %s114
    %p123 = scmp.eq.s32.totalorder %s17, 3
    %p124 = por %p122, %p123
    %p125 = scmp.ne.s32.totalorder %s114, %s115
    %p126 = scmp.eq.s32.totalorder %s17, 0
    %p127 = por %p125, %p126
    %p128 = scmp.ne.s32.totalorder %s114, %s115
    %p129 = scmp.eq.s32.totalorder %s18, 3
    %p130 = por %p128, %p129
    %p132 = scmp.ne.s32.totalorder %s115, %s131
    %p133 = scmp.eq.s32.totalorder %s18, 0
    %p134 = por %p132, %p133
    %s135 = ssub.s32 %s12, %s19
    %p136 = scmp.eq.s32.totalorder %s135, 0
    %s138 = sadd.s32 %s137, 1
    %s139 = scalar_select %p136, %s137, %s138
    %p142 = pneg %p136
    %p143 = scmp.eq.s32.totalorder %s12, 3
    %p144 = por %p142, %p143
    %p145 = scmp.ne.s32.totalorder %s137, %s140
    %p146 = scmp.eq.s32.totalorder %s12, 0
    %p147 = por %p145, %p146
    %p148 = scmp.ne.s32.totalorder %s137, %s140
    %p149 = scmp.eq.s32.totalorder %s17, 3
    %p150 = por %p148, %p149
    %p151 = scmp.ne.s32.totalorder %s140, %s141
    %p152 = scmp.eq.s32.totalorder %s17, 0
    %p153 = por %p151, %p152
    %p154 = scmp.ne.s32.totalorder %s140, %s141
    %p155 = scmp.eq.s32.totalorder %s18, 3
    %p156 = por %p154, %p155
    %p158 = scmp.ne.s32.totalorder %s141, %s157
    %p159 = scmp.eq.s32.totalorder %s18, 0
    %p160 = por %p158, %p159
    %p161 = scmp.le.s32.totalorder 1, %s12
    %p162 = scmp.lt.s32.totalorder %s12, 5
    %p163 = pnand %p161, %p162
    %p164 = pneg %p163
    // Predicated region
    $region9: #{position_embedding_forward.7} parent=5 // pred_check
      _
    $region10: #{position_embedding_forward.7} parent=5 // pred_check_branch
      %166 = sbr.rel (%p163) target = $region12
    $region11: #{position_embedding_forward.7} parent=5 // pred_region
      %s167 = ssub.s32 %s12, 1
      // Predicated region
      $region13: #{position_embedding_forward.7} parent=11 // pred_check
        %p168 = pneg %p59
      $region14: #{position_embedding_forward.7} parent=11 // pred_check_branch
        %170 = sbr.rel (%p168) target = $region16
      $region15: #{position_embedding_forward.7} parent=11 // pred_region
        _
      $region16: #{position_embedding_forward.7} parent=11 // pred_fallthru
        _
      // Predicated region
      $region17: #{position_embedding_forward.7} parent=11 // pred_check
        %p171 = pneg %p80
      $region18: #{position_embedding_forward.7} parent=11 // pred_check_branch
        %173 = sbr.rel (%p171) target = $region20
      $region19: #{position_embedding_forward.7} parent=11 // pred_region
        _
      $region20: #{position_embedding_forward.7} parent=11 // pred_fallthru
        _
      // Predicated region
      $region21: #{position_embedding_forward.7} parent=11 // pred_check
        %p174 = pneg %p101
      $region22: #{position_embedding_forward.7} parent=11 // pred_check_branch
        %176 = sbr.rel (%p174) target = $region24
      $region23: #{position_embedding_forward.7} parent=11 // pred_region
        _
      $region24: #{position_embedding_forward.7} parent=11 // pred_fallthru
        _
    $region12: #{position_embedding_forward.7} parent=5 // pred_fallthru
      _
    %p177 = scmp.lt.s32.totalorder %s12, 4
    // Predicated region
    $region25: #{position_embedding_forward.7} parent=5 // pred_check
      %p178 = pneg %p177
    $region26: #{position_embedding_forward.7} parent=5 // pred_check_branch
      %180 = sbr.rel (%p178) target = $region28
    $region27: #{position_embedding_forward.7} parent=5 // pred_region
      // Predicated region
      $region29: #{position_embedding_forward.7} parent=27 // pred_check
        %p181 = pneg %p32
      $region30: #{position_embedding_forward.7} parent=27 // pred_check_branch
        %183 = sbr.rel (%p181) target = $region32
      $region31: #{position_embedding_forward.7} parent=27 // pred_region
        %s184 = smul.u32 16, %s12
        %p185 = scmp.lt.s32.totalorder %s184, 63
        %s186 = scalar_select %p185, %s184, 63
        %s187 = smul.addr %s186, 4
        %s188 = scalar_lea.vmem %s0, %s187
        %s189 = smul.u32 16, %s12
      $region32: #{position_embedding_forward.7} parent=27 // pred_fallthru
        _
    $region28: #{position_embedding_forward.7} parent=5 // pred_fallthru
      _
    %p190 = scmp.le.s32.totalorder 1, %s12
    %p191 = scmp.lt.s32.totalorder %s12, 5
    %p192 = pnand %p190, %p191
    %p193 = pneg %p192
    // Predicated region
    $region33: #{position_embedding_forward.7} parent=5 // pred_check
      _
    $region34: #{position_embedding_forward.7} parent=5 // pred_check_branch
      %195 = sbr.rel (%p192) target = $region36
    $region35: #{position_embedding_forward.7} parent=5 // pred_region
      %s196 = ssub.s32 %s12, 1
      %s197 = smul.u32 16, %s17
      %p198 = scmp.lt.s32.totalorder %s197, 63
      %s199 = scalar_select %p198, %s197, 63
      %s200 = smul.addr %s199, 4
      %s201 = scalar_lea.vmem %s0, %s200
      %p202 = pneg %p38
      %p203 = pneg %p35
      %p204 = pneg %p59
      %p205 = pneg %p56
      %p206 = pneg %p80
      %p207 = pneg %p77
      %p208 = pneg %p101
      %p209 = pneg %p98
      %p210 = pneg %p127
      %p211 = pneg %p124
      %p212 = scmp.lt.s32.totalorder %s17, 3
      %s213 = scalar_select %p212, %s17, 3
      %s214 = scalar_lea.vmem %s4, %s213
      %p215 = pneg %p153
      %p216 = pneg %p150
      %p217 = scmp.lt.s32.totalorder %s17, 3
      %s218 = scalar_select %p217, %s17, 3
      %s219 = smul.addr %s218, 8
      %s220 = smul.addr %s219, 8
      %s221 = scalar_lea.vmem %s5, %s220
      %s222 = smul.u32 16, %s17
      %p223 = scmp.lt.s32.totalorder %s222, 63
      %s224 = scalar_select %p223, %s222, 63
      %s225 = smul.addr %s224, 4
      %s226 = scalar_lea.vmem %s0, %s225
      %s227 = smul.u32 16, %s17
      %p228 = scmp.lt.s32.totalorder %s17, 3
      %s229 = scalar_select %p228, %s17, 3
      %s230 = scalar_lea.vmem %s4, %s229
      %p231 = scmp.lt.s32.totalorder %s17, 3
      %s232 = scalar_select %p231, %s17, 3
      %s233 = smul.addr %s232, 8
      %s234 = smul.addr %s233, 8
      %s235 = scalar_lea.vmem %s5, %s234
      %v237 = vld [vmem:[%s226] sm:$0xf]
      %v238 = vld [vmem:[%s226 + $0x4] sm:$0xf]
      %v239 = vld [vmem:[%s226 + $0x8] sm:$0xf]
      %v240 = vld [vmem:[%s226 + $0xc] sm:$0xf]
      %v241 = vld [vmem:[%s226 + $0x10] sm:$0xf]
      %v242 = vld [vmem:[%s226 + $0x14] sm:$0xf]
      %v243 = vld [vmem:[%s226 + $0x18] sm:$0xf]
      %v244 = vld [vmem:[%s226 + $0x1c] sm:$0xf]
      %v245 = vld [vmem:[%s226 + $0x20] sm:$0xf]
      %v246 = vld [vmem:[%s226 + $0x24] sm:$0xf]
      %v247 = vld [vmem:[%s226 + $0x28] sm:$0xf]
      %v248 = vld [vmem:[%s226 + $0x2c] sm:$0xf]
      %v249 = vld [vmem:[%s226 + $0x30] sm:$0xf]
      %v250 = vld [vmem:[%s226 + $0x34] sm:$0xf]
      %v251 = vld [vmem:[%s226 + $0x38] sm:$0xf]
      %v252 = vld [vmem:[%s226 + $0x3c] sm:$0xf]
      %v253 = vld [vmem:[%s1] sm:$0xf]
      %v270 = vunpack.c.l.b16 %v237
      %v271 = vunpack.c.l.b16 %v238
      %v272 = vunpack.c.l.b16 %v239
      %v273 = vunpack.c.l.b16 %v240
      %v274 = vunpack.c.l.b16 %v241
      %v275 = vunpack.c.l.b16 %v242
      %v276 = vunpack.c.l.b16 %v243
      %v277 = vunpack.c.l.b16 %v244
      %v278 = vunpack.c.l.b16 %v245
      %v279 = vunpack.c.l.b16 %v246
      %v280 = vunpack.c.l.b16 %v247
      %v281 = vunpack.c.l.b16 %v248
      %v282 = vunpack.c.l.b16 %v249
      %v283 = vunpack.c.l.b16 %v250
      %v284 = vunpack.c.l.b16 %v251
      %v285 = vunpack.c.l.b16 %v252
      %v286 = vpack.c.b16 %v271, %v270
      %v287 = vpack.c.b16 %v273, %v272
      %v288 = vpack.c.b16 %v275, %v274
      %v289 = vpack.c.b16 %v277, %v276
      %v290 = vpack.c.b16 %v279, %v278
      %v291 = vpack.c.b16 %v281, %v280
      %v292 = vpack.c.b16 %v283, %v282
      %v293 = vpack.c.b16 %v285, %v284
      %vm294 = vcmask 64512
      %v296 = vsel %vm294, %v286, 0
      %v299 = vsel %vm294, %v287, 0
      %v302 = vsel %vm294, %v288, 0
      %v305 = vsel %vm294, %v289, 0
      %v308 = vsel %vm294, %v290, 0
      %v311 = vsel %vm294, %v291, 0
      %v314 = vsel %vm294, %v292, 0
      %v317 = vsel %vm294, %v293, 0
      %vm319 = vcmask 1043456
      %v321 = vsel %vm319, %v253, 0
      %323 = vmatprep.subr.bf16.mxu0 0
      %324 = vmatpush1.bf16.msra.mxu0 %v321
      %325 = vmatprep.subr.bf16.mxu0 0
      %326 = vmatpush1.bf16.msra.mxu0 0
      %327 = vmatprep.subr.bf16.mxu0 0
      %328 = vmatpush1.bf16.msra.mxu0 0
      %329 = vmatprep.subr.bf16.mxu0 0
      %330 = vmatpush1.bf16.msra.mxu0 0
      %331 = vmatprep.subr.bf16.mxu0 0
      %332 = vmatpush1.bf16.msra.mxu0 0
      %333 = vmatprep.subr.bf16.mxu0 0
      %334 = vmatpush1.bf16.msra.mxu0 0
      %335 = vmatprep.subr.bf16.mxu0 0
      %336 = vmatpush1.bf16.msra.mxu0 0
      %337 = vmatprep.subr.bf16.mxu0 0
      %338 = vmatpush1.bf16.msra.mxu0 0
      %339 = vmatprep.subr.bf16.mxu0 0
      %340 = vmatpush1.bf16.msra.mxu0 0
      %341 = vmatprep.subr.bf16.mxu0 0
      %342 = vmatpush1.bf16.msra.mxu0 0
      %343 = vmatprep.subr.bf16.mxu0 0
      %344 = vmatpush1.bf16.msra.mxu0 0
      %345 = vmatprep.subr.bf16.mxu0 0
      %346 = vmatpush1.bf16.msra.mxu0 0
      %347 = vmatprep.subr.bf16.mxu0 0
      %348 = vmatpush1.bf16.msra.mxu0 0
      %349 = vmatprep.subr.bf16.mxu0 0
      %350 = vmatpush1.bf16.msra.mxu0 0
      %351 = vmatprep.subr.bf16.mxu0 0
      %352 = vmatpush1.bf16.msra.mxu0 0
      %353 = vmatprep.subr.bf16.mxu0 0
      %354 = vmatpush1.bf16.msra.mxu0 0
      %355 = vmatprep.mubr.bf16.mxu0 0
      %356 = vmatmul.mubr.bf16.gmra.mrb[0].mxu0 %v296
      %v357 = vpop.f32.mrb[0].mxu0
      %v358 = vadd.f32 0.0, %v357
      %v359 = vpop.f32.mrb[0].mxu0
      %v360 = vpop.f32.mrb[0].mxu0
      %v361 = vadd.f32 0.0, %v360
      %v362 = vpop.f32.mrb[0].mxu0
      %363 = vmatprep.mubr.bf16.mxu0 0
      %364 = vmatmul.mubr.bf16.gmra.mrb[0].mxu0 %v299
      %v365 = vpop.f32.mrb[0].mxu0
      %v366 = vadd.f32 0.0, %v365
      %v367 = vpop.f32.mrb[0].mxu0
      %v368 = vpop.f32.mrb[0].mxu0
      %v369 = vadd.f32 0.0, %v368
      %v370 = vpop.f32.mrb[0].mxu0
      %371 = vmatprep.mubr.bf16.mxu0 0
      %372 = vmatmul.mubr.bf16.gmra.mrb[0].mxu0 %v302
      %v373 = vpop.f32.mrb[0].mxu0
      %v374 = vadd.f32 0.0, %v373
      %v375 = vpop.f32.mrb[0].mxu0
      %v376 = vpop.f32.mrb[0].mxu0
      %v377 = vadd.f32 0.0, %v376
      %v378 = vpop.f32.mrb[0].mxu0
      %379 = vmatprep.mubr.bf16.mxu0 0
      %380 = vmatmul.mubr.bf16.gmra.mrb[0].mxu0 %v305
      %v381 = vpop.f32.mrb[0].mxu0
      %v382 = vadd.f32 0.0, %v381
      %v383 = vpop.f32.mrb[0].mxu0
      %v384 = vpop.f32.mrb[0].mxu0
      %v385 = vadd.f32 0.0, %v384
      %v386 = vpop.f32.mrb[0].mxu0
      %387 = vmatprep.mubr.bf16.mxu0 0
      %388 = vmatmul.mubr.bf16.gmra.mrb[0].mxu0 %v308
      %v389 = vpop.f32.mrb[0].mxu0
      %v390 = vadd.f32 0.0, %v389
      %v391 = vpop.f32.mrb[0].mxu0
      %v392 = vpop.f32.mrb[0].mxu0
      %v393 = vadd.f32 0.0, %v392
      %v394 = vpop.f32.mrb[0].mxu0
      %395 = vmatprep.mubr.bf16.mxu0 0
      %396 = vmatmul.mubr.bf16.gmra.mrb[0].mxu0 %v311
      %v397 = vpop.f32.mrb[0].mxu0
      %v398 = vadd.f32 0.0, %v397
      %v399 = vpop.f32.mrb[0].mxu0
      %v400 = vpop.f32.mrb[0].mxu0
      %v401 = vadd.f32 0.0, %v400
      %v402 = vpop.f32.mrb[0].mxu0
      %403 = vmatprep.mubr.bf16.mxu0 0
      %404 = vmatmul.mubr.bf16.gmra.mrb[0].mxu0 %v314
      %v405 = vpop.f32.mrb[0].mxu0
      %v406 = vadd.f32 0.0, %v405
      %v407 = vpop.f32.mrb[0].mxu0
      %v408 = vpop.f32.mrb[0].mxu0
      %v409 = vadd.f32 0.0, %v408
      %v410 = vpop.f32.mrb[0].mxu0
      %411 = vmatprep.mubr.bf16.mxu0 0
      %412 = vmatmul.mubr.bf16.gmra.mrb[0].mxu0 %v317
      %v413 = vpop.f32.mrb[0].mxu0
      %v414 = vadd.f32 0.0, %v413
      %v415 = vpop.f32.mrb[0].mxu0
      %v416 = vpop.f32.mrb[0].mxu0
      %v417 = vadd.f32 0.0, %v416
      %v418 = vpop.f32.mrb[0].mxu0
      %419 = vdwg.mxu0
      %v420 = vld [vmem:[%s2] sm:$0x1]
      %v422 = vlaneseq
      %v423 = vshrl.u32 %v422, 7
      %v424 = vsub.s32 0, %v423
      %v425 = vrot.slane %v420, %v424
      %v427 = vmul.f32 %v358, %v425
      %v428 = vmul.f32 %v361, %v425
      %v429 = vmul.f32 %v366, %v425
      %v430 = vmul.f32 %v369, %v425
      %v431 = vmul.f32 %v374, %v425
      %v432 = vmul.f32 %v377, %v425
      %v433 = vmul.f32 %v382, %v425
      %v434 = vmul.f32 %v385, %v425
      %v435 = vmul.f32 %v390, %v425
      %v436 = vmul.f32 %v393, %v425
      %v437 = vmul.f32 %v398, %v425
      %v438 = vmul.f32 %v401, %v425
      %v439 = vmul.f32 %v406, %v425
      %v440 = vmul.f32 %v409, %v425
      %v441 = vmul.f32 %v414, %v425
      %v442 = vmul.f32 %v417, %v425
      %v443 = vld [vmem:[%s3] sm:$0x1]
      %v445 = vlaneseq
      %v446 = vshrl.u32 %v445, 7
      %v447 = vsub.s32 0, %v446
      %v448 = vrot.slane %v443, %v447
      %v450 = vadd.f32 %v427, %v448
      %v451 = vadd.f32 %v428, %v448
      %v452 = vadd.f32 %v429, %v448
      %v453 = vadd.f32 %v430, %v448
      %v454 = vadd.f32 %v431, %v448
      %v455 = vadd.f32 %v432, %v448
      %v456 = vadd.f32 %v433, %v448
      %v457 = vadd.f32 %v434, %v448
      %v458 = vadd.f32 %v435, %v448
      %v459 = vadd.f32 %v436, %v448
      %v460 = vadd.f32 %v437, %v448
      %v461 = vadd.f32 %v438, %v448
      %v462 = vadd.f32 %v439, %v448
      %v463 = vadd.f32 %v440, %v448
      %v464 = vadd.f32 %v441, %v448
      %v465 = vadd.f32 %v442, %v448
      %vm466 = vcmp.ge.f32.partialorder %v450, 0.0
      %vm467 = vcmp.ge.f32.partialorder %v451, 0.0
      %vm468 = vcmp.ge.f32.partialorder %v452, 0.0
      %vm469 = vcmp.ge.f32.partialorder %v453, 0.0
      %vm470 = vcmp.ge.f32.partialorder %v454, 0.0
      %vm471 = vcmp.ge.f32.partialorder %v455, 0.0
      %vm472 = vcmp.ge.f32.partialorder %v456, 0.0
      %vm473 = vcmp.ge.f32.partialorder %v457, 0.0
      %vm474 = vcmp.ge.f32.partialorder %v458, 0.0
      %vm475 = vcmp.ge.f32.partialorder %v459, 0.0
      %vm476 = vcmp.ge.f32.partialorder %v460, 0.0
      %vm477 = vcmp.ge.f32.partialorder %v461, 0.0
      %vm478 = vcmp.ge.f32.partialorder %v462, 0.0
      %vm479 = vcmp.ge.f32.partialorder %v463, 0.0
      %vm480 = vcmp.ge.f32.partialorder %v464, 0.0
      %vm481 = vcmp.ge.f32.partialorder %v465, 0.0
      %v482 = vmul.f32 %v450, 0.2
      %v483 = vmul.f32 %v451, 0.2
      %v484 = vmul.f32 %v452, 0.2
      %v485 = vmul.f32 %v453, 0.2
      %v486 = vmul.f32 %v454, 0.2
      %v487 = vmul.f32 %v455, 0.2
      %v488 = vmul.f32 %v456, 0.2
      %v489 = vmul.f32 %v457, 0.2
      %v490 = vmul.f32 %v458, 0.2
      %v491 = vmul.f32 %v459, 0.2
      %v492 = vmul.f32 %v460, 0.2
      %v493 = vmul.f32 %v461, 0.2
      %v494 = vmul.f32 %v462, 0.2
      %v495 = vmul.f32 %v463, 0.2
      %v496 = vmul.f32 %v464, 0.2
      %v497 = vmul.f32 %v465, 0.2
      %v498 = vsel %vm466, %v450, %v482
      %v499 = vsel %vm467, %v451, %v483
      %v500 = vsel %vm468, %v452, %v484
      %v501 = vsel %vm469, %v453, %v485
      %v502 = vsel %vm470, %v454, %v486
      %v503 = vsel %vm471, %v455, %v487
      %v504 = vsel %vm472, %v456, %v488
      %v505 = vsel %vm473, %v457, %v489
      %v506 = vsel %vm474, %v458, %v490
      %v507 = vsel %vm475, %v459, %v491
      %v508 = vsel %vm476, %v460, %v492
      %v509 = vsel %vm477, %v461, %v493
      %v510 = vsel %vm478, %v462, %v494
      %v511 = vsel %vm479, %v463, %v495
      %v512 = vsel %vm480, %v464, %v496
      %v513 = vsel %vm481, %v465, %v497
      %v514 = vpack.c.bf16 %v499, %v498
      %v515 = vpack.c.bf16 %v501, %v500
      %v516 = vpack.c.bf16 %v503, %v502
      %v517 = vpack.c.bf16 %v505, %v504
      %v518 = vpack.c.bf16 %v507, %v506
      %v519 = vpack.c.bf16 %v509, %v508
      %v520 = vpack.c.bf16 %v511, %v510
      %v521 = vpack.c.bf16 %v513, %v512
      %v522 = vunpack.c.l.bf16 %v514
      %v523 = vunpack.c.h.bf16 %v514
      %v524 = vunpack.c.l.bf16 %v515
      %v525 = vunpack.c.h.bf16 %v515
      %v526 = vunpack.c.l.bf16 %v516
      %v527 = vunpack.c.h.bf16 %v516
      %v528 = vunpack.c.l.bf16 %v517
      %v529 = vunpack.c.h.bf16 %v517
      %v530 = vunpack.c.l.bf16 %v518
      %v531 = vunpack.c.h.bf16 %v518
      %v532 = vunpack.c.l.bf16 %v519
      %v533 = vunpack.c.h.bf16 %v519
      %v534 = vunpack.c.l.bf16 %v520
      %v535 = vunpack.c.h.bf16 %v520
      %v536 = vunpack.c.l.bf16 %v521
      %v537 = vunpack.c.h.bf16 %v521
      %vm538 = vcmask 523264
      %v539 = vsel %vm538, %v522, 0.0
      %v540 = vsel %vm538, %v523, 0.0
      %v541 = vadd.f32 %v539, %v540
      %v542 = vsel %vm538, %v524, 0.0
      %v543 = vadd.f32 %v541, %v542
      %v544 = vsel %vm538, %v525, 0.0
      %v545 = vadd.f32 %v543, %v544
      %v546 = vsel %vm538, %v526, 0.0
      %v547 = vadd.f32 %v545, %v546
      %v548 = vsel %vm538, %v527, 0.0
      %v549 = vadd.f32 %v547, %v548
      %v550 = vsel %vm538, %v528, 0.0
      %v551 = vadd.f32 %v549, %v550
      %v552 = vsel %vm538, %v529, 0.0
      %v553 = vadd.f32 %v551, %v552
      %v554 = vsel %vm538, %v530, 0.0
      %v555 = vadd.f32 %v553, %v554
      %v556 = vsel %vm538, %v531, 0.0
      %v557 = vadd.f32 %v555, %v556
      %v558 = vsel %vm538, %v532, 0.0
      %v559 = vadd.f32 %v557, %v558
      %v560 = vsel %vm538, %v533, 0.0
      %v561 = vadd.f32 %v559, %v560
      %v562 = vsel %vm538, %v534, 0.0
      %v563 = vadd.f32 %v561, %v562
      %v564 = vsel %vm538, %v535, 0.0
      %v565 = vadd.f32 %v563, %v564
      %v566 = vsel %vm538, %v536, 0.0
      %v567 = vadd.f32 %v565, %v566
      %v568 = vsel %vm538, %v537, 0.0
      %v569 = vadd.f32 %v567, %v568
      %v570 = vrot.slane %v569, 4
      %v571 = vadd.f32 %v569, %v570
      %v572 = vrot.slane %v571, 2
      %v573 = vadd.f32 %v571, %v572
      %v574 = vrot.slane %v573, 1
      %v575 = vadd.f32 %v573, %v574
      %vm576 = vcmask 516096
      %577 = vst.msk [vmem:[%s230] sm:$0x1] %vm576, %v575
      %578 = vxpose.xlu0.c.b16.start [1/8] %v514, 128
      %579 = vxpose.xlu0.c.b16.cont [2/8] %v515, 128
      %580 = vxpose.xlu0.c.b16.cont [3/8] %v516, 128
      %581 = vxpose.xlu0.c.b16.cont [4/8] %v517, 128
      %582 = vxpose.xlu0.c.b16.cont [5/8] %v518, 128
      %583 = vxpose.xlu0.c.b16.cont [6/8] %v519, 128
      %584 = vxpose.xlu0.c.b16.cont [7/8] %v520, 128
      %585 = vxpose.xlu0.c.b16.end [8/8] %v521, 128
      %v586 = vpop.trf.xlu0
      %v587 = vpop.trf.xlu0
      %v588 = vpop.trf.xlu0
      %v589 = vpop.trf.xlu0
      %v590 = vpop.trf.xlu0
      %v591 = vpop.trf.xlu0
      %v592 = vpop.trf.xlu0
      %v593 = vpop.trf.xlu0
      %594 = vmatprep.subr.bf16.mxu0 0
      %595 = vmatpush1.bf16.msra.mxu0 %v514
      %596 = vmatprep.subr.bf16.mxu0 0
      %597 = vmatpush1.bf16.msra.mxu0 %v515
      %598 = vmatprep.subr.bf16.mxu0 0
      %599 = vmatpush1.bf16.msra.mxu0 %v516
      %600 = vmatprep.subr.bf16.mxu0 0
      %601 = vmatpush1.bf16.msra.mxu0 %v517
      %602 = vmatprep.subr.bf16.mxu0 0
      %603 = vmatpush1.bf16.msra.mxu0 %v518
      %604 = vmatprep.subr.bf16.mxu0 0
      %605 = vmatpush1.bf16.msra.mxu0 %v519
      %606 = vmatprep.subr.bf16.mxu0 0
      %607 = vmatpush1.bf16.msra.mxu0 %v520
      %608 = vmatprep.subr.bf16.mxu0 0
      %609 = vmatpush1.bf16.msra.mxu0 %v521
      %610 = vmatprep.subr.bf16.mxu0 0
      %611 = vmatpush1.bf16.msra.mxu0 0
      %612 = vmatprep.subr.bf16.mxu0 0
      %613 = vmatpush1.bf16.msra.mxu0 0
      %614 = vmatprep.subr.bf16.mxu0 0
      %615 = vmatpush1.bf16.msra.mxu0 0
      %616 = vmatprep.subr.bf16.mxu0 0
      %617 = vmatpush1.bf16.msra.mxu0 0
      %618 = vmatprep.subr.bf16.mxu0 0
      %619 = vmatpush1.bf16.msra.mxu0 0
      %620 = vmatprep.subr.bf16.mxu0 0
      %621 = vmatpush1.bf16.msra.mxu0 0
      %622 = vmatprep.subr.bf16.mxu0 0
      %623 = vmatpush1.bf16.msra.mxu0 0
      %624 = vmatprep.subr.bf16.mxu0 0
      %625 = vmatpush1.bf16.msra.mxu0 0
      %626 = vmatprep.mubr.bf16.mxu0 0
      %627 = vmatmul.mubr.bf16.gmra.mrb[0].mxu0 %v586
      %v628 = vpop.f32.mrb[0].mxu0
      %v629 = vadd.f32 0.0, %v628
      %v630 = vpop.f32.mrb[0].mxu0
      %v631 = vpop.f32.mrb[0].mxu0
      %v632 = vadd.f32 0.0, %v631
      %v633 = vpop.f32.mrb[0].mxu0
      %634 = vmatprep.mubr.bf16.mxu0 0
      %635 = vmatmul.mubr.bf16.gmra.mrb[0].mxu0 %v587
      %v636 = vpop.f32.mrb[0].mxu0
      %v637 = vadd.f32 0.0, %v636
      %v638 = vpop.f32.mrb[0].mxu0
      %v639 = vpop.f32.mrb[0].mxu0
      %v640 = vadd.f32 0.0, %v639
      %v641 = vpop.f32.mrb[0].mxu0
      %642 = vmatprep.mubr.bf16.mxu0 0
      %643 = vmatmul.mubr.bf16.gmra.mrb[0].mxu0 %v588
      %v644 = vpop.f32.mrb[0].mxu0
      %v645 = vadd.f32 0.0, %v644
      %v646 = vpop.f32.mrb[0].mxu0
      %v647 = vpop.f32.mrb[0].mxu0
      %v648 = vadd.f32 0.0, %v647
      %v649 = vpop.f32.mrb[0].mxu0
      %650 = vmatprep.mubr.bf16.mxu0 0
      %651 = vmatmul.mubr.bf16.gmra.mrb[0].mxu0 %v589
      %v652 = vpop.f32.mrb[0].mxu0
      %v653 = vadd.f32 0.0, %v652
      %v654 = vpop.f32.mrb[0].mxu0
      %v655 = vpop.f32.mrb[0].mxu0
      %v656 = vadd.f32 0.0, %v655
      %v657 = vpop.f32.mrb[0].mxu0
      %658 = vdwg.mxu0
      %659 = vst.msk [vmem:[%s235] sm:$0xff] %vm538, %v629
      %660 = vst.msk [vmem:[%s235 + $0x8] sm:$0xff] %vm538, %v632
      %661 = vst.msk [vmem:[%s235 + $0x10] sm:$0xff] %vm538, %v637
      %662 = vst.msk [vmem:[%s235 + $0x18] sm:$0xff] %vm538, %v640
      %663 = vst.msk [vmem:[%s235 + $0x20] sm:$0xff] %vm538, %v645
      %664 = vst.msk [vmem:[%s235 + $0x28] sm:$0xff] %vm538, %v648
      %665 = vst.msk [vmem:[%s235 + $0x30] sm:$0xff] %vm538, %v653
      %666 = vst.msk [vmem:[%s235 + $0x38] sm:$0xff] %vm538, %v656
      %p667 = scmp.lt.s32.totalorder %s17, 3
      %s668 = scalar_select %p667, %s17, 3
      %s669 = scalar_lea.vmem %s4, %s668
      %p670 = scmp.lt.s32.totalorder %s17, 3
      %s671 = scalar_select %p670, %s17, 3
      %s672 = smul.addr %s671, 8
      %s673 = smul.addr %s672, 8
      %s674 = scalar_lea.vmem %s5, %s673
      // Predicated region
      $region37: #{position_embedding_forward.7} parent=35 // pred_check
        %p675 = pneg %p124
      $region38: #{position_embedding_forward.7} parent=35 // pred_check_branch
        %677 = sbr.rel (%p675) target = $region40
      $region39: #{position_embedding_forward.7} parent=35 // pred_region
        _
      $region40: #{position_embedding_forward.7} parent=35 // pred_fallthru
        _
      // Predicated region
      $region41: #{position_embedding_forward.7} parent=35 // pred_check
        %p678 = pneg %p150
      $region42: #{position_embedding_forward.7} parent=35 // pred_check_branch
        %680 = sbr.rel (%p678) target = $region44
      $region43: #{position_embedding_forward.7} parent=35 // pred_region
        _
      $region44: #{position_embedding_forward.7} parent=35 // pred_fallthru
        _
    $region36: #{position_embedding_forward.7} parent=5 // pred_fallthru
      _
    %p681 = scmp.le.s32.totalorder 2, %s12
    // Predicated region
    $region45: #{position_embedding_forward.7} parent=5 // pred_check
      %p682 = pneg %p681
    $region46: #{position_embedding_forward.7} parent=5 // pred_check_branch
      %684 = sbr.rel (%p682) target = $region48
    $region47: #{position_embedding_forward.7} parent=5 // pred_region
      %s685 = ssub.s32 %s12, 2
      // Predicated region
      $region49: #{position_embedding_forward.7} parent=47 // pred_check
        %p686 = pneg %p130
      $region50: #{position_embedding_forward.7} parent=47 // pred_check_branch
        %688 = sbr.rel (%p686) target = $region52
      $region51: #{position_embedding_forward.7} parent=47 // pred_region
        %p689 = scmp.lt.s32.totalorder %s18, 3
        %s690 = scalar_select %p689, %s18, 3
        %s691 = scalar_lea.vmem %s4, %s690
      $region52: #{position_embedding_forward.7} parent=47 // pred_fallthru
        _
      // Predicated region
      $region53: #{position_embedding_forward.7} parent=47 // pred_check
        %p692 = pneg %p156
      $region54: #{position_embedding_forward.7} parent=47 // pred_check_branch
        %694 = sbr.rel (%p692) target = $region56
      $region55: #{position_embedding_forward.7} parent=47 // pred_region
        %p695 = scmp.lt.s32.totalorder %s18, 3
        %s696 = scalar_select %p695, %s18, 3
        %s697 = smul.addr %s696, 8
        %s698 = smul.addr %s697, 8
        %s699 = scalar_lea.vmem %s5, %s698
      $region56: #{position_embedding_forward.7} parent=47 // pred_fallthru
        _
    $region48: #{position_embedding_forward.7} parent=5 // pred_fallthru
      _
  $region6: #{position_embedding_forward.7} parent=0 // loop_footer
    %s16 = sadd.s32 1, %s12
  $region7: #{position_embedding_forward.7} parent=0 // loop_footer_branch
    %11 = sbr.rel target = $region3
  $region8: #{position_embedding_forward.7} parent=0 // loop_exit
    _

// kernel: position_embedding_forward.8
$region0: #{position_embedding_forward.8}
  #allocation0 [shape = 'u32[]', space=smem, size = 0x4, offset = 0x4, fixed_abs, tag = 'smem constant byte address 0x4 - core index']
  #allocation1 [shape = 'u32[144,128]{1,0:T(1,128)}', space=vmem, size = 0x12000, scoped, tag = 'internal scratch']
  %s0 = inlined_call_operand.vmem [shape: bf16[8,64,8], index: 0, kind: input, shape index: {}]
  %s1 = inlined_call_operand.vmem [shape: bf16[8,64], index: 1, kind: input, shape index: {}]
  %s2 = inlined_call_operand.vmem [shape: f32[1,64], index: 2, kind: input, shape index: {}]
  %s3 = inlined_call_operand.vmem [shape: f32[1,64], index: 3, kind: input, shape index: {}]
  %s4 = inlined_call_operand.vmem [shape: bf16[64,128], index: 4, kind: input, shape index: {}]
  %s5 = inlined_call_operand.vmem [shape: f32[1,128], index: 5, kind: input, shape index: {}]
  %s6 = inlined_call_operand.vmem [shape: f32[1,128], index: 6, kind: input, shape index: {}]
  %s7 = inlined_call_operand.vmem [shape: bf16[64,128], index: 7, kind: output, shape index: {0}]
  %s8 = inlined_call_operand.vmem [shape: f32[4,1,128], index: 8, kind: output, shape index: {1}]
  %s9 = inlined_call_operand.vmem [shape: f32[4,128,128], index: 9, kind: output, shape index: {2}]
  %10 = xla_tuple %s7, %s8, %s9
  %s11 = sld [smem:[#allocation0]]
  $region125: #{position_embedding_forward.8} parent=0
    _
  %s13 = ssub.s32 1, %s11
  %s14 = scalar_select 0, %s13, %s11
  $region1: #{position_embedding_forward.8} parent=0
    #allocation2 [shape = 'u8[65536]{0}', space=vmem, size = 0x10000, scoped, tag = 'input window, operand 0']
    loop: start=0, step=1, limit=6
    $region2: #{position_embedding_forward.8} parent=1 // loop_pre_header
      _
    $region3: #{position_embedding_forward.8} parent=1 // loop_header
      %s16 = sphi 0, %s20
      %p17 = scmp.ge.s32.totalorder %s16, 6
      %s26 = sphi 0, %s28
      %s29 = sphi 0, %s26
      %s30 = sphi 0, %s29
      %s46 = sphi 0, %s30
      %s50 = sphi 0, %s50
      %s52 = sphi 0, %s50
      %s53 = sphi 0, %s52
      %s67 = sphi 0, %s53
      %s71 = sphi 0, %s71
      %s73 = sphi 0, %s71
      %s74 = sphi 0, %s73
      %s88 = sphi 0, %s74
      %s92 = sphi 0, %s92
      %s94 = sphi 0, %s92
      %s95 = sphi 0, %s94
      %s109 = sphi 0, %s95
      %s113 = sphi 0, %s113
      %s115 = sphi 0, %s113
      %s116 = sphi 0, %s115
      %s130 = sphi 0, %s116
      %s134 = sphi 0, %s134
      %s136 = sphi 0, %s134
      %s137 = sphi 0, %s136
      %s151 = sphi 0, %s137
      %s155 = sphi 0, %s155
      %s157 = sphi 0, %s155
      %s158 = sphi 0, %s157
      %s172 = sphi 0, %s158
      %s178 = sphi 0, %s180
      %s181 = sphi 0, %s178
      %s182 = sphi 0, %s181
      %s198 = sphi 0, %s182
      %s204 = sphi 0, %s206
      %s207 = sphi 0, %s204
      %s208 = sphi 0, %s207
      %s224 = sphi 0, %s208
      %s230 = sphi 0, %s232
      %s233 = sphi 0, %s230
      %s234 = sphi 0, %s233
      %s250 = sphi 0, %s234
    $region4: #{position_embedding_forward.8} parent=1 // loop_header_branch
      %19 = sbr.rel (%p17) target = $region8
    $region5: #{position_embedding_forward.8} parent=1 // loop_body
      %s21 = ssub.s32 %s16, 1
      %s22 = ssub.s32 %s16, 2
      %s23 = sadd.s32 %s16, 1
      %s24 = ssub.s32 %s16, %s23
      %p25 = scmp.eq.s32.totalorder %s24, 0
      %s27 = sadd.s32 %s26, 1
      %s28 = scalar_select %p25, %s26, %s27
      %p31 = pneg %p25
      %p32 = scmp.eq.s32.totalorder %s16, 3
      %p33 = por %p31, %p32
      %p34 = scmp.ne.s32.totalorder %s26, %s29
      %p35 = scmp.eq.s32.totalorder %s16, 0
      %p36 = por %p34, %p35
      %p37 = scmp.ne.s32.totalorder %s26, %s29
      %p38 = scmp.eq.s32.totalorder %s21, 3
      %p39 = por %p37, %p38
      %p40 = scmp.ne.s32.totalorder %s29, %s30
      %p41 = scmp.eq.s32.totalorder %s21, 0
      %p42 = por %p40, %p41
      %p43 = scmp.ne.s32.totalorder %s29, %s30
      %p44 = scmp.eq.s32.totalorder %s22, 3
      %p45 = por %p43, %p44
      %p47 = scmp.ne.s32.totalorder %s30, %s46
      %p48 = scmp.eq.s32.totalorder %s22, 0
      %p49 = por %p47, %p48
      %s51 = sadd.s32 %s50, 1
      %p54 = scmp.eq.s32.totalorder %s16, 3
      %p55 = scmp.ne.s32.totalorder %s50, %s52
      %p56 = scmp.eq.s32.totalorder %s16, 0
      %p57 = por %p55, %p56
      %p58 = scmp.ne.s32.totalorder %s50, %s52
      %p59 = scmp.eq.s32.totalorder %s21, 3
      %p60 = por %p58, %p59
      %p61 = scmp.ne.s32.totalorder %s52, %s53
      %p62 = scmp.eq.s32.totalorder %s21, 0
      %p63 = por %p61, %p62
      %p64 = scmp.ne.s32.totalorder %s52, %s53
      %p65 = scmp.eq.s32.totalorder %s22, 3
      %p66 = por %p64, %p65
      %p68 = scmp.ne.s32.totalorder %s53, %s67
      %p69 = scmp.eq.s32.totalorder %s22, 0
      %p70 = por %p68, %p69
      %s72 = sadd.s32 %s71, 1
      %p75 = scmp.eq.s32.totalorder %s16, 3
      %p76 = scmp.ne.s32.totalorder %s71, %s73
      %p77 = scmp.eq.s32.totalorder %s16, 0
      %p78 = por %p76, %p77
      %p79 = scmp.ne.s32.totalorder %s71, %s73
      %p80 = scmp.eq.s32.totalorder %s21, 3
      %p81 = por %p79, %p80
      %p82 = scmp.ne.s32.totalorder %s73, %s74
      %p83 = scmp.eq.s32.totalorder %s21, 0
      %p84 = por %p82, %p83
      %p85 = scmp.ne.s32.totalorder %s73, %s74
      %p86 = scmp.eq.s32.totalorder %s22, 3
      %p87 = por %p85, %p86
      %p89 = scmp.ne.s32.totalorder %s74, %s88
      %p90 = scmp.eq.s32.totalorder %s22, 0
      %p91 = por %p89, %p90
      %s93 = sadd.s32 %s92, 1
      %p96 = scmp.eq.s32.totalorder %s16, 3
      %p97 = scmp.ne.s32.totalorder %s92, %s94
      %p98 = scmp.eq.s32.totalorder %s16, 0
      %p99 = por %p97, %p98
      %p100 = scmp.ne.s32.totalorder %s92, %s94
      %p101 = scmp.eq.s32.totalorder %s21, 3
      %p102 = por %p100, %p101
      %p103 = scmp.ne.s32.totalorder %s94, %s95
      %p104 = scmp.eq.s32.totalorder %s21, 0
      %p105 = por %p103, %p104
      %p106 = scmp.ne.s32.totalorder %s94, %s95
      %p107 = scmp.eq.s32.totalorder %s22, 3
      %p108 = por %p106, %p107
      %p110 = scmp.ne.s32.totalorder %s95, %s109
      %p111 = scmp.eq.s32.totalorder %s22, 0
      %p112 = por %p110, %p111
      %s114 = sadd.s32 %s113, 1
      %p117 = scmp.eq.s32.totalorder %s16, 3
      %p118 = scmp.ne.s32.totalorder %s113, %s115
      %p119 = scmp.eq.s32.totalorder %s16, 0
      %p120 = por %p118, %p119
      %p121 = scmp.ne.s32.totalorder %s113, %s115
      %p122 = scmp.eq.s32.totalorder %s21, 3
      %p123 = por %p121, %p122
      %p124 = scmp.ne.s32.totalorder %s115, %s116
      %p125 = scmp.eq.s32.totalorder %s21, 0
      %p126 = por %p124, %p125
      %p127 = scmp.ne.s32.totalorder %s115, %s116
      %p128 = scmp.eq.s32.totalorder %s22, 3
      %p129 = por %p127, %p128
      %p131 = scmp.ne.s32.totalorder %s116, %s130
      %p132 = scmp.eq.s32.totalorder %s22, 0
      %p133 = por %p131, %p132
      %s135 = sadd.s32 %s134, 1
      %p138 = scmp.eq.s32.totalorder %s16, 3
      %p139 = scmp.ne.s32.totalorder %s134, %s136
      %p140 = scmp.eq.s32.totalorder %s16, 0
      %p141 = por %p139, %p140
      %p142 = scmp.ne.s32.totalorder %s134, %s136
      %p143 = scmp.eq.s32.totalorder %s21, 3
      %p144 = por %p142, %p143
      %p145 = scmp.ne.s32.totalorder %s136, %s137
      %p146 = scmp.eq.s32.totalorder %s21, 0
      %p147 = por %p145, %p146
      %p148 = scmp.ne.s32.totalorder %s136, %s137
      %p149 = scmp.eq.s32.totalorder %s22, 3
      %p150 = por %p148, %p149
      %p152 = scmp.ne.s32.totalorder %s137, %s151
      %p153 = scmp.eq.s32.totalorder %s22, 0
      %p154 = por %p152, %p153
      %s156 = sadd.s32 %s155, 1
      %p159 = scmp.eq.s32.totalorder %s16, 3
      %p160 = scmp.ne.s32.totalorder %s155, %s157
      %p161 = scmp.eq.s32.totalorder %s16, 0
      %p162 = por %p160, %p161
      %p163 = scmp.ne.s32.totalorder %s155, %s157
      %p164 = scmp.eq.s32.totalorder %s21, 3
      %p165 = por %p163, %p164
      %p166 = scmp.ne.s32.totalorder %s157, %s158
      %p167 = scmp.eq.s32.totalorder %s21, 0
      %p168 = por %p166, %p167
      %p169 = scmp.ne.s32.totalorder %s157, %s158
      %p170 = scmp.eq.s32.totalorder %s22, 3
      %p171 = por %p169, %p170
      %p173 = scmp.ne.s32.totalorder %s158, %s172
      %p174 = scmp.eq.s32.totalorder %s22, 0
      %p175 = por %p173, %p174
      %s176 = ssub.s32 %s16, %s23
      %p177 = scmp.eq.s32.totalorder %s176, 0
      %s179 = sadd.s32 %s178, 1
      %s180 = scalar_select %p177, %s178, %s179
      %p183 = pneg %p177
      %p184 = scmp.eq.s32.totalorder %s16, 3
      %p185 = por %p183, %p184
      %p186 = scmp.ne.s32.totalorder %s178, %s181
      %p187 = scmp.eq.s32.totalorder %s16, 0
      %p188 = por %p186, %p187
      %p189 = scmp.ne.s32.totalorder %s178, %s181
      %p190 = scmp.eq.s32.totalorder %s21, 3
      %p191 = por %p189, %p190
      %p192 = scmp.ne.s32.totalorder %s181, %s182
      %p193 = scmp.eq.s32.totalorder %s21, 0
      %p194 = por %p192, %p193
      %p195 = scmp.ne.s32.totalorder %s181, %s182
      %p196 = scmp.eq.s32.totalorder %s22, 3
      %p197 = por %p195, %p196
      %p199 = scmp.ne.s32.totalorder %s182, %s198
      %p200 = scmp.eq.s32.totalorder %s22, 0
      %p201 = por %p199, %p200
      %s202 = ssub.s32 %s16, %s23
      %p203 = scmp.eq.s32.totalorder %s202, 0
      %s205 = sadd.s32 %s204, 1
      %s206 = scalar_select %p203, %s204, %s205
      %p209 = pneg %p203
      %p210 = scmp.eq.s32.totalorder %s16, 3
      %p211 = por %p209, %p210
      %p212 = scmp.ne.s32.totalorder %s204, %s207
      %p213 = scmp.eq.s32.totalorder %s16, 0
      %p214 = por %p212, %p213
      %p215 = scmp.ne.s32.totalorder %s204, %s207
      %p216 = scmp.eq.s32.totalorder %s21, 3
      %p217 = por %p215, %p216
      %p218 = scmp.ne.s32.totalorder %s207, %s208
      %p219 = scmp.eq.s32.totalorder %s21, 0
      %p220 = por %p218, %p219
      %p221 = scmp.ne.s32.totalorder %s207, %s208
      %p222 = scmp.eq.s32.totalorder %s22, 3
      %p223 = por %p221, %p222
      %p225 = scmp.ne.s32.totalorder %s208, %s224
      %p226 = scmp.eq.s32.totalorder %s22, 0
      %p227 = por %p225, %p226
      %s228 = ssub.s32 %s16, %s23
      %p229 = scmp.eq.s32.totalorder %s228, 0
      %s231 = sadd.s32 %s230, 1
      %s232 = scalar_select %p229, %s230, %s231
      %p235 = pneg %p229
      %p236 = scmp.eq.s32.totalorder %s16, 3
      %p237 = por %p235, %p236
      %p238 = scmp.ne.s32.totalorder %s230, %s233
      %p239 = scmp.eq.s32.totalorder %s16, 0
      %p240 = por %p238, %p239
      %p241 = scmp.ne.s32.totalorder %s230, %s233
      %p242 = scmp.eq.s32.totalorder %s21, 3
      %p243 = por %p241, %p242
      %p244 = scmp.ne.s32.totalorder %s233, %s234
      %p245 = scmp.eq.s32.totalorder %s21, 0
      %p246 = por %p244, %p245
      %p247 = scmp.ne.s32.totalorder %s233, %s234
      %p248 = scmp.eq.s32.totalorder %s22, 3
      %p249 = por %p247, %p248
      %p251 = scmp.ne.s32.totalorder %s234, %s250
      %p252 = scmp.eq.s32.totalorder %s22, 0
      %p253 = por %p251, %p252
      %p254 = scmp.le.s32.totalorder 1, %s16
      %p255 = scmp.lt.s32.totalorder %s16, 5
      %p256 = pnand %p254, %p255
      %p257 = pneg %p256
      // Predicated region
      $region9: #{position_embedding_forward.8} parent=5 // pred_check
        _
      $region10: #{position_embedding_forward.8} parent=5 // pred_check_branch
        %259 = sbr.rel (%p256) target = $region12
      $region11: #{position_embedding_forward.8} parent=5 // pred_region
        %s260 = ssub.s32 %s16, 1
        // Predicated region
        $region13: #{position_embedding_forward.8} parent=11 // pred_check
          %p261 = pneg %p63
        $region14: #{position_embedding_forward.8} parent=11 // pred_check_branch
          %263 = sbr.rel (%p261) target = $region16
        $region15: #{position_embedding_forward.8} parent=11 // pred_region
          _
        $region16: #{position_embedding_forward.8} parent=11 // pred_fallthru
          _
        // Predicated region
        $region17: #{position_embedding_forward.8} parent=11 // pred_check
          %p264 = pneg %p84
        $region18: #{position_embedding_forward.8} parent=11 // pred_check_branch
          %266 = sbr.rel (%p264) target = $region20
        $region19: #{position_embedding_forward.8} parent=11 // pred_region
          _
        $region20: #{position_embedding_forward.8} parent=11 // pred_fallthru
          _
        // Predicated region
        $region21: #{position_embedding_forward.8} parent=11 // pred_check
          %p267 = pneg %p105
        $region22: #{position_embedding_forward.8} parent=11 // pred_check_branch
          %269 = sbr.rel (%p267) target = $region24
        $region23: #{position_embedding_forward.8} parent=11 // pred_region
          _
        $region24: #{position_embedding_forward.8} parent=11 // pred_fallthru
          _
        // Predicated region
        $region25: #{position_embedding_forward.8} parent=11 // pred_check
          %p270 = pneg %p126
        $region26: #{position_embedding_forward.8} parent=11 // pred_check_branch
          %272 = sbr.rel (%p270) target = $region28
        $region27: #{position_embedding_forward.8} parent=11 // pred_region
          _
        $region28: #{position_embedding_forward.8} parent=11 // pred_fallthru
          _
        // Predicated region
        $region29: #{position_embedding_forward.8} parent=11 // pred_check
          %p273 = pneg %p147
        $region30: #{position_embedding_forward.8} parent=11 // pred_check_branch
          %275 = sbr.rel (%p273) target = $region32
        $region31: #{position_embedding_forward.8} parent=11 // pred_region
          _
        $region32: #{position_embedding_forward.8} parent=11 // pred_fallthru
          _
        // Predicated region
        $region33: #{position_embedding_forward.8} parent=11 // pred_check
          %p276 = pneg %p168
        $region34: #{position_embedding_forward.8} parent=11 // pred_check_branch
          %278 = sbr.rel (%p276) target = $region36
        $region35: #{position_embedding_forward.8} parent=11 // pred_region
          _
        $region36: #{position_embedding_forward.8} parent=11 // pred_fallthru
          _
      $region12: #{position_embedding_forward.8} parent=5 // pred_fallthru
        _
      %p279 = scmp.lt.s32.totalorder %s16, 4
      // Predicated region
      $region37: #{position_embedding_forward.8} parent=5 // pred_check
        %p280 = pneg %p279
      $region38: #{position_embedding_forward.8} parent=5 // pred_check_branch
        %282 = sbr.rel (%p280) target = $region40
      $region39: #{position_embedding_forward.8} parent=5 // pred_region
        // Predicated region
        $region41: #{position_embedding_forward.8} parent=39 // pred_check
          %p283 = pneg %p36
        $region42: #{position_embedding_forward.8} parent=39 // pred_check_branch
          %285 = sbr.rel (%p283) target = $region44
        $region43: #{position_embedding_forward.8} parent=39 // pred_region
          %s286 = sand.u32 %s26, 1
          %s287 = sand.u32 %s26, 1
          %s288 = smul.addr %s287, 64
          %s289 = scalar_lea.vmem [#allocation2], %s288
          %s290 = smul.u32 2, %s16
          %s291 = smul.addr %s290, 4
          %s292 = scalar_lea.vmem %s0, %s291
          // Predicated region
          $region45: #{position_embedding_forward.8} parent=43 // pred_check
            _
          $region46: #{position_embedding_forward.8} parent=43 // pred_check_branch
            %294 = sbr.rel (0) target = $region48
          $region47: #{position_embedding_forward.8} parent=43 // pred_region
            // Predicated region
            $region49: #{position_embedding_forward.8} parent=47 // pred_check
              _
            $region50: #{position_embedding_forward.8} parent=47 // pred_check_branch
              %296 = sbr.rel target = $region52
            $region51: #{position_embedding_forward.8} parent=47 // pred_region
              // Predicated region
              $region64: #{position_embedding_forward.8} parent=51 // pred_check
                _
              $region65: #{position_embedding_forward.8} parent=51 // pred_check_branch
                %341 = sbr.rel (0) target = $region67
              $region66: #{position_embedding_forward.8} parent=51 // pred_region
                loop: start=0, step=1, limit=1
                $region68: #{position_embedding_forward.8} parent=66 // loop_pre_header
                  _
                $region69: #{position_embedding_forward.8} parent=66 // loop_header
                  %s343 = sphi 0, %s347
                  %p344 = scmp.ge.s32.totalorder %s343, 1
                  %s348 = sphi %s292, %s292
                  %s349 = sphi %s289, %s289
                $region70: #{position_embedding_forward.8} parent=66 // loop_header_branch
                  %346 = sbr.rel (%p344) target = $region74
                $region71: #{position_embedding_forward.8} parent=66 // loop_body
                  _
                $region72: #{position_embedding_forward.8} parent=66 // loop_footer
                  %s347 = sadd.s32 1, %s343
                $region73: #{position_embedding_forward.8} parent=66 // loop_footer_branch
                  %342 = sbr.rel target = $region69
                $region74: #{position_embedding_forward.8} parent=66 // loop_exit
                  _
                loop: start=0, step=1, limit=1
                $region75: #{position_embedding_forward.8} parent=66 // loop_pre_header
                  _
                $region76: #{position_embedding_forward.8} parent=66 // loop_header
                  %s352 = sphi 0, %s356
                  %p353 = scmp.ge.s32.totalorder %s352, 1
                  %s357 = sphi %s292, %s292
                  %s358 = sphi %s289, %s289
                $region77: #{position_embedding_forward.8} parent=66 // loop_header_branch
                  %355 = sbr.rel (%p353) target = $region81
                $region78: #{position_embedding_forward.8} parent=66 // loop_body
                  %v359 = vld [vmem:[%s357] sm:$0xf]
                  %360 = vst [vmem:[%s358] sm:$0xf] %v359
                  %v361 = vld [vmem:[%s357 + $0x4] sm:$0xf]
                  %362 = vst [vmem:[%s358 + $0x4] sm:$0xf] %v361
                  %v363 = vld [vmem:[%s357 + $0x20] sm:$0xf]
                  %364 = vst [vmem:[%s358 + $0x8] sm:$0xf] %v363
                  %v365 = vld [vmem:[%s357 + $0x24] sm:$0xf]
                  %366 = vst [vmem:[%s358 + $0xc] sm:$0xf] %v365
                  %v367 = vld [vmem:[%s357 + $0x40] sm:$0xf]
                  %368 = vst [vmem:[%s358 + $0x10] sm:$0xf] %v367
                  %v369 = vld [vmem:[%s357 + $0x44] sm:$0xf]
                  %370 = vst [vmem:[%s358 + $0x14] sm:$0xf] %v369
                  %v371 = vld [vmem:[%s357 + $0x60] sm:$0xf]
                  %372 = vst [vmem:[%s358 + $0x18] sm:$0xf] %v371
                  %v373 = vld [vmem:[%s357 + $0x64] sm:$0xf]
                  %374 = vst [vmem:[%s358 + $0x1c] sm:$0xf] %v373
                  %v375 = vld [vmem:[%s357 + $0x80] sm:$0xf]
                  %376 = vst [vmem:[%s358 + $0x20] sm:$0xf] %v375
                  %v377 = vld [vmem:[%s357 + $0x84] sm:$0xf]
                  %378 = vst [vmem:[%s358 + $0x24] sm:$0xf] %v377
                  %v379 = vld [vmem:[%s357 + $0xa0] sm:$0xf]
                  %380 = vst [vmem:[%s358 + $0x28] sm:$0xf] %v379
                  %v381 = vld [vmem:[%s357 + $0xa4] sm:$0xf]
                  %382 = vst [vmem:[%s358 + $0x2c] sm:$0xf] %v381
                  %v383 = vld [vmem:[%s357 + $0xc0] sm:$0xf]
                  %384 = vst [vmem:[%s358 + $0x30] sm:$0xf] %v383
                  %v385 = vld [vmem:[%s357 + $0xc4] sm:$0xf]
                  %386 = vst [vmem:[%s358 + $0x34] sm:$0xf] %v385
                  %v387 = vld [vmem:[%s357 + $0xe0] sm:$0xf]
                  %388 = vst [vmem:[%s358 + $0x38] sm:$0xf] %v387
                  %v389 = vld [vmem:[%s357 + $0xe4] sm:$0xf]
                  %390 = vst [vmem:[%s358 + $0x3c] sm:$0xf] %v389
                $region79: #{position_embedding_forward.8} parent=66 // loop_footer
                  %s356 = sadd.s32 1, %s352
                $region80: #{position_embedding_forward.8} parent=66 // loop_footer_branch
                  %351 = sbr.rel target = $region76
                $region81: #{position_embedding_forward.8} parent=66 // loop_exit
                  _
              $region67: #{position_embedding_forward.8} parent=51 // pred_fallthru
                _
            $region52: #{position_embedding_forward.8} parent=47 // pred_fallthru
              _
            // Predicated region
            $region53: #{position_embedding_forward.8} parent=47 // pred_check
              _
            $region54: #{position_embedding_forward.8} parent=47 // pred_check_branch
              %298 = sbr.rel (0) target = $region56
            $region55: #{position_embedding_forward.8} parent=47 // pred_region
              loop: start=0, step=1, limit=1
              $region57: #{position_embedding_forward.8} parent=55 // loop_pre_header
                _
              $region58: #{position_embedding_forward.8} parent=55 // loop_header
                %s301 = sphi 0, %s305
                %p302 = scmp.ge.s32.totalorder %s301, 1
                %s306 = sphi %s292, %s292
                %s307 = sphi %s289, %s289
              $region59: #{position_embedding_forward.8} parent=55 // loop_header_branch
                %304 = sbr.rel (%p302) target = $region63
              $region60: #{position_embedding_forward.8} parent=55 // loop_body
                %v308 = vld [vmem:[%s306] sm:$0xf]
                %309 = vst [vmem:[%s307] sm:$0xf] %v308
                %v310 = vld [vmem:[%s306 + $0x4] sm:$0xf]
                %311 = vst [vmem:[%s307 + $0x4] sm:$0xf] %v310
                %v312 = vld [vmem:[%s306 + $0x20] sm:$0xf]
                %313 = vst [vmem:[%s307 + $0x8] sm:$0xf] %v312
                %v314 = vld [vmem:[%s306 + $0x24] sm:$0xf]
                %315 = vst [vmem:[%s307 + $0xc] sm:$0xf] %v314
                %v316 = vld [vmem:[%s306 + $0x40] sm:$0xf]
                %317 = vst [vmem:[%s307 + $0x10] sm:$0xf] %v316
                %v318 = vld [vmem:[%s306 + $0x44] sm:$0xf]
                %319 = vst [vmem:[%s307 + $0x14] sm:$0xf] %v318
                %v320 = vld [vmem:[%s306 + $0x60] sm:$0xf]
                %321 = vst [vmem:[%s307 + $0x18] sm:$0xf] %v320
                %v322 = vld [vmem:[%s306 + $0x64] sm:$0xf]
                %323 = vst [vmem:[%s307 + $0x1c] sm:$0xf] %v322
                %v324 = vld [vmem:[%s306 + $0x80] sm:$0xf]
                %325 = vst [vmem:[%s307 + $0x20] sm:$0xf] %v324
                %v326 = vld [vmem:[%s306 + $0x84] sm:$0xf]
                %327 = vst [vmem:[%s307 + $0x24] sm:$0xf] %v326
                %v328 = vld [vmem:[%s306 + $0xa0] sm:$0xf]
                %329 = vst [vmem:[%s307 + $0x28] sm:$0xf] %v328
                %v330 = vld [vmem:[%s306 + $0xa4] sm:$0xf]
                %331 = vst [vmem:[%s307 + $0x2c] sm:$0xf] %v330
                %v332 = vld [vmem:[%s306 + $0xc0] sm:$0xf]
                %333 = vst [vmem:[%s307 + $0x30] sm:$0xf] %v332
                %v334 = vld [vmem:[%s306 + $0xc4] sm:$0xf]
                %335 = vst [vmem:[%s307 + $0x34] sm:$0xf] %v334
                %v336 = vld [vmem:[%s306 + $0xe0] sm:$0xf]
                %337 = vst [vmem:[%s307 + $0x38] sm:$0xf] %v336
                %v338 = vld [vmem:[%s306 + $0xe4] sm:$0xf]
                %339 = vst [vmem:[%s307 + $0x3c] sm:$0xf] %v338
              $region61: #{position_embedding_forward.8} parent=55 // loop_footer
                %s305 = sadd.s32 1, %s301
              $region62: #{position_embedding_forward.8} parent=55 // loop_footer_branch
                %300 = sbr.rel target = $region58
              $region63: #{position_embedding_forward.8} parent=55 // loop_exit
                _
            $region56: #{position_embedding_forward.8} parent=47 // pred_fallthru
              _
          $region48: #{position_embedding_forward.8} parent=43 // pred_fallthru
            _
          %391 = vnop
        $region44: #{position_embedding_forward.8} parent=39 // pred_fallthru
          _
      $region40: #{position_embedding_forward.8} parent=5 // pred_fallthru
        _
      %p392 = scmp.le.s32.totalorder 1, %s16
      %p393 = scmp.lt.s32.totalorder %s16, 5
      %p394 = pnand %p392, %p393
      %p395 = pneg %p394
      // Predicated region
      $region82: #{position_embedding_forward.8} parent=5 // pred_check
        _
      $region83: #{position_embedding_forward.8} parent=5 // pred_check_branch
        %397 = sbr.rel (%p394) target = $region85
      $region84: #{position_embedding_forward.8} parent=5 // pred_region
        %s398 = ssub.s32 %s16, 1
        %s399 = sand.u32 %s29, 1
        %s400 = sand.u32 %s29, 1
        %s401 = smul.addr %s400, 64
        %s402 = scalar_lea.vmem [#allocation2], %s401
        // Predicated region
        $region86: #{position_embedding_forward.8} parent=84 // pred_check
          %p403 = pneg %p42
        $region87: #{position_embedding_forward.8} parent=84 // pred_check_branch
          %405 = sbr.rel (%p403) target = $region89
        $region88: #{position_embedding_forward.8} parent=84 // pred_region
          _
        $region89: #{position_embedding_forward.8} parent=84 // pred_fallthru
          _
        %s406 = sand.u32 %s29, 1
        %s407 = sand.u32 %s29, 1
        %s408 = smul.addr %s407, 64
        %s409 = scalar_lea.vmem [#allocation2], %s408
        %p410 = pneg %p42
        %p411 = pneg %p39
        %p412 = pneg %p63
        %p413 = pneg %p60
        %p414 = pneg %p84
        %p415 = pneg %p81
        %p416 = pneg %p105
        %p417 = pneg %p102
        %p418 = pneg %p126
        %p419 = pneg %p123
        %p420 = pneg %p147
        %p421 = pneg %p144
        %p422 = pneg %p168
        %p423 = pneg %p165
        %p424 = pneg %p194
        %p425 = pneg %p191
        %s426 = smul.u32 2, %s21
        %p427 = scmp.lt.s32.totalorder %s426, 7
        %s428 = scalar_select %p427, %s426, 7
        %s429 = smul.addr %s428, 4
        %s430 = scalar_lea.vmem %s7, %s429
        %p431 = pneg %p220
        %p432 = pneg %p217
        %p433 = scmp.lt.s32.totalorder %s21, 3
        %s434 = scalar_select %p433, %s21, 3
        %s435 = scalar_lea.vmem %s8, %s434
        %p436 = pneg %p246
        %p437 = pneg %p243
        %p438 = scmp.lt.s32.totalorder %s21, 3
        %s439 = scalar_select %p438, %s21, 3
        %s440 = smul.addr %s439, 16
        %s441 = smul.addr %s440, 8
        %s442 = scalar_lea.vmem %s9, %s441
        %s443 = smul.u32 2, %s21
        %s444 = smul.u32 2, %s21
        %p445 = scmp.lt.s32.totalorder %s444, 7
        %s446 = scalar_select %p445, %s444, 7
        %s447 = smul.addr %s446, 4
        %s448 = scalar_lea.vmem %s7, %s447
        %s449 = smul.u32 2, %s21
        %p450 = scmp.lt.s32.totalorder %s21, 3
        %s451 = scalar_select %p450, %s21, 3
        %s452 = scalar_lea.vmem %s8, %s451
        %p453 = scmp.lt.s32.totalorder %s21, 3
        %s454 = scalar_select %p453, %s21, 3
        %s455 = smul.addr %s454, 16
        %s456 = smul.addr %s455, 8
        %s457 = scalar_lea.vmem %s9, %s456
        %v459 = vld [vmem:[%s402] sm:$0xf]
        %v460 = vld [vmem:[%s402 + $0x4] sm:$0xf]
        %v461 = vld [vmem:[%s1] sm:$0xf]
        %v464 = vunpack.c.l.b16 %v459
        %v465 = vunpack.c.l.b16 %v460
        %v466 = vpack.c.b16 %v465, %v464
        %vm467 = vcmask 64512
        %v469 = vsel %vm467, %v466, 0
        %vm471 = vcmask 1043456
        %v473 = vsel %vm471, %v461, 0
        %475 = vmatprep.subr.bf16.mxu0 0
        %476 = vmatpush1.bf16.msra.mxu0 %v473
        %477 = vmatprep.subr.bf16.mxu0 0
        %478 = vmatpush1.bf16.msra.mxu0 0
        %479 = vmatprep.subr.bf16.mxu0 0
        %480 = vmatpush1.bf16.msra.mxu0 0
        %481 = vmatprep.subr.bf16.mxu0 0
        %482 = vmatpush1.bf16.msra.mxu0 0
        %483 = vmatprep.subr.bf16.mxu0 0
        %484 = vmatpush1.bf16.msra.mxu0 0
        %485 = vmatprep.subr.bf16.mxu0 0
        %486 = vmatpush1.bf16.msra.mxu0 0
        %487 = vmatprep.subr.bf16.mxu0 0
        %488 = vmatpush1.bf16.msra.mxu0 0
        %489 = vmatprep.subr.bf16.mxu0 0
        %490 = vmatpush1.bf16.msra.mxu0 0
        %491 = vmatprep.subr.bf16.mxu0 0
        %492 = vmatpush1.bf16.msra.mxu0 0
        %493 = vmatprep.subr.bf16.mxu0 0
        %494 = vmatpush1.bf16.msra.mxu0 0
        %495 = vmatprep.subr.bf16.mxu0 0
        %496 = vmatpush1.bf16.msra.mxu0 0
        %497 = vmatprep.subr.bf16.mxu0 0
        %498 = vmatpush1.bf16.msra.mxu0 0
        %499 = vmatprep.subr.bf16.mxu0 0
        %500 = vmatpush1.bf16.msra.mxu0 0
        %501 = vmatprep.subr.bf16.mxu0 0
        %502 = vmatpush1.bf16.msra.mxu0 0
        %503 = vmatprep.subr.bf16.mxu0 0
        %504 = vmatpush1.bf16.msra.mxu0 0
        %505 = vmatprep.subr.bf16.mxu0 0
        %506 = vmatpush1.bf16.msra.mxu0 0
        %507 = vmatprep.mubr.bf16.mxu0 0
        %508 = vmatmul.mubr.bf16.gmra.mrb[0].mxu0 %v469
        %v509 = vpop.f32.mrb[0].mxu0
        %v510 = vadd.f32 0.0, %v509
        %v511 = vpop.f32.mrb[0].mxu0
        %v512 = vpop.f32.mrb[0].mxu0
        %v513 = vadd.f32 0.0, %v512
        %v514 = vpop.f32.mrb[0].mxu0
        %515 = vdwg.mxu0
        %v516 = vld [vmem:[%s2] sm:$0x1]
        %v518 = vlaneseq
        %v519 = vshrl.u32 %v518, 7
        %v520 = vsub.s32 0, %v519
        %v521 = vrot.slane %v516, %v520
        %v523 = vmul.f32 %v510, %v521
        %v524 = vmul.f32 %v513, %v521
        %v525 = vld [vmem:[%s3] sm:$0x1]
        %v527 = vlaneseq
        %v528 = vshrl.u32 %v527, 7
        %v529 = vsub.s32 0, %v528
        %v530 = vrot.slane %v525, %v529
        %v532 = vadd.f32 %v523, %v530
        %v533 = vadd.f32 %v524, %v530
        %vm534 = vcmp.ge.f32.partialorder %v532, 0.0
        %vm535 = vcmp.ge.f32.partialorder %v533, 0.0
        %v536 = vmul.f32 %v532, 0.2
        %v537 = vmul.f32 %v533, 0.2
        %v538 = vsel %vm534, %v532, %v536
        %v539 = vsel %vm535, %v533, %v537
        %v540 = vpack.c.bf16 %v539, %v538
        %v541 = vld [vmem:[%s4] sm:$0xf]
        %v542 = vld [vmem:[%s4 + $0x4] sm:$0xf]
        %v543 = vld [vmem:[%s4 + $0x8] sm:$0xf]
        %v544 = vld [vmem:[%s4 + $0xc] sm:$0xf]
        %v545 = vld [vmem:[%s4 + $0x10] sm:$0xf]
        %v546 = vld [vmem:[%s4 + $0x14] sm:$0xf]
        %v547 = vld [vmem:[%s4 + $0x18] sm:$0xf]
        %v548 = vld [vmem:[%s4 + $0x1c] sm:$0xf]
        %v557 = vunpack.c.l.b16 %v541
        %v558 = vunpack.c.l.b16 %v542
        %v559 = vunpack.c.l.b16 %v543
        %v560 = vunpack.c.l.b16 %v544
        %v561 = vunpack.c.l.b16 %v545
        %v562 = vunpack.c.l.b16 %v546
        %v563 = vunpack.c.l.b16 %v547
        %v564 = vunpack.c.l.b16 %v548
        %v565 = vpack.c.b16 %v558, %v557
        %v566 = vpack.c.b16 %v560, %v559
        %v567 = vpack.c.b16 %v562, %v561
        %v568 = vpack.c.b16 %v564, %v563
        %vm573 = vcmask 523264
        %v575 = vsel %vm573, %v540, 0
        %577 = vmatprep.subr.bf16.mxu0 0
        %578 = vmatpush1.bf16.msra.mxu0 %v565
        %579 = vmatprep.subr.bf16.mxu0 0
        %580 = vmatpush1.bf16.msra.mxu0 %v566
        %581 = vmatprep.subr.bf16.mxu0 0
        %582 = vmatpush1.bf16.msra.mxu0 %v567
        %583 = vmatprep.subr.bf16.mxu0 0
        %584 = vmatpush1.bf16.msra.mxu0 %v568
        %585 = vmatprep.subr.bf16.mxu0 0
        %586 = vmatpush1.bf16.msra.mxu0 0
        %587 = vmatprep.subr.bf16.mxu0 0
        %588 = vmatpush1.bf16.msra.mxu0 0
        %589 = vmatprep.subr.bf16.mxu0 0
        %590 = vmatpush1.bf16.msra.mxu0 0
        %591 = vmatprep.subr.bf16.mxu0 0
        %592 = vmatpush1.bf16.msra.mxu0 0
        %593 = vmatprep.subr.bf16.mxu0 0
        %594 = vmatpush1.bf16.msra.mxu0 0
        %595 = vmatprep.subr.bf16.mxu0 0
        %596 = vmatpush1.bf16.msra.mxu0 0
        %597 = vmatprep.subr.bf16.mxu0 0
        %598 = vmatpush1.bf16.msra.mxu0 0
        %599 = vmatprep.subr.bf16.mxu0 0
        %600 = vmatpush1.bf16.msra.mxu0 0
        %601 = vmatprep.subr.bf16.mxu0 0
        %602 = vmatpush1.bf16.msra.mxu0 0
        %603 = vmatprep.subr.bf16.mxu0 0
        %604 = vmatpush1.bf16.msra.mxu0 0
        %605 = vmatprep.subr.bf16.mxu0 0
        %606 = vmatpush1.bf16.msra.mxu0 0
        %607 = vmatprep.subr.bf16.mxu0 0
        %608 = vmatpush1.bf16.msra.mxu0 0
        %609 = vmatprep.mubr.bf16.mxu0 0
        %610 = vmatmul.mubr.bf16.gmra.mrb[0].mxu0 %v575
        %v611 = vpop.f32.mrb[0].mxu0
        %v612 = vadd.f32 0.0, %v611
        %v613 = vpop.f32.mrb[0].mxu0
        %v614 = vpop.f32.mrb[0].mxu0
        %v615 = vadd.f32 0.0, %v614
        %v616 = vpop.f32.mrb[0].mxu0
        %617 = vdwg.mxu0
        %v618 = vld [vmem:[%s5] sm:$0x1]
        %v620 = vlaneseq
        %v621 = vshrl.u32 %v620, 7
        %v622 = vsub.s32 0, %v621
        %v623 = vrot.slane %v618, %v622
        %v625 = vmul.f32 %v612, %v623
        %v626 = vmul.f32 %v615, %v623
        %v627 = vld [vmem:[%s6] sm:$0x1]
        %v629 = vlaneseq
        %v630 = vshrl.u32 %v629, 7
        %v631 = vsub.s32 0, %v630
        %v632 = vrot.slane %v627, %v631
        %v634 = vadd.f32 %v625, %v632
        %v635 = vadd.f32 %v626, %v632
        %vm636 = vcmp.ge.f32.partialorder %v634, 0.0
        %vm637 = vcmp.ge.f32.partialorder %v635, 0.0
        %v638 = vmul.f32 %v634, 0.2
        %v639 = vmul.f32 %v635, 0.2
        %v640 = vsel %vm636, %v634, %v638
        %v641 = vsel %vm637, %v635, %v639
        loop: start=1, step=1, limit=8
        $region90: #{position_embedding_forward.8} parent=84 // loop_pre_header
          _
        $region91: #{position_embedding_forward.8} parent=84 // loop_header
          %s643 = sphi 1, %s647
          %p644 = scmp.ge.s32.totalorder %s643, 8
          %v648 = vphi %v640, %v833
          %v649 = vphi %v641, %v834
        $region92: #{position_embedding_forward.8} parent=84 // loop_header_branch
          %646 = sbr.rel (%p644) target = $region96
        $region93: #{position_embedding_forward.8} parent=84 // loop_body
          %s650 = smul.u32 %s643, 2
          %s651 = smul.addr %s650, 4
          %s652 = scalar_lea.vmem %s402, %s651 [#allocation2]
          %v653 = vld [vmem:[%s652] sm:$0xf]
          %v654 = vld [vmem:[%s652 + $0x4] sm:$0xf]
          %v655 = vld [vmem:[%s1] sm:$0xf]
          %v658 = vunpack.c.l.b16 %v653
          %v659 = vunpack.c.l.b16 %v654
          %v660 = vpack.c.b16 %v659, %v658
          %v662 = vsel %vm467, %v660, 0
          %v665 = vsel %vm471, %v655, 0
          %667 = vmatprep.subr.bf16.mxu0 0
          %668 = vmatpush1.bf16.msra.mxu0 %v665
          %669 = vmatprep.subr.bf16.mxu0 0
          %670 = vmatpush1.bf16.msra.mxu0 0
          %671 = vmatprep.subr.bf16.mxu0 0
          %672 = vmatpush1.bf16.msra.mxu0 0
          %673 = vmatprep.subr.bf16.mxu0 0
          %674 = vmatpush1.bf16.msra.mxu0 0
          %675 = vmatprep.subr.bf16.mxu0 0
          %676 = vmatpush1.bf16.msra.mxu0 0
          %677 = vmatprep.subr.bf16.mxu0 0
          %678 = vmatpush1.bf16.msra.mxu0 0
          %679 = vmatprep.subr.bf16.mxu0 0
          %680 = vmatpush1.bf16.msra.mxu0 0
          %681 = vmatprep.subr.bf16.mxu0 0
          %682 = vmatpush1.bf16.msra.mxu0 0
          %683 = vmatprep.subr.bf16.mxu0 0
          %684 = vmatpush1.bf16.msra.mxu0 0
          %685 = vmatprep.subr.bf16.mxu0 0
          %686 = vmatpush1.bf16.msra.mxu0 0
          %687 = vmatprep.subr.bf16.mxu0 0
          %688 = vmatpush1.bf16.msra.mxu0 0
          %689 = vmatprep.subr.bf16.mxu0 0
          %690 = vmatpush1.bf16.msra.mxu0 0
          %691 = vmatprep.subr.bf16.mxu0 0
          %692 = vmatpush1.bf16.msra.mxu0 0
          %693 = vmatprep.subr.bf16.mxu0 0
          %694 = vmatpush1.bf16.msra.mxu0 0
          %695 = vmatprep.subr.bf16.mxu0 0
          %696 = vmatpush1.bf16.msra.mxu0 0
          %697 = vmatprep.subr.bf16.mxu0 0
          %698 = vmatpush1.bf16.msra.mxu0 0
          %699 = vmatprep.mubr.bf16.mxu0 0
          %700 = vmatmul.mubr.bf16.gmra.mrb[0].mxu0 %v662
          %v701 = vpop.f32.mrb[0].mxu0
          %v702 = vadd.f32 0.0, %v701
          %v703 = vpop.f32.mrb[0].mxu0
          %v704 = vpop.f32.mrb[0].mxu0
          %v705 = vadd.f32 0.0, %v704
          %v706 = vpop.f32.mrb[0].mxu0
          %707 = vdwg.mxu0
          %v708 = vld [vmem:[%s2] sm:$0x1]
          %v710 = vlaneseq
          %v711 = vshrl.u32 %v710, 7
          %v712 = vsub.s32 0, %v711
          %v713 = vrot.slane %v708, %v712
          %v715 = vmul.f32 %v702, %v713
          %v716 = vmul.f32 %v705, %v713
          %v717 = vld [vmem:[%s3] sm:$0x1]
          %v719 = vlaneseq
          %v720 = vshrl.u32 %v719, 7
          %v721 = vsub.s32 0, %v720
          %v722 = vrot.slane %v717, %v721
          %v724 = vadd.f32 %v715, %v722
          %v725 = vadd.f32 %v716, %v722
          %vm726 = vcmp.ge.f32.partialorder %v724, 0.0
          %vm727 = vcmp.ge.f32.partialorder %v725, 0.0
          %v728 = vmul.f32 %v724, 0.2
          %v729 = vmul.f32 %v725, 0.2
          %v730 = vsel %vm726, %v724, %v728
          %v731 = vsel %vm727, %v725, %v729
          %v732 = vpack.c.bf16 %v731, %v730
          %v733 = vld [vmem:[%s4] sm:$0xf]
          %v734 = vld [vmem:[%s4 + $0x4] sm:$0xf]
          %v735 = vld [vmem:[%s4 + $0x8] sm:$0xf]
          %v736 = vld [vmem:[%s4 + $0xc] sm:$0xf]
          %v737 = vld [vmem:[%s4 + $0x10] sm:$0xf]
          %v738 = vld [vmem:[%s4 + $0x14] sm:$0xf]
          %v739 = vld [vmem:[%s4 + $0x18] sm:$0xf]
          %v740 = vld [vmem:[%s4 + $0x1c] sm:$0xf]
          %v749 = vunpack.c.l.b16 %v733
          %v750 = vunpack.c.l.b16 %v734
          %v751 = vunpack.c.l.b16 %v735
          %v752 = vunpack.c.l.b16 %v736
          %v753 = vunpack.c.l.b16 %v737
          %v754 = vunpack.c.l.b16 %v738
          %v755 = vunpack.c.l.b16 %v739
          %v756 = vunpack.c.l.b16 %v740
          %v757 = vpack.c.b16 %v750, %v749
          %v758 = vpack.c.b16 %v752, %v751
          %v759 = vpack.c.b16 %v754, %v753
          %v760 = vpack.c.b16 %v756, %v755
          %v766 = vsel %vm573, %v732, 0
          %768 = vmatprep.subr.bf16.mxu0 0
          %769 = vmatpush1.bf16.msra.mxu0 %v757
          %770 = vmatprep.subr.bf16.mxu0 0
          %771 = vmatpush1.bf16.msra.mxu0 %v758
          %772 = vmatprep.subr.bf16.mxu0 0
          %773 = vmatpush1.bf16.msra.mxu0 %v759
          %774 = vmatprep.subr.bf16.mxu0 0
          %775 = vmatpush1.bf16.msra.mxu0 %v760
          %776 = vmatprep.subr.bf16.mxu0 0
          %777 = vmatpush1.bf16.msra.mxu0 0
          %778 = vmatprep.subr.bf16.mxu0 0
          %779 = vmatpush1.bf16.msra.mxu0 0
          %780 = vmatprep.subr.bf16.mxu0 0
          %781 = vmatpush1.bf16.msra.mxu0 0
          %782 = vmatprep.subr.bf16.mxu0 0
          %783 = vmatpush1.bf16.msra.mxu0 0
          %784 = vmatprep.subr.bf16.mxu0 0
          %785 = vmatpush1.bf16.msra.mxu0 0
          %786 = vmatprep.subr.bf16.mxu0 0
          %787 = vmatpush1.bf16.msra.mxu0 0
          %788 = vmatprep.subr.bf16.mxu0 0
          %789 = vmatpush1.bf16.msra.mxu0 0
          %790 = vmatprep.subr.bf16.mxu0 0
          %791 = vmatpush1.bf16.msra.mxu0 0
          %792 = vmatprep.subr.bf16.mxu0 0
          %793 = vmatpush1.bf16.msra.mxu0 0
          %794 = vmatprep.subr.bf16.mxu0 0
          %795 = vmatpush1.bf16.msra.mxu0 0
          %796 = vmatprep.subr.bf16.mxu0 0
          %797 = vmatpush1.bf16.msra.mxu0 0
          %798 = vmatprep.subr.bf16.mxu0 0
          %799 = vmatpush1.bf16.msra.mxu0 0
          %800 = vmatprep.mubr.bf16.mxu0 0
          %801 = vmatmul.mubr.bf16.gmra.mrb[0].mxu0 %v766
          %v802 = vpop.f32.mrb[0].mxu0
          %v803 = vadd.f32 0.0, %v802
          %v804 = vpop.f32.mrb[0].mxu0
          %v805 = vpop.f32.mrb[0].mxu0
          %v806 = vadd.f32 0.0, %v805
          %v807 = vpop.f32.mrb[0].mxu0
          %808 = vdwg.mxu0
          %v809 = vld [vmem:[%s5] sm:$0x1]
          %v811 = vlaneseq
          %v812 = vshrl.u32 %v811, 7
          %v813 = vsub.s32 0, %v812
          %v814 = vrot.slane %v809, %v813
          %v816 = vmul.f32 %v803, %v814
          %v817 = vmul.f32 %v806, %v814
          %v818 = vld [vmem:[%s6] sm:$0x1]
          %v820 = vlaneseq
          %v821 = vshrl.u32 %v820, 7
          %v822 = vsub.s32 0, %v821
          %v823 = vrot.slane %v818, %v822
          %v825 = vadd.f32 %v816, %v823
          %v826 = vadd.f32 %v817, %v823
          %vm827 = vcmp.ge.f32.partialorder %v825, 0.0
          %vm828 = vcmp.ge.f32.partialorder %v826, 0.0
          %v829 = vmul.f32 %v825, 0.2
          %v830 = vmul.f32 %v826, 0.2
          %v831 = vsel %vm827, %v825, %v829
          %v832 = vsel %vm828, %v826, %v830
          %v833 = vmax.f32 %v648, %v831
          %v834 = vmax.f32 %v649, %v832
        $region94: #{position_embedding_forward.8} parent=84 // loop_footer
          %s647 = sadd.s32 1, %s643
        $region95: #{position_embedding_forward.8} parent=84 // loop_footer_branch
          %642 = sbr.rel target = $region91
        $region96: #{position_embedding_forward.8} parent=84 // loop_exit
          _
        %v835 = vpack.c.bf16 %v649, %v648
        %v837 = vunpack.c.l.b16 %v835
        %v838 = vunpack.c.h.b16 %v835
        %v839 = vpack.c.b16 %v837, %v837
        %v840 = vpack.c.b16 %v838, %v838
        %843 = vst [vmem:[%s448] sm:$0xf] %v839
        %844 = vst [vmem:[%s448 + $0x4] sm:$0xf] %v840
        %v845 = vunpack.c.l.bf16 %v835
        %v846 = vunpack.c.h.bf16 %v835
        %v847 = vadd.f32 %v845, %v846
        %v848 = vrot.slane %v847, 4
        %v849 = vadd.f32 %v847, %v848
        %v850 = vrot.slane %v849, 2
        %v851 = vadd.f32 %v849, %v850
        %v852 = vrot.slane %v851, 1
        %v853 = vadd.f32 %v851, %v852
        %854 = vst [vmem:[%s452] sm:$0x1] %v853
        %855 = vxpose.xlu0.c.b16.start [1/8] %v835, 128
        %856 = vxpose.xlu0.c.b16.cont [2/8] 0, 128
        %857 = vxpose.xlu0.c.b16.cont [3/8] 0, 128
        %858 = vxpose.xlu0.c.b16.cont [4/8] 0, 128
        %859 = vxpose.xlu0.c.b16.cont [5/8] 0, 128
        %860 = vxpose.xlu0.c.b16.cont [6/8] 0, 128
        %861 = vxpose.xlu0.c.b16.cont [7/8] 0, 128
        %862 = vxpose.xlu0.c.b16.end [8/8] 0, 128
        %v863 = vpop.trf.xlu0
        %v864 = vpop.trf.xlu0
        %v865 = vpop.trf.xlu0
        %v866 = vpop.trf.xlu0
        %v867 = vpop.trf.xlu0
        %v868 = vpop.trf.xlu0
        %v869 = vpop.trf.xlu0
        %v870 = vpop.trf.xlu0
        %vm871 = vcmask 130048
        %v873 = vsel %vm871, %v863, 0
        %v876 = vsel %vm871, %v864, 0
        %v879 = vsel %vm871, %v865, 0
        %v882 = vsel %vm871, %v866, 0
        %v885 = vsel %vm871, %v867, 0
        %v888 = vsel %vm871, %v868, 0
        %v891 = vsel %vm871, %v869, 0
        %v894 = vsel %vm871, %v870, 0
        %896 = vmatprep.subr.bf16.mxu0 0
        %897 = vmatpush1.bf16.msra.mxu0 %v835
        %898 = vmatprep.subr.bf16.mxu0 0
        %899 = vmatpush1.bf16.msra.mxu0 0
        %900 = vmatprep.subr.bf16.mxu0 0
        %901 = vmatpush1.bf16.msra.mxu0 0
        %902 = vmatprep.subr.bf16.mxu0 0
        %903 = vmatpush1.bf16.msra.mxu0 0
        %904 = vmatprep.subr.bf16.mxu0 0
        %905 = vmatpush1.bf16.msra.mxu0 0
        %906 = vmatprep.subr.bf16.mxu0 0
        %907 = vmatpush1.bf16.msra.mxu0 0
        %908 = vmatprep.subr.bf16.mxu0 0
        %909 = vmatpush1.bf16.msra.mxu0 0
        %910 = vmatprep.subr.bf16.mxu0 0
        %911 = vmatpush1.bf16.msra.mxu0 0
        %912 = vmatprep.subr.bf16.mxu0 0
        %913 = vmatpush1.bf16.msra.mxu0 0
        %914 = vmatprep.subr.bf16.mxu0 0
        %915 = vmatpush1.bf16.msra.mxu0 0
        %916 = vmatprep.subr.bf16.mxu0 0
        %917 = vmatpush1.bf16.msra.mxu0 0
        %918 = vmatprep.subr.bf16.mxu0 0
        %919 = vmatpush1.bf16.msra.mxu0 0
        %920 = vmatprep.subr.bf16.mxu0 0
        %921 = vmatpush1.bf16.msra.mxu0 0
        %922 = vmatprep.subr.bf16.mxu0 0
        %923 = vmatpush1.bf16.msra.mxu0 0
        %924 = vmatprep.subr.bf16.mxu0 0
        %925 = vmatpush1.bf16.msra.mxu0 0
        %926 = vmatprep.subr.bf16.mxu0 0
        %927 = vmatpush1.bf16.msra.mxu0 0
        %928 = vmatprep.mubr.bf16.mxu0 0
        %929 = vmatmul.mubr.bf16.gmra.mrb[0].mxu0 %v873
        %v930 = vpop.f32.mrb[0].mxu0
        %v931 = vadd.f32 0.0, %v930
        %v932 = vpop.f32.mrb[0].mxu0
        %v933 = vpop.f32.mrb[0].mxu0
        %v934 = vadd.f32 0.0, %v933
        %v935 = vpop.f32.mrb[0].mxu0
        %936 = vmatprep.mubr.bf16.mxu0 0
        %937 = vmatmul.mubr.bf16.gmra.mrb[0].mxu0 %v876
        %v938 = vpop.f32.mrb[0].mxu0
        %v939 = vadd.f32 0.0, %v938
        %v940 = vpop.f32.mrb[0].mxu0
        %v941 = vpop.f32.mrb[0].mxu0
        %v942 = vadd.f32 0.0, %v941
        %v943 = vpop.f32.mrb[0].mxu0
        %944 = vmatprep.mubr.bf16.mxu0 0
        %945 = vmatmul.mubr.bf16.gmra.mrb[0].mxu0 %v879
        %v946 = vpop.f32.mrb[0].mxu0
        %v947 = vadd.f32 0.0, %v946
        %v948 = vpop.f32.mrb[0].mxu0
        %v949 = vpop.f32.mrb[0].mxu0
        %v950 = vadd.f32 0.0, %v949
        %v951 = vpop.f32.mrb[0].mxu0
        %952 = vmatprep.mubr.bf16.mxu0 0
        %953 = vmatmul.mubr.bf16.gmra.mrb[0].mxu0 %v882
        %v954 = vpop.f32.mrb[0].mxu0
        %v955 = vadd.f32 0.0, %v954
        %v956 = vpop.f32.mrb[0].mxu0
        %v957 = vpop.f32.mrb[0].mxu0
        %v958 = vadd.f32 0.0, %v957
        %v959 = vpop.f32.mrb[0].mxu0
        %960 = vmatprep.mubr.bf16.mxu0 0
        %961 = vmatmul.mubr.bf16.gmra.mrb[0].mxu0 %v885
        %v962 = vpop.f32.mrb[0].mxu0
        %v963 = vadd.f32 0.0, %v962
        %v964 = vpop.f32.mrb[0].mxu0
        %v965 = vpop.f32.mrb[0].mxu0
        %v966 = vadd.f32 0.0, %v965
        %v967 = vpop.f32.mrb[0].mxu0
        %968 = vmatprep.mubr.bf16.mxu0 0
        %969 = vmatmul.mubr.bf16.gmra.mrb[0].mxu0 %v888
        %v970 = vpop.f32.mrb[0].mxu0
        %v971 = vadd.f32 0.0, %v970
        %v972 = vpop.f32.mrb[0].mxu0
        %v973 = vpop.f32.mrb[0].mxu0
        %v974 = vadd.f32 0.0, %v973
        %v975 = vpop.f32.mrb[0].mxu0
        %976 = vmatprep.mubr.bf16.mxu0 0
        %977 = vmatmul.mubr.bf16.gmra.mrb[0].mxu0 %v891
        %v978 = vpop.f32.mrb[0].mxu0
        %v979 = vadd.f32 0.0, %v978
        %v980 = vpop.f32.mrb[0].mxu0
        %v981 = vpop.f32.mrb[0].mxu0
        %v982 = vadd.f32 0.0, %v981
        %v983 = vpop.f32.mrb[0].mxu0
        %984 = vmatprep.mubr.bf16.mxu0 0
        %985 = vmatmul.mubr.bf16.gmra.mrb[0].mxu0 %v894
        %v986 = vpop.f32.mrb[0].mxu0
        %v987 = vadd.f32 0.0, %v986
        %v988 = vpop.f32.mrb[0].mxu0
        %v989 = vpop.f32.mrb[0].mxu0
        %v990 = vadd.f32 0.0, %v989
        %v991 = vpop.f32.mrb[0].mxu0
        %992 = vdwg.mxu0
        %993 = vst [vmem:[%s457] sm:$0xff] %v931
        %994 = vst [vmem:[%s457 + $0x8] sm:$0xff] %v934
        %995 = vst [vmem:[%s457 + $0x10] sm:$0xff] %v939
        %996 = vst [vmem:[%s457 + $0x18] sm:$0xff] %v942
        %997 = vst [vmem:[%s457 + $0x20] sm:$0xff] %v947
        %998 = vst [vmem:[%s457 + $0x28] sm:$0xff] %v950
        %999 = vst [vmem:[%s457 + $0x30] sm:$0xff] %v955
        %1000 = vst [vmem:[%s457 + $0x38] sm:$0xff] %v958
        %1001 = vst [vmem:[%s457 + $0x40] sm:$0xff] %v963
        %1002 = vst [vmem:[%s457 + $0x48] sm:$0xff] %v966
        %1003 = vst [vmem:[%s457 + $0x50] sm:$0xff] %v971
        %1004 = vst [vmem:[%s457 + $0x58] sm:$0xff] %v974
        %1005 = vst [vmem:[%s457 + $0x60] sm:$0xff] %v979
        %1006 = vst [vmem:[%s457 + $0x68] sm:$0xff] %v982
        %1007 = vst [vmem:[%s457 + $0x70] sm:$0xff] %v987
        %1008 = vst [vmem:[%s457 + $0x78] sm:$0xff] %v990
        %s1009 = smul.u32 2, %s21
        %p1010 = scmp.lt.s32.totalorder %s1009, 7
        %s1011 = scalar_select %p1010, %s1009, 7
        %s1012 = smul.addr %s1011, 4
        %s1013 = scalar_lea.vmem %s7, %s1012
        %p1014 = scmp.lt.s32.totalorder %s21, 3
        %s1015 = scalar_select %p1014, %s21, 3
        %s1016 = scalar_lea.vmem %s8, %s1015
        %p1017 = scmp.lt.s32.totalorder %s21, 3
        %s1018 = scalar_select %p1017, %s21, 3
        %s1019 = smul.addr %s1018, 16
        %s1020 = smul.addr %s1019, 8
        %s1021 = scalar_lea.vmem %s9, %s1020
        // Predicated region
        $region97: #{position_embedding_forward.8} parent=84 // pred_check
          %p1022 = pneg %p191
        $region98: #{position_embedding_forward.8} parent=84 // pred_check_branch
          %1024 = sbr.rel (%p1022) target = $region100
        $region99: #{position_embedding_forward.8} parent=84 // pred_region
          %s1025 = smul.u32 2, %s21
        $region100: #{position_embedding_forward.8} parent=84 // pred_fallthru
          _
        // Predicated region
        $region101: #{position_embedding_forward.8} parent=84 // pred_check
          %p1026 = pneg %p217
        $region102: #{position_embedding_forward.8} parent=84 // pred_check_branch
          %1028 = sbr.rel (%p1026) target = $region104
        $region103: #{position_embedding_forward.8} parent=84 // pred_region
          _
        $region104: #{position_embedding_forward.8} parent=84 // pred_fallthru
          _
        // Predicated region
        $region105: #{position_embedding_forward.8} parent=84 // pred_check
          %p1029 = pneg %p243
        $region106: #{position_embedding_forward.8} parent=84 // pred_check_branch
          %1031 = sbr.rel (%p1029) target = $region108
        $region107: #{position_embedding_forward.8} parent=84 // pred_region
          _
        $region108: #{position_embedding_forward.8} parent=84 // pred_fallthru
          _
      $region85: #{position_embedding_forward.8} parent=5 // pred_fallthru
        _
      %p1032 = scmp.le.s32.totalorder 2, %s16
      // Predicated region
      $region109: #{position_embedding_forward.8} parent=5 // pred_check
        %p1033 = pneg %p1032
      $region110: #{position_embedding_forward.8} parent=5 // pred_check_branch
        %1035 = sbr.rel (%p1033) target = $region112
      $region111: #{position_embedding_forward.8} parent=5 // pred_region
        %s1036 = ssub.s32 %s16, 2
        // Predicated region
        $region113: #{position_embedding_forward.8} parent=111 // pred_check
          %p1037 = pneg %p197
        $region114: #{position_embedding_forward.8} parent=111 // pred_check_branch
          %1039 = sbr.rel (%p1037) target = $region116
        $region115: #{position_embedding_forward.8} parent=111 // pred_region
          %s1040 = smul.u32 2, %s22
          %p1041 = scmp.lt.s32.totalorder %s1040, 7
          %s1042 = scalar_select %p1041, %s1040, 7
          %s1043 = smul.addr %s1042, 4
          %s1044 = scalar_lea.vmem %s7, %s1043
        $region116: #{position_embedding_forward.8} parent=111 // pred_fallthru
          _
        // Predicated region
        $region117: #{position_embedding_forward.8} parent=111 // pred_check
          %p1045 = pneg %p223
        $region118: #{position_embedding_forward.8} parent=111 // pred_check_branch
          %1047 = sbr.rel (%p1045) target = $region120
        $region119: #{position_embedding_forward.8} parent=111 // pred_region
          %p1048 = scmp.lt.s32.totalorder %s22, 3
          %s1049 = scalar_select %p1048, %s22, 3
          %s1050 = scalar_lea.vmem %s8, %s1049
        $region120: #{position_embedding_forward.8} parent=111 // pred_fallthru
          _
        // Predicated region
        $region121: #{position_embedding_forward.8} parent=111 // pred_check
          %p1051 = pneg %p249
        $region122: #{position_embedding_forward.8} parent=111 // pred_check_branch
          %1053 = sbr.rel (%p1051) target = $region124
        $region123: #{position_embedding_forward.8} parent=111 // pred_region
          %p1054 = scmp.lt.s32.totalorder %s22, 3
          %s1055 = scalar_select %p1054, %s22, 3
          %s1056 = smul.addr %s1055, 16
          %s1057 = smul.addr %s1056, 8
          %s1058 = scalar_lea.vmem %s9, %s1057
        $region124: #{position_embedding_forward.8} parent=111 // pred_fallthru
          _
      $region112: #{position_embedding_forward.8} parent=5 // pred_fallthru
        _
    $region6: #{position_embedding_forward.8} parent=1 // loop_footer
      %s20 = sadd.s32 1, %s16
    $region7: #{position_embedding_forward.8} parent=1 // loop_footer_branch
      %15 = sbr.rel target = $region3
    $region8: #{position_embedding_forward.8} parent=1 // loop_exit
      _

// kernel: position_embedding_forward.11
$region0: #{position_embedding_forward.11}
  #allocation0 [shape = 'u32[]', space=smem, size = 0x4, offset = 0x4, fixed_abs, tag = 'smem constant byte address 0x4 - core index']
  #allocation1 [shape = 'u32[144,128]{1,0:T(1,128)}', space=vmem, size = 0x12000, scoped, tag = 'internal scratch']
  %s0 = inlined_call_operand.vmem [shape: f32[2,3,32], index: 0, kind: input, shape index: {}]
  %s1 = inlined_call_operand.vmem [shape: f32[2,3,3], index: 1, kind: input, shape index: {}]
  %s2 = inlined_call_operand.vmem [shape: f32[2,3,32], index: 2, kind: output, shape index: {}]
  %s3 = sld [smem:[#allocation0]]
  $region41: #{position_embedding_forward.11} parent=0
    _
  %s5 = ssub.s32 1, %s3
  %s6 = scalar_select 0, %s5, %s3
  loop: start=0, step=1, limit=4
  $region2: #{position_embedding_forward.11} parent=0 // loop_pre_header
    _
  $region3: #{position_embedding_forward.11} parent=0 // loop_header
    %s8 = sphi 0, %s12
    %p9 = scmp.ge.s32.totalorder %s8, 4
    %s18 = sphi 0, %s20
    %s21 = sphi 0, %s18
    %s22 = sphi 0, %s21
    %s38 = sphi 0, %s22
    %s44 = sphi 0, %s46
    %s47 = sphi 0, %s44
    %s48 = sphi 0, %s47
    %s64 = sphi 0, %s48
    %s70 = sphi 0, %s72
    %s73 = sphi 0, %s70
    %s74 = sphi 0, %s73
    %s90 = sphi 0, %s74
  $region4: #{position_embedding_forward.11} parent=0 // loop_header_branch
    %11 = sbr.rel (%p9) target = $region8
  $region5: #{position_embedding_forward.11} parent=0 // loop_body
    %s13 = ssub.s32 %s8, 1
    %s14 = ssub.s32 %s8, 2
    %s15 = sadd.s32 %s8, 1
    %s16 = ssub.s32 %s8, %s15
    %p17 = scmp.eq.s32.totalorder %s16, 0
    %s19 = sadd.s32 %s18, 1
    %s20 = scalar_select %p17, %s18, %s19
    %p23 = pneg %p17
    %p24 = scmp.eq.s32.totalorder %s8, 1
    %p25 = por %p23, %p24
    %p26 = scmp.ne.s32.totalorder %s18, %s21
    %p27 = scmp.eq.s32.totalorder %s8, 0
    %p28 = por %p26, %p27
    %p29 = scmp.ne.s32.totalorder %s18, %s21
    %p30 = scmp.eq.s32.totalorder %s13, 1
    %p31 = por %p29, %p30
    %p32 = scmp.ne.s32.totalorder %s21, %s22
    %p33 = scmp.eq.s32.totalorder %s13, 0
    %p34 = por %p32, %p33
    %p35 = scmp.ne.s32.totalorder %s21, %s22
    %p36 = scmp.eq.s32.totalorder %s14, 1
    %p37 = por %p35, %p36
    %p39 = scmp.ne.s32.totalorder %s22, %s38
    %p40 = scmp.eq.s32.totalorder %s14, 0
    %p41 = por %p39, %p40
    %s42 = ssub.s32 %s8, %s15
    %p43 = scmp.eq.s32.totalorder %s42, 0
    %s45 = sadd.s32 %s44, 1
    %s46 = scalar_select %p43, %s44, %s45
    %p49 = pneg %p43
    %p50 = scmp.eq.s32.totalorder %s8, 1
    %p51 = por %p49, %p50
    %p52 = scmp.ne.s32.totalorder %s44, %s47
    %p53 = scmp.eq.s32.totalorder %s8, 0
    %p54 = por %p52, %p53
    %p55 = scmp.ne.s32.totalorder %s44, %s47
    %p56 = scmp.eq.s32.totalorder %s13, 1
    %p57 = por %p55, %p56
    %p58 = scmp.ne.s32.totalorder %s47, %s48
    %p59 = scmp.eq.s32.totalorder %s13, 0
    %p60 = por %p58, %p59
    %p61 = scmp.ne.s32.totalorder %s47, %s48
    %p62 = scmp.eq.s32.totalorder %s14, 1
    %p63 = por %p61, %p62
    %p65 = scmp.ne.s32.totalorder %s48, %s64
    %p66 = scmp.eq.s32.totalorder %s14, 0
    %p67 = por %p65, %p66
    %s68 = ssub.s32 %s8, %s15
    %p69 = scmp.eq.s32.totalorder %s68, 0
    %s71 = sadd.s32 %s70, 1
    %s72 = scalar_select %p69, %s70, %s71
    %p75 = pneg %p69
    %p76 = scmp.eq.s32.totalorder %s8, 1
    %p77 = por %p75, %p76
    %p78 = scmp.ne.s32.totalorder %s70, %s73
    %p79 = scmp.eq.s32.totalorder %s8, 0
    %p80 = por %p78, %p79
    %p81 = scmp.ne.s32.totalorder %s70, %s73
    %p82 = scmp.eq.s32.totalorder %s13, 1
    %p83 = por %p81, %p82
    %p84 = scmp.ne.s32.totalorder %s73, %s74
    %p85 = scmp.eq.s32.totalorder %s13, 0
    %p86 = por %p84, %p85
    %p87 = scmp.ne.s32.totalorder %s73, %s74
    %p88 = scmp.eq.s32.totalorder %s14, 1
    %p89 = por %p87, %p88
    %p91 = scmp.ne.s32.totalorder %s74, %s90
    %p92 = scmp.eq.s32.totalorder %s14, 0
    %p93 = por %p91, %p92
    %p94 = scmp.le.s32.totalorder 1, %s8
    %p95 = scmp.lt.s32.totalorder %s8, 3
    %p96 = pnand %p94, %p95
    %p97 = pneg %p96
    // Predicated region
    $region9: #{position_embedding_forward.11} parent=5 // pred_check
      _
    $region10: #{position_embedding_forward.11} parent=5 // pred_check_branch
      %99 = sbr.rel (%p96) target = $region12
    $region11: #{position_embedding_forward.11} parent=5 // pred_region
      %s100 = ssub.s32 %s8, 1
    $region12: #{position_embedding_forward.11} parent=5 // pred_fallthru
      _
    %p101 = scmp.lt.s32.totalorder %s8, 2
    // Predicated region
    $region13: #{position_embedding_forward.11} parent=5 // pred_check
      %p102 = pneg %p101
    $region14: #{position_embedding_forward.11} parent=5 // pred_check_branch
      %104 = sbr.rel (%p102) target = $region16
    $region15: #{position_embedding_forward.11} parent=5 // pred_region
      // Predicated region
      $region17: #{position_embedding_forward.11} parent=15 // pred_check
        %p105 = pneg %p28
      $region18: #{position_embedding_forward.11} parent=15 // pred_check_branch
        %107 = sbr.rel (%p105) target = $region20
      $region19: #{position_embedding_forward.11} parent=15 // pred_region
        %p108 = scmp.lt.s32.totalorder %s8, 1
        %s109 = scalar_select %p108, %s8, 1
        %s110 = smul.addr %s109, 4
        %s111 = scalar_lea.vmem %s0, %s110
      $region20: #{position_embedding_forward.11} parent=15 // pred_fallthru
        _
      // Predicated region
      $region21: #{position_embedding_forward.11} parent=15 // pred_check
        %p112 = pneg %p54
      $region22: #{position_embedding_forward.11} parent=15 // pred_check_branch
        %114 = sbr.rel (%p112) target = $region24
      $region23: #{position_embedding_forward.11} parent=15 // pred_region
        %p115 = scmp.lt.s32.totalorder %s8, 1
        %s116 = scalar_select %p115, %s8, 1
        %s117 = smul.addr %s116, 4
        %s118 = scalar_lea.vmem %s1, %s117
      $region24: #{position_embedding_forward.11} parent=15 // pred_fallthru
        _
    $region16: #{position_embedding_forward.11} parent=5 // pred_fallthru
      _
    %p119 = scmp.le.s32.totalorder 1, %s8
    %p120 = scmp.lt.s32.totalorder %s8, 3
    %p121 = pnand %p119, %p120
    %p122 = pneg %p121
    // Predicated region
    $region25: #{position_embedding_forward.11} parent=5 // pred_check
      _
    $region26: #{position_embedding_forward.11} parent=5 // pred_check_branch
      %124 = sbr.rel (%p121) target = $region28
    $region27: #{position_embedding_forward.11} parent=5 // pred_region
      %s125 = ssub.s32 %s8, 1
      %p126 = scmp.lt.s32.totalorder %s13, 1
      %s127 = scalar_select %p126, %s13, 1
      %s128 = smul.addr %s127, 4
      %s129 = scalar_lea.vmem %s0, %s128
      %p130 = pneg %p34
      %p131 = pneg %p31
      %p132 = scmp.lt.s32.totalorder %s13, 1
      %s133 = scalar_select %p132, %s13, 1
      %s134 = smul.addr %s133, 4
      %s135 = scalar_lea.vmem %s1, %s134
      %p136 = pneg %p60
      %p137 = pneg %p57
      %p138 = pneg %p86
      %p139 = pneg %p83
      %p140 = scmp.lt.s32.totalorder %s13, 1
      %s141 = scalar_select %p140, %s13, 1
      %s142 = smul.addr %s141, 4
      %s143 = scalar_lea.vmem %s2, %s142
      %p144 = scmp.lt.s32.totalorder %s13, 1
      %s145 = scalar_select %p144, %s13, 1
      %s146 = smul.addr %s145, 4
      %s147 = scalar_lea.vmem %s0, %s146
      %p148 = scmp.lt.s32.totalorder %s13, 1
      %s149 = scalar_select %p148, %s13, 1
      %s150 = smul.addr %s149, 4
      %s151 = scalar_lea.vmem %s1, %s150
      %p152 = scmp.lt.s32.totalorder %s13, 1
      %s153 = scalar_select %p152, %s13, 1
      %s154 = smul.addr %s153, 4
      %s155 = scalar_lea.vmem %s2, %s154
      %v156 = vld [vmem:[%s147] sm:$0x7]
      %v157 = vld [vmem:[%s151] sm:$0x7]
      %v158 = vlaneseq
      %v159 = vshrl.u32 %v158, 7
      %v160 = vsub.s32 0, %v159
      %v161 = vrot.slane %v157, %v160
      %163 = vbcast.lane.b32.xlu0 %v161, 256
      %v164 = vpop.permute.xlu0 %163
      %v165 = vlaneseq
      %v166 = vshrl.u32 %v165, 7
      %v167 = vsub.s32 0, %v166
      %v168 = vrot.slane %v156, %v167
      %v169 = vmul.f32 %v164, %v168
      %v170 = vlaneseq
      %v171 = vshrl.u32 %v170, 7
      %v172 = vsub.s32 1, %v171
      %v173 = vrot.slane %v157, %v172
      %175 = vbcast.lane.b32.xlu0 %v173, 256
      %v176 = vpop.permute.xlu0 %175
      %v177 = vlaneseq
      %v178 = vshrl.u32 %v177, 7
      %v179 = vsub.s32 1, %v178
      %v180 = vrot.slane %v156, %v179
      %v181 = vmul.f32 %v176, %v180
      %v182 = vadd.f32 %v169, %v181
      %v183 = vlaneseq
      %v184 = vshrl.u32 %v183, 7
      %v185 = vsub.s32 2, %v184
      %v186 = vrot.slane %v157, %v185
      %188 = vbcast.lane.b32.xlu0 %v186, 256
      %v189 = vpop.permute.xlu0 %188
      %v190 = vlaneseq
      %v191 = vshrl.u32 %v190, 7
      %v192 = vsub.s32 2, %v191
      %v193 = vrot.slane %v156, %v192
      %v194 = vmul.f32 %v189, %v193
      %v195 = vadd.f32 %v182, %v194
      %vm196 = vcmask 256000
      %197 = vst.msk [vmem:[%s155] sm:$0x7] %vm196, %v195
      %p198 = scmp.lt.s32.totalorder %s13, 1
      %s199 = scalar_select %p198, %s13, 1
      %s200 = smul.addr %s199, 4
      %s201 = scalar_lea.vmem %s2, %s200
      // Predicated region
      $region29: #{position_embedding_forward.11} parent=27 // pred_check
        %p202 = pneg %p83
      $region30: #{position_embedding_forward.11} parent=27 // pred_check_branch
        %204 = sbr.rel (%p202) target = $region32
      $region31: #{position_embedding_forward.11} parent=27 // pred_region
        _
      $region32: #{position_embedding_forward.11} parent=27 // pred_fallthru
        _
    $region28: #{position_embedding_forward.11} parent=5 // pred_fallthru
      _
    %p205 = scmp.le.s32.totalorder 2, %s8
    // Predicated region
    $region33: #{position_embedding_forward.11} parent=5 // pred_check
      %p206 = pneg %p205
    $region34: #{position_embedding_forward.11} parent=5 // pred_check_branch
      %208 = sbr.rel (%p206) target = $region36
    $region35: #{position_embedding_forward.11} parent=5 // pred_region
      %s209 = ssub.s32 %s8, 2
      // Predicated region
      $region37: #{position_embedding_forward.11} parent=35 // pred_check
        %p210 = pneg %p89
      $region38: #{position_embedding_forward.11} parent=35 // pred_check_branch
        %212 = sbr.rel (%p210) target = $region40
      $region39: #{position_embedding_forward.11} parent=35 // pred_region
        %p213 = scmp.lt.s32.totalorder %s14, 1
        %s214 = scalar_select %p213, %s14, 1
        %s215 = smul.addr %s214, 4
        %s216 = scalar_lea.vmem %s2, %s215
      $region40: #{position_embedding_forward.11} parent=35 // pred_fallthru
        _
    $region36: #{position_embedding_forward.11} parent=5 // pred_fallthru
      _
  $region6: #{position_embedding_forward.11} parent=0 // loop_footer
    %s12 = sadd.s32 1, %s8
  $region7: #{position_embedding_forward.11} parent=0 // loop_footer_branch
    %7 = sbr.rel target = $region3
  $region8: #{position_embedding_forward.11} parent=0 // loop_exit
    _

// kernel: position_embedding_forward.9
$region0: #{position_embedding_forward.9}
  #allocation0 [shape = 'u32[]', space=smem, size = 0x4, offset = 0x4, fixed_abs, tag = 'smem constant byte address 0x4 - core index']
  #allocation1 [shape = 'u32[144,128]{1,0:T(1,128)}', space=vmem, size = 0x12000, scoped, tag = 'internal scratch']
  %s0 = inlined_call_operand.vmem [shape: bf16[2,32,128], index: 0, kind: input, shape index: {}]
  %s1 = inlined_call_operand.vmem [shape: bf16[128,1024], index: 1, kind: input, shape index: {}]
  %s2 = inlined_call_operand.vmem [shape: f32[1,1024], index: 2, kind: input, shape index: {}]
  %s3 = inlined_call_operand.vmem [shape: f32[1,1024], index: 3, kind: input, shape index: {}]
  %s4 = inlined_call_operand.vmem [shape: f32[2,1,1024], index: 4, kind: output, shape index: {}]
  %s5 = sld [smem:[#allocation0]]
  $region57: #{position_embedding_forward.9} parent=0
    _
  %s7 = ssub.s32 1, %s5
  %s8 = scalar_select 0, %s7, %s5
  loop: start=0, step=1, limit=6
  $region2: #{position_embedding_forward.9} parent=0 // loop_pre_header
    _
  $region3: #{position_embedding_forward.9} parent=0 // loop_header
    %s10 = sphi 0, %s14
    %p11 = scmp.ge.s32.totalorder %s10, 6
    %s17 = sphi 0, %s29
    %s18 = sphi 0, %s25
    %s19 = sphi 0, %s17
    %s20 = sphi 0, %s18
    %s21 = sphi 0, %s19
    %s22 = sphi 0, %s20
    %s34 = sphi 0, %s36
    %s37 = sphi 0, %s34
    %s38 = sphi 0, %s37
    %s54 = sphi 0, %s38
    %s58 = sphi 0, %s58
    %s60 = sphi 0, %s58
    %s61 = sphi 0, %s60
    %s75 = sphi 0, %s61
    %s79 = sphi 0, %s79
    %s81 = sphi 0, %s79
    %s82 = sphi 0, %s81
    %s96 = sphi 0, %s82
    %s100 = sphi 0, %s100
    %s102 = sphi 0, %s100
    %s103 = sphi 0, %s102
    %s117 = sphi 0, %s103
    %s123 = sphi 0, %s125
    %s126 = sphi 0, %s123
    %s127 = sphi 0, %s126
    %s143 = sphi 0, %s127
  $region4: #{position_embedding_forward.9} parent=0 // loop_header_branch
    %13 = sbr.rel (%p11) target = $region8
  $region5: #{position_embedding_forward.9} parent=0 // loop_body
    %s15 = ssub.s32 %s10, 1
    %s16 = ssub.s32 %s10, 2
    %s23 = sadd.s32 1, %s18
    %p24 = scmp.ge.s32.totalorder %s23, 2
    %s25 = scalar_select %p24, 0, %s23
    %s26 = sadd.s32 1, %s17
    %s27 = scalar_select %p24, %s26, %s17
    %p28 = scmp.ge.s32.totalorder %s27, 2
    %s29 = scalar_select %p28, 0, %s27
    %s30 = ssub.s32 %s17, %s29
    %s31 = ssub.s32 %s18, %s25
    %s32 = sor.u32 %s30, %s31
    %p33 = scmp.eq.s32.totalorder %s32, 0
    %s35 = sadd.s32 %s34, 1
    %s36 = scalar_select %p33, %s34, %s35
    %p39 = pneg %p33
    %p40 = scmp.eq.s32.totalorder %s10, 3
    %p41 = por %p39, %p40
    %p42 = scmp.ne.s32.totalorder %s34, %s37
    %p43 = scmp.eq.s32.totalorder %s10, 0
    %p44 = por %p42, %p43
    %p45 = scmp.ne.s32.totalorder %s34, %s37
    %p46 = scmp.eq.s32.totalorder %s15, 3
    %p47 = por %p45, %p46
    %p48 = scmp.ne.s32.totalorder %s37, %s38
    %p49 = scmp.eq.s32.totalorder %s15, 0
    %p50 = por %p48, %p49
    %p51 = scmp.ne.s32.totalorder %s37, %s38
    %p52 = scmp.eq.s32.totalorder %s16, 3
    %p53 = por %p51, %p52
    %p55 = scmp.ne.s32.totalorder %s38, %s54
    %p56 = scmp.eq.s32.totalorder %s16, 0
    %p57 = por %p55, %p56
    %s59 = sadd.s32 %s58, 1
    %p62 = scmp.eq.s32.totalorder %s10, 3
    %p63 = scmp.ne.s32.totalorder %s58, %s60
    %p64 = scmp.eq.s32.totalorder %s10, 0
    %p65 = por %p63, %p64
    %p66 = scmp.ne.s32.totalorder %s58, %s60
    %p67 = scmp.eq.s32.totalorder %s15, 3
    %p68 = por %p66, %p67
    %p69 = scmp.ne.s32.totalorder %s60, %s61
    %p70 = scmp.eq.s32.totalorder %s15, 0
    %p71 = por %p69, %p70
    %p72 = scmp.ne.s32.totalorder %s60, %s61
    %p73 = scmp.eq.s32.totalorder %s16, 3
    %p74 = por %p72, %p73
    %p76 = scmp.ne.s32.totalorder %s61, %s75
    %p77 = scmp.eq.s32.totalorder %s16, 0
    %p78 = por %p76, %p77
    %s80 = sadd.s32 %s79, 1
    %p83 = scmp.eq.s32.totalorder %s10, 3
    %p84 = scmp.ne.s32.totalorder %s79, %s81
    %p85 = scmp.eq.s32.totalorder %s10, 0
    %p86 = por %p84, %p85
    %p87 = scmp.ne.s32.totalorder %s79, %s81
    %p88 = scmp.eq.s32.totalorder %s15, 3
    %p89 = por %p87, %p88
    %p90 = scmp.ne.s32.totalorder %s81, %s82
    %p91 = scmp.eq.s32.totalorder %s15, 0
    %p92 = por %p90, %p91
    %p93 = scmp.ne.s32.totalorder %s81, %s82
    %p94 = scmp.eq.s32.totalorder %s16, 3
    %p95 = por %p93, %p94
    %p97 = scmp.ne.s32.totalorder %s82, %s96
    %p98 = scmp.eq.s32.totalorder %s16, 0
    %p99 = por %p97, %p98
    %s101 = sadd.s32 %s100, 1
    %p104 = scmp.eq.s32.totalorder %s10, 3
    %p105 = scmp.ne.s32.totalorder %s100, %s102
    %p106 = scmp.eq.s32.totalorder %s10, 0
    %p107 = por %p105, %p106
    %p108 = scmp.ne.s32.totalorder %s100, %s102
    %p109 = scmp.eq.s32.totalorder %s15, 3
    %p110 = por %p108, %p109
    %p111 = scmp.ne.s32.totalorder %s102, %s103
    %p112 = scmp.eq.s32.totalorder %s15, 0
    %p113 = por %p111, %p112
    %p114 = scmp.ne.s32.totalorder %s102, %s103
    %p115 = scmp.eq.s32.totalorder %s16, 3
    %p116 = por %p114, %p115
    %p118 = scmp.ne.s32.totalorder %s103, %s117
    %p119 = scmp.eq.s32.totalorder %s16, 0
    %p120 = por %p118, %p119
    %s121 = ssub.s32 %s17, %s29
    %p122 = scmp.eq.s32.totalorder %s121, 0
    %s124 = sadd.s32 %s123, 1
    %s125 = scalar_select %p122, %s123, %s124
    %p128 = pneg %p122
    %p129 = scmp.eq.s32.totalorder %s10, 3
    %p130 = por %p128, %p129
    %p131 = scmp.ne.s32.totalorder %s123, %s126
    %p132 = scmp.eq.s32.totalorder %s10, 0
    %p133 = por %p131, %p132
    %p134 = scmp.ne.s32.totalorder %s123, %s126
    %p135 = scmp.eq.s32.totalorder %s15, 3
    %p136 = por %p134, %p135
    %p137 = scmp.ne.s32.totalorder %s126, %s127
    %p138 = scmp.eq.s32.totalorder %s15, 0
    %p139 = por %p137, %p138
    %p140 = scmp.ne.s32.totalorder %s126, %s127
    %p141 = scmp.eq.s32.totalorder %s16, 3
    %p142 = por %p140, %p141
    %p144 = scmp.ne.s32.totalorder %s127, %s143
    %p145 = scmp.eq.s32.totalorder %s16, 0
    %p146 = por %p144, %p145
    %p147 = scmp.le.s32.totalorder 1, %s10
    %p148 = scmp.lt.s32.totalorder %s10, 5
    %p149 = pnand %p147, %p148
    %p150 = pneg %p149
    // Predicated region
    $region9: #{position_embedding_forward.9} parent=5 // pred_check
      _
    $region10: #{position_embedding_forward.9} parent=5 // pred_check_branch
      %152 = sbr.rel (%p149) target = $region12
    $region11: #{position_embedding_forward.9} parent=5 // pred_region
      %s153 = ssub.s32 %s10, 1
      // Predicated region
      $region13: #{position_embedding_forward.9} parent=11 // pred_check
        %p154 = pneg %p71
      $region14: #{position_embedding_forward.9} parent=11 // pred_check_branch
        %156 = sbr.rel (%p154) target = $region16
      $region15: #{position_embedding_forward.9} parent=11 // pred_region
        _
      $region16: #{position_embedding_forward.9} parent=11 // pred_fallthru
        _
      // Predicated region
      $region17: #{position_embedding_forward.9} parent=11 // pred_check
        %p157 = pneg %p92
      $region18: #{position_embedding_forward.9} parent=11 // pred_check_branch
        %159 = sbr.rel (%p157) target = $region20
      $region19: #{position_embedding_forward.9} parent=11 // pred_region
        _
      $region20: #{position_embedding_forward.9} parent=11 // pred_fallthru
        _
      // Predicated region
      $region21: #{position_embedding_forward.9} parent=11 // pred_check
        %p160 = pneg %p113
      $region22: #{position_embedding_forward.9} parent=11 // pred_check_branch
        %162 = sbr.rel (%p160) target = $region24
      $region23: #{position_embedding_forward.9} parent=11 // pred_region
        _
      $region24: #{position_embedding_forward.9} parent=11 // pred_fallthru
        _
    $region12: #{position_embedding_forward.9} parent=5 // pred_fallthru
      _
    %p163 = scmp.lt.s32.totalorder %s10, 4
    // Predicated region
    $region25: #{position_embedding_forward.9} parent=5 // pred_check
      %p164 = pneg %p163
    $region26: #{position_embedding_forward.9} parent=5 // pred_check_branch
      %166 = sbr.rel (%p164) target = $region28
    $region27: #{position_embedding_forward.9} parent=5 // pred_region
      // Predicated region
      $region29: #{position_embedding_forward.9} parent=27 // pred_check
        %p167 = pneg %p44
      $region30: #{position_embedding_forward.9} parent=27 // pred_check_branch
        %169 = sbr.rel (%p167) target = $region32
      $region31: #{position_embedding_forward.9} parent=27 // pred_region
        %s170 = smul.u32 2, %s18
        %p171 = scmp.lt.s32.totalorder %s17, 1
        %s172 = scalar_select %p171, %s17, 1
        %p173 = scmp.lt.s32.totalorder %s170, 3
        %s174 = scalar_select %p173, %s170, 3
        %s175 = smul.addr %s172, 4
        %s176 = sadd.s32 %s174, %s175
        %s177 = smul.addr %s176, 4
        %s178 = scalar_lea.vmem %s0, %s177
        %s179 = smul.u32 2, %s18
      $region32: #{position_embedding_forward.9} parent=27 // pred_fallthru
        _
    $region28: #{position_embedding_forward.9} parent=5 // pred_fallthru
      _
    %p180 = scmp.le.s32.totalorder 1, %s10
    %p181 = scmp.lt.s32.totalorder %s10, 5
    %p182 = pnand %p180, %p181
    %p183 = pneg %p182
    // Predicated region
    $region33: #{position_embedding_forward.9} parent=5 // pred_check
      _
    $region34: #{position_embedding_forward.9} parent=5 // pred_check_branch
      %185 = sbr.rel (%p182) target = $region36
    $region35: #{position_embedding_forward.9} parent=5 // pred_region
      %s186 = ssub.s32 %s10, 1
      %s187 = smul.u32 2, %s20
      %p188 = scmp.lt.s32.totalorder %s19, 1
      %s189 = scalar_select %p188, %s19, 1
      %p190 = scmp.lt.s32.totalorder %s187, 3
      %s191 = scalar_select %p190, %s187, 3
      %s192 = smul.addr %s189, 4
      %s193 = sadd.s32 %s191, %s192
      %s194 = smul.addr %s193, 4
      %s195 = scalar_lea.vmem %s0, %s194
      %p196 = pneg %p50
      %p197 = pneg %p47
      %p198 = pneg %p71
      %p199 = pneg %p68
      %p200 = pneg %p92
      %p201 = pneg %p89
      %p202 = pneg %p113
      %p203 = pneg %p110
      %p204 = pneg %p139
      %p205 = pneg %p136
      %p206 = scmp.lt.s32.totalorder %s19, 1
      %s207 = scalar_select %p206, %s19, 1
      %s208 = smul.addr %s207, 8
      %s209 = scalar_lea.vmem %s4, %s208
      %s210 = smul.u32 2, %s20
      %p211 = scmp.lt.s32.totalorder %s19, 1
      %s212 = scalar_select %p211, %s19, 1
      %p213 = scmp.lt.s32.totalorder %s210, 3
      %s214 = scalar_select %p213, %s210, 3
      %s215 = smul.addr %s212, 4
      %s216 = sadd.s32 %s214, %s215
      %s217 = smul.addr %s216, 4
      %s218 = scalar_lea.vmem %s0, %s217
      %s219 = smul.u32 2, %s20
      %p220 = scmp.lt.s32.totalorder %s19, 1
      %s221 = scalar_select %p220, %s19, 1
      %s222 = smul.addr %s221, 8
      %s223 = scalar_lea.vmem %s4, %s222
      %v225 = vld [vmem:[%s218] sm:$0xf]
      %v226 = vld [vmem:[%s218 + $0x4] sm:$0xf]
      %v227 = vld [vmem:[%s1] sm:$0xff]
      %v228 = vld [vmem:[%s1 + $0x8] sm:$0xff]
      %v229 = vld [vmem:[%s1 + $0x10] sm:$0xff]
      %v230 = vld [vmem:[%s1 + $0x18] sm:$0xff]
      %v231 = vld [vmem:[%s1 + $0x20] sm:$0xff]
      %v232 = vld [vmem:[%s1 + $0x28] sm:$0xff]
      %v233 = vld [vmem:[%s1 + $0x30] sm:$0xff]
      %v234 = vld [vmem:[%s1 + $0x38] sm:$0xff]
      %v235 = vld [vmem:[%s1 + $0x40] sm:$0xff]
      %v236 = vld [vmem:[%s1 + $0x48] sm:$0xff]
      %v237 = vld [vmem:[%s1 + $0x50] sm:$0xff]
      %v238 = vld [vmem:[%s1 + $0x58] sm:$0xff]
      %v239 = vld [vmem:[%s1 + $0x60] sm:$0xff]
      %v240 = vld [vmem:[%s1 + $0x68] sm:$0xff]
      %v241 = vld [vmem:[%s1 + $0x70] sm:$0xff]
      %v242 = vld [vmem:[%s1 + $0x78] sm:$0xff]
      %v243 = vld [vmem:[%s1 + $0x80] sm:$0xff]
      %v244 = vld [vmem:[%s1 + $0x88] sm:$0xff]
      %v245 = vld [vmem:[%s1 + $0x90] sm:$0xff]
      %v246 = vld [vmem:[%s1 + $0x98] sm:$0xff]
      %v247 = vld [vmem:[%s1 + $0xa0] sm:$0xff]
      %v248 = vld [vmem:[%s1 + $0xa8] sm:$0xff]
      %v249 = vld [vmem:[%s1 + $0xb0] sm:$0xff]
      %v250 = vld [vmem:[%s1 + $0xb8] sm:$0xff]
      %v251 = vld [vmem:[%s1 + $0xc0] sm:$0xff]
      %v252 = vld [vmem:[%s1 + $0xc8] sm:$0xff]
      %v253 = vld [vmem:[%s1 + $0xd0] sm:$0xff]
      %v254 = vld [vmem:[%s1 + $0xd8] sm:$0xff]
      %v255 = vld [vmem:[%s1 + $0xe0] sm:$0xff]
      %v256 = vld [vmem:[%s1 + $0xe8] sm:$0xff]
      %v257 = vld [vmem:[%s1 + $0xf0] sm:$0xff]
      %v258 = vld [vmem:[%s1 + $0xf8] sm:$0xff]
      %v259 = vld [vmem:[%s1 + $0x100] sm:$0xff]
      %v260 = vld [vmem:[%s1 + $0x108] sm:$0xff]
      %v261 = vld [vmem:[%s1 + $0x110] sm:$0xff]
      %v262 = vld [vmem:[%s1 + $0x118] sm:$0xff]
      %v263 = vld [vmem:[%s1 + $0x120] sm:$0xff]
      %v264 = vld [vmem:[%s1 + $0x128] sm:$0xff]
      %v265 = vld [vmem:[%s1 + $0x130] sm:$0xff]
      %v266 = vld [vmem:[%s1 + $0x138] sm:$0xff]
      %v267 = vld [vmem:[%s1 + $0x140] sm:$0xff]
      %v268 = vld [vmem:[%s1 + $0x148] sm:$0xff]
      %v269 = vld [vmem:[%s1 + $0x150] sm:$0xff]
      %v270 = vld [vmem:[%s1 + $0x158] sm:$0xff]
      %v271 = vld [vmem:[%s1 + $0x160] sm:$0xff]
      %v272 = vld [vmem:[%s1 + $0x168] sm:$0xff]
      %v273 = vld [vmem:[%s1 + $0x170] sm:$0xff]
      %v274 = vld [vmem:[%s1 + $0x178] sm:$0xff]
      %v275 = vld [vmem:[%s1 + $0x180] sm:$0xff]
      %v276 = vld [vmem:[%s1 + $0x188] sm:$0xff]
      %v277 = vld [vmem:[%s1 + $0x190] sm:$0xff]
      %v278 = vld [vmem:[%s1 + $0x198] sm:$0xff]
      %v279 = vld [vmem:[%s1 + $0x1a0] sm:$0xff]
      %v280 = vld [vmem:[%s1 + $0x1a8] sm:$0xff]
      %v281 = vld [vmem:[%s1 + $0x1b0] sm:$0xff]
      %v282 = vld [vmem:[%s1 + $0x1b8] sm:$0xff]
      %v283 = vld [vmem:[%s1 + $0x1c0] sm:$0xff]
      %v284 = vld [vmem:[%s1 + $0x1c8] sm:$0xff]
      %v285 = vld [vmem:[%s1 + $0x1d0] sm:$0xff]
      %v286 = vld [vmem:[%s1 + $0x1d8] sm:$0xff]
      %v287 = vld [vmem:[%s1 + $0x1e0] sm:$0xff]
      %v288 = vld [vmem:[%s1 + $0x1e8] sm:$0xff]
      %v289 = vld [vmem:[%s1 + $0x1f0] sm:$0xff]
      %v290 = vld [vmem:[%s1 + $0x1f8] sm:$0xff]
      %v293 = vunpack.c.l.b16 %v225
      %v294 = vunpack.c.l.b16 %v226
      %v295 = vpack.c.b16 %v294, %v293
      %v361 = vunpack.c.l.b16 %v227
      %v362 = vunpack.c.h.b16 %v227
      %v363 = vunpack.c.l.b16 %v228
      %v364 = vunpack.c.h.b16 %v228
      %v365 = vunpack.c.l.b16 %v229
      %v366 = vunpack.c.h.b16 %v229
      %v367 = vunpack.c.l.b16 %v230
      %v368 = vunpack.c.h.b16 %v230
      %v369 = vunpack.c.l.b16 %v231
      %v370 = vunpack.c.h.b16 %v231
      %v371 = vunpack.c.l.b16 %v232
      %v372 = vunpack.c.h.b16 %v232
      %v373 = vunpack.c.l.b16 %v233
      %v374 = vunpack.c.h.b16 %v233
      %v375 = vunpack.c.l.b16 %v234
      %v376 = vunpack.c.h.b16 %v234
      %v377 = vunpack.c.l.b16 %v235
      %v378 = vunpack.c.h.b16 %v235
      %v379 = vunpack.c.l.b16 %v236
      %v380 = vunpack.c.h.b16 %v236
      %v381 = vunpack.c.l.b16 %v237
      %v382 = vunpack.c.h.b16 %v237
      %v383 = vunpack.c.l.b16 %v238
      %v384 = vunpack.c.h.b16 %v238
      %v385 = vunpack.c.l.b16 %v239
      %v386 = vunpack.c.h.b16 %v239
      %v387 = vunpack.c.l.b16 %v240
      %v388 = vunpack.c.h.b16 %v240
      %v389 = vunpack.c.l.b16 %v241
      %v390 = vunpack.c.h.b16 %v241
      %v391 = vunpack.c.l.b16 %v242
      %v392 = vunpack.c.h.b16 %v242
      %v393 = vunpack.c.l.b16 %v243
      %v394 = vunpack.c.h.b16 %v243
      %v395 = vunpack.c.l.b16 %v244
      %v396 = vunpack.c.h.b16 %v244
      %v397 = vunpack.c.l.b16 %v245
      %v398 = vunpack.c.h.b16 %v245
      %v399 = vunpack.c.l.b16 %v246
      %v400 = vunpack.c.h.b16 %v246
      %v401 = vunpack.c.l.b16 %v247
      %v402 = vunpack.c.h.b16 %v247
      %v403 = vunpack.c.l.b16 %v248
      %v404 = vunpack.c.h.b16 %v248
      %v405 = vunpack.c.l.b16 %v249
      %v406 = vunpack.c.h.b16 %v249
      %v407 = vunpack.c.l.b16 %v250
      %v408 = vunpack.c.h.b16 %v250
      %v409 = vunpack.c.l.b16 %v251
      %v410 = vunpack.c.h.b16 %v251
      %v411 = vunpack.c.l.b16 %v252
      %v412 = vunpack.c.h.b16 %v252
      %v413 = vunpack.c.l.b16 %v253
      %v414 = vunpack.c.h.b16 %v253
      %v415 = vunpack.c.l.b16 %v254
      %v416 = vunpack.c.h.b16 %v254
      %v417 = vunpack.c.l.b16 %v255
      %v418 = vunpack.c.h.b16 %v255
      %v419 = vunpack.c.l.b16 %v256
      %v420 = vunpack.c.h.b16 %v256
      %v421 = vunpack.c.l.b16 %v257
      %v422 = vunpack.c.h.b16 %v257
      %v423 = vunpack.c.l.b16 %v258
      %v424 = vunpack.c.h.b16 %v258
      %v425 = vunpack.c.l.b16 %v259
      %v426 = vunpack.c.h.b16 %v259
      %v427 = vunpack.c.l.b16 %v260
      %v428 = vunpack.c.h.b16 %v260
      %v429 = vunpack.c.l.b16 %v261
      %v430 = vunpack.c.h.b16 %v261
      %v431 = vunpack.c.l.b16 %v262
      %v432 = vunpack.c.h.b16 %v262
      %v433 = vunpack.c.l.b16 %v263
      %v434 = vunpack.c.h.b16 %v263
      %v435 = vunpack.c.l.b16 %v264
      %v436 = vunpack.c.h.b16 %v264
      %v437 = vunpack.c.l.b16 %v265
      %v438 = vunpack.c.h.b16 %v265
      %v439 = vunpack.c.l.b16 %v266
      %v440 = vunpack.c.h.b16 %v266
      %v441 = vunpack.c.l.b16 %v267
      %v442 = vunpack.c.h.b16 %v267
      %v443 = vunpack.c.l.b16 %v268
      %v444 = vunpack.c.h.b16 %v268
      %v445 = vunpack.c.l.b16 %v269
      %v446 = vunpack.c.h.b16 %v269
      %v447 = vunpack.c.l.b16 %v270
      %v448 = vunpack.c.h.b16 %v270
      %v449 = vunpack.c.l.b16 %v271
      %v450 = vunpack.c.h.b16 %v271
      %v451 = vunpack.c.l.b16 %v272
      %v452 = vunpack.c.h.b16 %v272
      %v453 = vunpack.c.l.b16 %v273
      %v454 = vunpack.c.h.b16 %v273
      %v455 = vunpack.c.l.b16 %v274
      %v456 = vunpack.c.h.b16 %v274
      %v457 = vunpack.c.l.b16 %v275
      %v458 = vunpack.c.h.b16 %v275
      %v459 = vunpack.c.l.b16 %v276
      %v460 = vunpack.c.h.b16 %v276
      %v461 = vunpack.c.l.b16 %v277
      %v462 = vunpack.c.h.b16 %v277
      %v463 = vunpack.c.l.b16 %v278
      %v464 = vunpack.c.h.b16 %v278
      %v465 = vunpack.c.l.b16 %v279
      %v466 = vunpack.c.h.b16 %v279
      %v467 = vunpack.c.l.b16 %v280
      %v468 = vunpack.c.h.b16 %v280
      %v469 = vunpack.c.l.b16 %v281
      %v470 = vunpack.c.h.b16 %v281
      %v471 = vunpack.c.l.b16 %v282
      %v472 = vunpack.c.h.b16 %v282
      %v473 = vunpack.c.l.b16 %v283
      %v474 = vunpack.c.h.b16 %v283
      %v475 = vunpack.c.l.b16 %v284
      %v476 = vunpack.c.h.b16 %v284
      %v477 = vunpack.c.l.b16 %v285
      %v478 = vunpack.c.h.b16 %v285
      %v479 = vunpack.c.l.b16 %v286
      %v480 = vunpack.c.h.b16 %v286
      %v481 = vunpack.c.l.b16 %v287
      %v482 = vunpack.c.h.b16 %v287
      %v483 = vunpack.c.l.b16 %v288
      %v484 = vunpack.c.h.b16 %v288
      %v485 = vunpack.c.l.b16 %v289
      %v486 = vunpack.c.h.b16 %v289
      %v487 = vunpack.c.l.b16 %v290
      %v488 = vunpack.c.h.b16 %v290
      %v489 = vpack.c.b16 %v369, %v361
      %v490 = vpack.c.b16 %v370, %v362
      %v491 = vpack.c.b16 %v371, %v363
      %v492 = vpack.c.b16 %v372, %v364
      %v493 = vpack.c.b16 %v373, %v365
      %v494 = vpack.c.b16 %v374, %v366
      %v495 = vpack.c.b16 %v375, %v367
      %v496 = vpack.c.b16 %v376, %v368
      %v497 = vpack.c.b16 %v385, %v377
      %v498 = vpack.c.b16 %v386, %v378
      %v499 = vpack.c.b16 %v387, %v379
      %v500 = vpack.c.b16 %v388, %v380
      %v501 = vpack.c.b16 %v389, %v381
      %v502 = vpack.c.b16 %v390, %v382
      %v503 = vpack.c.b16 %v391, %v383
      %v504 = vpack.c.b16 %v392, %v384
      %v505 = vpack.c.b16 %v401, %v393
      %v506 = vpack.c.b16 %v402, %v394
      %v507 = vpack.c.b16 %v403, %v395
      %v508 = vpack.c.b16 %v404, %v396
      %v509 = vpack.c.b16 %v405, %v397
      %v510 = vpack.c.b16 %v406, %v398
      %v511 = vpack.c.b16 %v407, %v399
      %v512 = vpack.c.b16 %v408, %v400
      %v513 = vpack.c.b16 %v417, %v409
      %v514 = vpack.c.b16 %v418, %v410
      %v515 = vpack.c.b16 %v419, %v411
      %v516 = vpack.c.b16 %v420, %v412
      %v517 = vpack.c.b16 %v421, %v413
      %v518 = vpack.c.b16 %v422, %v414
      %v519 = vpack.c.b16 %v423, %v415
      %v520 = vpack.c.b16 %v424, %v416
      %v521 = vpack.c.b16 %v433, %v425
      %v522 = vpack.c.b16 %v434, %v426
      %v523 = vpack.c.b16 %v435, %v427
      %v524 = vpack.c.b16 %v436, %v428
      %v525 = vpack.c.b16 %v437, %v429
      %v526 = vpack.c.b16 %v438, %v430
      %v527 = vpack.c.b16 %v439, %v431
      %v528 = vpack.c.b16 %v440, %v432
      %v529 = vpack.c.b16 %v449, %v441
      %v530 = vpack.c.b16 %v450, %v442
      %v531 = vpack.c.b16 %v451, %v443
      %v532 = vpack.c.b16 %v452, %v444
      %v533 = vpack.c.b16 %v453, %v445
      %v534 = vpack.c.b16 %v454, %v446
      %v535 = vpack.c.b16 %v455, %v447
      %v536 = vpack.c.b16 %v456, %v448
      %v537 = vpack.c.b16 %v465, %v457
      %v538 = vpack.c.b16 %v466, %v458
      %v539 = vpack.c.b16 %v467, %v459
      %v540 = vpack.c.b16 %v468, %v460
      %v541 = vpack.c.b16 %v469, %v461
      %v542 = vpack.c.b16 %v470, %v462
      %v543 = vpack.c.b16 %v471, %v463
      %v544 = vpack.c.b16 %v472, %v464
      %v545 = vpack.c.b16 %v481, %v473
      %v546 = vpack.c.b16 %v482, %v474
      %v547 = vpack.c.b16 %v483, %v475
      %v548 = vpack.c.b16 %v484, %v476
      %v549 = vpack.c.b16 %v485, %v477
      %v550 = vpack.c.b16 %v486, %v478
      %v551 = vpack.c.b16 %v487, %v479
      %v552 = vpack.c.b16 %v488, %v480
      %617 = vmatprep.subr.bf16.mxu0 %v490
      %618 = vmatpush1.bf16.msra.mxu0 %v489
      %619 = vmatprep.subr.bf16.mxu0 %v498
      %620 = vmatpush1.bf16.msra.mxu0 %v497
      %621 = vmatprep.subr.bf16.mxu0 %v506
      %622 = vmatpush1.bf16.msra.mxu0 %v505
      %623 = vmatprep.subr.bf16.mxu0 %v514
      %624 = vmatpush1.bf16.msra.mxu0 %v513
      %625 = vmatprep.subr.bf16.mxu0 %v522
      %626 = vmatpush1.bf16.msra.mxu0 %v521
      %627 = vmatprep.subr.bf16.mxu0 %v530
      %628 = vmatpush1.bf16.msra.mxu0 %v529
      %629 = vmatprep.subr.bf16.mxu0 %v538
      %630 = vmatpush1.bf16.msra.mxu0 %v537
      %631 = vmatprep.subr.bf16.mxu0 %v546
      %632 = vmatpush1.bf16.msra.mxu0 %v545
      %633 = vmatprep.subr.bf16.mxu0 0
      %634 = vmatpush1.bf16.msra.mxu0 0
      %635 = vmatprep.subr.bf16.mxu0 0
      %636 = vmatpush1.bf16.msra.mxu0 0
      %637 = vmatprep.subr.bf16.mxu0 0
      %638 = vmatpush1.bf16.msra.mxu0 0
      %639 = vmatprep.subr.bf16.mxu0 0
      %640 = vmatpush1.bf16.msra.mxu0 0
      %641 = vmatprep.subr.bf16.mxu0 0
      %642 = vmatpush1.bf16.msra.mxu0 0
      %643 = vmatprep.subr.bf16.mxu0 0
      %644 = vmatpush1.bf16.msra.mxu0 0
      %645 = vmatprep.subr.bf16.mxu0 0
      %646 = vmatpush1.bf16.msra.mxu0 0
      %647 = vmatprep.subr.bf16.mxu0 0
      %648 = vmatpush1.bf16.msra.mxu0 0
      %649 = vmatprep.mubr.bf16.mxu0 0
      %650 = vmatmul.mubr.bf16.gmra.mrb[0].mxu0 %v295
      %v651 = vpop.f32.mrb[0].mxu0
      %v652 = vadd.f32 0.0, %v651
      %v653 = vpop.f32.mrb[0].mxu0
      %v654 = vadd.f32 0.0, %v653
      %v655 = vpop.f32.mrb[0].mxu0
      %v656 = vadd.f32 0.0, %v655
      %v657 = vpop.f32.mrb[0].mxu0
      %v658 = vadd.f32 0.0, %v657
      %659 = vdwg.mxu0
      %660 = vmatprep.subr.bf16.mxu0 %v492
      %661 = vmatpush1.bf16.msra.mxu0 %v491
      %662 = vmatprep.subr.bf16.mxu0 %v500
      %663 = vmatpush1.bf16.msra.mxu0 %v499
      %664 = vmatprep.subr.bf16.mxu0 %v508
      %665 = vmatpush1.bf16.msra.mxu0 %v507
      %666 = vmatprep.subr.bf16.mxu0 %v516
      %667 = vmatpush1.bf16.msra.mxu0 %v515
      %668 = vmatprep.subr.bf16.mxu0 %v524
      %669 = vmatpush1.bf16.msra.mxu0 %v523
      %670 = vmatprep.subr.bf16.mxu0 %v532
      %671 = vmatpush1.bf16.msra.mxu0 %v531
      %672 = vmatprep.subr.bf16.mxu0 %v540
      %673 = vmatpush1.bf16.msra.mxu0 %v539
      %674 = vmatprep.subr.bf16.mxu0 %v548
      %675 = vmatpush1.bf16.msra.mxu0 %v547
      %676 = vmatprep.subr.bf16.mxu0 0
      %677 = vmatpush1.bf16.msra.mxu0 0
      %678 = vmatprep.subr.bf16.mxu0 0
      %679 = vmatpush1.bf16.msra.mxu0 0
      %680 = vmatprep.subr.bf16.mxu0 0
      %681 = vmatpush1.bf16.msra.mxu0 0
      %682 = vmatprep.subr.bf16.mxu0 0
      %683 = vmatpush1.bf16.msra.mxu0 0
      %684 = vmatprep.subr.bf16.mxu0 0
      %685 = vmatpush1.bf16.msra.mxu0 0
      %686 = vmatprep.subr.bf16.mxu0 0
      %687 = vmatpush1.bf16.msra.mxu0 0
      %688 = vmatprep.subr.bf16.mxu0 0
      %689 = vmatpush1.bf16.msra.mxu0 0
      %690 = vmatprep.subr.bf16.mxu0 0
      %691 = vmatpush1.bf16.msra.mxu0 0
      %692 = vmatprep.mubr.bf16.mxu0 0
      %693 = vmatmul.mubr.bf16.gmra.mrb[0].mxu0 %v295
      %v694 = vpop.f32.mrb[0].mxu0
      %v695 = vadd.f32 0.0, %v694
      %v696 = vpop.f32.mrb[0].mxu0
      %v697 = vadd.f32 0.0, %v696
      %v698 = vpop.f32.mrb[0].mxu0
      %v699 = vadd.f32 0.0, %v698
      %v700 = vpop.f32.mrb[0].mxu0
      %v701 = vadd.f32 0.0, %v700
      %702 = vdwg.mxu0
      %703 = vmatprep.subr.bf16.mxu0 %v494
      %704 = vmatpush1.bf16.msra.mxu0 %v493
      %705 = vmatprep.subr.bf16.mxu0 %v502
      %706 = vmatpush1.bf16.msra.mxu0 %v501
      %707 = vmatprep.subr.bf16.mxu0 %v510
      %708 = vmatpush1.bf16.msra.mxu0 %v509
      %709 = vmatprep.subr.bf16.mxu0 %v518
      %710 = vmatpush1.bf16.msra.mxu0 %v517
      %711 = vmatprep.subr.bf16.mxu0 %v526
      %712 = vmatpush1.bf16.msra.mxu0 %v525
      %713 = vmatprep.subr.bf16.mxu0 %v534
      %714 = vmatpush1.bf16.msra.mxu0 %v533
      %715 = vmatprep.subr.bf16.mxu0 %v542
      %716 = vmatpush1.bf16.msra.mxu0 %v541
      %717 = vmatprep.subr.bf16.mxu0 %v550
      %718 = vmatpush1.bf16.msra.mxu0 %v549
      %719 = vmatprep.subr.bf16.mxu0 0
      %720 = vmatpush1.bf16.msra.mxu0 0
      %721 = vmatprep.subr.bf16.mxu0 0
      %722 = vmatpush1.bf16.msra.mxu0 0
      %723 = vmatprep.subr.bf16.mxu0 0
      %724 = vmatpush1.bf16.msra.mxu0 0
      %725 = vmatprep.subr.bf16.mxu0 0
      %726 = vmatpush1.bf16.msra.mxu0 0
      %727 = vmatprep.subr.bf16.mxu0 0
      %728 = vmatpush1.bf16.msra.mxu0 0
      %729 = vmatprep.subr.bf16.mxu0 0
      %730 = vmatpush1.bf16.msra.mxu0 0
      %731 = vmatprep.subr.bf16.mxu0 0
      %732 = vmatpush1.bf16.msra.mxu0 0
      %733 = vmatprep.subr.bf16.mxu0 0
      %734 = vmatpush1.bf16.msra.mxu0 0
      %735 = vmatprep.mubr.bf16.mxu0 0
      %736 = vmatmul.mubr.bf16.gmra.mrb[0].mxu0 %v295
      %v737 = vpop.f32.mrb[0].mxu0
      %v738 = vadd.f32 0.0, %v737
      %v739 = vpop.f32.mrb[0].mxu0
      %v740 = vadd.f32 0.0, %v739
      %v741 = vpop.f32.mrb[0].mxu0
      %v742 = vadd.f32 0.0, %v741
      %v743 = vpop.f32.mrb[0].mxu0
      %v744 = vadd.f32 0.0, %v743
      %745 = vdwg.mxu0
      %746 = vmatprep.subr.bf16.mxu0 %v496
      %747 = vmatpush1.bf16.msra.mxu0 %v495
      %748 = vmatprep.subr.bf16.mxu0 %v504
      %749 = vmatpush1.bf16.msra.mxu0 %v503
      %750 = vmatprep.subr.bf16.mxu0 %v512
      %751 = vmatpush1.bf16.msra.mxu0 %v511
      %752 = vmatprep.subr.bf16.mxu0 %v520
      %753 = vmatpush1.bf16.msra.mxu0 %v519
      %754 = vmatprep.subr.bf16.mxu0 %v528
      %755 = vmatpush1.bf16.msra.mxu0 %v527
      %756 = vmatprep.subr.bf16.mxu0 %v536
      %757 = vmatpush1.bf16.msra.mxu0 %v535
      %758 = vmatprep.subr.bf16.mxu0 %v544
      %759 = vmatpush1.bf16.msra.mxu0 %v543
      %760 = vmatprep.subr.bf16.mxu0 %v552
      %761 = vmatpush1.bf16.msra.mxu0 %v551
      %762 = vmatprep.subr.bf16.mxu0 0
      %763 = vmatpush1.bf16.msra.mxu0 0
      %764 = vmatprep.subr.bf16.mxu0 0
      %765 = vmatpush1.bf16.msra.mxu0 0
      %766 = vmatprep.subr.bf16.mxu0 0
      %767 = vmatpush1.bf16.msra.mxu0 0
      %768 = vmatprep.subr.bf16.mxu0 0
      %769 = vmatpush1.bf16.msra.mxu0 0
      %770 = vmatprep.subr.bf16.mxu0 0
      %771 = vmatpush1.bf16.msra.mxu0 0
      %772 = vmatprep.subr.bf16.mxu0 0
      %773 = vmatpush1.bf16.msra.mxu0 0
      %774 = vmatprep.subr.bf16.mxu0 0
      %775 = vmatpush1.bf16.msra.mxu0 0
      %776 = vmatprep.subr.bf16.mxu0 0
      %777 = vmatpush1.bf16.msra.mxu0 0
      %778 = vmatprep.mubr.bf16.mxu0 0
      %779 = vmatmul.mubr.bf16.gmra.mrb[0].mxu0 %v295
      %v780 = vpop.f32.mrb[0].mxu0
      %v781 = vadd.f32 0.0, %v780
      %v782 = vpop.f32.mrb[0].mxu0
      %v783 = vadd.f32 0.0, %v782
      %v784 = vpop.f32.mrb[0].mxu0
      %v785 = vadd.f32 0.0, %v784
      %v786 = vpop.f32.mrb[0].mxu0
      %v787 = vadd.f32 0.0, %v786
      %788 = vdwg.mxu0
      %v789 = vld [vmem:[%s2] sm:$0xff]
      %v791 = vlaneseq
      %v792 = vshrl.u32 %v791, 7
      %v793 = vsub.s32 0, %v792
      %v794 = vrot.slane %v789, %v793
      %v795 = vlaneseq
      %v796 = vshrl.u32 %v795, 7
      %v797 = vsub.s32 1, %v796
      %v798 = vrot.slane %v789, %v797
      %v799 = vlaneseq
      %v800 = vshrl.u32 %v799, 7
      %v801 = vsub.s32 2, %v800
      %v802 = vrot.slane %v789, %v801
      %v803 = vlaneseq
      %v804 = vshrl.u32 %v803, 7
      %v805 = vsub.s32 3, %v804
      %v806 = vrot.slane %v789, %v805
      %v807 = vlaneseq
      %v808 = vshrl.u32 %v807, 7
      %v809 = vsub.s32 4, %v808
      %v810 = vrot.slane %v789, %v809
      %v811 = vlaneseq
      %v812 = vshrl.u32 %v811, 7
      %v813 = vsub.s32 5, %v812
      %v814 = vrot.slane %v789, %v813
      %v815 = vlaneseq
      %v816 = vshrl.u32 %v815, 7
      %v817 = vsub.s32 6, %v816
      %v818 = vrot.slane %v789, %v817
      %v819 = vlaneseq
      %v820 = vshrl.u32 %v819, 7
      %v821 = vsub.s32 7, %v820
      %v822 = vrot.slane %v789, %v821
      %v831 = vmul.f32 %v652, %v794
      %v832 = vmul.f32 %v654, %v798
      %v833 = vmul.f32 %v695, %v802
      %v834 = vmul.f32 %v697, %v806
      %v835 = vmul.f32 %v738, %v810
      %v836 = vmul.f32 %v740, %v814
      %v837 = vmul.f32 %v781, %v818
      %v838 = vmul.f32 %v783, %v822
      %v839 = vmul.f32 %v656, %v794
      %v840 = vmul.f32 %v658, %v798
      %v841 = vmul.f32 %v699, %v802
      %v842 = vmul.f32 %v701, %v806
      %v843 = vmul.f32 %v742, %v810
      %v844 = vmul.f32 %v744, %v814
      %v845 = vmul.f32 %v785, %v818
      %v846 = vmul.f32 %v787, %v822
      %v847 = vld [vmem:[%s3] sm:$0xff]
      %v849 = vlaneseq
      %v850 = vshrl.u32 %v849, 7
      %v851 = vsub.s32 0, %v850
      %v852 = vrot.slane %v847, %v851
      %v853 = vlaneseq
      %v854 = vshrl.u32 %v853, 7
      %v855 = vsub.s32 1, %v854
      %v856 = vrot.slane %v847, %v855
      %v857 = vlaneseq
      %v858 = vshrl.u32 %v857, 7
      %v859 = vsub.s32 2, %v858
      %v860 = vrot.slane %v847, %v859
      %v861 = vlaneseq
      %v862 = vshrl.u32 %v861, 7
      %v863 = vsub.s32 3, %v862
      %v864 = vrot.slane %v847, %v863
      %v865 = vlaneseq
      %v866 = vshrl.u32 %v865, 7
      %v867 = vsub.s32 4, %v866
      %v868 = vrot.slane %v847, %v867
      %v869 = vlaneseq
      %v870 = vshrl.u32 %v869, 7
      %v871 = vsub.s32 5, %v870
      %v872 = vrot.slane %v847, %v871
      %v873 = vlaneseq
      %v874 = vshrl.u32 %v873, 7
      %v875 = vsub.s32 6, %v874
      %v876 = vrot.slane %v847, %v875
      %v877 = vlaneseq
      %v878 = vshrl.u32 %v877, 7
      %v879 = vsub.s32 7, %v878
      %v880 = vrot.slane %v847, %v879
      %v889 = vadd.f32 %v831, %v852
      %v890 = vadd.f32 %v832, %v856
      %v891 = vadd.f32 %v833, %v860
      %v892 = vadd.f32 %v834, %v864
      %v893 = vadd.f32 %v835, %v868
      %v894 = vadd.f32 %v836, %v872
      %v895 = vadd.f32 %v837, %v876
      %v896 = vadd.f32 %v838, %v880
      %v897 = vadd.f32 %v839, %v852
      %v898 = vadd.f32 %v840, %v856
      %v899 = vadd.f32 %v841, %v860
      %v900 = vadd.f32 %v842, %v864
      %v901 = vadd.f32 %v843, %v868
      %v902 = vadd.f32 %v844, %v872
      %v903 = vadd.f32 %v845, %v876
      %v904 = vadd.f32 %v846, %v880
      %vm905 = vcmp.ge.f32.partialorder %v889, 0.0
      %vm906 = vcmp.ge.f32.partialorder %v890, 0.0
      %vm907 = vcmp.ge.f32.partialorder %v891, 0.0
      %vm908 = vcmp.ge.f32.partialorder %v892, 0.0
      %vm909 = vcmp.ge.f32.partialorder %v893, 0.0
      %vm910 = vcmp.ge.f32.partialorder %v894, 0.0
      %vm911 = vcmp.ge.f32.partialorder %v895, 0.0
      %vm912 = vcmp.ge.f32.partialorder %v896, 0.0
      %vm913 = vcmp.ge.f32.partialorder %v897, 0.0
      %vm914 = vcmp.ge.f32.partialorder %v898, 0.0
      %vm915 = vcmp.ge.f32.partialorder %v899, 0.0
      %vm916 = vcmp.ge.f32.partialorder %v900, 0.0
      %vm917 = vcmp.ge.f32.partialorder %v901, 0.0
      %vm918 = vcmp.ge.f32.partialorder %v902, 0.0
      %vm919 = vcmp.ge.f32.partialorder %v903, 0.0
      %vm920 = vcmp.ge.f32.partialorder %v904, 0.0
      %v921 = vmul.f32 %v889, 0.2
      %v922 = vmul.f32 %v890, 0.2
      %v923 = vmul.f32 %v891, 0.2
      %v924 = vmul.f32 %v892, 0.2
      %v925 = vmul.f32 %v893, 0.2
      %v926 = vmul.f32 %v894, 0.2
      %v927 = vmul.f32 %v895, 0.2
      %v928 = vmul.f32 %v896, 0.2
      %v929 = vmul.f32 %v897, 0.2
      %v930 = vmul.f32 %v898, 0.2
      %v931 = vmul.f32 %v899, 0.2
      %v932 = vmul.f32 %v900, 0.2
      %v933 = vmul.f32 %v901, 0.2
      %v934 = vmul.f32 %v902, 0.2
      %v935 = vmul.f32 %v903, 0.2
      %v936 = vmul.f32 %v904, 0.2
      %v937 = vsel %vm905, %v889, %v921
      %v938 = vsel %vm906, %v890, %v922
      %v939 = vsel %vm907, %v891, %v923
      %v940 = vsel %vm908, %v892, %v924
      %v941 = vsel %vm909, %v893, %v925
      %v942 = vsel %vm910, %v894, %v926
      %v943 = vsel %vm911, %v895, %v927
      %v944 = vsel %vm912, %v896, %v928
      %v945 = vsel %vm913, %v897, %v929
      %v946 = vsel %vm914, %v898, %v930
      %v947 = vsel %vm915, %v899, %v931
      %v948 = vsel %vm916, %v900, %v932
      %v949 = vsel %vm917, %v901, %v933
      %v950 = vsel %vm918, %v902, %v934
      %v951 = vsel %vm919, %v903, %v935
      %v952 = vsel %vm920, %v904, %v936
      %v953 = vmax.f32 %v937, %v945
      %v954 = vrot.slane %v953, 4
      %v955 = vmax.f32 %v953, %v954
      %v956 = vrot.slane %v955, 2
      %v957 = vmax.f32 %v955, %v956
      %v958 = vrot.slane %v957, 1
      %v959 = vmax.f32 %v957, %v958
      %v960 = vmax.f32 %v938, %v946
      %v961 = vrot.slane %v960, 4
      %v962 = vmax.f32 %v960, %v961
      %v963 = vrot.slane %v962, 2
      %v964 = vmax.f32 %v962, %v963
      %v965 = vrot.slane %v964, 1
      %v966 = vmax.f32 %v964, %v965
      %v967 = vmax.f32 %v939, %v947
      %v968 = vrot.slane %v967, 4
      %v969 = vmax.f32 %v967, %v968
      %v970 = vrot.slane %v969, 2
      %v971 = vmax.f32 %v969, %v970
      %v972 = vrot.slane %v971, 1
      %v973 = vmax.f32 %v971, %v972
      %v974 = vmax.f32 %v940, %v948
      %v975 = vrot.slane %v974, 4
      %v976 = vmax.f32 %v974, %v975
      %v977 = vrot.slane %v976, 2
      %v978 = vmax.f32 %v976, %v977
      %v979 = vrot.slane %v978, 1
      %v980 = vmax.f32 %v978, %v979
      %v981 = vmax.f32 %v941, %v949
      %v982 = vrot.slane %v981, 4
      %v983 = vmax.f32 %v981, %v982
      %v984 = vrot.slane %v983, 2
      %v985 = vmax.f32 %v983, %v984
      %v986 = vrot.slane %v985, 1
      %v987 = vmax.f32 %v985, %v986
      %v988 = vmax.f32 %v942, %v950
      %v989 = vrot.slane %v988, 4
      %v990 = vmax.f32 %v988, %v989
      %v991 = vrot.slane %v990, 2
      %v992 = vmax.f32 %v990, %v991
      %v993 = vrot.slane %v992, 1
      %v994 = vmax.f32 %v992, %v993
      %v995 = vmax.f32 %v943, %v951
      %v996 = vrot.slane %v995, 4
      %v997 = vmax.f32 %v995, %v996
      %v998 = vrot.slane %v997, 2
      %v999 = vmax.f32 %v997, %v998
      %v1000 = vrot.slane %v999, 1
      %v1001 = vmax.f32 %v999, %v1000
      %v1002 = vmax.f32 %v944, %v952
      %v1003 = vrot.slane %v1002, 4
      %v1004 = vmax.f32 %v1002, %v1003
      %v1005 = vrot.slane %v1004, 2
      %v1006 = vmax.f32 %v1004, %v1005
      %v1007 = vrot.slane %v1006, 1
      %v1008 = vmax.f32 %v1006, %v1007
      %p1009 = scmp.eq.s32.totalorder %s20, 0
      // Predicated region
      $region37: #{position_embedding_forward.9} parent=35 // pred_check
        %p1010 = pneg %p1009
      $region38: #{position_embedding_forward.9} parent=35 // pred_check_branch
        %1012 = sbr.rel (%p1010) target = $region40
      $region39: #{position_embedding_forward.9} parent=35 // pred_region
        %v1021 = vcombine.low %v959, %v966
        %v1022 = vcombine.low %v973, %v980
        %v1023 = vcombine.low %v987, %v994
        %v1024 = vcombine.low %v1001, %v1008
        %v1026 = vunpack.c.l.s4 1966171168
        %v1027 = vunpack.c.0.s8 %v1026
        %v1028 = vlaneseq
        %v1029 = vshrl.u32 %v1028, 7
        %v1030 = vsub.s32 %v1027, %v1029
        %v1031 = vrot.slane %v1021, %v1030
        %v1033 = vunpack.c.l.s4 1966171168
        %v1034 = vunpack.c.0.s8 %v1033
        %v1035 = vlaneseq
        %v1036 = vshrl.u32 %v1035, 7
        %v1037 = vsub.s32 %v1034, %v1036
        %v1038 = vrot.slane %v1022, %v1037
        %v1040 = vunpack.c.l.s4 1966171168
        %v1041 = vunpack.c.0.s8 %v1040
        %v1042 = vlaneseq
        %v1043 = vshrl.u32 %v1042, 7
        %v1044 = vsub.s32 %v1041, %v1043
        %v1045 = vrot.slane %v1023, %v1044
        %v1047 = vunpack.c.l.s4 1966171168
        %v1048 = vunpack.c.0.s8 %v1047
        %v1049 = vlaneseq
        %v1050 = vshrl.u32 %v1049, 7
        %v1051 = vsub.s32 %v1048, %v1050
        %v1052 = vrot.slane %v1024, %v1051
        %v1053 = vcombine.low %v1031, %v1038
        %v1054 = vcombine.low %v1045, %v1052
        %v1056 = vunpack.c.l.s4 1966171168
        %v1057 = vunpack.c.0.s8 %v1056
        %v1058 = vlaneseq
        %v1059 = vshrl.u32 %v1058, 7
        %v1060 = vsub.s32 %v1057, %v1059
        %v1061 = vrot.slane %v1053, %v1060
        %v1063 = vunpack.c.l.s4 1966171168
        %v1064 = vunpack.c.0.s8 %v1063
        %v1065 = vlaneseq
        %v1066 = vshrl.u32 %v1065, 7
        %v1067 = vsub.s32 %v1064, %v1066
        %v1068 = vrot.slane %v1054, %v1067
        %v1069 = vcombine.low %v1061, %v1068
        %1071 = vst [vmem:[%s223] sm:$0xff] %v1069
      $region40: #{position_embedding_forward.9} parent=35 // pred_fallthru
        _
      %p1072 = scmp.gt.s32.totalorder %s20, 0
      // Predicated region
      $region41: #{position_embedding_forward.9} parent=35 // pred_check
        %p1073 = pneg %p1072
      $region42: #{position_embedding_forward.9} parent=35 // pred_check_branch
        %1075 = sbr.rel (%p1073) target = $region44
      $region43: #{position_embedding_forward.9} parent=35 // pred_region
        %v1076 = vld [vmem:[%s223] sm:$0xff]
        %v1085 = vcombine.low %v959, %v966
        %v1086 = vcombine.low %v973, %v980
        %v1087 = vcombine.low %v987, %v994
        %v1088 = vcombine.low %v1001, %v1008
        %v1090 = vunpack.c.l.s4 1966171168
        %v1091 = vunpack.c.0.s8 %v1090
        %v1092 = vlaneseq
        %v1093 = vshrl.u32 %v1092, 7
        %v1094 = vsub.s32 %v1091, %v1093
        %v1095 = vrot.slane %v1085, %v1094
        %v1097 = vunpack.c.l.s4 1966171168
        %v1098 = vunpack.c.0.s8 %v1097
        %v1099 = vlaneseq
        %v1100 = vshrl.u32 %v1099, 7
        %v1101 = vsub.s32 %v1098, %v1100
        %v1102 = vrot.slane %v1086, %v1101
        %v1104 = vunpack.c.l.s4 1966171168
        %v1105 = vunpack.c.0.s8 %v1104
        %v1106 = vlaneseq
        %v1107 = vshrl.u32 %v1106, 7
        %v1108 = vsub.s32 %v1105, %v1107
        %v1109 = vrot.slane %v1087, %v1108
        %v1111 = vunpack.c.l.s4 1966171168
        %v1112 = vunpack.c.0.s8 %v1111
        %v1113 = vlaneseq
        %v1114 = vshrl.u32 %v1113, 7
        %v1115 = vsub.s32 %v1112, %v1114
        %v1116 = vrot.slane %v1088, %v1115
        %v1117 = vcombine.low %v1095, %v1102
        %v1118 = vcombine.low %v1109, %v1116
        %v1120 = vunpack.c.l.s4 1966171168
        %v1121 = vunpack.c.0.s8 %v1120
        %v1122 = vlaneseq
        %v1123 = vshrl.u32 %v1122, 7
        %v1124 = vsub.s32 %v1121, %v1123
        %v1125 = vrot.slane %v1117, %v1124
        %v1127 = vunpack.c.l.s4 1966171168
        %v1128 = vunpack.c.0.s8 %v1127
        %v1129 = vlaneseq
        %v1130 = vshrl.u32 %v1129, 7
        %v1131 = vsub.s32 %v1128, %v1130
        %v1132 = vrot.slane %v1118, %v1131
        %v1133 = vcombine.low %v1125, %v1132
        %v1135 = vmax.f32 %v1076, %v1133
        %1136 = vst [vmem:[%s223] sm:$0xff] %v1135
      $region44: #{position_embedding_forward.9} parent=35 // pred_fallthru
        _
      %p1137 = scmp.lt.s32.totalorder %s19, 1
      %s1138 = scalar_select %p1137, %s19, 1
      %s1139 = smul.addr %s1138, 8
      %s1140 = scalar_lea.vmem %s4, %s1139
      // Predicated region
      $region45: #{position_embedding_forward.9} parent=35 // pred_check
        %p1141 = pneg %p136
      $region46: #{position_embedding_forward.9} parent=35 // pred_check_branch
        %1143 = sbr.rel (%p1141) target = $region48
      $region47: #{position_embedding_forward.9} parent=35 // pred_region
        _
      $region48: #{position_embedding_forward.9} parent=35 // pred_fallthru
        _
    $region36: #{position_embedding_forward.9} parent=5 // pred_fallthru
      _
    %p1144 = scmp.le.s32.totalorder 2, %s10
    // Predicated region
    $region49: #{position_embedding_forward.9} parent=5 // pred_check
      %p1145 = pneg %p1144
    $region50: #{position_embedding_forward.9} parent=5 // pred_check_branch
      %1147 = sbr.rel (%p1145) target = $region52
    $region51: #{position_embedding_forward.9} parent=5 // pred_region
      %s1148 = ssub.s32 %s10, 2
      // Predicated region
      $region53: #{position_embedding_forward.9} parent=51 // pred_check
        %p1149 = pneg %p142
      $region54: #{position_embedding_forward.9} parent=51 // pred_check_branch
        %1151 = sbr.rel (%p1149) target = $region56
      $region55: #{position_embedding_forward.9} parent=51 // pred_region
        %p1152 = scmp.lt.s32.totalorder %s21, 1
        %s1153 = scalar_select %p1152, %s21, 1
        %s1154 = smul.addr %s1153, 8
        %s1155 = scalar_lea.vmem %s4, %s1154
      $region56: #{position_embedding_forward.9} parent=51 // pred_fallthru
        _
    $region52: #{position_embedding_forward.9} parent=5 // pred_fallthru
      _
  $region6: #{position_embedding_forward.9} parent=0 // loop_footer
    %s14 = sadd.s32 1, %s10
  $region7: #{position_embedding_forward.9} parent=0 // loop_footer_branch
    %9 = sbr.rel target = $region3
  $region8: #{position_embedding_forward.9} parent=0 // loop_exit
    _

// kernel: position_embedding_forward.10
$region0: #{position_embedding_forward.10}
  #allocation0 [shape = 'u32[]', space=smem, size = 0x4, offset = 0x4, fixed_abs, tag = 'smem constant byte address 0x4 - core index']
  #allocation1 [shape = 'u32[144,128]{1,0:T(1,128)}', space=vmem, size = 0x12000, scoped, tag = 'internal scratch']
  %s0 = inlined_call_operand.vmem [shape: f32[2,1024], index: 0, kind: input, shape index: {}]
  %s1 = inlined_call_operand.vmem [shape: bf16[1024,512], index: 1, kind: input, shape index: {}]
  %s2 = inlined_call_operand.vmem [shape: f32[1,512], index: 2, kind: input, shape index: {}]
  %s3 = inlined_call_operand.vmem [shape: f32[1,512], index: 3, kind: input, shape index: {}]
  %s4 = inlined_call_operand.vmem [shape: bf16[512,256], index: 4, kind: input, shape index: {}]
  %s5 = inlined_call_operand.vmem [shape: f32[1,256], index: 5, kind: input, shape index: {}]
  %s6 = inlined_call_operand.vmem [shape: f32[1,256], index: 6, kind: input, shape index: {}]
  %s7 = inlined_call_operand.vmem [shape: f32[256,9], index: 7, kind: input, shape index: {}]
  %s8 = inlined_call_operand.vmem [shape: f32[1,9], index: 8, kind: input, shape index: {}]
  %s9 = inlined_call_operand.vmem [shape: f32[2,9], index: 9, kind: output, shape index: {}]
  %s10 = sld [smem:[#allocation0]]
  $region46: #{position_embedding_forward.10} parent=0
    _
  %s12 = ssub.s32 1, %s10
  %s13 = scalar_select 0, %s12, %s10
  // Predicated region
  $region2: #{position_embedding_forward.10} parent=0 // pred_check
    _
  $region3: #{position_embedding_forward.10} parent=0 // pred_check_branch
    %15 = sbr.rel (0) target = $region5
  $region4: #{position_embedding_forward.10} parent=0 // pred_region
    _
  $region5: #{position_embedding_forward.10} parent=0 // pred_fallthru
    _
  // Predicated region
  $region6: #{position_embedding_forward.10} parent=0 // pred_check
    _
  $region7: #{position_embedding_forward.10} parent=0 // pred_check_branch
    %17 = sbr.rel (0) target = $region9
  $region8: #{position_embedding_forward.10} parent=0 // pred_region
    _
  $region9: #{position_embedding_forward.10} parent=0 // pred_fallthru
    _
  // Predicated region
  $region10: #{position_embedding_forward.10} parent=0 // pred_check
    _
  $region11: #{position_embedding_forward.10} parent=0 // pred_check_branch
    %19 = sbr.rel (0) target = $region13
  $region12: #{position_embedding_forward.10} parent=0 // pred_region
    _
  $region13: #{position_embedding_forward.10} parent=0 // pred_fallthru
    _
  // Predicated region
  $region14: #{position_embedding_forward.10} parent=0 // pred_check
    _
  $region15: #{position_embedding_forward.10} parent=0 // pred_check_branch
    %21 = sbr.rel (0) target = $region17
  $region16: #{position_embedding_forward.10} parent=0 // pred_region
    _
  $region17: #{position_embedding_forward.10} parent=0 // pred_fallthru
    _
  // Predicated region
  $region18: #{position_embedding_forward.10} parent=0 // pred_check
    _
  $region19: #{position_embedding_forward.10} parent=0 // pred_check_branch
    %23 = sbr.rel (0) target = $region21
  $region20: #{position_embedding_forward.10} parent=0 // pred_region
    _
  $region21: #{position_embedding_forward.10} parent=0 // pred_fallthru
    _
  // Predicated region
  $region22: #{position_embedding_forward.10} parent=0 // pred_check
    _
  $region23: #{position_embedding_forward.10} parent=0 // pred_check_branch
    %25 = sbr.rel (0) target = $region25
  $region24: #{position_embedding_forward.10} parent=0 // pred_region
    _
  $region25: #{position_embedding_forward.10} parent=0 // pred_fallthru
    _
  // Predicated region
  $region26: #{position_embedding_forward.10} parent=0 // pred_check
    _
  $region27: #{position_embedding_forward.10} parent=0 // pred_check_branch
    %27 = sbr.rel (0) target = $region29
  $region28: #{position_embedding_forward.10} parent=0 // pred_region
    _
  $region29: #{position_embedding_forward.10} parent=0 // pred_fallthru
    _
  // Predicated region
  $region30: #{position_embedding_forward.10} parent=0 // pred_check
    _
  $region31: #{position_embedding_forward.10} parent=0 // pred_check_branch
    %29 = sbr.rel (0) target = $region33
  $region32: #{position_embedding_forward.10} parent=0 // pred_region
    _
  $region33: #{position_embedding_forward.10} parent=0 // pred_fallthru
    _
  // Predicated region
  $region34: #{position_embedding_forward.10} parent=0 // pred_check
    _
  $region35: #{position_embedding_forward.10} parent=0 // pred_check_branch
    %31 = sbr.rel (0) target = $region37
  $region36: #{position_embedding_forward.10} parent=0 // pred_region
    _
  $region37: #{position_embedding_forward.10} parent=0 // pred_fallthru
    _
  %v32 = vld [vmem:[%s0] sm:$0xff]
  %v33 = vld [vmem:[%s0 + $0x8] sm:$0xff]
  %v36 = vcombine.high %v32, %v32
  %v38 = vunpack.c.l.s4 1983009808
  %v39 = vunpack.c.0.s8 %v38
  %v40 = vlaneseq
  %v41 = vshrl.u32 %v40, 7
  %v42 = vsub.s32 %v39, %v41
  %v43 = vrot.slane %v32, %v42
  %v45 = vunpack.c.l.s4 1983009808
  %v46 = vunpack.c.0.s8 %v45
  %v47 = vlaneseq
  %v48 = vshrl.u32 %v47, 7
  %v49 = vsub.s32 %v46, %v48
  %v50 = vrot.slane %v36, %v49
  %v51 = vcombine.high %v43, %v43
  %v52 = vcombine.high %v50, %v50
  %v53 = vcombine.high %v33, %v33
  %v55 = vunpack.c.l.s4 1983009808
  %v56 = vunpack.c.0.s8 %v55
  %v57 = vlaneseq
  %v58 = vshrl.u32 %v57, 7
  %v59 = vsub.s32 %v56, %v58
  %v60 = vrot.slane %v33, %v59
  %v62 = vunpack.c.l.s4 1983009808
  %v63 = vunpack.c.0.s8 %v62
  %v64 = vlaneseq
  %v65 = vshrl.u32 %v64, 7
  %v66 = vsub.s32 %v63, %v65
  %v67 = vrot.slane %v53, %v66
  %v68 = vcombine.high %v60, %v60
  %v69 = vcombine.high %v67, %v67
  %v78 = vpack.c.bf16 %v43, %v43
  %v79 = vpack.c.bf16 %v51, %v51
  %v80 = vpack.c.bf16 %v50, %v50
  %v81 = vpack.c.bf16 %v52, %v52
  %v82 = vpack.c.bf16 %v60, %v60
  %v83 = vpack.c.bf16 %v68, %v68
  %v84 = vpack.c.bf16 %v67, %v67
  %v85 = vpack.c.bf16 %v69, %v69
  %v86 = vld [vmem:[%s1] sm:$0xff]
  %v87 = vld [vmem:[%s1 + $0x8] sm:$0xff]
  %v88 = vld [vmem:[%s1 + $0x10] sm:$0xff]
  %v89 = vld [vmem:[%s1 + $0x18] sm:$0xff]
  %v90 = vld [vmem:[%s1 + $0x20] sm:$0xff]
  %v91 = vld [vmem:[%s1 + $0x28] sm:$0xff]
  %v92 = vld [vmem:[%s1 + $0x30] sm:$0xff]
  %v93 = vld [vmem:[%s1 + $0x38] sm:$0xff]
  %v94 = vld [vmem:[%s1 + $0x40] sm:$0xff]
  %v95 = vld [vmem:[%s1 + $0x48] sm:$0xff]
  %v96 = vld [vmem:[%s1 + $0x50] sm:$0xff]
  %v97 = vld [vmem:[%s1 + $0x58] sm:$0xff]
  %v98 = vld [vmem:[%s1 + $0x60] sm:$0xff]
  %v99 = vld [vmem:[%s1 + $0x68] sm:$0xff]
  %v100 = vld [vmem:[%s1 + $0x70] sm:$0xff]
  %v101 = vld [vmem:[%s1 + $0x78] sm:$0xff]
  %v102 = vld [vmem:[%s1 + $0x80] sm:$0xff]
  %v103 = vld [vmem:[%s1 + $0x88] sm:$0xff]
  %v104 = vld [vmem:[%s1 + $0x90] sm:$0xff]
  %v105 = vld [vmem:[%s1 + $0x98] sm:$0xff]
  %v106 = vld [vmem:[%s1 + $0xa0] sm:$0xff]
  %v107 = vld [vmem:[%s1 + $0xa8] sm:$0xff]
  %v108 = vld [vmem:[%s1 + $0xb0] sm:$0xff]
  %v109 = vld [vmem:[%s1 + $0xb8] sm:$0xff]
  %v110 = vld [vmem:[%s1 + $0xc0] sm:$0xff]
  %v111 = vld [vmem:[%s1 + $0xc8] sm:$0xff]
  %v112 = vld [vmem:[%s1 + $0xd0] sm:$0xff]
  %v113 = vld [vmem:[%s1 + $0xd8] sm:$0xff]
  %v114 = vld [vmem:[%s1 + $0xe0] sm:$0xff]
  %v115 = vld [vmem:[%s1 + $0xe8] sm:$0xff]
  %v116 = vld [vmem:[%s1 + $0xf0] sm:$0xff]
  %v117 = vld [vmem:[%s1 + $0xf8] sm:$0xff]
  %v118 = vld [vmem:[%s1 + $0x100] sm:$0xff]
  %v119 = vld [vmem:[%s1 + $0x108] sm:$0xff]
  %v120 = vld [vmem:[%s1 + $0x110] sm:$0xff]
  %v121 = vld [vmem:[%s1 + $0x118] sm:$0xff]
  %v122 = vld [vmem:[%s1 + $0x120] sm:$0xff]
  %v123 = vld [vmem:[%s1 + $0x128] sm:$0xff]
  %v124 = vld [vmem:[%s1 + $0x130] sm:$0xff]
  %v125 = vld [vmem:[%s1 + $0x138] sm:$0xff]
  %v126 = vld [vmem:[%s1 + $0x140] sm:$0xff]
  %v127 = vld [vmem:[%s1 + $0x148] sm:$0xff]
  %v128 = vld [vmem:[%s1 + $0x150] sm:$0xff]
  %v129 = vld [vmem:[%s1 + $0x158] sm:$0xff]
  %v130 = vld [vmem:[%s1 + $0x160] sm:$0xff]
  %v131 = vld [vmem:[%s1 + $0x168] sm:$0xff]
  %v132 = vld [vmem:[%s1 + $0x170] sm:$0xff]
  %v133 = vld [vmem:[%s1 + $0x178] sm:$0xff]
  %v134 = vld [vmem:[%s1 + $0x180] sm:$0xff]
  %v135 = vld [vmem:[%s1 + $0x188] sm:$0xff]
  %v136 = vld [vmem:[%s1 + $0x190] sm:$0xff]
  %v137 = vld [vmem:[%s1 + $0x198] sm:$0xff]
  %v138 = vld [vmem:[%s1 + $0x1a0] sm:$0xff]
  %v139 = vld [vmem:[%s1 + $0x1a8] sm:$0xff]
  %v140 = vld [vmem:[%s1 + $0x1b0] sm:$0xff]
  %v141 = vld [vmem:[%s1 + $0x1b8] sm:$0xff]
  %v142 = vld [vmem:[%s1 + $0x1c0] sm:$0xff]
  %v143 = vld [vmem:[%s1 + $0x1c8] sm:$0xff]
  %v144 = vld [vmem:[%s1 + $0x1d0] sm:$0xff]
  %v145 = vld [vmem:[%s1 + $0x1d8] sm:$0xff]
  %v146 = vld [vmem:[%s1 + $0x1e0] sm:$0xff]
  %v147 = vld [vmem:[%s1 + $0x1e8] sm:$0xff]
  %v148 = vld [vmem:[%s1 + $0x1f0] sm:$0xff]
  %v149 = vld [vmem:[%s1 + $0x1f8] sm:$0xff]
  %v150 = vld [vmem:[%s1 + $0x200] sm:$0xff]
  %v151 = vld [vmem:[%s1 + $0x208] sm:$0xff]
  %v152 = vld [vmem:[%s1 + $0x210] sm:$0xff]
  %v153 = vld [vmem:[%s1 + $0x218] sm:$0xff]
  %v154 = vld [vmem:[%s1 + $0x220] sm:$0xff]
  %v155 = vld [vmem:[%s1 + $0x228] sm:$0xff]
  %v156 = vld [vmem:[%s1 + $0x230] sm:$0xff]
  %v157 = vld [vmem:[%s1 + $0x238] sm:$0xff]
  %v158 = vld [vmem:[%s1 + $0x240] sm:$0xff]
  %v159 = vld [vmem:[%s1 + $0x248] sm:$0xff]
  %v160 = vld [vmem:[%s1 + $0x250] sm:$0xff]
  %v161 = vld [vmem:[%s1 + $0x258] sm:$0xff]
  %v162 = vld [vmem:[%s1 + $0x260] sm:$0xff]
  %v163 = vld [vmem:[%s1 + $0x268] sm:$0xff]
  %v164 = vld [vmem:[%s1 + $0x270] sm:$0xff]
  %v165 = vld [vmem:[%s1 + $0x278] sm:$0xff]
  %v166 = vld [vmem:[%s1 + $0x280] sm:$0xff]
  %v167 = vld [vmem:[%s1 + $0x288] sm:$0xff]
  %v168 = vld [vmem:[%s1 + $0x290] sm:$0xff]
  %v169 = vld [vmem:[%s1 + $0x298] sm:$0xff]
  %v170 = vld [vmem:[%s1 + $0x2a0] sm:$0xff]
  %v171 = vld [vmem:[%s1 + $0x2a8] sm:$0xff]
  %v172 = vld [vmem:[%s1 + $0x2b0] sm:$0xff]
  %v173 = vld [vmem:[%s1 + $0x2b8] sm:$0xff]
  %v174 = vld [vmem:[%s1 + $0x2c0] sm:$0xff]
  %v175 = vld [vmem:[%s1 + $0x2c8] sm:$0xff]
  %v176 = vld [vmem:[%s1 + $0x2d0] sm:$0xff]
  %v177 = vld [vmem:[%s1 + $0x2d8] sm:$0xff]
  %v178 = vld [vmem:[%s1 + $0x2e0] sm:$0xff]
  %v179 = vld [vmem:[%s1 + $0x2e8] sm:$0xff]
  %v180 = vld [vmem:[%s1 + $0x2f0] sm:$0xff]
  %v181 = vld [vmem:[%s1 + $0x2f8] sm:$0xff]
  %v182 = vld [vmem:[%s1 + $0x300] sm:$0xff]
  %v183 = vld [vmem:[%s1 + $0x308] sm:$0xff]
  %v184 = vld [vmem:[%s1 + $0x310] sm:$0xff]
  %v185 = vld [vmem:[%s1 + $0x318] sm:$0xff]
  %v186 = vld [vmem:[%s1 + $0x320] sm:$0xff]
  %v187 = vld [vmem:[%s1 + $0x328] sm:$0xff]
  %v188 = vld [vmem:[%s1 + $0x330] sm:$0xff]
  %v189 = vld [vmem:[%s1 + $0x338] sm:$0xff]
  %v190 = vld [vmem:[%s1 + $0x340] sm:$0xff]
  %v191 = vld [vmem:[%s1 + $0x348] sm:$0xff]
  %v192 = vld [vmem:[%s1 + $0x350] sm:$0xff]
  %v193 = vld [vmem:[%s1 + $0x358] sm:$0xff]
  %v194 = vld [vmem:[%s1 + $0x360] sm:$0xff]
  %v195 = vld [vmem:[%s1 + $0x368] sm:$0xff]
  %v196 = vld [vmem:[%s1 + $0x370] sm:$0xff]
  %v197 = vld [vmem:[%s1 + $0x378] sm:$0xff]
  %v198 = vld [vmem:[%s1 + $0x380] sm:$0xff]
  %v199 = vld [vmem:[%s1 + $0x388] sm:$0xff]
  %v200 = vld [vmem:[%s1 + $0x390] sm:$0xff]
  %v201 = vld [vmem:[%s1 + $0x398] sm:$0xff]
  %v202 = vld [vmem:[%s1 + $0x3a0] sm:$0xff]
  %v203 = vld [vmem:[%s1 + $0x3a8] sm:$0xff]
  %v204 = vld [vmem:[%s1 + $0x3b0] sm:$0xff]
  %v205 = vld [vmem:[%s1 + $0x3b8] sm:$0xff]
  %v206 = vld [vmem:[%s1 + $0x3c0] sm:$0xff]
  %v207 = vld [vmem:[%s1 + $0x3c8] sm:$0xff]
  %v208 = vld [vmem:[%s1 + $0x3d0] sm:$0xff]
  %v209 = vld [vmem:[%s1 + $0x3d8] sm:$0xff]
  %v210 = vld [vmem:[%s1 + $0x3e0] sm:$0xff]
  %v211 = vld [vmem:[%s1 + $0x3e8] sm:$0xff]
  %v212 = vld [vmem:[%s1 + $0x3f0] sm:$0xff]
  %v213 = vld [vmem:[%s1 + $0x3f8] sm:$0xff]
  %v214 = vld [vmem:[%s1 + $0x400] sm:$0xff]
  %v215 = vld [vmem:[%s1 + $0x408] sm:$0xff]
  %v216 = vld [vmem:[%s1 + $0x410] sm:$0xff]
  %v217 = vld [vmem:[%s1 + $0x418] sm:$0xff]
  %v218 = vld [vmem:[%s1 + $0x420] sm:$0xff]
  %v219 = vld [vmem:[%s1 + $0x428] sm:$0xff]
  %v220 = vld [vmem:[%s1 + $0x430] sm:$0xff]
  %v221 = vld [vmem:[%s1 + $0x438] sm:$0xff]
  %v222 = vld [vmem:[%s1 + $0x440] sm:$0xff]
  %v223 = vld [vmem:[%s1 + $0x448] sm:$0xff]
  %v224 = vld [vmem:[%s1 + $0x450] sm:$0xff]
  %v225 = vld [vmem:[%s1 + $0x458] sm:$0xff]
  %v226 = vld [vmem:[%s1 + $0x460] sm:$0xff]
  %v227 = vld [vmem:[%s1 + $0x468] sm:$0xff]
  %v228 = vld [vmem:[%s1 + $0x470] sm:$0xff]
  %v229 = vld [vmem:[%s1 + $0x478] sm:$0xff]
  %v230 = vld [vmem:[%s1 + $0x480] sm:$0xff]
  %v231 = vld [vmem:[%s1 + $0x488] sm:$0xff]
  %v232 = vld [vmem:[%s1 + $0x490] sm:$0xff]
  %v233 = vld [vmem:[%s1 + $0x498] sm:$0xff]
  %v234 = vld [vmem:[%s1 + $0x4a0] sm:$0xff]
  %v235 = vld [vmem:[%s1 + $0x4a8] sm:$0xff]
  %v236 = vld [vmem:[%s1 + $0x4b0] sm:$0xff]
  %v237 = vld [vmem:[%s1 + $0x4b8] sm:$0xff]
  %v238 = vld [vmem:[%s1 + $0x4c0] sm:$0xff]
  %v239 = vld [vmem:[%s1 + $0x4c8] sm:$0xff]
  %v240 = vld [vmem:[%s1 + $0x4d0] sm:$0xff]
  %v241 = vld [vmem:[%s1 + $0x4d8] sm:$0xff]
  %v242 = vld [vmem:[%s1 + $0x4e0] sm:$0xff]
  %v243 = vld [vmem:[%s1 + $0x4e8] sm:$0xff]
  %v244 = vld [vmem:[%s1 + $0x4f0] sm:$0xff]
  %v245 = vld [vmem:[%s1 + $0x4f8] sm:$0xff]
  %v246 = vld [vmem:[%s1 + $0x500] sm:$0xff]
  %v247 = vld [vmem:[%s1 + $0x508] sm:$0xff]
  %v248 = vld [vmem:[%s1 + $0x510] sm:$0xff]
  %v249 = vld [vmem:[%s1 + $0x518] sm:$0xff]
  %v250 = vld [vmem:[%s1 + $0x520] sm:$0xff]
  %v251 = vld [vmem:[%s1 + $0x528] sm:$0xff]
  %v252 = vld [vmem:[%s1 + $0x530] sm:$0xff]
  %v253 = vld [vmem:[%s1 + $0x538] sm:$0xff]
  %v254 = vld [vmem:[%s1 + $0x540] sm:$0xff]
  %v255 = vld [vmem:[%s1 + $0x548] sm:$0xff]
  %v256 = vld [vmem:[%s1 + $0x550] sm:$0xff]
  %v257 = vld [vmem:[%s1 + $0x558] sm:$0xff]
  %v258 = vld [vmem:[%s1 + $0x560] sm:$0xff]
  %v259 = vld [vmem:[%s1 + $0x568] sm:$0xff]
  %v260 = vld [vmem:[%s1 + $0x570] sm:$0xff]
  %v261 = vld [vmem:[%s1 + $0x578] sm:$0xff]
  %v262 = vld [vmem:[%s1 + $0x580] sm:$0xff]
  %v263 = vld [vmem:[%s1 + $0x588] sm:$0xff]
  %v264 = vld [vmem:[%s1 + $0x590] sm:$0xff]
  %v265 = vld [vmem:[%s1 + $0x598] sm:$0xff]
  %v266 = vld [vmem:[%s1 + $0x5a0] sm:$0xff]
  %v267 = vld [vmem:[%s1 + $0x5a8] sm:$0xff]
  %v268 = vld [vmem:[%s1 + $0x5b0] sm:$0xff]
  %v269 = vld [vmem:[%s1 + $0x5b8] sm:$0xff]
  %v270 = vld [vmem:[%s1 + $0x5c0] sm:$0xff]
  %v271 = vld [vmem:[%s1 + $0x5c8] sm:$0xff]
  %v272 = vld [vmem:[%s1 + $0x5d0] sm:$0xff]
  %v273 = vld [vmem:[%s1 + $0x5d8] sm:$0xff]
  %v274 = vld [vmem:[%s1 + $0x5e0] sm:$0xff]
  %v275 = vld [vmem:[%s1 + $0x5e8] sm:$0xff]
  %v276 = vld [vmem:[%s1 + $0x5f0] sm:$0xff]
  %v277 = vld [vmem:[%s1 + $0x5f8] sm:$0xff]
  %v278 = vld [vmem:[%s1 + $0x600] sm:$0xff]
  %v279 = vld [vmem:[%s1 + $0x608] sm:$0xff]
  %v280 = vld [vmem:[%s1 + $0x610] sm:$0xff]
  %v281 = vld [vmem:[%s1 + $0x618] sm:$0xff]
  %v282 = vld [vmem:[%s1 + $0x620] sm:$0xff]
  %v283 = vld [vmem:[%s1 + $0x628] sm:$0xff]
  %v284 = vld [vmem:[%s1 + $0x630] sm:$0xff]
  %v285 = vld [vmem:[%s1 + $0x638] sm:$0xff]
  %v286 = vld [vmem:[%s1 + $0x640] sm:$0xff]
  %v287 = vld [vmem:[%s1 + $0x648] sm:$0xff]
  %v288 = vld [vmem:[%s1 + $0x650] sm:$0xff]
  %v289 = vld [vmem:[%s1 + $0x658] sm:$0xff]
  %v290 = vld [vmem:[%s1 + $0x660] sm:$0xff]
  %v291 = vld [vmem:[%s1 + $0x668] sm:$0xff]
  %v292 = vld [vmem:[%s1 + $0x670] sm:$0xff]
  %v293 = vld [vmem:[%s1 + $0x678] sm:$0xff]
  %v294 = vld [vmem:[%s1 + $0x680] sm:$0xff]
  %v295 = vld [vmem:[%s1 + $0x688] sm:$0xff]
  %v296 = vld [vmem:[%s1 + $0x690] sm:$0xff]
  %v297 = vld [vmem:[%s1 + $0x698] sm:$0xff]
  %v298 = vld [vmem:[%s1 + $0x6a0] sm:$0xff]
  %v299 = vld [vmem:[%s1 + $0x6a8] sm:$0xff]
  %v300 = vld [vmem:[%s1 + $0x6b0] sm:$0xff]
  %v301 = vld [vmem:[%s1 + $0x6b8] sm:$0xff]
  %v302 = vld [vmem:[%s1 + $0x6c0] sm:$0xff]
  %v303 = vld [vmem:[%s1 + $0x6c8] sm:$0xff]
  %v304 = vld [vmem:[%s1 + $0x6d0] sm:$0xff]
  %v305 = vld [vmem:[%s1 + $0x6d8] sm:$0xff]
  %v306 = vld [vmem:[%s1 + $0x6e0] sm:$0xff]
  %v307 = vld [vmem:[%s1 + $0x6e8] sm:$0xff]
  %v308 = vld [vmem:[%s1 + $0x6f0] sm:$0xff]
  %v309 = vld [vmem:[%s1 + $0x6f8] sm:$0xff]
  %v310 = vld [vmem:[%s1 + $0x700] sm:$0xff]
  %v311 = vld [vmem:[%s1 + $0x708] sm:$0xff]
  %v312 = vld [vmem:[%s1 + $0x710] sm:$0xff]
  %v313 = vld [vmem:[%s1 + $0x718] sm:$0xff]
  %v314 = vld [vmem:[%s1 + $0x720] sm:$0xff]
  %v315 = vld [vmem:[%s1 + $0x728] sm:$0xff]
  %v316 = vld [vmem:[%s1 + $0x730] sm:$0xff]
  %v317 = vld [vmem:[%s1 + $0x738] sm:$0xff]
  %v318 = vld [vmem:[%s1 + $0x740] sm:$0xff]
  %v319 = vld [vmem:[%s1 + $0x748] sm:$0xff]
  %v320 = vld [vmem:[%s1 + $0x750] sm:$0xff]
  %v321 = vld [vmem:[%s1 + $0x758] sm:$0xff]
  %v322 = vld [vmem:[%s1 + $0x760] sm:$0xff]
  %v323 = vld [vmem:[%s1 + $0x768] sm:$0xff]
  %v324 = vld [vmem:[%s1 + $0x770] sm:$0xff]
  %v325 = vld [vmem:[%s1 + $0x778] sm:$0xff]
  %v326 = vld [vmem:[%s1 + $0x780] sm:$0xff]
  %v327 = vld [vmem:[%s1 + $0x788] sm:$0xff]
  %v328 = vld [vmem:[%s1 + $0x790] sm:$0xff]
  %v329 = vld [vmem:[%s1 + $0x798] sm:$0xff]
  %v330 = vld [vmem:[%s1 + $0x7a0] sm:$0xff]
  %v331 = vld [vmem:[%s1 + $0x7a8] sm:$0xff]
  %v332 = vld [vmem:[%s1 + $0x7b0] sm:$0xff]
  %v333 = vld [vmem:[%s1 + $0x7b8] sm:$0xff]
  %v334 = vld [vmem:[%s1 + $0x7c0] sm:$0xff]
  %v335 = vld [vmem:[%s1 + $0x7c8] sm:$0xff]
  %v336 = vld [vmem:[%s1 + $0x7d0] sm:$0xff]
  %v337 = vld [vmem:[%s1 + $0x7d8] sm:$0xff]
  %v338 = vld [vmem:[%s1 + $0x7e0] sm:$0xff]
  %v339 = vld [vmem:[%s1 + $0x7e8] sm:$0xff]
  %v340 = vld [vmem:[%s1 + $0x7f0] sm:$0xff]
  %v341 = vld [vmem:[%s1 + $0x7f8] sm:$0xff]
  %v598 = vunpack.c.l.b16 %v86
  %v599 = vunpack.c.h.b16 %v86
  %v600 = vunpack.c.l.b16 %v87
  %v601 = vunpack.c.h.b16 %v87
  %v602 = vunpack.c.l.b16 %v88
  %v603 = vunpack.c.h.b16 %v88
  %v604 = vunpack.c.l.b16 %v89
  %v605 = vunpack.c.h.b16 %v89
  %v606 = vunpack.c.l.b16 %v90
  %v607 = vunpack.c.h.b16 %v90
  %v608 = vunpack.c.l.b16 %v91
  %v609 = vunpack.c.h.b16 %v91
  %v610 = vunpack.c.l.b16 %v92
  %v611 = vunpack.c.h.b16 %v92
  %v612 = vunpack.c.l.b16 %v93
  %v613 = vunpack.c.h.b16 %v93
  %v614 = vunpack.c.l.b16 %v94
  %v615 = vunpack.c.h.b16 %v94
  %v616 = vunpack.c.l.b16 %v95
  %v617 = vunpack.c.h.b16 %v95
  %v618 = vunpack.c.l.b16 %v96
  %v619 = vunpack.c.h.b16 %v96
  %v620 = vunpack.c.l.b16 %v97
  %v621 = vunpack.c.h.b16 %v97
  %v622 = vunpack.c.l.b16 %v98
  %v623 = vunpack.c.h.b16 %v98
  %v624 = vunpack.c.l.b16 %v99
  %v625 = vunpack.c.h.b16 %v99
  %v626 = vunpack.c.l.b16 %v100
  %v627 = vunpack.c.h.b16 %v100
  %v628 = vunpack.c.l.b16 %v101
  %v629 = vunpack.c.h.b16 %v101
  %v630 = vunpack.c.l.b16 %v102
  %v631 = vunpack.c.h.b16 %v102
  %v632 = vunpack.c.l.b16 %v103
  %v633 = vunpack.c.h.b16 %v103
  %v634 = vunpack.c.l.b16 %v104
  %v635 = vunpack.c.h.b16 %v104
  %v636 = vunpack.c.l.b16 %v105
  %v637 = vunpack.c.h.b16 %v105
  %v638 = vunpack.c.l.b16 %v106
  %v639 = vunpack.c.h.b16 %v106
  %v640 = vunpack.c.l.b16 %v107
  %v641 = vunpack.c.h.b16 %v107
  %v642 = vunpack.c.l.b16 %v108
  %v643 = vunpack.c.h.b16 %v108
  %v644 = vunpack.c.l.b16 %v109
  %v645 = vunpack.c.h.b16 %v109
  %v646 = vunpack.c.l.b16 %v110
  %v647 = vunpack.c.h.b16 %v110
  %v648 = vunpack.c.l.b16 %v111
  %v649 = vunpack.c.h.b16 %v111
  %v650 = vunpack.c.l.b16 %v112
  %v651 = vunpack.c.h.b16 %v112
  %v652 = vunpack.c.l.b16 %v113
  %v653 = vunpack.c.h.b16 %v113
  %v654 = vunpack.c.l.b16 %v114
  %v655 = vunpack.c.h.b16 %v114
  %v656 = vunpack.c.l.b16 %v115
  %v657 = vunpack.c.h.b16 %v115
  %v658 = vunpack.c.l.b16 %v116
  %v659 = vunpack.c.h.b16 %v116
  %v660 = vunpack.c.l.b16 %v117
  %v661 = vunpack.c.h.b16 %v117
  %v662 = vunpack.c.l.b16 %v118
  %v663 = vunpack.c.h.b16 %v118
  %v664 = vunpack.c.l.b16 %v119
  %v665 = vunpack.c.h.b16 %v119
  %v666 = vunpack.c.l.b16 %v120
  %v667 = vunpack.c.h.b16 %v120
  %v668 = vunpack.c.l.b16 %v121
  %v669 = vunpack.c.h.b16 %v121
  %v670 = vunpack.c.l.b16 %v122
  %v671 = vunpack.c.h.b16 %v122
  %v672 = vunpack.c.l.b16 %v123
  %v673 = vunpack.c.h.b16 %v123
  %v674 = vunpack.c.l.b16 %v124
  %v675 = vunpack.c.h.b16 %v124
  %v676 = vunpack.c.l.b16 %v125
  %v677 = vunpack.c.h.b16 %v125
  %v678 = vunpack.c.l.b16 %v126
  %v679 = vunpack.c.h.b16 %v126
  %v680 = vunpack.c.l.b16 %v127
  %v681 = vunpack.c.h.b16 %v127
  %v682 = vunpack.c.l.b16 %v128
  %v683 = vunpack.c.h.b16 %v128
  %v684 = vunpack.c.l.b16 %v129
  %v685 = vunpack.c.h.b16 %v129
  %v686 = vunpack.c.l.b16 %v130
  %v687 = vunpack.c.h.b16 %v130
  %v688 = vunpack.c.l.b16 %v131
  %v689 = vunpack.c.h.b16 %v131
  %v690 = vunpack.c.l.b16 %v132
  %v691 = vunpack.c.h.b16 %v132
  %v692 = vunpack.c.l.b16 %v133
  %v693 = vunpack.c.h.b16 %v133
  %v694 = vunpack.c.l.b16 %v134
  %v695 = vunpack.c.h.b16 %v134
  %v696 = vunpack.c.l.b16 %v135
  %v697 = vunpack.c.h.b16 %v135
  %v698 = vunpack.c.l.b16 %v136
  %v699 = vunpack.c.h.b16 %v136
  %v700 = vunpack.c.l.b16 %v137
  %v701 = vunpack.c.h.b16 %v137
  %v702 = vunpack.c.l.b16 %v138
  %v703 = vunpack.c.h.b16 %v138
  %v704 = vunpack.c.l.b16 %v139
  %v705 = vunpack.c.h.b16 %v139
  %v706 = vunpack.c.l.b16 %v140
  %v707 = vunpack.c.h.b16 %v140
  %v708 = vunpack.c.l.b16 %v141
  %v709 = vunpack.c.h.b16 %v141
  %v710 = vunpack.c.l.b16 %v142
  %v711 = vunpack.c.h.b16 %v142
  %v712 = vunpack.c.l.b16 %v143
  %v713 = vunpack.c.h.b16 %v143
  %v714 = vunpack.c.l.b16 %v144
  %v715 = vunpack.c.h.b16 %v144
  %v716 = vunpack.c.l.b16 %v145
  %v717 = vunpack.c.h.b16 %v145
  %v718 = vunpack.c.l.b16 %v146
  %v719 = vunpack.c.h.b16 %v146
  %v720 = vunpack.c.l.b16 %v147
  %v721 = vunpack.c.h.b16 %v147
  %v722 = vunpack.c.l.b16 %v148
  %v723 = vunpack.c.h.b16 %v148
  %v724 = vunpack.c.l.b16 %v149
  %v725 = vunpack.c.h.b16 %v149
  %v726 = vunpack.c.l.b16 %v150
  %v727 = vunpack.c.h.b16 %v150
  %v728 = vunpack.c.l.b16 %v151
  %v729 = vunpack.c.h.b16 %v151
  %v730 = vunpack.c.l.b16 %v152
  %v731 = vunpack.c.h.b16 %v152
  %v732 = vunpack.c.l.b16 %v153
  %v733 = vunpack.c.h.b16 %v153
  %v734 = vunpack.c.l.b16 %v154
  %v735 = vunpack.c.h.b16 %v154
  %v736 = vunpack.c.l.b16 %v155
  %v737 = vunpack.c.h.b16 %v155
  %v738 = vunpack.c.l.b16 %v156
  %v739 = vunpack.c.h.b16 %v156
  %v740 = vunpack.c.l.b16 %v157
  %v741 = vunpack.c.h.b16 %v157
  %v742 = vunpack.c.l.b16 %v158
  %v743 = vunpack.c.h.b16 %v158
  %v744 = vunpack.c.l.b16 %v159
  %v745 = vunpack.c.h.b16 %v159
  %v746 = vunpack.c.l.b16 %v160
  %v747 = vunpack.c.h.b16 %v160
  %v748 = vunpack.c.l.b16 %v161
  %v749 = vunpack.c.h.b16 %v161
  %v750 = vunpack.c.l.b16 %v162
  %v751 = vunpack.c.h.b16 %v162
  %v752 = vunpack.c.l.b16 %v163
  %v753 = vunpack.c.h.b16 %v163
  %v754 = vunpack.c.l.b16 %v164
  %v755 = vunpack.c.h.b16 %v164
  %v756 = vunpack.c.l.b16 %v165
  %v757 = vunpack.c.h.b16 %v165
  %v758 = vunpack.c.l.b16 %v166
  %v759 = vunpack.c.h.b16 %v166
  %v760 = vunpack.c.l.b16 %v167
  %v761 = vunpack.c.h.b16 %v167
  %v762 = vunpack.c.l.b16 %v168
  %v763 = vunpack.c.h.b16 %v168
  %v764 = vunpack.c.l.b16 %v169
  %v765 = vunpack.c.h.b16 %v169
  %v766 = vunpack.c.l.b16 %v170
  %v767 = vunpack.c.h.b16 %v170
  %v768 = vunpack.c.l.b16 %v171
  %v769 = vunpack.c.h.b16 %v171
  %v770 = vunpack.c.l.b16 %v172
  %v771 = vunpack.c.h.b16 %v172
  %v772 = vunpack.c.l.b16 %v173
  %v773 = vunpack.c.h.b16 %v173
  %v774 = vunpack.c.l.b16 %v174
  %v775 = vunpack.c.h.b16 %v174
  %v776 = vunpack.c.l.b16 %v175
  %v777 = vunpack.c.h.b16 %v175
  %v778 = vunpack.c.l.b16 %v176
  %v779 = vunpack.c.h.b16 %v176
  %v780 = vunpack.c.l.b16 %v177
  %v781 = vunpack.c.h.b16 %v177
  %v782 = vunpack.c.l.b16 %v178
  %v783 = vunpack.c.h.b16 %v178
  %v784 = vunpack.c.l.b16 %v179
  %v785 = vunpack.c.h.b16 %v179
  %v786 = vunpack.c.l.b16 %v180
  %v787 = vunpack.c.h.b16 %v180
  %v788 = vunpack.c.l.b16 %v181
  %v789 = vunpack.c.h.b16 %v181
  %v790 = vunpack.c.l.b16 %v182
  %v791 = vunpack.c.h.b16 %v182
  %v792 = vunpack.c.l.b16 %v183
  %v793 = vunpack.c.h.b16 %v183
  %v794 = vunpack.c.l.b16 %v184
  %v795 = vunpack.c.h.b16 %v184
  %v796 = vunpack.c.l.b16 %v185
  %v797 = vunpack.c.h.b16 %v185
  %v798 = vunpack.c.l.b16 %v186
  %v799 = vunpack.c.h.b16 %v186
  %v800 = vunpack.c.l.b16 %v187
  %v801 = vunpack.c.h.b16 %v187
  %v802 = vunpack.c.l.b16 %v188
  %v803 = vunpack.c.h.b16 %v188
  %v804 = vunpack.c.l.b16 %v189
  %v805 = vunpack.c.h.b16 %v189
  %v806 = vunpack.c.l.b16 %v190
  %v807 = vunpack.c.h.b16 %v190
  %v808 = vunpack.c.l.b16 %v191
  %v809 = vunpack.c.h.b16 %v191
  %v810 = vunpack.c.l.b16 %v192
  %v811 = vunpack.c.h.b16 %v192
  %v812 = vunpack.c.l.b16 %v193
  %v813 = vunpack.c.h.b16 %v193
  %v814 = vunpack.c.l.b16 %v194
  %v815 = vunpack.c.h.b16 %v194
  %v816 = vunpack.c.l.b16 %v195
  %v817 = vunpack.c.h.b16 %v195
  %v818 = vunpack.c.l.b16 %v196
  %v819 = vunpack.c.h.b16 %v196
  %v820 = vunpack.c.l.b16 %v197
  %v821 = vunpack.c.h.b16 %v197
  %v822 = vunpack.c.l.b16 %v198
  %v823 = vunpack.c.h.b16 %v198
  %v824 = vunpack.c.l.b16 %v199
  %v825 = vunpack.c.h.b16 %v199
  %v826 = vunpack.c.l.b16 %v200
  %v827 = vunpack.c.h.b16 %v200
  %v828 = vunpack.c.l.b16 %v201
  %v829 = vunpack.c.h.b16 %v201
  %v830 = vunpack.c.l.b16 %v202
  %v831 = vunpack.c.h.b16 %v202
  %v832 = vunpack.c.l.b16 %v203
  %v833 = vunpack.c.h.b16 %v203
  %v834 = vunpack.c.l.b16 %v204
  %v835 = vunpack.c.h.b16 %v204
  %v836 = vunpack.c.l.b16 %v205
  %v837 = vunpack.c.h.b16 %v205
  %v838 = vunpack.c.l.b16 %v206
  %v839 = vunpack.c.h.b16 %v206
  %v840 = vunpack.c.l.b16 %v207
  %v841 = vunpack.c.h.b16 %v207
  %v842 = vunpack.c.l.b16 %v208
  %v843 = vunpack.c.h.b16 %v208
  %v844 = vunpack.c.l.b16 %v209
  %v845 = vunpack.c.h.b16 %v209
  %v846 = vunpack.c.l.b16 %v210
  %v847 = vunpack.c.h.b16 %v210
  %v848 = vunpack.c.l.b16 %v211
  %v849 = vunpack.c.h.b16 %v211
  %v850 = vunpack.c.l.b16 %v212
  %v851 = vunpack.c.h.b16 %v212
  %v852 = vunpack.c.l.b16 %v213
  %v853 = vunpack.c.h.b16 %v213
  %v854 = vunpack.c.l.b16 %v214
  %v855 = vunpack.c.h.b16 %v214
  %v856 = vunpack.c.l.b16 %v215
  %v857 = vunpack.c.h.b16 %v215
  %v858 = vunpack.c.l.b16 %v216
  %v859 = vunpack.c.h.b16 %v216
  %v860 = vunpack.c.l.b16 %v217
  %v861 = vunpack.c.h.b16 %v217
  %v862 = vunpack.c.l.b16 %v218
  %v863 = vunpack.c.h.b16 %v218
  %v864 = vunpack.c.l.b16 %v219
  %v865 = vunpack.c.h.b16 %v219
  %v866 = vunpack.c.l.b16 %v220
  %v867 = vunpack.c.h.b16 %v220
  %v868 = vunpack.c.l.b16 %v221
  %v869 = vunpack.c.h.b16 %v221
  %v870 = vunpack.c.l.b16 %v222
  %v871 = vunpack.c.h.b16 %v222
  %v872 = vunpack.c.l.b16 %v223
  %v873 = vunpack.c.h.b16 %v223
  %v874 = vunpack.c.l.b16 %v224
  %v875 = vunpack.c.h.b16 %v224
  %v876 = vunpack.c.l.b16 %v225
  %v877 = vunpack.c.h.b16 %v225
  %v878 = vunpack.c.l.b16 %v226
  %v879 = vunpack.c.h.b16 %v226
  %v880 = vunpack.c.l.b16 %v227
  %v881 = vunpack.c.h.b16 %v227
  %v882 = vunpack.c.l.b16 %v228
  %v883 = vunpack.c.h.b16 %v228
  %v884 = vunpack.c.l.b16 %v229
  %v885 = vunpack.c.h.b16 %v229
  %v886 = vunpack.c.l.b16 %v230
  %v887 = vunpack.c.h.b16 %v230
  %v888 = vunpack.c.l.b16 %v231
  %v889 = vunpack.c.h.b16 %v231
  %v890 = vunpack.c.l.b16 %v232
  %v891 = vunpack.c.h.b16 %v232
  %v892 = vunpack.c.l.b16 %v233
  %v893 = vunpack.c.h.b16 %v233
  %v894 = vunpack.c.l.b16 %v234
  %v895 = vunpack.c.h.b16 %v234
  %v896 = vunpack.c.l.b16 %v235
  %v897 = vunpack.c.h.b16 %v235
  %v898 = vunpack.c.l.b16 %v236
  %v899 = vunpack.c.h.b16 %v236
  %v900 = vunpack.c.l.b16 %v237
  %v901 = vunpack.c.h.b16 %v237
  %v902 = vunpack.c.l.b16 %v238
  %v903 = vunpack.c.h.b16 %v238
  %v904 = vunpack.c.l.b16 %v239
  %v905 = vunpack.c.h.b16 %v239
  %v906 = vunpack.c.l.b16 %v240
  %v907 = vunpack.c.h.b16 %v240
  %v908 = vunpack.c.l.b16 %v241
  %v909 = vunpack.c.h.b16 %v241
  %v910 = vunpack.c.l.b16 %v242
  %v911 = vunpack.c.h.b16 %v242
  %v912 = vunpack.c.l.b16 %v243
  %v913 = vunpack.c.h.b16 %v243
  %v914 = vunpack.c.l.b16 %v244
  %v915 = vunpack.c.h.b16 %v244
  %v916 = vunpack.c.l.b16 %v245
  %v917 = vunpack.c.h.b16 %v245
  %v918 = vunpack.c.l.b16 %v246
  %v919 = vunpack.c.h.b16 %v246
  %v920 = vunpack.c.l.b16 %v247
  %v921 = vunpack.c.h.b16 %v247
  %v922 = vunpack.c.l.b16 %v248
  %v923 = vunpack.c.h.b16 %v248
  %v924 = vunpack.c.l.b16 %v249
  %v925 = vunpack.c.h.b16 %v249
  %v926 = vunpack.c.l.b16 %v250
  %v927 = vunpack.c.h.b16 %v250
  %v928 = vunpack.c.l.b16 %v251
  %v929 = vunpack.c.h.b16 %v251
  %v930 = vunpack.c.l.b16 %v252
  %v931 = vunpack.c.h.b16 %v252
  %v932 = vunpack.c.l.b16 %v253
  %v933 = vunpack.c.h.b16 %v253
  %v934 = vunpack.c.l.b16 %v254
  %v935 = vunpack.c.h.b16 %v254
  %v936 = vunpack.c.l.b16 %v255
  %v937 = vunpack.c.h.b16 %v255
  %v938 = vunpack.c.l.b16 %v256
  %v939 = vunpack.c.h.b16 %v256
  %v940 = vunpack.c.l.b16 %v257
  %v941 = vunpack.c.h.b16 %v257
  %v942 = vunpack.c.l.b16 %v258
  %v943 = vunpack.c.h.b16 %v258
  %v944 = vunpack.c.l.b16 %v259
  %v945 = vunpack.c.h.b16 %v259
  %v946 = vunpack.c.l.b16 %v260
  %v947 = vunpack.c.h.b16 %v260
  %v948 = vunpack.c.l.b16 %v261
  %v949 = vunpack.c.h.b16 %v261
  %v950 = vunpack.c.l.b16 %v262
  %v951 = vunpack.c.h.b16 %v262
  %v952 = vunpack.c.l.b16 %v263
  %v953 = vunpack.c.h.b16 %v263
  %v954 = vunpack.c.l.b16 %v264
  %v955 = vunpack.c.h.b16 %v264
  %v956 = vunpack.c.l.b16 %v265
  %v957 = vunpack.c.h.b16 %v265
  %v958 = vunpack.c.l.b16 %v266
  %v959 = vunpack.c.h.b16 %v266
  %v960 = vunpack.c.l.b16 %v267
  %v961 = vunpack.c.h.b16 %v267
  %v962 = vunpack.c.l.b16 %v268
  %v963 = vunpack.c.h.b16 %v268
  %v964 = vunpack.c.l.b16 %v269
  %v965 = vunpack.c.h.b16 %v269
  %v966 = vunpack.c.l.b16 %v270
  %v967 = vunpack.c.h.b16 %v270
  %v968 = vunpack.c.l.b16 %v271
  %v969 = vunpack.c.h.b16 %v271
  %v970 = vunpack.c.l.b16 %v272
  %v971 = vunpack.c.h.b16 %v272
  %v972 = vunpack.c.l.b16 %v273
  %v973 = vunpack.c.h.b16 %v273
  %v974 = vunpack.c.l.b16 %v274
  %v975 = vunpack.c.h.b16 %v274
  %v976 = vunpack.c.l.b16 %v275
  %v977 = vunpack.c.h.b16 %v275
  %v978 = vunpack.c.l.b16 %v276
  %v979 = vunpack.c.h.b16 %v276
  %v980 = vunpack.c.l.b16 %v277
  %v981 = vunpack.c.h.b16 %v277
  %v982 = vunpack.c.l.b16 %v278
  %v983 = vunpack.c.h.b16 %v278
  %v984 = vunpack.c.l.b16 %v279
  %v985 = vunpack.c.h.b16 %v279
  %v986 = vunpack.c.l.b16 %v280
  %v987 = vunpack.c.h.b16 %v280
  %v988 = vunpack.c.l.b16 %v281
  %v989 = vunpack.c.h.b16 %v281
  %v990 = vunpack.c.l.b16 %v282
  %v991 = vunpack.c.h.b16 %v282
  %v992 = vunpack.c.l.b16 %v283
  %v993 = vunpack.c.h.b16 %v283
  %v994 = vunpack.c.l.b16 %v284
  %v995 = vunpack.c.h.b16 %v284
  %v996 = vunpack.c.l.b16 %v285
  %v997 = vunpack.c.h.b16 %v285
  %v998 = vunpack.c.l.b16 %v286
  %v999 = vunpack.c.h.b16 %v286
  %v1000 = vunpack.c.l.b16 %v287
  %v1001 = vunpack.c.h.b16 %v287
  %v1002 = vunpack.c.l.b16 %v288
  %v1003 = vunpack.c.h.b16 %v288
  %v1004 = vunpack.c.l.b16 %v289
  %v1005 = vunpack.c.h.b16 %v289
  %v1006 = vunpack.c.l.b16 %v290
  %v1007 = vunpack.c.h.b16 %v290
  %v1008 = vunpack.c.l.b16 %v291
  %v1009 = vunpack.c.h.b16 %v291
  %v1010 = vunpack.c.l.b16 %v292
  %v1011 = vunpack.c.h.b16 %v292
  %v1012 = vunpack.c.l.b16 %v293
  %v1013 = vunpack.c.h.b16 %v293
  %v1014 = vunpack.c.l.b16 %v294
  %v1015 = vunpack.c.h.b16 %v294
  %v1016 = vunpack.c.l.b16 %v295
  %v1017 = vunpack.c.h.b16 %v295
  %v1018 = vunpack.c.l.b16 %v296
  %v1019 = vunpack.c.h.b16 %v296
  %v1020 = vunpack.c.l.b16 %v297
  %v1021 = vunpack.c.h.b16 %v297
  %v1022 = vunpack.c.l.b16 %v298
  %v1023 = vunpack.c.h.b16 %v298
  %v1024 = vunpack.c.l.b16 %v299
  %v1025 = vunpack.c.h.b16 %v299
  %v1026 = vunpack.c.l.b16 %v300
  %v1027 = vunpack.c.h.b16 %v300
  %v1028 = vunpack.c.l.b16 %v301
  %v1029 = vunpack.c.h.b16 %v301
  %v1030 = vunpack.c.l.b16 %v302
  %v1031 = vunpack.c.h.b16 %v302
  %v1032 = vunpack.c.l.b16 %v303
  %v1033 = vunpack.c.h.b16 %v303
  %v1034 = vunpack.c.l.b16 %v304
  %v1035 = vunpack.c.h.b16 %v304
  %v1036 = vunpack.c.l.b16 %v305
  %v1037 = vunpack.c.h.b16 %v305
  %v1038 = vunpack.c.l.b16 %v306
  %v1039 = vunpack.c.h.b16 %v306
  %v1040 = vunpack.c.l.b16 %v307
  %v1041 = vunpack.c.h.b16 %v307
  %v1042 = vunpack.c.l.b16 %v308
  %v1043 = vunpack.c.h.b16 %v308
  %v1044 = vunpack.c.l.b16 %v309
  %v1045 = vunpack.c.h.b16 %v309
  %v1046 = vunpack.c.l.b16 %v310
  %v1047 = vunpack.c.h.b16 %v310
  %v1048 = vunpack.c.l.b16 %v311
  %v1049 = vunpack.c.h.b16 %v311
  %v1050 = vunpack.c.l.b16 %v312
  %v1051 = vunpack.c.h.b16 %v312
  %v1052 = vunpack.c.l.b16 %v313
  %v1053 = vunpack.c.h.b16 %v313
  %v1054 = vunpack.c.l.b16 %v314
  %v1055 = vunpack.c.h.b16 %v314
  %v1056 = vunpack.c.l.b16 %v315
  %v1057 = vunpack.c.h.b16 %v315
  %v1058 = vunpack.c.l.b16 %v316
  %v1059 = vunpack.c.h.b16 %v316
  %v1060 = vunpack.c.l.b16 %v317
  %v1061 = vunpack.c.h.b16 %v317
  %v1062 = vunpack.c.l.b16 %v318
  %v1063 = vunpack.c.h.b16 %v318
  %v1064 = vunpack.c.l.b16 %v319
  %v1065 = vunpack.c.h.b16 %v319
  %v1066 = vunpack.c.l.b16 %v320
  %v1067 = vunpack.c.h.b16 %v320
  %v1068 = vunpack.c.l.b16 %v321
  %v1069 = vunpack.c.h.b16 %v321
  %v1070 = vunpack.c.l.b16 %v322
  %v1071 = vunpack.c.h.b16 %v322
  %v1072 = vunpack.c.l.b16 %v323
  %v1073 = vunpack.c.h.b16 %v323
  %v1074 = vunpack.c.l.b16 %v324
  %v1075 = vunpack.c.h.b16 %v324
  %v1076 = vunpack.c.l.b16 %v325
  %v1077 = vunpack.c.h.b16 %v325
  %v1078 = vunpack.c.l.b16 %v326
  %v1079 = vunpack.c.h.b16 %v326
  %v1080 = vunpack.c.l.b16 %v327
  %v1081 = vunpack.c.h.b16 %v327
  %v1082 = vunpack.c.l.b16 %v328
  %v1083 = vunpack.c.h.b16 %v328
  %v1084 = vunpack.c.l.b16 %v329
  %v1085 = vunpack.c.h.b16 %v329
  %v1086 = vunpack.c.l.b16 %v330
  %v1087 = vunpack.c.h.b16 %v330
  %v1088 = vunpack.c.l.b16 %v331
  %v1089 = vunpack.c.h.b16 %v331
  %v1090 = vunpack.c.l.b16 %v332
  %v1091 = vunpack.c.h.b16 %v332
  %v1092 = vunpack.c.l.b16 %v333
  %v1093 = vunpack.c.h.b16 %v333
  %v1094 = vunpack.c.l.b16 %v334
  %v1095 = vunpack.c.h.b16 %v334
  %v1096 = vunpack.c.l.b16 %v335
  %v1097 = vunpack.c.h.b16 %v335
  %v1098 = vunpack.c.l.b16 %v336
  %v1099 = vunpack.c.h.b16 %v336
  %v1100 = vunpack.c.l.b16 %v337
  %v1101 = vunpack.c.h.b16 %v337
  %v1102 = vunpack.c.l.b16 %v338
  %v1103 = vunpack.c.h.b16 %v338
  %v1104 = vunpack.c.l.b16 %v339
  %v1105 = vunpack.c.h.b16 %v339
  %v1106 = vunpack.c.l.b16 %v340
  %v1107 = vunpack.c.h.b16 %v340
  %v1108 = vunpack.c.l.b16 %v341
  %v1109 = vunpack.c.h.b16 %v341
  %v1110 = vpack.c.b16 %v602, %v598
  %v1111 = vpack.c.b16 %v603, %v599
  %v1112 = vpack.c.b16 %v604, %v600
  %v1113 = vpack.c.b16 %v605, %v601
  %v1114 = vpack.c.b16 %v610, %v606
  %v1115 = vpack.c.b16 %v611, %v607
  %v1116 = vpack.c.b16 %v612, %v608
  %v1117 = vpack.c.b16 %v613, %v609
  %v1118 = vpack.c.b16 %v618, %v614
  %v1119 = vpack.c.b16 %v619, %v615
  %v1120 = vpack.c.b16 %v620, %v616
  %v1121 = vpack.c.b16 %v621, %v617
  %v1122 = vpack.c.b16 %v626, %v622
  %v1123 = vpack.c.b16 %v627, %v623
  %v1124 = vpack.c.b16 %v628, %v624
  %v1125 = vpack.c.b16 %v629, %v625
  %v1126 = vpack.c.b16 %v634, %v630
  %v1127 = vpack.c.b16 %v635, %v631
  %v1128 = vpack.c.b16 %v636, %v632
  %v1129 = vpack.c.b16 %v637, %v633
  %v1130 = vpack.c.b16 %v642, %v638
  %v1131 = vpack.c.b16 %v643, %v639
  %v1132 = vpack.c.b16 %v644, %v640
  %v1133 = vpack.c.b16 %v645, %v641
  %v1134 = vpack.c.b16 %v650, %v646
  %v1135 = vpack.c.b16 %v651, %v647
  %v1136 = vpack.c.b16 %v652, %v648
  %v1137 = vpack.c.b16 %v653, %v649
  %v1138 = vpack.c.b16 %v658, %v654
  %v1139 = vpack.c.b16 %v659, %v655
  %v1140 = vpack.c.b16 %v660, %v656
  %v1141 = vpack.c.b16 %v661, %v657
  %v1142 = vpack.c.b16 %v666, %v662
  %v1143 = vpack.c.b16 %v667, %v663
  %v1144 = vpack.c.b16 %v668, %v664
  %v1145 = vpack.c.b16 %v669, %v665
  %v1146 = vpack.c.b16 %v674, %v670
  %v1147 = vpack.c.b16 %v675, %v671
  %v1148 = vpack.c.b16 %v676, %v672
  %v1149 = vpack.c.b16 %v677, %v673
  %v1150 = vpack.c.b16 %v682, %v678
  %v1151 = vpack.c.b16 %v683, %v679
  %v1152 = vpack.c.b16 %v684, %v680
  %v1153 = vpack.c.b16 %v685, %v681
  %v1154 = vpack.c.b16 %v690, %v686
  %v1155 = vpack.c.b16 %v691, %v687
  %v1156 = vpack.c.b16 %v692, %v688
  %v1157 = vpack.c.b16 %v693, %v689
  %v1158 = vpack.c.b16 %v698, %v694
  %v1159 = vpack.c.b16 %v699, %v695
  %v1160 = vpack.c.b16 %v700, %v696
  %v1161 = vpack.c.b16 %v701, %v697
  %v1162 = vpack.c.b16 %v706, %v702
  %v1163 = vpack.c.b16 %v707, %v703
  %v1164 = vpack.c.b16 %v708, %v704
  %v1165 = vpack.c.b16 %v709, %v705
  %v1166 = vpack.c.b16 %v714, %v710
  %v1167 = vpack.c.b16 %v715, %v711
  %v1168 = vpack.c.b16 %v716, %v712
  %v1169 = vpack.c.b16 %v717, %v713
  %v1170 = vpack.c.b16 %v722, %v718
  %v1171 = vpack.c.b16 %v723, %v719
  %v1172 = vpack.c.b16 %v724, %v720
  %v1173 = vpack.c.b16 %v725, %v721
  %v1174 = vpack.c.b16 %v730, %v726
  %v1175 = vpack.c.b16 %v731, %v727
  %v1176 = vpack.c.b16 %v732, %v728
  %v1177 = vpack.c.b16 %v733, %v729
  %v1178 = vpack.c.b16 %v738, %v734
  %v1179 = vpack.c.b16 %v739, %v735
  %v1180 = vpack.c.b16 %v740, %v736
  %v1181 = vpack.c.b16 %v741, %v737
  %v1182 = vpack.c.b16 %v746, %v742
  %v1183 = vpack.c.b16 %v747, %v743
  %v1184 = vpack.c.b16 %v748, %v744
  %v1185 = vpack.c.b16 %v749, %v745
  %v1186 = vpack.c.b16 %v754, %v750
  %v1187 = vpack.c.b16 %v755, %v751
  %v1188 = vpack.c.b16 %v756, %v752
  %v1189 = vpack.c.b16 %v757, %v753
  %v1190 = vpack.c.b16 %v762, %v758
  %v1191 = vpack.c.b16 %v763, %v759
  %v1192 = vpack.c.b16 %v764, %v760
  %v1193 = vpack.c.b16 %v765, %v761
  %v1194 = vpack.c.b16 %v770, %v766
  %v1195 = vpack.c.b16 %v771, %v767
  %v1196 = vpack.c.b16 %v772, %v768
  %v1197 = vpack.c.b16 %v773, %v769
  %v1198 = vpack.c.b16 %v778, %v774
  %v1199 = vpack.c.b16 %v779, %v775
  %v1200 = vpack.c.b16 %v780, %v776
  %v1201 = vpack.c.b16 %v781, %v777
  %v1202 = vpack.c.b16 %v786, %v782
  %v1203 = vpack.c.b16 %v787, %v783
  %v1204 = vpack.c.b16 %v788, %v784
  %v1205 = vpack.c.b16 %v789, %v785
  %v1206 = vpack.c.b16 %v794, %v790
  %v1207 = vpack.c.b16 %v795, %v791
  %v1208 = vpack.c.b16 %v796, %v792
  %v1209 = vpack.c.b16 %v797, %v793
  %v1210 = vpack.c.b16 %v802, %v798
  %v1211 = vpack.c.b16 %v803, %v799
  %v1212 = vpack.c.b16 %v804, %v800
  %v1213 = vpack.c.b16 %v805, %v801
  %v1214 = vpack.c.b16 %v810, %v806
  %v1215 = vpack.c.b16 %v811, %v807
  %v1216 = vpack.c.b16 %v812, %v808
  %v1217 = vpack.c.b16 %v813, %v809
  %v1218 = vpack.c.b16 %v818, %v814
  %v1219 = vpack.c.b16 %v819, %v815
  %v1220 = vpack.c.b16 %v820, %v816
  %v1221 = vpack.c.b16 %v821, %v817
  %v1222 = vpack.c.b16 %v826, %v822
  %v1223 = vpack.c.b16 %v827, %v823
  %v1224 = vpack.c.b16 %v828, %v824
  %v1225 = vpack.c.b16 %v829, %v825
  %v1226 = vpack.c.b16 %v834, %v830
  %v1227 = vpack.c.b16 %v835, %v831
  %v1228 = vpack.c.b16 %v836, %v832
  %v1229 = vpack.c.b16 %v837, %v833
  %v1230 = vpack.c.b16 %v842, %v838
  %v1231 = vpack.c.b16 %v843, %v839
  %v1232 = vpack.c.b16 %v844, %v840
  %v1233 = vpack.c.b16 %v845, %v841
  %v1234 = vpack.c.b16 %v850, %v846
  %v1235 = vpack.c.b16 %v851, %v847
  %v1236 = vpack.c.b16 %v852, %v848
  %v1237 = vpack.c.b16 %v853, %v849
  %v1238 = vpack.c.b16 %v858, %v854
  %v1239 = vpack.c.b16 %v859, %v855
  %v1240 = vpack.c.b16 %v860, %v856
  %v1241 = vpack.c.b16 %v861, %v857
  %v1242 = vpack.c.b16 %v866, %v862
  %v1243 = vpack.c.b16 %v867, %v863
  %v1244 = vpack.c.b16 %v868, %v864
  %v1245 = vpack.c.b16 %v869, %v865
  %v1246 = vpack.c.b16 %v874, %v870
  %v1247 = vpack.c.b16 %v875, %v871
  %v1248 = vpack.c.b16 %v876, %v872
  %v1249 = vpack.c.b16 %v877, %v873
  %v1250 = vpack.c.b16 %v882, %v878
  %v1251 = vpack.c.b16 %v883, %v879
  %v1252 = vpack.c.b16 %v884, %v880
  %v1253 = vpack.c.b16 %v885, %v881
  %v1254 = vpack.c.b16 %v890, %v886
  %v1255 = vpack.c.b16 %v891, %v887
  %v1256 = vpack.c.b16 %v892, %v888
  %v1257 = vpack.c.b16 %v893, %v889
  %v1258 = vpack.c.b16 %v898, %v894
  %v1259 = vpack.c.b16 %v899, %v895
  %v1260 = vpack.c.b16 %v900, %v896
  %v1261 = vpack.c.b16 %v901, %v897
  %v1262 = vpack.c.b16 %v906, %v902
  %v1263 = vpack.c.b16 %v907, %v903
  %v1264 = vpack.c.b16 %v908, %v904
  %v1265 = vpack.c.b16 %v909, %v905
  %v1266 = vpack.c.b16 %v914, %v910
  %v1267 = vpack.c.b16 %v915, %v911
  %v1268 = vpack.c.b16 %v916, %v912
  %v1269 = vpack.c.b16 %v917, %v913
  %v1270 = vpack.c.b16 %v922, %v918
  %v1271 = vpack.c.b16 %v923, %v919
  %v1272 = vpack.c.b16 %v924, %v920
  %v1273 = vpack.c.b16 %v925, %v921
  %v1274 = vpack.c.b16 %v930, %v926
  %v1275 = vpack.c.b16 %v931, %v927
  %v1276 = vpack.c.b16 %v932, %v928
  %v1277 = vpack.c.b16 %v933, %v929
  %v1278 = vpack.c.b16 %v938, %v934
  %v1279 = vpack.c.b16 %v939, %v935
  %v1280 = vpack.c.b16 %v940, %v936
  %v1281 = vpack.c.b16 %v941, %v937
  %v1282 = vpack.c.b16 %v946, %v942
  %v1283 = vpack.c.b16 %v947, %v943
  %v1284 = vpack.c.b16 %v948, %v944
  %v1285 = vpack.c.b16 %v949, %v945
  %v1286 = vpack.c.b16 %v954, %v950
  %v1287 = vpack.c.b16 %v955, %v951
  %v1288 = vpack.c.b16 %v956, %v952
  %v1289 = vpack.c.b16 %v957, %v953
  %v1290 = vpack.c.b16 %v962, %v958
  %v1291 = vpack.c.b16 %v963, %v959
  %v1292 = vpack.c.b16 %v964, %v960
  %v1293 = vpack.c.b16 %v965, %v961
  %v1294 = vpack.c.b16 %v970, %v966
  %v1295 = vpack.c.b16 %v971, %v967
  %v1296 = vpack.c.b16 %v972, %v968
  %v1297 = vpack.c.b16 %v973, %v969
  %v1298 = vpack.c.b16 %v978, %v974
  %v1299 = vpack.c.b16 %v979, %v975
  %v1300 = vpack.c.b16 %v980, %v976
  %v1301 = vpack.c.b16 %v981, %v977
  %v1302 = vpack.c.b16 %v986, %v982
  %v1303 = vpack.c.b16 %v987, %v983
  %v1304 = vpack.c.b16 %v988, %v984
  %v1305 = vpack.c.b16 %v989, %v985
  %v1306 = vpack.c.b16 %v994, %v990
  %v1307 = vpack.c.b16 %v995, %v991
  %v1308 = vpack.c.b16 %v996, %v992
  %v1309 = vpack.c.b16 %v997, %v993
  %v1310 = vpack.c.b16 %v1002, %v998
  %v1311 = vpack.c.b16 %v1003, %v999
  %v1312 = vpack.c.b16 %v1004, %v1000
  %v1313 = vpack.c.b16 %v1005, %v1001
  %v1314 = vpack.c.b16 %v1010, %v1006
  %v1315 = vpack.c.b16 %v1011, %v1007
  %v1316 = vpack.c.b16 %v1012, %v1008
  %v1317 = vpack.c.b16 %v1013, %v1009
  %v1318 = vpack.c.b16 %v1018, %v1014
  %v1319 = vpack.c.b16 %v1019, %v1015
  %v1320 = vpack.c.b16 %v1020, %v1016
  %v1321 = vpack.c.b16 %v1021, %v1017
  %v1322 = vpack.c.b16 %v1026, %v1022
  %v1323 = vpack.c.b16 %v1027, %v1023
  %v1324 = vpack.c.b16 %v1028, %v1024
  %v1325 = vpack.c.b16 %v1029, %v1025
  %v1326 = vpack.c.b16 %v1034, %v1030
  %v1327 = vpack.c.b16 %v1035, %v1031
  %v1328 = vpack.c.b16 %v1036, %v1032
  %v1329 = vpack.c.b16 %v1037, %v1033
  %v1330 = vpack.c.b16 %v1042, %v1038
  %v1331 = vpack.c.b16 %v1043, %v1039
  %v1332 = vpack.c.b16 %v1044, %v1040
  %v1333 = vpack.c.b16 %v1045, %v1041
  %v1334 = vpack.c.b16 %v1050, %v1046
  %v1335 = vpack.c.b16 %v1051, %v1047
  %v1336 = vpack.c.b16 %v1052, %v1048
  %v1337 = vpack.c.b16 %v1053, %v1049
  %v1338 = vpack.c.b16 %v1058, %v1054
  %v1339 = vpack.c.b16 %v1059, %v1055
  %v1340 = vpack.c.b16 %v1060, %v1056
  %v1341 = vpack.c.b16 %v1061, %v1057
  %v1342 = vpack.c.b16 %v1066, %v1062
  %v1343 = vpack.c.b16 %v1067, %v1063
  %v1344 = vpack.c.b16 %v1068, %v1064
  %v1345 = vpack.c.b16 %v1069, %v1065
  %v1346 = vpack.c.b16 %v1074, %v1070
  %v1347 = vpack.c.b16 %v1075, %v1071
  %v1348 = vpack.c.b16 %v1076, %v1072
  %v1349 = vpack.c.b16 %v1077, %v1073
  %v1350 = vpack.c.b16 %v1082, %v1078
  %v1351 = vpack.c.b16 %v1083, %v1079
  %v1352 = vpack.c.b16 %v1084, %v1080
  %v1353 = vpack.c.b16 %v1085, %v1081
  %v1354 = vpack.c.b16 %v1090, %v1086
  %v1355 = vpack.c.b16 %v1091, %v1087
  %v1356 = vpack.c.b16 %v1092, %v1088
  %v1357 = vpack.c.b16 %v1093, %v1089
  %v1358 = vpack.c.b16 %v1098, %v1094
  %v1359 = vpack.c.b16 %v1099, %v1095
  %v1360 = vpack.c.b16 %v1100, %v1096
  %v1361 = vpack.c.b16 %v1101, %v1097
  %v1362 = vpack.c.b16 %v1106, %v1102
  %v1363 = vpack.c.b16 %v1107, %v1103
  %v1364 = vpack.c.b16 %v1108, %v1104
  %v1365 = vpack.c.b16 %v1109, %v1105
  %1622 = vmatprep.subr.bf16.mxu0 %v1111
  %1623 = vmatpush1.bf16.msra.mxu0 %v1110
  %1624 = vmatprep.subr.bf16.mxu0 %v1115
  %1625 = vmatpush1.bf16.msra.mxu0 %v1114
  %1626 = vmatprep.subr.bf16.mxu0 %v1119
  %1627 = vmatpush1.bf16.msra.mxu0 %v1118
  %1628 = vmatprep.subr.bf16.mxu0 %v1123
  %1629 = vmatpush1.bf16.msra.mxu0 %v1122
  %1630 = vmatprep.subr.bf16.mxu0 %v1127
  %1631 = vmatpush1.bf16.msra.mxu0 %v1126
  %1632 = vmatprep.subr.bf16.mxu0 %v1131
  %1633 = vmatpush1.bf16.msra.mxu0 %v1130
  %1634 = vmatprep.subr.bf16.mxu0 %v1135
  %1635 = vmatpush1.bf16.msra.mxu0 %v1134
  %1636 = vmatprep.subr.bf16.mxu0 %v1139
  %1637 = vmatpush1.bf16.msra.mxu0 %v1138
  %1638 = vmatprep.subr.bf16.mxu0 %v1143
  %1639 = vmatpush1.bf16.msra.mxu0 %v1142
  %1640 = vmatprep.subr.bf16.mxu0 %v1147
  %1641 = vmatpush1.bf16.msra.mxu0 %v1146
  %1642 = vmatprep.subr.bf16.mxu0 %v1151
  %1643 = vmatpush1.bf16.msra.mxu0 %v1150
  %1644 = vmatprep.subr.bf16.mxu0 %v1155
  %1645 = vmatpush1.bf16.msra.mxu0 %v1154
  %1646 = vmatprep.subr.bf16.mxu0 %v1159
  %1647 = vmatpush1.bf16.msra.mxu0 %v1158
  %1648 = vmatprep.subr.bf16.mxu0 %v1163
  %1649 = vmatpush1.bf16.msra.mxu0 %v1162
  %1650 = vmatprep.subr.bf16.mxu0 %v1167
  %1651 = vmatpush1.bf16.msra.mxu0 %v1166
  %1652 = vmatprep.subr.bf16.mxu0 %v1171
  %1653 = vmatpush1.bf16.msra.mxu0 %v1170
  %1654 = vmatprep.mubr.bf16.mxu0 %v79
  %1655 = vmatmul.mubr.bf16.gmra.mrb[0].mxu0 %v78
  %v1656 = vpop.f32.mrb[0].mxu0
  %v1657 = vadd.f32 0.0, %v1656
  %v1658 = vpop.f32.mrb[0].mxu0
  %v1659 = vadd.f32 0.0, %v1658
  %v1660 = vpop.f32.mrb[0].mxu0
  %v1661 = vpop.f32.mrb[0].mxu0
  %1662 = vdwg.mxu0
  %1663 = vmatprep.subr.bf16.mxu0 %v1175
  %1664 = vmatpush1.bf16.msra.mxu0 %v1174
  %1665 = vmatprep.subr.bf16.mxu0 %v1179
  %1666 = vmatpush1.bf16.msra.mxu0 %v1178
  %1667 = vmatprep.subr.bf16.mxu0 %v1183
  %1668 = vmatpush1.bf16.msra.mxu0 %v1182
  %1669 = vmatprep.subr.bf16.mxu0 %v1187
  %1670 = vmatpush1.bf16.msra.mxu0 %v1186
  %1671 = vmatprep.subr.bf16.mxu0 %v1191
  %1672 = vmatpush1.bf16.msra.mxu0 %v1190
  %1673 = vmatprep.subr.bf16.mxu0 %v1195
  %1674 = vmatpush1.bf16.msra.mxu0 %v1194
  %1675 = vmatprep.subr.bf16.mxu0 %v1199
  %1676 = vmatpush1.bf16.msra.mxu0 %v1198
  %1677 = vmatprep.subr.bf16.mxu0 %v1203
  %1678 = vmatpush1.bf16.msra.mxu0 %v1202
  %1679 = vmatprep.subr.bf16.mxu0 %v1207
  %1680 = vmatpush1.bf16.msra.mxu0 %v1206
  %1681 = vmatprep.subr.bf16.mxu0 %v1211
  %1682 = vmatpush1.bf16.msra.mxu0 %v1210
  %1683 = vmatprep.subr.bf16.mxu0 %v1215
  %1684 = vmatpush1.bf16.msra.mxu0 %v1214
  %1685 = vmatprep.subr.bf16.mxu0 %v1219
  %1686 = vmatpush1.bf16.msra.mxu0 %v1218
  %1687 = vmatprep.subr.bf16.mxu0 %v1223
  %1688 = vmatpush1.bf16.msra.mxu0 %v1222
  %1689 = vmatprep.subr.bf16.mxu0 %v1227
  %1690 = vmatpush1.bf16.msra.mxu0 %v1226
  %1691 = vmatprep.subr.bf16.mxu0 %v1231
  %1692 = vmatpush1.bf16.msra.mxu0 %v1230
  %1693 = vmatprep.subr.bf16.mxu0 %v1235
  %1694 = vmatpush1.bf16.msra.mxu0 %v1234
  %1695 = vmatprep.mubr.bf16.mxu0 %v81
  %1696 = vmatmul.mubr.bf16.gmra.mrb[0].mxu0 %v80
  %v1697 = vpop.f32.mrb[0].mxu0
  %v1698 = vadd.f32 %v1657, %v1697
  %v1699 = vpop.f32.mrb[0].mxu0
  %v1700 = vadd.f32 %v1659, %v1699
  %v1701 = vpop.f32.mrb[0].mxu0
  %v1702 = vpop.f32.mrb[0].mxu0
  %1703 = vdwg.mxu0
  %1704 = vmatprep.subr.bf16.mxu0 %v1239
  %1705 = vmatpush1.bf16.msra.mxu0 %v1238
  %1706 = vmatprep.subr.bf16.mxu0 %v1243
  %1707 = vmatpush1.bf16.msra.mxu0 %v1242
  %1708 = vmatprep.subr.bf16.mxu0 %v1247
  %1709 = vmatpush1.bf16.msra.mxu0 %v1246
  %1710 = vmatprep.subr.bf16.mxu0 %v1251
  %1711 = vmatpush1.bf16.msra.mxu0 %v1250
  %1712 = vmatprep.subr.bf16.mxu0 %v1255
  %1713 = vmatpush1.bf16.msra.mxu0 %v1254
  %1714 = vmatprep.subr.bf16.mxu0 %v1259
  %1715 = vmatpush1.bf16.msra.mxu0 %v1258
  %1716 = vmatprep.subr.bf16.mxu0 %v1263
  %1717 = vmatpush1.bf16.msra.mxu0 %v1262
  %1718 = vmatprep.subr.bf16.mxu0 %v1267
  %1719 = vmatpush1.bf16.msra.mxu0 %v1266
  %1720 = vmatprep.subr.bf16.mxu0 %v1271
  %1721 = vmatpush1.bf16.msra.mxu0 %v1270
  %1722 = vmatprep.subr.bf16.mxu0 %v1275
  %1723 = vmatpush1.bf16.msra.mxu0 %v1274
  %1724 = vmatprep.subr.bf16.mxu0 %v1279
  %1725 = vmatpush1.bf16.msra.mxu0 %v1278
  %1726 = vmatprep.subr.bf16.mxu0 %v1283
  %1727 = vmatpush1.bf16.msra.mxu0 %v1282
  %1728 = vmatprep.subr.bf16.mxu0 %v1287
  %1729 = vmatpush1.bf16.msra.mxu0 %v1286
  %1730 = vmatprep.subr.bf16.mxu0 %v1291
  %1731 = vmatpush1.bf16.msra.mxu0 %v1290
  %1732 = vmatprep.subr.bf16.mxu0 %v1295
  %1733 = vmatpush1.bf16.msra.mxu0 %v1294
  %1734 = vmatprep.subr.bf16.mxu0 %v1299
  %1735 = vmatpush1.bf16.msra.mxu0 %v1298
  %1736 = vmatprep.mubr.bf16.mxu0 %v83
  %1737 = vmatmul.mubr.bf16.gmra.mrb[0].mxu0 %v82
  %v1738 = vpop.f32.mrb[0].mxu0
  %v1739 = vadd.f32 %v1698, %v1738
  %v1740 = vpop.f32.mrb[0].mxu0
  %v1741 = vadd.f32 %v1700, %v1740
  %v1742 = vpop.f32.mrb[0].mxu0
  %v1743 = vpop.f32.mrb[0].mxu0
  %1744 = vdwg.mxu0
  %1745 = vmatprep.subr.bf16.mxu0 %v1303
  %1746 = vmatpush1.bf16.msra.mxu0 %v1302
  %1747 = vmatprep.subr.bf16.mxu0 %v1307
  %1748 = vmatpush1.bf16.msra.mxu0 %v1306
  %1749 = vmatprep.subr.bf16.mxu0 %v1311
  %1750 = vmatpush1.bf16.msra.mxu0 %v1310
  %1751 = vmatprep.subr.bf16.mxu0 %v1315
  %1752 = vmatpush1.bf16.msra.mxu0 %v1314
  %1753 = vmatprep.subr.bf16.mxu0 %v1319
  %1754 = vmatpush1.bf16.msra.mxu0 %v1318
  %1755 = vmatprep.subr.bf16.mxu0 %v1323
  %1756 = vmatpush1.bf16.msra.mxu0 %v1322
  %1757 = vmatprep.subr.bf16.mxu0 %v1327
  %1758 = vmatpush1.bf16.msra.mxu0 %v1326
  %1759 = vmatprep.subr.bf16.mxu0 %v1331
  %1760 = vmatpush1.bf16.msra.mxu0 %v1330
  %1761 = vmatprep.subr.bf16.mxu0 %v1335
  %1762 = vmatpush1.bf16.msra.mxu0 %v1334
  %1763 = vmatprep.subr.bf16.mxu0 %v1339
  %1764 = vmatpush1.bf16.msra.mxu0 %v1338
  %1765 = vmatprep.subr.bf16.mxu0 %v1343
  %1766 = vmatpush1.bf16.msra.mxu0 %v1342
  %1767 = vmatprep.subr.bf16.mxu0 %v1347
  %1768 = vmatpush1.bf16.msra.mxu0 %v1346
  %1769 = vmatprep.subr.bf16.mxu0 %v1351
  %1770 = vmatpush1.bf16.msra.mxu0 %v1350
  %1771 = vmatprep.subr.bf16.mxu0 %v1355
  %1772 = vmatpush1.bf16.msra.mxu0 %v1354
  %1773 = vmatprep.subr.bf16.mxu0 %v1359
  %1774 = vmatpush1.bf16.msra.mxu0 %v1358
  %1775 = vmatprep.subr.bf16.mxu0 %v1363
  %1776 = vmatpush1.bf16.msra.mxu0 %v1362
  %1777 = vmatprep.mubr.bf16.mxu0 %v85
  %1778 = vmatmul.mubr.bf16.gmra.mrb[0].mxu0 %v84
  %v1779 = vpop.f32.mrb[0].mxu0
  %v1780 = vadd.f32 %v1739, %v1779
  %v1781 = vpop.f32.mrb[0].mxu0
  %v1782 = vadd.f32 %v1741, %v1781
  %v1783 = vpop.f32.mrb[0].mxu0
  %v1784 = vpop.f32.mrb[0].mxu0
  %1785 = vdwg.mxu0
  %1786 = vmatprep.subr.bf16.mxu0 %v1113
  %1787 = vmatpush1.bf16.msra.mxu0 %v1112
  %1788 = vmatprep.subr.bf16.mxu0 %v1117
  %1789 = vmatpush1.bf16.msra.mxu0 %v1116
  %1790 = vmatprep.subr.bf16.mxu0 %v1121
  %1791 = vmatpush1.bf16.msra.mxu0 %v1120
  %1792 = vmatprep.subr.bf16.mxu0 %v1125
  %1793 = vmatpush1.bf16.msra.mxu0 %v1124
  %1794 = vmatprep.subr.bf16.mxu0 %v1129
  %1795 = vmatpush1.bf16.msra.mxu0 %v1128
  %1796 = vmatprep.subr.bf16.mxu0 %v1133
  %1797 = vmatpush1.bf16.msra.mxu0 %v1132
  %1798 = vmatprep.subr.bf16.mxu0 %v1137
  %1799 = vmatpush1.bf16.msra.mxu0 %v1136
  %1800 = vmatprep.subr.bf16.mxu0 %v1141
  %1801 = vmatpush1.bf16.msra.mxu0 %v1140
  %1802 = vmatprep.subr.bf16.mxu0 %v1145
  %1803 = vmatpush1.bf16.msra.mxu0 %v1144
  %1804 = vmatprep.subr.bf16.mxu0 %v1149
  %1805 = vmatpush1.bf16.msra.mxu0 %v1148
  %1806 = vmatprep.subr.bf16.mxu0 %v1153
  %1807 = vmatpush1.bf16.msra.mxu0 %v1152
  %1808 = vmatprep.subr.bf16.mxu0 %v1157
  %1809 = vmatpush1.bf16.msra.mxu0 %v1156
  %1810 = vmatprep.subr.bf16.mxu0 %v1161
  %1811 = vmatpush1.bf16.msra.mxu0 %v1160
  %1812 = vmatprep.subr.bf16.mxu0 %v1165
  %1813 = vmatpush1.bf16.msra.mxu0 %v1164
  %1814 = vmatprep.subr.bf16.mxu0 %v1169
  %1815 = vmatpush1.bf16.msra.mxu0 %v1168
  %1816 = vmatprep.subr.bf16.mxu0 %v1173
  %1817 = vmatpush1.bf16.msra.mxu0 %v1172
  %1818 = vmatprep.mubr.bf16.mxu0 %v79
  %1819 = vmatmul.mubr.bf16.gmra.mrb[0].mxu0 %v78
  %v1820 = vpop.f32.mrb[0].mxu0
  %v1821 = vadd.f32 0.0, %v1820
  %v1822 = vpop.f32.mrb[0].mxu0
  %v1823 = vadd.f32 0.0, %v1822
  %v1824 = vpop.f32.mrb[0].mxu0
  %v1825 = vpop.f32.mrb[0].mxu0
  %1826 = vdwg.mxu0
  %1827 = vmatprep.subr.bf16.mxu0 %v1177
  %1828 = vmatpush1.bf16.msra.mxu0 %v1176
  %1829 = vmatprep.subr.bf16.mxu0 %v1181
  %1830 = vmatpush1.bf16.msra.mxu0 %v1180
  %1831 = vmatprep.subr.bf16.mxu0 %v1185
  %1832 = vmatpush1.bf16.msra.mxu0 %v1184
  %1833 = vmatprep.subr.bf16.mxu0 %v1189
  %1834 = vmatpush1.bf16.msra.mxu0 %v1188
  %1835 = vmatprep.subr.bf16.mxu0 %v1193
  %1836 = vmatpush1.bf16.msra.mxu0 %v1192
  %1837 = vmatprep.subr.bf16.mxu0 %v1197
  %1838 = vmatpush1.bf16.msra.mxu0 %v1196
  %1839 = vmatprep.subr.bf16.mxu0 %v1201
  %1840 = vmatpush1.bf16.msra.mxu0 %v1200
  %1841 = vmatprep.subr.bf16.mxu0 %v1205
  %1842 = vmatpush1.bf16.msra.mxu0 %v1204
  %1843 = vmatprep.subr.bf16.mxu0 %v1209
  %1844 = vmatpush1.bf16.msra.mxu0 %v1208
  %1845 = vmatprep.subr.bf16.mxu0 %v1213
  %1846 = vmatpush1.bf16.msra.mxu0 %v1212
  %1847 = vmatprep.subr.bf16.mxu0 %v1217
  %1848 = vmatpush1.bf16.msra.mxu0 %v1216
  %1849 = vmatprep.subr.bf16.mxu0 %v1221
  %1850 = vmatpush1.bf16.msra.mxu0 %v1220
  %1851 = vmatprep.subr.bf16.mxu0 %v1225
  %1852 = vmatpush1.bf16.msra.mxu0 %v1224
  %1853 = vmatprep.subr.bf16.mxu0 %v1229
  %1854 = vmatpush1.bf16.msra.mxu0 %v1228
  %1855 = vmatprep.subr.bf16.mxu0 %v1233
  %1856 = vmatpush1.bf16.msra.mxu0 %v1232
  %1857 = vmatprep.subr.bf16.mxu0 %v1237
  %1858 = vmatpush1.bf16.msra.mxu0 %v1236
  %1859 = vmatprep.mubr.bf16.mxu0 %v81
  %1860 = vmatmul.mubr.bf16.gmra.mrb[0].mxu0 %v80
  %v1861 = vpop.f32.mrb[0].mxu0
  %v1862 = vadd.f32 %v1821, %v1861
  %v1863 = vpop.f32.mrb[0].mxu0
  %v1864 = vadd.f32 %v1823, %v1863
  %v1865 = vpop.f32.mrb[0].mxu0
  %v1866 = vpop.f32.mrb[0].mxu0
  %1867 = vdwg.mxu0
  %1868 = vmatprep.subr.bf16.mxu0 %v1241
  %1869 = vmatpush1.bf16.msra.mxu0 %v1240
  %1870 = vmatprep.subr.bf16.mxu0 %v1245
  %1871 = vmatpush1.bf16.msra.mxu0 %v1244
  %1872 = vmatprep.subr.bf16.mxu0 %v1249
  %1873 = vmatpush1.bf16.msra.mxu0 %v1248
  %1874 = vmatprep.subr.bf16.mxu0 %v1253
  %1875 = vmatpush1.bf16.msra.mxu0 %v1252
  %1876 = vmatprep.subr.bf16.mxu0 %v1257
  %1877 = vmatpush1.bf16.msra.mxu0 %v1256
  %1878 = vmatprep.subr.bf16.mxu0 %v1261
  %1879 = vmatpush1.bf16.msra.mxu0 %v1260
  %1880 = vmatprep.subr.bf16.mxu0 %v1265
  %1881 = vmatpush1.bf16.msra.mxu0 %v1264
  %1882 = vmatprep.subr.bf16.mxu0 %v1269
  %1883 = vmatpush1.bf16.msra.mxu0 %v1268
  %1884 = vmatprep.subr.bf16.mxu0 %v1273
  %1885 = vmatpush1.bf16.msra.mxu0 %v1272
  %1886 = vmatprep.subr.bf16.mxu0 %v1277
  %1887 = vmatpush1.bf16.msra.mxu0 %v1276
  %1888 = vmatprep.subr.bf16.mxu0 %v1281
  %1889 = vmatpush1.bf16.msra.mxu0 %v1280
  %1890 = vmatprep.subr.bf16.mxu0 %v1285
  %1891 = vmatpush1.bf16.msra.mxu0 %v1284
  %1892 = vmatprep.subr.bf16.mxu0 %v1289
  %1893 = vmatpush1.bf16.msra.mxu0 %v1288
  %1894 = vmatprep.subr.bf16.mxu0 %v1293
  %1895 = vmatpush1.bf16.msra.mxu0 %v1292
  %1896 = vmatprep.subr.bf16.mxu0 %v1297
  %1897 = vmatpush1.bf16.msra.mxu0 %v1296
  %1898 = vmatprep.subr.bf16.mxu0 %v1301
  %1899 = vmatpush1.bf16.msra.mxu0 %v1300
  %1900 = vmatprep.mubr.bf16.mxu0 %v83
  %1901 = vmatmul.mubr.bf16.gmra.mrb[0].mxu0 %v82
  %v1902 = vpop.f32.mrb[0].mxu0
  %v1903 = vadd.f32 %v1862, %v1902
  %v1904 = vpop.f32.mrb[0].mxu0
  %v1905 = vadd.f32 %v1864, %v1904
  %v1906 = vpop.f32.mrb[0].mxu0
  %v1907 = vpop.f32.mrb[0].mxu0
  %1908 = vdwg.mxu0
  %1909 = vmatprep.subr.bf16.mxu0 %v1305
  %1910 = vmatpush1.bf16.msra.mxu0 %v1304
  %1911 = vmatprep.subr.bf16.mxu0 %v1309
  %1912 = vmatpush1.bf16.msra.mxu0 %v1308
  %1913 = vmatprep.subr.bf16.mxu0 %v1313
  %1914 = vmatpush1.bf16.msra.mxu0 %v1312
  %1915 = vmatprep.subr.bf16.mxu0 %v1317
  %1916 = vmatpush1.bf16.msra.mxu0 %v1316
  %1917 = vmatprep.subr.bf16.mxu0 %v1321
  %1918 = vmatpush1.bf16.msra.mxu0 %v1320
  %1919 = vmatprep.subr.bf16.mxu0 %v1325
  %1920 = vmatpush1.bf16.msra.mxu0 %v1324
  %1921 = vmatprep.subr.bf16.mxu0 %v1329
  %1922 = vmatpush1.bf16.msra.mxu0 %v1328
  %1923 = vmatprep.subr.bf16.mxu0 %v1333
  %1924 = vmatpush1.bf16.msra.mxu0 %v1332
  %1925 = vmatprep.subr.bf16.mxu0 %v1337
  %1926 = vmatpush1.bf16.msra.mxu0 %v1336
  %1927 = vmatprep.subr.bf16.mxu0 %v1341
  %1928 = vmatpush1.bf16.msra.mxu0 %v1340
  %1929 = vmatprep.subr.bf16.mxu0 %v1345
  %1930 = vmatpush1.bf16.msra.mxu0 %v1344
  %1931 = vmatprep.subr.bf16.mxu0 %v1349
  %1932 = vmatpush1.bf16.msra.mxu0 %v1348
  %1933 = vmatprep.subr.bf16.mxu0 %v1353
  %1934 = vmatpush1.bf16.msra.mxu0 %v1352
  %1935 = vmatprep.subr.bf16.mxu0 %v1357
  %1936 = vmatpush1.bf16.msra.mxu0 %v1356
  %1937 = vmatprep.subr.bf16.mxu0 %v1361
  %1938 = vmatpush1.bf16.msra.mxu0 %v1360
  %1939 = vmatprep.subr.bf16.mxu0 %v1365
  %1940 = vmatpush1.bf16.msra.mxu0 %v1364
  %1941 = vmatprep.mubr.bf16.mxu0 %v85
  %1942 = vmatmul.mubr.bf16.gmra.mrb[0].mxu0 %v84
  %v1943 = vpop.f32.mrb[0].mxu0
  %v1944 = vadd.f32 %v1903, %v1943
  %v1945 = vpop.f32.mrb[0].mxu0
  %v1946 = vadd.f32 %v1905, %v1945
  %v1947 = vpop.f32.mrb[0].mxu0
  %v1948 = vpop.f32.mrb[0].mxu0
  %1949 = vdwg.mxu0
  %v1950 = vld [vmem:[%s2] sm:$0xf]
  %v1951 = vld [vmem:[%s3] sm:$0xf]
  %vm1952 = vcmask 1041408
  %v1953 = vsel %vm1952, %v1780, 0.0
  %v1954 = vrot.slane %v1953, 4
  %v1955 = vadd.f32 %v1953, %v1954
  %v1956 = vrot.slane %v1955, 2
  %v1957 = vadd.f32 %v1955, %v1956
  %v1958 = vrot.slane %v1957, 1
  %v1959 = vadd.f32 %v1957, %v1958
  %v1960 = vsel %vm1952, %v1782, 0.0
  %v1961 = vrot.slane %v1960, 4
  %v1962 = vadd.f32 %v1960, %v1961
  %v1963 = vrot.slane %v1962, 2
  %v1964 = vadd.f32 %v1962, %v1963
  %v1965 = vrot.slane %v1964, 1
  %v1966 = vadd.f32 %v1964, %v1965
  %v1967 = vsel %vm1952, %v1944, 0.0
  %v1968 = vrot.slane %v1967, 4
  %v1969 = vadd.f32 %v1967, %v1968
  %v1970 = vrot.slane %v1969, 2
  %v1971 = vadd.f32 %v1969, %v1970
  %v1972 = vrot.slane %v1971, 1
  %v1973 = vadd.f32 %v1971, %v1972
  %v1974 = vsel %vm1952, %v1946, 0.0
  %v1975 = vrot.slane %v1974, 4
  %v1976 = vadd.f32 %v1974, %v1975
  %v1977 = vrot.slane %v1976, 2
  %v1978 = vadd.f32 %v1976, %v1977
  %v1979 = vrot.slane %v1978, 1
  %v1980 = vadd.f32 %v1978, %v1979
  %v1981 = vrcp.pop 2.0
  %v1982 = vmul.f32 %v1959, %v1981
  %v1983 = vmul.f32 %v1966, %v1981
  %v1984 = vmul.f32 %v1973, %v1981
  %v1985 = vmul.f32 %v1980, %v1981
  %v1986 = vmul.f32 %v1780, %v1780
  %v1987 = vmul.f32 %v1782, %v1782
  %v1988 = vmul.f32 %v1944, %v1944
  %v1989 = vmul.f32 %v1946, %v1946
  %v1990 = vsel %vm1952, %v1986, 0.0
  %v1991 = vrot.slane %v1990, 4
  %v1992 = vadd.f32 %v1990, %v1991
  %v1993 = vrot.slane %v1992, 2
  %v1994 = vadd.f32 %v1992, %v1993
  %v1995 = vrot.slane %v1994, 1
  %v1996 = vadd.f32 %v1994, %v1995
  %v1997 = vsel %vm1952, %v1987, 0.0
  %v1998 = vrot.slane %v1997, 4
  %v1999 = vadd.f32 %v1997, %v1998
  %v2000 = vrot.slane %v1999, 2
  %v2001 = vadd.f32 %v1999, %v2000
  %v2002 = vrot.slane %v2001, 1
  %v2003 = vadd.f32 %v2001, %v2002
  %v2004 = vsel %vm1952, %v1988, 0.0
  %v2005 = vrot.slane %v2004, 4
  %v2006 = vadd.f32 %v2004, %v2005
  %v2007 = vrot.slane %v2006, 2
  %v2008 = vadd.f32 %v2006, %v2007
  %v2009 = vrot.slane %v2008, 1
  %v2010 = vadd.f32 %v2008, %v2009
  %v2011 = vsel %vm1952, %v1989, 0.0
  %v2012 = vrot.slane %v2011, 4
  %v2013 = vadd.f32 %v2011, %v2012
  %v2014 = vrot.slane %v2013, 2
  %v2015 = vadd.f32 %v2013, %v2014
  %v2016 = vrot.slane %v2015, 1
  %v2017 = vadd.f32 %v2015, %v2016
  %v2018 = vmul.f32 %v1996, %v1981
  %v2019 = vmul.f32 %v2003, %v1981
  %v2020 = vmul.f32 %v2010, %v1981
  %v2021 = vmul.f32 %v2017, %v1981
  %v2022 = vmul.f32 %v1982, %v1982
  %v2023 = vmul.f32 %v1983, %v1983
  %v2024 = vmul.f32 %v1984, %v1984
  %v2025 = vmul.f32 %v1985, %v1985
  %v2026 = vsub.f32 %v2018, %v2022
  %v2027 = vsub.f32 %v2019, %v2023
  %v2028 = vsub.f32 %v2020, %v2024
  %v2029 = vsub.f32 %v2021, %v2025
  %v2030 = vmax.f32 %v2026, 0.0
  %v2031 = vmax.f32 %v2027, 0.0
  %v2032 = vmax.f32 %v2028, 0.0
  %v2033 = vmax.f32 %v2029, 0.0
  %v2034 = vsub.f32 %v1780, %v1982
  %v2035 = vsub.f32 %v1782, %v1983
  %v2036 = vsub.f32 %v1944, %v1984
  %v2037 = vsub.f32 %v1946, %v1985
  %v2038 = vadd.f32 %v2030, 1e-05
  %v2039 = vadd.f32 %v2031, 1e-05
  %v2040 = vadd.f32 %v2032, 1e-05
  %v2041 = vadd.f32 %v2033, 1e-05
  %v2042 = vrsqrt.pop %v2038
  %v2043 = vrsqrt.pop %v2039
  %v2044 = vrsqrt.pop %v2040
  %v2045 = vrsqrt.pop %v2041
  %v2046 = vmul.f32 %v2034, %v2042
  %v2047 = vmul.f32 %v2035, %v2043
  %v2048 = vmul.f32 %v2036, %v2044
  %v2049 = vmul.f32 %v2037, %v2045
  %v2051 = vlaneseq
  %v2052 = vshrl.u32 %v2051, 7
  %v2053 = vsub.s32 0, %v2052
  %v2054 = vrot.slane %v1950, %v2053
  %v2055 = vlaneseq
  %v2056 = vshrl.u32 %v2055, 7
  %v2057 = vsub.s32 1, %v2056
  %v2058 = vrot.slane %v1950, %v2057
  %v2059 = vlaneseq
  %v2060 = vshrl.u32 %v2059, 7
  %v2061 = vsub.s32 2, %v2060
  %v2062 = vrot.slane %v1950, %v2061
  %v2063 = vlaneseq
  %v2064 = vshrl.u32 %v2063, 7
  %v2065 = vsub.s32 3, %v2064
  %v2066 = vrot.slane %v1950, %v2065
  %v2071 = vmul.f32 %v2046, %v2054
  %v2072 = vmul.f32 %v2047, %v2058
  %v2073 = vmul.f32 %v2048, %v2062
  %v2074 = vmul.f32 %v2049, %v2066
  %v2076 = vlaneseq
  %v2077 = vshrl.u32 %v2076, 7
  %v2078 = vsub.s32 0, %v2077
  %v2079 = vrot.slane %v1951, %v2078
  %v2080 = vlaneseq
  %v2081 = vshrl.u32 %v2080, 7
  %v2082 = vsub.s32 1, %v2081
  %v2083 = vrot.slane %v1951, %v2082
  %v2084 = vlaneseq
  %v2085 = vshrl.u32 %v2084, 7
  %v2086 = vsub.s32 2, %v2085
  %v2087 = vrot.slane %v1951, %v2086
  %v2088 = vlaneseq
  %v2089 = vshrl.u32 %v2088, 7
  %v2090 = vsub.s32 3, %v2089
  %v2091 = vrot.slane %v1951, %v2090
  %v2096 = vadd.f32 %v2071, %v2079
  %v2097 = vadd.f32 %v2072, %v2083
  %v2098 = vadd.f32 %v2073, %v2087
  %v2099 = vadd.f32 %v2074, %v2091
  %vm2100 = vcmp.ge.f32.partialorder %v2096, 0.0
  %vm2101 = vcmp.ge.f32.partialorder %v2097, 0.0
  %vm2102 = vcmp.ge.f32.partialorder %v2098, 0.0
  %vm2103 = vcmp.ge.f32.partialorder %v2099, 0.0
  %v2104 = vmul.f32 %v2096, 0.2
  %v2105 = vmul.f32 %v2097, 0.2
  %v2106 = vmul.f32 %v2098, 0.2
  %v2107 = vmul.f32 %v2099, 0.2
  %v2108 = vsel %vm2100, %v2096, %v2104
  %v2109 = vsel %vm2101, %v2097, %v2105
  %v2110 = vsel %vm2102, %v2098, %v2106
  %v2111 = vsel %vm2103, %v2099, %v2107
  %v2112 = vpack.c.bf16 %v2108, %v2108
  %v2113 = vpack.c.bf16 %v2109, %v2109
  %v2114 = vpack.c.bf16 %v2110, %v2110
  %v2115 = vpack.c.bf16 %v2111, %v2111
  %v2116 = vld [vmem:[%s4] sm:$0xff]
  %v2117 = vld [vmem:[%s4 + $0x8] sm:$0xff]
  %v2118 = vld [vmem:[%s4 + $0x10] sm:$0xff]
  %v2119 = vld [vmem:[%s4 + $0x18] sm:$0xff]
  %v2120 = vld [vmem:[%s4 + $0x20] sm:$0xff]
  %v2121 = vld [vmem:[%s4 + $0x28] sm:$0xff]
  %v2122 = vld [vmem:[%s4 + $0x30] sm:$0xff]
  %v2123 = vld [vmem:[%s4 + $0x38] sm:$0xff]
  %v2124 = vld [vmem:[%s4 + $0x40] sm:$0xff]
  %v2125 = vld [vmem:[%s4 + $0x48] sm:$0xff]
  %v2126 = vld [vmem:[%s4 + $0x50] sm:$0xff]
  %v2127 = vld [vmem:[%s4 + $0x58] sm:$0xff]
  %v2128 = vld [vmem:[%s4 + $0x60] sm:$0xff]
  %v2129 = vld [vmem:[%s4 + $0x68] sm:$0xff]
  %v2130 = vld [vmem:[%s4 + $0x70] sm:$0xff]
  %v2131 = vld [vmem:[%s4 + $0x78] sm:$0xff]
  %v2132 = vld [vmem:[%s4 + $0x80] sm:$0xff]
  %v2133 = vld [vmem:[%s4 + $0x88] sm:$0xff]
  %v2134 = vld [vmem:[%s4 + $0x90] sm:$0xff]
  %v2135 = vld [vmem:[%s4 + $0x98] sm:$0xff]
  %v2136 = vld [vmem:[%s4 + $0xa0] sm:$0xff]
  %v2137 = vld [vmem:[%s4 + $0xa8] sm:$0xff]
  %v2138 = vld [vmem:[%s4 + $0xb0] sm:$0xff]
  %v2139 = vld [vmem:[%s4 + $0xb8] sm:$0xff]
  %v2140 = vld [vmem:[%s4 + $0xc0] sm:$0xff]
  %v2141 = vld [vmem:[%s4 + $0xc8] sm:$0xff]
  %v2142 = vld [vmem:[%s4 + $0xd0] sm:$0xff]
  %v2143 = vld [vmem:[%s4 + $0xd8] sm:$0xff]
  %v2144 = vld [vmem:[%s4 + $0xe0] sm:$0xff]
  %v2145 = vld [vmem:[%s4 + $0xe8] sm:$0xff]
  %v2146 = vld [vmem:[%s4 + $0xf0] sm:$0xff]
  %v2147 = vld [vmem:[%s4 + $0xf8] sm:$0xff]
  %v2148 = vld [vmem:[%s4 + $0x100] sm:$0xff]
  %v2149 = vld [vmem:[%s4 + $0x108] sm:$0xff]
  %v2150 = vld [vmem:[%s4 + $0x110] sm:$0xff]
  %v2151 = vld [vmem:[%s4 + $0x118] sm:$0xff]
  %v2152 = vld [vmem:[%s4 + $0x120] sm:$0xff]
  %v2153 = vld [vmem:[%s4 + $0x128] sm:$0xff]
  %v2154 = vld [vmem:[%s4 + $0x130] sm:$0xff]
  %v2155 = vld [vmem:[%s4 + $0x138] sm:$0xff]
  %v2156 = vld [vmem:[%s4 + $0x140] sm:$0xff]
  %v2157 = vld [vmem:[%s4 + $0x148] sm:$0xff]
  %v2158 = vld [vmem:[%s4 + $0x150] sm:$0xff]
  %v2159 = vld [vmem:[%s4 + $0x158] sm:$0xff]
  %v2160 = vld [vmem:[%s4 + $0x160] sm:$0xff]
  %v2161 = vld [vmem:[%s4 + $0x168] sm:$0xff]
  %v2162 = vld [vmem:[%s4 + $0x170] sm:$0xff]
  %v2163 = vld [vmem:[%s4 + $0x178] sm:$0xff]
  %v2164 = vld [vmem:[%s4 + $0x180] sm:$0xff]
  %v2165 = vld [vmem:[%s4 + $0x188] sm:$0xff]
  %v2166 = vld [vmem:[%s4 + $0x190] sm:$0xff]
  %v2167 = vld [vmem:[%s4 + $0x198] sm:$0xff]
  %v2168 = vld [vmem:[%s4 + $0x1a0] sm:$0xff]
  %v2169 = vld [vmem:[%s4 + $0x1a8] sm:$0xff]
  %v2170 = vld [vmem:[%s4 + $0x1b0] sm:$0xff]
  %v2171 = vld [vmem:[%s4 + $0x1b8] sm:$0xff]
  %v2172 = vld [vmem:[%s4 + $0x1c0] sm:$0xff]
  %v2173 = vld [vmem:[%s4 + $0x1c8] sm:$0xff]
  %v2174 = vld [vmem:[%s4 + $0x1d0] sm:$0xff]
  %v2175 = vld [vmem:[%s4 + $0x1d8] sm:$0xff]
  %v2176 = vld [vmem:[%s4 + $0x1e0] sm:$0xff]
  %v2177 = vld [vmem:[%s4 + $0x1e8] sm:$0xff]
  %v2178 = vld [vmem:[%s4 + $0x1f0] sm:$0xff]
  %v2179 = vld [vmem:[%s4 + $0x1f8] sm:$0xff]
  %v2244 = vunpack.c.l.b16 %v2116
  %v2245 = vunpack.c.h.b16 %v2116
  %v2246 = vunpack.c.l.b16 %v2117
  %v2247 = vunpack.c.h.b16 %v2117
  %v2248 = vunpack.c.l.b16 %v2118
  %v2249 = vunpack.c.h.b16 %v2118
  %v2250 = vunpack.c.l.b16 %v2119
  %v2251 = vunpack.c.h.b16 %v2119
  %v2252 = vunpack.c.l.b16 %v2120
  %v2253 = vunpack.c.h.b16 %v2120
  %v2254 = vunpack.c.l.b16 %v2121
  %v2255 = vunpack.c.h.b16 %v2121
  %v2256 = vunpack.c.l.b16 %v2122
  %v2257 = vunpack.c.h.b16 %v2122
  %v2258 = vunpack.c.l.b16 %v2123
  %v2259 = vunpack.c.h.b16 %v2123
  %v2260 = vunpack.c.l.b16 %v2124
  %v2261 = vunpack.c.h.b16 %v2124
  %v2262 = vunpack.c.l.b16 %v2125
  %v2263 = vunpack.c.h.b16 %v2125
  %v2264 = vunpack.c.l.b16 %v2126
  %v2265 = vunpack.c.h.b16 %v2126
  %v2266 = vunpack.c.l.b16 %v2127
  %v2267 = vunpack.c.h.b16 %v2127
  %v2268 = vunpack.c.l.b16 %v2128
  %v2269 = vunpack.c.h.b16 %v2128
  %v2270 = vunpack.c.l.b16 %v2129
  %v2271 = vunpack.c.h.b16 %v2129
  %v2272 = vunpack.c.l.b16 %v2130
  %v2273 = vunpack.c.h.b16 %v2130
  %v2274 = vunpack.c.l.b16 %v2131
  %v2275 = vunpack.c.h.b16 %v2131
  %v2276 = vunpack.c.l.b16 %v2132
  %v2277 = vunpack.c.h.b16 %v2132
  %v2278 = vunpack.c.l.b16 %v2133
  %v2279 = vunpack.c.h.b16 %v2133
  %v2280 = vunpack.c.l.b16 %v2134
  %v2281 = vunpack.c.h.b16 %v2134
  %v2282 = vunpack.c.l.b16 %v2135
  %v2283 = vunpack.c.h.b16 %v2135
  %v2284 = vunpack.c.l.b16 %v2136
  %v2285 = vunpack.c.h.b16 %v2136
  %v2286 = vunpack.c.l.b16 %v2137
  %v2287 = vunpack.c.h.b16 %v2137
  %v2288 = vunpack.c.l.b16 %v2138
  %v2289 = vunpack.c.h.b16 %v2138
  %v2290 = vunpack.c.l.b16 %v2139
  %v2291 = vunpack.c.h.b16 %v2139
  %v2292 = vunpack.c.l.b16 %v2140
  %v2293 = vunpack.c.h.b16 %v2140
  %v2294 = vunpack.c.l.b16 %v2141
  %v2295 = vunpack.c.h.b16 %v2141
  %v2296 = vunpack.c.l.b16 %v2142
  %v2297 = vunpack.c.h.b16 %v2142
  %v2298 = vunpack.c.l.b16 %v2143
  %v2299 = vunpack.c.h.b16 %v2143
  %v2300 = vunpack.c.l.b16 %v2144
  %v2301 = vunpack.c.h.b16 %v2144
  %v2302 = vunpack.c.l.b16 %v2145
  %v2303 = vunpack.c.h.b16 %v2145
  %v2304 = vunpack.c.l.b16 %v2146
  %v2305 = vunpack.c.h.b16 %v2146
  %v2306 = vunpack.c.l.b16 %v2147
  %v2307 = vunpack.c.h.b16 %v2147
  %v2308 = vunpack.c.l.b16 %v2148
  %v2309 = vunpack.c.h.b16 %v2148
  %v2310 = vunpack.c.l.b16 %v2149
  %v2311 = vunpack.c.h.b16 %v2149
  %v2312 = vunpack.c.l.b16 %v2150
  %v2313 = vunpack.c.h.b16 %v2150
  %v2314 = vunpack.c.l.b16 %v2151
  %v2315 = vunpack.c.h.b16 %v2151
  %v2316 = vunpack.c.l.b16 %v2152
  %v2317 = vunpack.c.h.b16 %v2152
  %v2318 = vunpack.c.l.b16 %v2153
  %v2319 = vunpack.c.h.b16 %v2153
  %v2320 = vunpack.c.l.b16 %v2154
  %v2321 = vunpack.c.h.b16 %v2154
  %v2322 = vunpack.c.l.b16 %v2155
  %v2323 = vunpack.c.h.b16 %v2155
  %v2324 = vunpack.c.l.b16 %v2156
  %v2325 = vunpack.c.h.b16 %v2156
  %v2326 = vunpack.c.l.b16 %v2157
  %v2327 = vunpack.c.h.b16 %v2157
  %v2328 = vunpack.c.l.b16 %v2158
  %v2329 = vunpack.c.h.b16 %v2158
  %v2330 = vunpack.c.l.b16 %v2159
  %v2331 = vunpack.c.h.b16 %v2159
  %v2332 = vunpack.c.l.b16 %v2160
  %v2333 = vunpack.c.h.b16 %v2160
  %v2334 = vunpack.c.l.b16 %v2161
  %v2335 = vunpack.c.h.b16 %v2161
  %v2336 = vunpack.c.l.b16 %v2162
  %v2337 = vunpack.c.h.b16 %v2162
  %v2338 = vunpack.c.l.b16 %v2163
  %v2339 = vunpack.c.h.b16 %v2163
  %v2340 = vunpack.c.l.b16 %v2164
  %v2341 = vunpack.c.h.b16 %v2164
  %v2342 = vunpack.c.l.b16 %v2165
  %v2343 = vunpack.c.h.b16 %v2165
  %v2344 = vunpack.c.l.b16 %v2166
  %v2345 = vunpack.c.h.b16 %v2166
  %v2346 = vunpack.c.l.b16 %v2167
  %v2347 = vunpack.c.h.b16 %v2167
  %v2348 = vunpack.c.l.b16 %v2168
  %v2349 = vunpack.c.h.b16 %v2168
  %v2350 = vunpack.c.l.b16 %v2169
  %v2351 = vunpack.c.h.b16 %v2169
  %v2352 = vunpack.c.l.b16 %v2170
  %v2353 = vunpack.c.h.b16 %v2170
  %v2354 = vunpack.c.l.b16 %v2171
  %v2355 = vunpack.c.h.b16 %v2171
  %v2356 = vunpack.c.l.b16 %v2172
  %v2357 = vunpack.c.h.b16 %v2172
  %v2358 = vunpack.c.l.b16 %v2173
  %v2359 = vunpack.c.h.b16 %v2173
  %v2360 = vunpack.c.l.b16 %v2174
  %v2361 = vunpack.c.h.b16 %v2174
  %v2362 = vunpack.c.l.b16 %v2175
  %v2363 = vunpack.c.h.b16 %v2175
  %v2364 = vunpack.c.l.b16 %v2176
  %v2365 = vunpack.c.h.b16 %v2176
  %v2366 = vunpack.c.l.b16 %v2177
  %v2367 = vunpack.c.h.b16 %v2177
  %v2368 = vunpack.c.l.b16 %v2178
  %v2369 = vunpack.c.h.b16 %v2178
  %v2370 = vunpack.c.l.b16 %v2179
  %v2371 = vunpack.c.h.b16 %v2179
  %v2372 = vpack.c.b16 %v2246, %v2244
  %v2373 = vpack.c.b16 %v2247, %v2245
  %v2374 = vpack.c.b16 %v2250, %v2248
  %v2375 = vpack.c.b16 %v2251, %v2249
  %v2376 = vpack.c.b16 %v2254, %v2252
  %v2377 = vpack.c.b16 %v2255, %v2253
  %v2378 = vpack.c.b16 %v2258, %v2256
  %v2379 = vpack.c.b16 %v2259, %v2257
  %v2380 = vpack.c.b16 %v2262, %v2260
  %v2381 = vpack.c.b16 %v2263, %v2261
  %v2382 = vpack.c.b16 %v2266, %v2264
  %v2383 = vpack.c.b16 %v2267, %v2265
  %v2384 = vpack.c.b16 %v2270, %v2268
  %v2385 = vpack.c.b16 %v2271, %v2269
  %v2386 = vpack.c.b16 %v2274, %v2272
  %v2387 = vpack.c.b16 %v2275, %v2273
  %v2388 = vpack.c.b16 %v2278, %v2276
  %v2389 = vpack.c.b16 %v2279, %v2277
  %v2390 = vpack.c.b16 %v2282, %v2280
  %v2391 = vpack.c.b16 %v2283, %v2281
  %v2392 = vpack.c.b16 %v2286, %v2284
  %v2393 = vpack.c.b16 %v2287, %v2285
  %v2394 = vpack.c.b16 %v2290, %v2288
  %v2395 = vpack.c.b16 %v2291, %v2289
  %v2396 = vpack.c.b16 %v2294, %v2292
  %v2397 = vpack.c.b16 %v2295, %v2293
  %v2398 = vpack.c.b16 %v2298, %v2296
  %v2399 = vpack.c.b16 %v2299, %v2297
  %v2400 = vpack.c.b16 %v2302, %v2300
  %v2401 = vpack.c.b16 %v2303, %v2301
  %v2402 = vpack.c.b16 %v2306, %v2304
  %v2403 = vpack.c.b16 %v2307, %v2305
  %v2404 = vpack.c.b16 %v2310, %v2308
  %v2405 = vpack.c.b16 %v2311, %v2309
  %v2406 = vpack.c.b16 %v2314, %v2312
  %v2407 = vpack.c.b16 %v2315, %v2313
  %v2408 = vpack.c.b16 %v2318, %v2316
  %v2409 = vpack.c.b16 %v2319, %v2317
  %v2410 = vpack.c.b16 %v2322, %v2320
  %v2411 = vpack.c.b16 %v2323, %v2321
  %v2412 = vpack.c.b16 %v2326, %v2324
  %v2413 = vpack.c.b16 %v2327, %v2325
  %v2414 = vpack.c.b16 %v2330, %v2328
  %v2415 = vpack.c.b16 %v2331, %v2329
  %v2416 = vpack.c.b16 %v2334, %v2332
  %v2417 = vpack.c.b16 %v2335, %v2333
  %v2418 = vpack.c.b16 %v2338, %v2336
  %v2419 = vpack.c.b16 %v2339, %v2337
  %v2420 = vpack.c.b16 %v2342, %v2340
  %v2421 = vpack.c.b16 %v2343, %v2341
  %v2422 = vpack.c.b16 %v2346, %v2344
  %v2423 = vpack.c.b16 %v2347, %v2345
  %v2424 = vpack.c.b16 %v2350, %v2348
  %v2425 = vpack.c.b16 %v2351, %v2349
  %v2426 = vpack.c.b16 %v2354, %v2352
  %v2427 = vpack.c.b16 %v2355, %v2353
  %v2428 = vpack.c.b16 %v2358, %v2356
  %v2429 = vpack.c.b16 %v2359, %v2357
  %v2430 = vpack.c.b16 %v2362, %v2360
  %v2431 = vpack.c.b16 %v2363, %v2361
  %v2432 = vpack.c.b16 %v2366, %v2364
  %v2433 = vpack.c.b16 %v2367, %v2365
  %v2434 = vpack.c.b16 %v2370, %v2368
  %v2435 = vpack.c.b16 %v2371, %v2369
  %2500 = vmatprep.subr.bf16.mxu0 %v2373
  %2501 = vmatpush1.bf16.msra.mxu0 %v2372
  %2502 = vmatprep.subr.bf16.mxu0 %v2375
  %2503 = vmatpush1.bf16.msra.mxu0 %v2374
  %2504 = vmatprep.subr.bf16.mxu0 %v2377
  %2505 = vmatpush1.bf16.msra.mxu0 %v2376
  %2506 = vmatprep.subr.bf16.mxu0 %v2379
  %2507 = vmatpush1.bf16.msra.mxu0 %v2378
  %2508 = vmatprep.subr.bf16.mxu0 %v2381
  %2509 = vmatpush1.bf16.msra.mxu0 %v2380
  %2510 = vmatprep.subr.bf16.mxu0 %v2383
  %2511 = vmatpush1.bf16.msra.mxu0 %v2382
  %2512 = vmatprep.subr.bf16.mxu0 %v2385
  %2513 = vmatpush1.bf16.msra.mxu0 %v2384
  %2514 = vmatprep.subr.bf16.mxu0 %v2387
  %2515 = vmatpush1.bf16.msra.mxu0 %v2386
  %2516 = vmatprep.subr.bf16.mxu0 %v2389
  %2517 = vmatpush1.bf16.msra.mxu0 %v2388
  %2518 = vmatprep.subr.bf16.mxu0 %v2391
  %2519 = vmatpush1.bf16.msra.mxu0 %v2390
  %2520 = vmatprep.subr.bf16.mxu0 %v2393
  %2521 = vmatpush1.bf16.msra.mxu0 %v2392
  %2522 = vmatprep.subr.bf16.mxu0 %v2395
  %2523 = vmatpush1.bf16.msra.mxu0 %v2394
  %2524 = vmatprep.subr.bf16.mxu0 %v2397
  %2525 = vmatpush1.bf16.msra.mxu0 %v2396
  %2526 = vmatprep.subr.bf16.mxu0 %v2399
  %2527 = vmatpush1.bf16.msra.mxu0 %v2398
  %2528 = vmatprep.subr.bf16.mxu0 %v2401
  %2529 = vmatpush1.bf16.msra.mxu0 %v2400
  %2530 = vmatprep.subr.bf16.mxu0 %v2403
  %2531 = vmatpush1.bf16.msra.mxu0 %v2402
  %2532 = vmatprep.mubr.bf16.mxu0 %v2113
  %2533 = vmatmul.mubr.bf16.gmra.mrb[0].mxu0 %v2112
  %v2534 = vpop.f32.mrb[0].mxu0
  %v2535 = vadd.f32 0.0, %v2534
  %v2536 = vpop.f32.mrb[0].mxu0
  %v2537 = vadd.f32 0.0, %v2536
  %v2538 = vpop.f32.mrb[0].mxu0
  %v2539 = vpop.f32.mrb[0].mxu0
  %2540 = vdwg.mxu0
  %2541 = vmatprep.subr.bf16.mxu0 %v2405
  %2542 = vmatpush1.bf16.msra.mxu0 %v2404
  %2543 = vmatprep.subr.bf16.mxu0 %v2407
  %2544 = vmatpush1.bf16.msra.mxu0 %v2406
  %2545 = vmatprep.subr.bf16.mxu0 %v2409
  %2546 = vmatpush1.bf16.msra.mxu0 %v2408
  %2547 = vmatprep.subr.bf16.mxu0 %v2411
  %2548 = vmatpush1.bf16.msra.mxu0 %v2410
  %2549 = vmatprep.subr.bf16.mxu0 %v2413
  %2550 = vmatpush1.bf16.msra.mxu0 %v2412
  %2551 = vmatprep.subr.bf16.mxu0 %v2415
  %2552 = vmatpush1.bf16.msra.mxu0 %v2414
  %2553 = vmatprep.subr.bf16.mxu0 %v2417
  %2554 = vmatpush1.bf16.msra.mxu0 %v2416
  %2555 = vmatprep.subr.bf16.mxu0 %v2419
  %2556 = vmatpush1.bf16.msra.mxu0 %v2418
  %2557 = vmatprep.subr.bf16.mxu0 %v2421
  %2558 = vmatpush1.bf16.msra.mxu0 %v2420
  %2559 = vmatprep.subr.bf16.mxu0 %v2423
  %2560 = vmatpush1.bf16.msra.mxu0 %v2422
  %2561 = vmatprep.subr.bf16.mxu0 %v2425
  %2562 = vmatpush1.bf16.msra.mxu0 %v2424
  %2563 = vmatprep.subr.bf16.mxu0 %v2427
  %2564 = vmatpush1.bf16.msra.mxu0 %v2426
  %2565 = vmatprep.subr.bf16.mxu0 %v2429
  %2566 = vmatpush1.bf16.msra.mxu0 %v2428
  %2567 = vmatprep.subr.bf16.mxu0 %v2431
  %2568 = vmatpush1.bf16.msra.mxu0 %v2430
  %2569 = vmatprep.subr.bf16.mxu0 %v2433
  %2570 = vmatpush1.bf16.msra.mxu0 %v2432
  %2571 = vmatprep.subr.bf16.mxu0 %v2435
  %2572 = vmatpush1.bf16.msra.mxu0 %v2434
  %2573 = vmatprep.mubr.bf16.mxu0 %v2115
  %2574 = vmatmul.mubr.bf16.gmra.mrb[0].mxu0 %v2114
  %v2575 = vpop.f32.mrb[0].mxu0
  %v2576 = vadd.f32 %v2535, %v2575
  %v2577 = vpop.f32.mrb[0].mxu0
  %v2578 = vadd.f32 %v2537, %v2577
  %v2579 = vpop.f32.mrb[0].mxu0
  %v2580 = vpop.f32.mrb[0].mxu0
  %2581 = vdwg.mxu0
  %v2582 = vld [vmem:[%s5] sm:$0x3]
  %v2583 = vld [vmem:[%s6] sm:$0x3]
  %v2584 = vsel %vm1952, %v2576, 0.0
  %v2585 = vrot.slane %v2584, 4
  %v2586 = vadd.f32 %v2584, %v2585
  %v2587 = vrot.slane %v2586, 2
  %v2588 = vadd.f32 %v2586, %v2587
  %v2589 = vrot.slane %v2588, 1
  %v2590 = vadd.f32 %v2588, %v2589
  %v2591 = vsel %vm1952, %v2578, 0.0
  %v2592 = vrot.slane %v2591, 4
  %v2593 = vadd.f32 %v2591, %v2592
  %v2594 = vrot.slane %v2593, 2
  %v2595 = vadd.f32 %v2593, %v2594
  %v2596 = vrot.slane %v2595, 1
  %v2597 = vadd.f32 %v2595, %v2596
  %v2598 = vmul.f32 %v2590, %v1981
  %v2599 = vmul.f32 %v2597, %v1981
  %v2600 = vmul.f32 %v2576, %v2576
  %v2601 = vmul.f32 %v2578, %v2578
  %v2602 = vsel %vm1952, %v2600, 0.0
  %v2603 = vrot.slane %v2602, 4
  %v2604 = vadd.f32 %v2602, %v2603
  %v2605 = vrot.slane %v2604, 2
  %v2606 = vadd.f32 %v2604, %v2605
  %v2607 = vrot.slane %v2606, 1
  %v2608 = vadd.f32 %v2606, %v2607
  %v2609 = vsel %vm1952, %v2601, 0.0
  %v2610 = vrot.slane %v2609, 4
  %v2611 = vadd.f32 %v2609, %v2610
  %v2612 = vrot.slane %v2611, 2
  %v2613 = vadd.f32 %v2611, %v2612
  %v2614 = vrot.slane %v2613, 1
  %v2615 = vadd.f32 %v2613, %v2614
  %v2616 = vmul.f32 %v2608, %v1981
  %v2617 = vmul.f32 %v2615, %v1981
  %v2618 = vmul.f32 %v2598, %v2598
  %v2619 = vmul.f32 %v2599, %v2599
  %v2620 = vsub.f32 %v2616, %v2618
  %v2621 = vsub.f32 %v2617, %v2619
  %v2622 = vmax.f32 %v2620, 0.0
  %v2623 = vmax.f32 %v2621, 0.0
  %v2624 = vsub.f32 %v2576, %v2598
  %v2625 = vsub.f32 %v2578, %v2599
  %v2626 = vadd.f32 %v2622, 1e-05
  %v2627 = vadd.f32 %v2623, 1e-05
  %v2628 = vrsqrt.pop %v2626
  %v2629 = vrsqrt.pop %v2627
  %v2630 = vmul.f32 %v2624, %v2628
  %v2631 = vmul.f32 %v2625, %v2629
  %v2633 = vlaneseq
  %v2634 = vshrl.u32 %v2633, 7
  %v2635 = vsub.s32 0, %v2634
  %v2636 = vrot.slane %v2582, %v2635
  %v2637 = vlaneseq
  %v2638 = vshrl.u32 %v2637, 7
  %v2639 = vsub.s32 1, %v2638
  %v2640 = vrot.slane %v2582, %v2639
  %v2643 = vmul.f32 %v2630, %v2636
  %v2644 = vmul.f32 %v2631, %v2640
  %v2646 = vlaneseq
  %v2647 = vshrl.u32 %v2646, 7
  %v2648 = vsub.s32 0, %v2647
  %v2649 = vrot.slane %v2583, %v2648
  %v2650 = vlaneseq
  %v2651 = vshrl.u32 %v2650, 7
  %v2652 = vsub.s32 1, %v2651
  %v2653 = vrot.slane %v2583, %v2652
  %v2656 = vadd.f32 %v2643, %v2649
  %v2657 = vadd.f32 %v2644, %v2653
  %vm2658 = vcmp.ge.f32.partialorder %v2656, 0.0
  %vm2659 = vcmp.ge.f32.partialorder %v2657, 0.0
  %v2660 = vmul.f32 %v2656, 0.2
  %v2661 = vmul.f32 %v2657, 0.2
  %v2662 = vsel %vm2658, %v2656, %v2660
  %v2663 = vsel %vm2659, %v2657, %v2661
  %v2664 = vld [vmem:[%s7] sm:$0xff]
  %v2665 = vld [vmem:[%s7 + $0x8] sm:$0xff]
  %v2666 = vld [vmem:[%s7 + $0x10] sm:$0xff]
  %v2667 = vld [vmem:[%s7 + $0x18] sm:$0xff]
  %v2668 = vld [vmem:[%s7 + $0x20] sm:$0xff]
  %v2669 = vld [vmem:[%s7 + $0x28] sm:$0xff]
  %v2670 = vld [vmem:[%s7 + $0x30] sm:$0xff]
  %v2671 = vld [vmem:[%s7 + $0x38] sm:$0xff]
  %v2672 = vld [vmem:[%s7 + $0x40] sm:$0xff]
  %v2673 = vld [vmem:[%s7 + $0x48] sm:$0xff]
  %v2674 = vld [vmem:[%s7 + $0x50] sm:$0xff]
  %v2675 = vld [vmem:[%s7 + $0x58] sm:$0xff]
  %v2676 = vld [vmem:[%s7 + $0x60] sm:$0xff]
  %v2677 = vld [vmem:[%s7 + $0x68] sm:$0xff]
  %v2678 = vld [vmem:[%s7 + $0x70] sm:$0xff]
  %v2679 = vld [vmem:[%s7 + $0x78] sm:$0xff]
  %v2680 = vld [vmem:[%s7 + $0x80] sm:$0xff]
  %v2681 = vld [vmem:[%s7 + $0x88] sm:$0xff]
  %v2682 = vld [vmem:[%s7 + $0x90] sm:$0xff]
  %v2683 = vld [vmem:[%s7 + $0x98] sm:$0xff]
  %v2684 = vld [vmem:[%s7 + $0xa0] sm:$0xff]
  %v2685 = vld [vmem:[%s7 + $0xa8] sm:$0xff]
  %v2686 = vld [vmem:[%s7 + $0xb0] sm:$0xff]
  %v2687 = vld [vmem:[%s7 + $0xb8] sm:$0xff]
  %v2688 = vld [vmem:[%s7 + $0xc0] sm:$0xff]
  %v2689 = vld [vmem:[%s7 + $0xc8] sm:$0xff]
  %v2690 = vld [vmem:[%s7 + $0xd0] sm:$0xff]
  %v2691 = vld [vmem:[%s7 + $0xd8] sm:$0xff]
  %v2692 = vld [vmem:[%s7 + $0xe0] sm:$0xff]
  %v2693 = vld [vmem:[%s7 + $0xe8] sm:$0xff]
  %v2694 = vld [vmem:[%s7 + $0xf0] sm:$0xff]
  %v2695 = vld [vmem:[%s7 + $0xf8] sm:$0xff]
  %v2696 = vld [vmem:[%s8] sm:$0x1]
  %v2698 = vlaneseq
  %v2699 = vshrl.u32 %v2698, 7
  %v2700 = vsub.s32 0, %v2699
  %v2701 = vrot.slane %v2696, %v2700
  %2703 = vmatprep.subr.mxu0 0.0
  %2704 = vmatpush1.msra.mxu0 %v2664
  %2705 = vmatprep.subr.mxu0 0.0
  %2706 = vmatpush1.msra.mxu0 %v2665
  %2707 = vmatprep.subr.mxu0 0.0
  %2708 = vmatpush1.msra.mxu0 %v2666
  %2709 = vmatprep.subr.mxu0 0.0
  %2710 = vmatpush1.msra.mxu0 %v2667
  %2711 = vmatprep.subr.mxu0 0.0
  %2712 = vmatpush1.msra.mxu0 %v2668
  %2713 = vmatprep.subr.mxu0 0.0
  %2714 = vmatpush1.msra.mxu0 %v2669
  %2715 = vmatprep.subr.mxu0 0.0
  %2716 = vmatpush1.msra.mxu0 %v2670
  %2717 = vmatprep.subr.mxu0 0.0
  %2718 = vmatpush1.msra.mxu0 %v2671
  %2719 = vmatprep.subr.mxu0 0.0
  %2720 = vmatpush1.msra.mxu0 %v2672
  %2721 = vmatprep.subr.mxu0 0.0
  %2722 = vmatpush1.msra.mxu0 %v2673
  %2723 = vmatprep.subr.mxu0 0.0
  %2724 = vmatpush1.msra.mxu0 %v2674
  %2725 = vmatprep.subr.mxu0 0.0
  %2726 = vmatpush1.msra.mxu0 %v2675
  %2727 = vmatprep.subr.mxu0 0.0
  %2728 = vmatpush1.msra.mxu0 %v2676
  %2729 = vmatprep.subr.mxu0 0.0
  %2730 = vmatpush1.msra.mxu0 %v2677
  %2731 = vmatprep.subr.mxu0 0.0
  %2732 = vmatpush1.msra.mxu0 %v2678
  %2733 = vmatprep.subr.mxu0 0.0
  %2734 = vmatpush1.msra.mxu0 %v2679
  %2735 = vmatprep.subr.mxu0 0.0
  %2736 = vmatpush1.msra.mxu0 %v2680
  %2737 = vmatprep.subr.mxu0 0.0
  %2738 = vmatpush1.msra.mxu0 %v2681
  %2739 = vmatprep.subr.mxu0 0.0
  %2740 = vmatpush1.msra.mxu0 %v2682
  %2741 = vmatprep.subr.mxu0 0.0
  %2742 = vmatpush1.msra.mxu0 %v2683
  %2743 = vmatprep.subr.mxu0 0.0
  %2744 = vmatpush1.msra.mxu0 %v2684
  %2745 = vmatprep.subr.mxu0 0.0
  %2746 = vmatpush1.msra.mxu0 %v2685
  %2747 = vmatprep.subr.mxu0 0.0
  %2748 = vmatpush1.msra.mxu0 %v2686
  %2749 = vmatprep.subr.mxu0 0.0
  %2750 = vmatpush1.msra.mxu0 %v2687
  %2751 = vmatprep.subr.mxu0 0.0
  %2752 = vmatpush1.msra.mxu0 %v2688
  %2753 = vmatprep.subr.mxu0 0.0
  %2754 = vmatpush1.msra.mxu0 %v2689
  %2755 = vmatprep.subr.mxu0 0.0
  %2756 = vmatpush1.msra.mxu0 %v2690
  %2757 = vmatprep.subr.mxu0 0.0
  %2758 = vmatpush1.msra.mxu0 %v2691
  %2759 = vmatprep.subr.mxu0 0.0
  %2760 = vmatpush1.msra.mxu0 %v2692
  %2761 = vmatprep.subr.mxu0 0.0
  %2762 = vmatpush1.msra.mxu0 %v2693
  %2763 = vmatprep.subr.mxu0 0.0
  %2764 = vmatpush1.msra.mxu0 %v2694
  %2765 = vmatprep.subr.mxu0 0.0
  %2766 = vmatpush1.msra.mxu0 %v2695
  %2767 = vmatprep.mubr.f32.mxu0 %v2663
  %2768 = vmatmul.mubr.f32.gmra.mrb[0].mxu0 %v2662
  %v2769 = vpop.f32.mrb[0].mxu0
  %v2770 = vadd.f32 %v2701, %v2769
  %v2771 = vpop.f32.mrb[0].mxu0
  %2772 = vdwg.mxu0
  %vm2773 = vcmask 66560
  %2774 = vst.msk [vmem:[%s9] sm:$0x3] %vm2773, %v2770
  // Predicated region
  $region38: #{position_embedding_forward.10} parent=0 // pred_check
    _
  $region39: #{position_embedding_forward.10} parent=0 // pred_check_branch
    %2776 = sbr.rel (0) target = $region41
  $region40: #{position_embedding_forward.10} parent=0 // pred_region
    _
  $region41: #{position_embedding_forward.10} parent=0 // pred_fallthru
    _
  // Predicated region
  $region42: #{position_embedding_forward.10} parent=0 // pred_check
    _
  $region43: #{position_embedding_forward.10} parent=0 // pred_check_branch
    %2778 = sbr.rel (0) target = $region45
  $region44: #{position_embedding_forward.10} parent=0 // pred_region
    _
  $region45: #{position_embedding_forward.10} parent=0 // pred_fallthru
    _

</llo_original>
